<compile_context>
chip_gen: v7x
topology: tpu7x:2x2x1
jax: 0.10.0
libtpu: 0.0.40
codegen_flags: <defaults>
</compile_context>

<pallas_src>
import functools

import jax
import jax.numpy as jnp
import numpy as np
from jax.experimental import pallas as pl
from jax.experimental.pallas import tpu as pltpu

INPUT_SIZE = 128
HIDDEN = 64
NUM_LAYERS = 3
NUM_CLASSES = 20

assert INPUT_SIZE == 2 * HIDDEN  # lets every layer share the same (128,384) layout


# ----------------------------------------------------------------------------
# Fused Pallas kernel
# ----------------------------------------------------------------------------
def _fused_kernel(T, B,
                  x_ref, wih_ref, whh_ref, bgi_ref, bhn_ref, wfc_ref, bfc_ref,
                  out_ref,
                  seq_scr, gi_scr, hist_scr):
    """x_ref: (T*B, 128) bf16 time-major-flattened input (row t*B+b = x[b,t,:]).

    wih_ref: (3, 128, 384) bf16  input->gates, columns [r_f|r_b|z_f|z_b|n_f|n_b]
    whh_ref: (3, 128, 384) bf16  hidden->gates, block-diagonal per direction
    bgi_ref: (3, 1, 384)   f32   b_ih (+ b_hh folded in for r,z)
    bhn_ref: (3, 1, 128)   f32   b_hh for the n gate only
    wfc_ref: (128, 128)    bf16  FC weight, padded to 128 output lanes
    bfc_ref: (1, 128)      f32
    out_ref: (B, 128)      f32   sigmoid(FC(last)) padded to 128 lanes

    Scratch (f32): seq (T*B,128) layer input, gi (T*B,384) merged pre-acts,
                   hist (T*B,128) step-order hidden history.
    """
    H = HIDDEN
    H2 = 2 * HIDDEN      # 128
    G = 6 * HIDDEN       # 384

    # Lane masks (hoisted once). First 64 lanes of each 128-lane gate group /
    # of the 128-lane hidden state belong to the forward direction.
    gate_lanes = jax.lax.broadcasted_iota(jnp.int32, (B, G), 1)
    fwd_gate_mask = (gate_lanes & 127) < H                       # (B, 384)
    out_lanes = jax.lax.broadcasted_iota(jnp.int32, (B, H2), 1)
    fwd_out_mask = out_lanes < H                                 # (B, 128)

    unroll = True if T <= 16 else 8  # full unroll only for short sequences

    for layer in range(NUM_LAYERS):
        src_ref = x_ref if layer == 0 else seq_scr               # no initial copy

        # ---- hoisted input-to-hidden matmul: all timesteps, both directions ----
        gi_scr[...] = (
            jnp.dot(src_ref[...].astype(jnp.bfloat16), wih_ref[layer],
                    preferred_element_type=jnp.float32)
            + bgi_ref[layer]
        )                                                        # (T*B, 384) f32

        # ---- pre-merge fwd/bwd rows OFF the serial path (pairwise swap of the
        #      bwd gate columns between time s and time T-1-s).  After this,
        #      row-block s holds fwd cols of time s and bwd cols of time T-1-s.
        for s in range(T // 2):
            i_lo = s * B
            i_hi = (T - 1 - s) * B
            blk_lo = gi_scr[pl.ds(i_lo, B), :]
            blk_hi = gi_scr[pl.ds(i_hi, B), :]
            gi_scr[pl.ds(i_lo, B), :] = jnp.where(fwd_gate_mask, blk_lo, blk_hi)
            gi_scr[pl.ds(i_hi, B), :] = jnp.where(fwd_gate_mask, blk_hi, blk_lo)
        # (odd T: the middle block is already self-merged.)

        bhn_b = jnp.broadcast_to(bhn_ref[layer], (B, H2))        # hoisted broadcast

        def step(s, h, layer=layer, bhn_b=bhn_b):
            i = pl.multiple_of(s * B, B)
            gi = gi_scr[pl.ds(i, B), :]                          # (B, 384) single load
            gh = jnp.dot(h.astype(jnp.bfloat16), whh_ref[layer],
                         preferred_element_type=jnp.float32)     # (B, 384)

            r = jax.nn.sigmoid(gi[:, 0:H2] + gh[:, 0:H2])
            z = jax.nn.sigmoid(gi[:, H2:2 * H2] + gh[:, H2:2 * H2])
            n = jnp.tanh(gi[:, 2 * H2:3 * H2] + r * (gh[:, 2 * H2:3 * H2] + bhn_b))
            h_new = (1.0 - z) * n + z * h                        # (B, 128) f32

            # single lane-dense store, step order:
            #   lanes 0:64  = h_fwd(time s), lanes 64:128 = h_bwd(time T-1-s)
            hist_scr[pl.ds(i, B), :] = h_new
            return h_new

        jax.lax.fori_loop(0, T, step, jnp.zeros((B, H2), jnp.float32),
                          unroll=unroll)

        if layer < NUM_LAYERS - 1:
            # Layer output in true time order (vectorized, off the serial path):
            #   seq[t] = [ hist[t].fwd , hist[T-1-t].bwd ]
            for s in range(T // 2):
                i_lo = s * B
                i_hi = (T - 1 - s) * B
                a = hist_scr[pl.ds(i_lo, B), :]
                b = hist_scr[pl.ds(i_hi, B), :]
                seq_scr[pl.ds(i_lo, B), :] = jnp.where(fwd_out_mask, a, b)
                seq_scr[pl.ds(i_hi, B), :] = jnp.where(fwd_out_mask, b, a)
            if T % 2 == 1:
                i_m = (T // 2) * B
                seq_scr[pl.ds(i_m, B), :] = hist_scr[pl.ds(i_m, B), :]

    # Classifier on out[:, -1, :] = [h_fwd(T-1), h_bwd(T-1)]:
    #   fwd half lives in hist[T-1], bwd half in hist[0].
    last = jnp.where(fwd_out_mask,
                     hist_scr[pl.ds((T - 1) * B, B), :],
                     hist_scr[pl.ds(0, B), :])                   # (B, 128)
    out_ref[...] = jax.nn.sigmoid(
        jnp.dot(last.astype(jnp.bfloat16), wfc_ref[...],
                preferred_element_type=jnp.float32)
        + bfc_ref[...]
    )


# ----------------------------------------------------------------------------
# Wrapper
# ----------------------------------------------------------------------------
def fused_forward(packed, X):
    """X: (B, T, 128) batch-first, like the PyTorch module. Returns (B, 20).

    Throughput note (per review): the kernel is latency-bound on the serial
    recurrence at tiny B; pass the largest available batch (B up to ~128-256)
    in one call — latency is nearly flat in B, so throughput scales ~linearly.
    """
    B, T, D = X.shape
    assert D == INPUT_SIZE

    # time-major flatten: row t*B+b holds x[b, t, :]; bf16 for the MXU.
    x_flat = jnp.transpose(X.astype(jnp.bfloat16), (1, 0, 2)).reshape(T * B, D)

    kernel = functools.partial(_fused_kernel, T, B)
    vmem_spec = pl.BlockSpec(memory_space=pltpu.MemorySpace.VMEM)

    # Explicit VMEM budget (review item): scratch + weights + I/O, 2x + headroom.
    scratch_bytes = T * B * (2 * (2 * HIDDEN) * 4 + (6 * HIDDEN) * 4)
    weight_bytes = (2 * NUM_LAYERS * (2 * HIDDEN) * (6 * HIDDEN) * 2   # wih+whh bf16
                    + (2 * HIDDEN) * (2 * HIDDEN) * 2                  # wfc bf16
                    + NUM_LAYERS * (6 * HIDDEN + 2 * HIDDEN) * 4       # biases f32
                    + (2 * HIDDEN) * 4)
    io_bytes = T * B * INPUT_SIZE * 2 + B * (2 * HIDDEN) * 4
    vmem_limit = min(64 << 20,
                     2 * (scratch_bytes + weight_bytes + io_bytes) + (8 << 20))
    # TODO(synk): for long sequences, tile the time axis (chunked GI) instead of
    #             materializing the full (T*B,384) gi scratch.

    out_pad = pl.pallas_call(
        kernel,
        out_shape=jax.ShapeDtypeStruct((B, 2 * HIDDEN), jnp.float32),
        in_specs=[vmem_spec] * 7,
        out_specs=vmem_spec,
        scratch_shapes=[
            pltpu.VMEM((T * B, 2 * HIDDEN), jnp.float32),   # seq  (layer input)
            pltpu.VMEM((T * B, 6 * HIDDEN), jnp.float32),   # gi   (merged pre-acts)
            pltpu.VMEM((T * B, 2 * HIDDEN), jnp.float32),   # hist (step-order h)
        ],
        compiler_params=pltpu.CompilerParams(vmem_limit_bytes=vmem_limit),
    )(x_flat, packed["wih"], packed["whh"], packed["bgi"], packed["bhn"],
      packed["wfc"], packed["bfc"])
    return out_pad[:, :NUM_CLASSES]


baseline_rnn_2_forward = jax.jit(fused_forward)


# ----------------------------------------------------------------------------
# Parameters: PyTorch-layout init + packing into the fused kernel layout
# ----------------------------------------------------------------------------
def init_params(key):
    """PyTorch-style uniform(-1/sqrt(H), 1/sqrt(H)) init, PyTorch tensor layouts."""
    params = {"gru": []}
    k = 1.0 / float(np.sqrt(HIDDEN))

    def uni(key, shape, bound):
        return jax.random.uniform(key, shape, jnp.float32, -bound, bound)

    for layer in range(NUM_LAYERS):
        d_in = INPUT_SIZE if layer == 0 else 2 * HIDDEN
        dirs = []
        for _direction in range(2):  # forward, backward
            key, k1, k2, k3, k4 = jax.random.split(key, 5)
            dirs.append((uni(k1, (3 * HIDDEN, d_in), k),    # weight_ih (3H, D_in)
                         uni(k2, (3 * HIDDEN, HIDDEN), k),  # weight_hh (3H, H)
                         uni(k3, (3 * HIDDEN,), k),         # bias_ih
                         uni(k4, (3 * HIDDEN,), k)))        # bias_hh
        params["gru"].append(tuple(dirs))

    key, k1, k2 = jax.random.split(key, 3)
    kf = 1.0 / float(np.sqrt(2 * HIDDEN))
    params["fc"] = (uni(k1, (NUM_CLASSES, 2 * HIDDEN), kf),  # (20, 128)
                    uni(k2, (NUM_CLASSES,), kf))             # (20,)
    return params


def pack_params(raw):
    """Convert PyTorch-layout params into the fused kernel's packed layout."""
    H = HIDDEN
    wih_l, whh_l, bgi_l, bhn_l = [], [], [], []

    def gsplit(m):  # split (3H, ...) into r, z, n blocks (PyTorch row order)
        return m[0:H], m[H:2 * H], m[2 * H:3 * H]

    for layer in range(NUM_LAYERS):
        p_f, p_b = raw["gru"][layer]
        w_ih_f, w_hh_f, b_ih_f, b_hh_f = p_f
        w_ih_b, w_hh_b, b_ih_b, b_hh_b = p_b

        ir_f, iz_f, in_f = gsplit(w_ih_f)
        ir_b, iz_b, in_b = gsplit(w_ih_b)
        hr_f, hz_f, hn_f = gsplit(w_hh_f)
        hr_b, hz_b, hn_b = gsplit(w_hh_b)
        bir_f, biz_f, bin_f = gsplit(b_ih_f)
        bir_b, biz_b, bin_b = gsplit(b_ih_b)
        bhr_f, bhz_f, bhn_f = gsplit(b_hh_f)
        bhr_b, bhz_b, bhn_b = gsplit(b_hh_b)

        # input->gates: columns [r_f|r_b|z_f|z_b|n_f|n_b]
        w_ih_comb = jnp.concatenate(
            [ir_f.T, ir_b.T, iz_f.T, iz_b.T, in_f.T, in_b.T], axis=1)  # (128, 384)

        # hidden->gates: block-diagonal per direction (rows 0:64 = h_fwd)
        zero = jnp.zeros((H, H), jnp.float32)
        row_f = jnp.concatenate([hr_f.T, zero, hz_f.T, zero, hn_f.T, zero], axis=1)
        row_b = jnp.concatenate([zero, hr_b.T, zero, hz_b.T, zero, hn_b.T], axis=1)
        w_hh_comb = jnp.concatenate([row_f, row_b], axis=0)            # (128, 384)

        # b_ih for all gates, with b_hh pre-folded for r and z (not n).
        b_gi = jnp.concatenate(
            [bir_f + bhr_f, bir_b + bhr_b,
             biz_f + bhz_f, biz_b + bhz_b,
             bin_f, bin_b])                                            # (384,)
        b_hn = jnp.concatenate([bhn_f, bhn_b])                         # (128,)

        wih_l.append(w_ih_comb.astype(jnp.bfloat16))
        whh_l.append(w_hh_comb.astype(jnp.bfloat16))
        bgi_l.append(b_gi.reshape(1, 6 * H))
        bhn_l.append(b_hn.reshape(1, 2 * H))

    w_fc, b_fc = raw["fc"]
    wfc_pad = jnp.zeros((2 * H, 2 * H), jnp.float32).at[:, :NUM_CLASSES].set(w_fc.T)
    bfc_pad = jnp.zeros((1, 2 * H), jnp.float32).at[0, :NUM_CLASSES].set(b_fc)

    return {
        "wih": jnp.stack(wih_l),                 # (3, 128, 384) bf16
        "whh": jnp.stack(whh_l),                 # (3, 128, 384) bf16
        "bgi": jnp.stack(bgi_l),                 # (3, 1, 384)   f32
        "bhn": jnp.stack(bhn_l),                 # (3, 1, 128)   f32
        "wfc": wfc_pad.astype(jnp.bfloat16),     # (128, 128)    bf16
        "bfc": bfc_pad,                          # (1, 128)      f32
    }


# ----------------------------------------------------------------------------
# Pure-JAX reference (PyTorch eval-mode semantics, f32) for correctness check
# ----------------------------------------------------------------------------
def reference_forward(raw, X):
    x = jnp.transpose(X.astype(jnp.float32), (1, 0, 2))   # (T, B, D)
    T = x.shape[0]
    H = HIDDEN
    for layer in range(NUM_LAYERS):
        outs = []
        for direction in range(2):
            w_ih, w_hh, b_ih, b_hh = raw["gru"][layer][direction]
            seq = x if direction == 0 else x[::-1]
            h = jnp.zeros((x.shape[1], H), jnp.float32)
            hs = []
            for t in range(T):
                gi = seq[t] @ w_ih.T + b_ih
                gh = h @ w_hh.T + b_hh
                r = jax.nn.sigmoid(gi[:, :H] + gh[:, :H])
                z = jax.nn.sigmoid(gi[:, H:2 * H] + gh[:, H:2 * H])
                n = jnp.tanh(gi[:, 2 * H:] + r * gh[:, 2 * H:])
                h = (1.0 - z) * n + z * h
                hs.append(h)
            hs = jnp.stack(hs)
            if direction == 1:
                hs = hs[::-1]
            outs.append(hs)
        x = jnp.concatenate(outs, axis=-1)                 # (T, B, 2H)
    w_fc, b_fc = raw["fc"]
    return jax.nn.sigmoid(x[-1] @ w_fc.T + b_fc)           # (B, 20)


# ----------------------------------------------------------------------------
if __name__ == "__main__":
    key = jax.random.PRNGKey(0)
    key, pkey, xkey = jax.random.split(key, 3)

    B, T = 8, 8  # B multiple of 8 keeps sublane alignment
    raw = init_params(pkey)
    packed = pack_params(raw)
    X = jax.random.normal(xkey, (B, T, INPUT_SIZE), jnp.float32)

    out = baseline_rnn_2_forward(packed, X)
    jax.block_until_ready(out)
    assert out.shape == (B, NUM_CLASSES)

    ref = reference_forward(raw, X)
    # atol=2e-2 absorbs the bf16 matmul-operand quantization (measured error is
    # well below this; post-sigmoid outputs live in [0,1]).
    np.testing.assert_allclose(np.asarray(out), np.asarray(ref), atol=2e-2, rtol=0)

    print("KERNEL_OK")
</pallas_src>

<mosaic_0001>
module attributes {stable_mosaic.version = 11 : i64} {
  func.func @_fused_kernel(%arg0: memref<64x128xbf16, #tpu.memory_space<vmem>>, %arg1: memref<3x128x384xbf16, #tpu.memory_space<vmem>>, %arg2: memref<3x128x384xbf16, #tpu.memory_space<vmem>>, %arg3: memref<3x1x384xf32, #tpu.memory_space<vmem>>, %arg4: memref<3x1x128xf32, #tpu.memory_space<vmem>>, %arg5: memref<128x128xbf16, #tpu.memory_space<vmem>>, %arg6: memref<1x128xf32, #tpu.memory_space<vmem>>, %arg7: memref<8x128xf32, #tpu.memory_space<vmem>>, %arg8: memref<64x128xf32, #tpu.memory_space<vmem>>, %arg9: memref<64x384xf32, #tpu.memory_space<vmem>>, %arg10: memref<64x128xf32, #tpu.memory_space<vmem>>) attributes {dimension_semantics = [], scalar_prefetch = 0 : i64, scratch_operands = 3 : i64, tpu.core_type = #tpu.core_type<tc>} {
    %0 = tpu.iota {dimensions = array<i32: 1>} : vector<8x384xi32>
    %c127_i32 = arith.constant 127 : i32
    %1 = vector.broadcast %c127_i32 : i32 to vector<8x384xi32>
    %2 = arith.andi %0, %1 : vector<8x384xi32>
    %c64_i32 = arith.constant 64 : i32
    %3 = vector.broadcast %c64_i32 : i32 to vector<8x384xi32>
    %4 = arith.cmpi slt, %2, %3 : vector<8x384xi32>
    %5 = tpu.iota {dimensions = array<i32: 1>} : vector<8x128xi32>
    %c64_i32_0 = arith.constant 64 : i32
    %6 = vector.broadcast %c64_i32_0 : i32 to vector<8x128xi32>
    %7 = arith.cmpi slt, %5, %6 : vector<8x128xi32>
    %c0 = arith.constant 0 : index
    %c0_1 = arith.constant 0 : index
    %8 = vector.load %arg0[%c0, %c0_1] : memref<64x128xbf16, #tpu.memory_space<vmem>>, vector<64x128xbf16>
    %c0_2 = arith.constant 0 : index
    %c0_3 = arith.constant 0 : index
    %c0_4 = arith.constant 0 : index
    %9 = vector.load %arg1[%c0_2, %c0_3, %c0_4] : memref<3x128x384xbf16, #tpu.memory_space<vmem>>, vector<1x128x384xbf16>
    %10 = vector.shape_cast %9 : vector<1x128x384xbf16> to vector<128x384xbf16>
    %cst = arith.constant dense<0.000000e+00> : vector<64x384xf32>
    %11 = tpu.matmul %8, %10, %cst {dimension_numbers = #tpu.dot_dimension_numbers<[1], [0], [0], [1], [0, 0, 1, 1], [], []>} : vector<64x128xbf16>, vector<128x384xbf16>, vector<64x384xf32> -> vector<64x384xf32>
    %c0_5 = arith.constant 0 : index
    %c0_6 = arith.constant 0 : index
    %c0_7 = arith.constant 0 : index
    %12 = vector.load %arg3[%c0_5, %c0_6, %c0_7] : memref<3x1x384xf32, #tpu.memory_space<vmem>>, vector<1x1x384xf32>
    %13 = vector.shape_cast %12 : vector<1x1x384xf32> to vector<1x384xf32>
    %14 = vector.broadcast %13 : vector<1x384xf32> to vector<64x384xf32>
    %15 = arith.addf %11, %14 : vector<64x384xf32>
    %c0_8 = arith.constant 0 : index
    %c0_9 = arith.constant 0 : index
    %16 = vector.load %arg9[%c0_8, %c0_9] : memref<64x384xf32, #tpu.memory_space<vmem>>, vector<64x384xf32>
    tpu.vector_store %arg9[%c0_8, %c0_9], %15 {strides = array<i32>} : memref<64x384xf32, #tpu.memory_space<vmem>>, vector<64x384xf32>,
    %c0_10 = arith.constant 0 : index
    %c0_11 = arith.constant 0 : index
    %17 = vector.load %arg9[%c0_10, %c0_11] : memref<64x384xf32, #tpu.memory_space<vmem>>, vector<8x384xf32>
    %c56 = arith.constant 56 : index
    %c0_12 = arith.constant 0 : index
    %18 = vector.load %arg9[%c56, %c0_12] : memref<64x384xf32, #tpu.memory_space<vmem>>, vector<8x384xf32>
    %19 = arith.select %4, %17, %18 : vector<8x384xi1>, vector<8x384xf32>
    %c0_13 = arith.constant 0 : index
    %c0_14 = arith.constant 0 : index
    %20 = vector.load %arg9[%c0_13, %c0_14] : memref<64x384xf32, #tpu.memory_space<vmem>>, vector<8x384xf32>
    tpu.vector_store %arg9[%c0_13, %c0_14], %19 {strides = array<i32>} : memref<64x384xf32, #tpu.memory_space<vmem>>, vector<8x384xf32>,
    %21 = arith.select %4, %18, %17 : vector<8x384xi1>, vector<8x384xf32>
    %c56_15 = arith.constant 56 : index
    %c0_16 = arith.constant 0 : index
    %22 = vector.load %arg9[%c56_15, %c0_16] : memref<64x384xf32, #tpu.memory_space<vmem>>, vector<8x384xf32>
    tpu.vector_store %arg9[%c56_15, %c0_16], %21 {strides = array<i32>} : memref<64x384xf32, #tpu.memory_space<vmem>>, vector<8x384xf32>,
    %c8 = arith.constant 8 : index
    %c0_17 = arith.constant 0 : index
    %23 = vector.load %arg9[%c8, %c0_17] : memref<64x384xf32, #tpu.memory_space<vmem>>, vector<8x384xf32>
    %c48 = arith.constant 48 : index
    %c0_18 = arith.constant 0 : index
    %24 = vector.load %arg9[%c48, %c0_18] : memref<64x384xf32, #tpu.memory_space<vmem>>, vector<8x384xf32>
    %25 = arith.select %4, %23, %24 : vector<8x384xi1>, vector<8x384xf32>
    %c8_19 = arith.constant 8 : index
    %c0_20 = arith.constant 0 : index
    %26 = vector.load %arg9[%c8_19, %c0_20] : memref<64x384xf32, #tpu.memory_space<vmem>>, vector<8x384xf32>
    tpu.vector_store %arg9[%c8_19, %c0_20], %25 {strides = array<i32>} : memref<64x384xf32, #tpu.memory_space<vmem>>, vector<8x384xf32>,
    %27 = arith.select %4, %24, %23 : vector<8x384xi1>, vector<8x384xf32>
    %c48_21 = arith.constant 48 : index
    %c0_22 = arith.constant 0 : index
    %28 = vector.load %arg9[%c48_21, %c0_22] : memref<64x384xf32, #tpu.memory_space<vmem>>, vector<8x384xf32>
    tpu.vector_store %arg9[%c48_21, %c0_22], %27 {strides = array<i32>} : memref<64x384xf32, #tpu.memory_space<vmem>>, vector<8x384xf32>,
    %c16 = arith.constant 16 : index
    %c0_23 = arith.constant 0 : index
    %29 = vector.load %arg9[%c16, %c0_23] : memref<64x384xf32, #tpu.memory_space<vmem>>, vector<8x384xf32>
    %c40 = arith.constant 40 : index
    %c0_24 = arith.constant 0 : index
    %30 = vector.load %arg9[%c40, %c0_24] : memref<64x384xf32, #tpu.memory_space<vmem>>, vector<8x384xf32>
    %31 = arith.select %4, %29, %30 : vector<8x384xi1>, vector<8x384xf32>
    %c16_25 = arith.constant 16 : index
    %c0_26 = arith.constant 0 : index
    %32 = vector.load %arg9[%c16_25, %c0_26] : memref<64x384xf32, #tpu.memory_space<vmem>>, vector<8x384xf32>
    tpu.vector_store %arg9[%c16_25, %c0_26], %31 {strides = array<i32>} : memref<64x384xf32, #tpu.memory_space<vmem>>, vector<8x384xf32>,
    %33 = arith.select %4, %30, %29 : vector<8x384xi1>, vector<8x384xf32>
    %c40_27 = arith.constant 40 : index
    %c0_28 = arith.constant 0 : index
    %34 = vector.load %arg9[%c40_27, %c0_28] : memref<64x384xf32, #tpu.memory_space<vmem>>, vector<8x384xf32>
    tpu.vector_store %arg9[%c40_27, %c0_28], %33 {strides = array<i32>} : memref<64x384xf32, #tpu.memory_space<vmem>>, vector<8x384xf32>,
    %c24 = arith.constant 24 : index
    %c0_29 = arith.constant 0 : index
    %35 = vector.load %arg9[%c24, %c0_29] : memref<64x384xf32, #tpu.memory_space<vmem>>, vector<8x384xf32>
    %c32 = arith.constant 32 : index
    %c0_30 = arith.constant 0 : index
    %36 = vector.load %arg9[%c32, %c0_30] : memref<64x384xf32, #tpu.memory_space<vmem>>, vector<8x384xf32>
    %37 = arith.select %4, %35, %36 : vector<8x384xi1>, vector<8x384xf32>
    %c24_31 = arith.constant 24 : index
    %c0_32 = arith.constant 0 : index
    %38 = vector.load %arg9[%c24_31, %c0_32] : memref<64x384xf32, #tpu.memory_space<vmem>>, vector<8x384xf32>
    tpu.vector_store %arg9[%c24_31, %c0_32], %37 {strides = array<i32>} : memref<64x384xf32, #tpu.memory_space<vmem>>, vector<8x384xf32>,
    %39 = arith.select %4, %36, %35 : vector<8x384xi1>, vector<8x384xf32>
    %c32_33 = arith.constant 32 : index
    %c0_34 = arith.constant 0 : index
    %40 = vector.load %arg9[%c32_33, %c0_34] : memref<64x384xf32, #tpu.memory_space<vmem>>, vector<8x384xf32>
    tpu.vector_store %arg9[%c32_33, %c0_34], %39 {strides = array<i32>} : memref<64x384xf32, #tpu.memory_space<vmem>>, vector<8x384xf32>,
    %c0_35 = arith.constant 0 : index
    %c0_36 = arith.constant 0 : index
    %c0_37 = arith.constant 0 : index
    %41 = vector.load %arg4[%c0_35, %c0_36, %c0_37] : memref<3x1x128xf32, #tpu.memory_space<vmem>>, vector<1x1x128xf32>
    %42 = vector.shape_cast %41 : vector<1x1x128xf32> to vector<1x128xf32>
    %43 = vector.shape_cast %42 : vector<1x128xf32> to vector<1x128xf32>
    %44 = vector.broadcast %43 : vector<1x128xf32> to vector<8x128xf32>
    %cst_38 = arith.constant 0.000000e+00 : f32
    %45 = vector.broadcast %cst_38 : f32 to vector<8x128xf32>
    %c0_i32 = arith.constant 0 : i32
    %c8_i32 = arith.constant 8 : i32
    %46 = arith.muli %c0_i32, %c8_i32 : i32
    %47 = tpu.assume_multiple %46, 8 : i32
    %48 = arith.index_cast %47 : i32 to index
    %c0_39 = arith.constant 0 : index
    %49 = vector.load %arg9[%48, %c0_39] : memref<64x384xf32, #tpu.memory_space<vmem>>, vector<8x384xf32>
    %50 = arith.truncf %45 : vector<8x128xf32> to vector<8x128xbf16>
    %c0_40 = arith.constant 0 : index
    %c0_41 = arith.constant 0 : index
    %c0_42 = arith.constant 0 : index
    %51 = vector.load %arg2[%c0_40, %c0_41, %c0_42] : memref<3x128x384xbf16, #tpu.memory_space<vmem>>, vector<1x128x384xbf16>
    %52 = vector.shape_cast %51 : vector<1x128x384xbf16> to vector<128x384xbf16>
    %cst_43 = arith.constant dense<0.000000e+00> : vector<8x384xf32>
    %53 = tpu.matmul %50, %52, %cst_43 {dimension_numbers = #tpu.dot_dimension_numbers<[1], [0], [0], [1], [0, 0, 1, 1], [], []>} : vector<8x128xbf16>, vector<128x384xbf16>, vector<8x384xf32> -> vector<8x384xf32>
    %54 = vector.extract_strided_slice %49 {offsets = [0, 0], sizes = [8, 128], strides = [1, 1]} : vector<8x384xf32> to vector<8x128xf32>
    %55 = vector.extract_strided_slice %53 {offsets = [0, 0], sizes = [8, 128], strides = [1, 1]} : vector<8x384xf32> to vector<8x128xf32>
    %56 = arith.addf %54, %55 : vector<8x128xf32>
    %57 = arith.negf %56 : vector<8x128xf32>
    %58 = math.exp %57 : vector<8x128xf32>
    %cst_44 = arith.constant 1.000000e+00 : f32
    %59 = vector.broadcast %cst_44 : f32 to vector<8x128xf32>
    %60 = arith.addf %59, %58 : vector<8x128xf32>
    %61 = arith.divf %59, %60 : vector<8x128xf32>
    %62 = vector.extract_strided_slice %49 {offsets = [0, 128], sizes = [8, 128], strides = [1, 1]} : vector<8x384xf32> to vector<8x128xf32>
    %63 = vector.extract_strided_slice %53 {offsets = [0, 128], sizes = [8, 128], strides = [1, 1]} : vector<8x384xf32> to vector<8x128xf32>
    %64 = arith.addf %62, %63 : vector<8x128xf32>
    %65 = arith.negf %64 : vector<8x128xf32>
    %66 = math.exp %65 : vector<8x128xf32>
    %cst_45 = arith.constant 1.000000e+00 : f32
    %67 = vector.broadcast %cst_45 : f32 to vector<8x128xf32>
    %68 = arith.addf %67, %66 : vector<8x128xf32>
    %69 = arith.divf %67, %68 : vector<8x128xf32>
    %70 = vector.extract_strided_slice %49 {offsets = [0, 256], sizes = [8, 128], strides = [1, 1]} : vector<8x384xf32> to vector<8x128xf32>
    %71 = vector.extract_strided_slice %53 {offsets = [0, 256], sizes = [8, 128], strides = [1, 1]} : vector<8x384xf32> to vector<8x128xf32>
    %72 = arith.addf %71, %44 : vector<8x128xf32>
    %73 = arith.mulf %61, %72 : vector<8x128xf32>
    %74 = arith.addf %70, %73 : vector<8x128xf32>
    %75 = math.tanh %74 : vector<8x128xf32>
    %cst_46 = arith.constant 1.000000e+00 : f32
    %76 = vector.broadcast %cst_46 : f32 to vector<8x128xf32>
    %77 = arith.subf %76, %69 : vector<8x128xf32>
    %78 = arith.mulf %77, %75 : vector<8x128xf32>
    %79 = arith.mulf %69, %45 : vector<8x128xf32>
    %80 = arith.addf %78, %79 : vector<8x128xf32>
    %81 = arith.index_cast %47 : i32 to index
    %c0_47 = arith.constant 0 : index
    %82 = vector.load %arg10[%81, %c0_47] : memref<64x128xf32, #tpu.memory_space<vmem>>, vector<8x128xf32>
    tpu.vector_store %arg10[%81, %c0_47], %80 {strides = array<i32>} : memref<64x128xf32, #tpu.memory_space<vmem>>, vector<8x128xf32>,
    %c1_i32 = arith.constant 1 : i32
    %c8_i32_48 = arith.constant 8 : i32
    %83 = arith.muli %c1_i32, %c8_i32_48 : i32
    %84 = tpu.assume_multiple %83, 8 : i32
    %85 = arith.index_cast %84 : i32 to index
    %c0_49 = arith.constant 0 : index
    %86 = vector.load %arg9[%85, %c0_49] : memref<64x384xf32, #tpu.memory_space<vmem>>, vector<8x384xf32>
    %87 = arith.truncf %80 : vector<8x128xf32> to vector<8x128xbf16>
    %c0_50 = arith.constant 0 : index
    %c0_51 = arith.constant 0 : index
    %c0_52 = arith.constant 0 : index
    %88 = vector.load %arg2[%c0_50, %c0_51, %c0_52] : memref<3x128x384xbf16, #tpu.memory_space<vmem>>, vector<1x128x384xbf16>
    %89 = vector.shape_cast %88 : vector<1x128x384xbf16> to vector<128x384xbf16>
    %cst_53 = arith.constant dense<0.000000e+00> : vector<8x384xf32>
    %90 = tpu.matmul %87, %89, %cst_53 {dimension_numbers = #tpu.dot_dimension_numbers<[1], [0], [0], [1], [0, 0, 1, 1], [], []>} : vector<8x128xbf16>, vector<128x384xbf16>, vector<8x384xf32> -> vector<8x384xf32>
    %91 = vector.extract_strided_slice %86 {offsets = [0, 0], sizes = [8, 128], strides = [1, 1]} : vector<8x384xf32> to vector<8x128xf32>
    %92 = vector.extract_strided_slice %90 {offsets = [0, 0], sizes = [8, 128], strides = [1, 1]} : vector<8x384xf32> to vector<8x128xf32>
    %93 = arith.addf %91, %92 : vector<8x128xf32>
    %94 = arith.negf %93 : vector<8x128xf32>
    %95 = math.exp %94 : vector<8x128xf32>
    %cst_54 = arith.constant 1.000000e+00 : f32
    %96 = vector.broadcast %cst_54 : f32 to vector<8x128xf32>
    %97 = arith.addf %96, %95 : vector<8x128xf32>
    %98 = arith.divf %96, %97 : vector<8x128xf32>
    %99 = vector.extract_strided_slice %86 {offsets = [0, 128], sizes = [8, 128], strides = [1, 1]} : vector<8x384xf32> to vector<8x128xf32>
    %100 = vector.extract_strided_slice %90 {offsets = [0, 128], sizes = [8, 128], strides = [1, 1]} : vector<8x384xf32> to vector<8x128xf32>
    %101 = arith.addf %99, %100 : vector<8x128xf32>
    %102 = arith.negf %101 : vector<8x128xf32>
    %103 = math.exp %102 : vector<8x128xf32>
    %cst_55 = arith.constant 1.000000e+00 : f32
    %104 = vector.broadcast %cst_55 : f32 to vector<8x128xf32>
    %105 = arith.addf %104, %103 : vector<8x128xf32>
    %106 = arith.divf %104, %105 : vector<8x128xf32>
    %107 = vector.extract_strided_slice %86 {offsets = [0, 256], sizes = [8, 128], strides = [1, 1]} : vector<8x384xf32> to vector<8x128xf32>
    %108 = vector.extract_strided_slice %90 {offsets = [0, 256], sizes = [8, 128], strides = [1, 1]} : vector<8x384xf32> to vector<8x128xf32>
    %109 = arith.addf %108, %44 : vector<8x128xf32>
    %110 = arith.mulf %98, %109 : vector<8x128xf32>
    %111 = arith.addf %107, %110 : vector<8x128xf32>
    %112 = math.tanh %111 : vector<8x128xf32>
    %cst_56 = arith.constant 1.000000e+00 : f32
    %113 = vector.broadcast %cst_56 : f32 to vector<8x128xf32>
    %114 = arith.subf %113, %106 : vector<8x128xf32>
    %115 = arith.mulf %114, %112 : vector<8x128xf32>
    %116 = arith.mulf %106, %80 : vector<8x128xf32>
    %117 = arith.addf %115, %116 : vector<8x128xf32>
    %118 = arith.index_cast %84 : i32 to index
    %c0_57 = arith.constant 0 : index
    %119 = vector.load %arg10[%118, %c0_57] : memref<64x128xf32, #tpu.memory_space<vmem>>, vector<8x128xf32>
    tpu.vector_store %arg10[%118, %c0_57], %117 {strides = array<i32>} : memref<64x128xf32, #tpu.memory_space<vmem>>, vector<8x128xf32>,
    %c2_i32 = arith.constant 2 : i32
    %c8_i32_58 = arith.constant 8 : i32
    %120 = arith.muli %c2_i32, %c8_i32_58 : i32
    %121 = tpu.assume_multiple %120, 8 : i32
    %122 = arith.index_cast %121 : i32 to index
    %c0_59 = arith.constant 0 : index
    %123 = vector.load %arg9[%122, %c0_59] : memref<64x384xf32, #tpu.memory_space<vmem>>, vector<8x384xf32>
    %124 = arith.truncf %117 : vector<8x128xf32> to vector<8x128xbf16>
    %c0_60 = arith.constant 0 : index
    %c0_61 = arith.constant 0 : index
    %c0_62 = arith.constant 0 : index
    %125 = vector.load %arg2[%c0_60, %c0_61, %c0_62] : memref<3x128x384xbf16, #tpu.memory_space<vmem>>, vector<1x128x384xbf16>
    %126 = vector.shape_cast %125 : vector<1x128x384xbf16> to vector<128x384xbf16>
    %cst_63 = arith.constant dense<0.000000e+00> : vector<8x384xf32>
    %127 = tpu.matmul %124, %126, %cst_63 {dimension_numbers = #tpu.dot_dimension_numbers<[1], [0], [0], [1], [0, 0, 1, 1], [], []>} : vector<8x128xbf16>, vector<128x384xbf16>, vector<8x384xf32> -> vector<8x384xf32>
    %128 = vector.extract_strided_slice %123 {offsets = [0, 0], sizes = [8, 128], strides = [1, 1]} : vector<8x384xf32> to vector<8x128xf32>
    %129 = vector.extract_strided_slice %127 {offsets = [0, 0], sizes = [8, 128], strides = [1, 1]} : vector<8x384xf32> to vector<8x128xf32>
    %130 = arith.addf %128, %129 : vector<8x128xf32>
    %131 = arith.negf %130 : vector<8x128xf32>
    %132 = math.exp %131 : vector<8x128xf32>
    %cst_64 = arith.constant 1.000000e+00 : f32
    %133 = vector.broadcast %cst_64 : f32 to vector<8x128xf32>
    %134 = arith.addf %133, %132 : vector<8x128xf32>
    %135 = arith.divf %133, %134 : vector<8x128xf32>
    %136 = vector.extract_strided_slice %123 {offsets = [0, 128], sizes = [8, 128], strides = [1, 1]} : vector<8x384xf32> to vector<8x128xf32>
    %137 = vector.extract_strided_slice %127 {offsets = [0, 128], sizes = [8, 128], strides = [1, 1]} : vector<8x384xf32> to vector<8x128xf32>
    %138 = arith.addf %136, %137 : vector<8x128xf32>
    %139 = arith.negf %138 : vector<8x128xf32>
    %140 = math.exp %139 : vector<8x128xf32>
    %cst_65 = arith.constant 1.000000e+00 : f32
    %141 = vector.broadcast %cst_65 : f32 to vector<8x128xf32>
    %142 = arith.addf %141, %140 : vector<8x128xf32>
    %143 = arith.divf %141, %142 : vector<8x128xf32>
    %144 = vector.extract_strided_slice %123 {offsets = [0, 256], sizes = [8, 128], strides = [1, 1]} : vector<8x384xf32> to vector<8x128xf32>
    %145 = vector.extract_strided_slice %127 {offsets = [0, 256], sizes = [8, 128], strides = [1, 1]} : vector<8x384xf32> to vector<8x128xf32>
    %146 = arith.addf %145, %44 : vector<8x128xf32>
    %147 = arith.mulf %135, %146 : vector<8x128xf32>
    %148 = arith.addf %144, %147 : vector<8x128xf32>
    %149 = math.tanh %148 : vector<8x128xf32>
    %cst_66 = arith.constant 1.000000e+00 : f32
    %150 = vector.broadcast %cst_66 : f32 to vector<8x128xf32>
    %151 = arith.subf %150, %143 : vector<8x128xf32>
    %152 = arith.mulf %151, %149 : vector<8x128xf32>
    %153 = arith.mulf %143, %117 : vector<8x128xf32>
    %154 = arith.addf %152, %153 : vector<8x128xf32>
    %155 = arith.index_cast %121 : i32 to index
    %c0_67 = arith.constant 0 : index
    %156 = vector.load %arg10[%155, %c0_67] : memref<64x128xf32, #tpu.memory_space<vmem>>, vector<8x128xf32>
    tpu.vector_store %arg10[%155, %c0_67], %154 {strides = array<i32>} : memref<64x128xf32, #tpu.memory_space<vmem>>, vector<8x128xf32>,
    %c3_i32 = arith.constant 3 : i32
    %c8_i32_68 = arith.constant 8 : i32
    %157 = arith.muli %c3_i32, %c8_i32_68 : i32
    %158 = tpu.assume_multiple %157, 8 : i32
    %159 = arith.index_cast %158 : i32 to index
    %c0_69 = arith.constant 0 : index
    %160 = vector.load %arg9[%159, %c0_69] : memref<64x384xf32, #tpu.memory_space<vmem>>, vector<8x384xf32>
    %161 = arith.truncf %154 : vector<8x128xf32> to vector<8x128xbf16>
    %c0_70 = arith.constant 0 : index
    %c0_71 = arith.constant 0 : index
    %c0_72 = arith.constant 0 : index
    %162 = vector.load %arg2[%c0_70, %c0_71, %c0_72] : memref<3x128x384xbf16, #tpu.memory_space<vmem>>, vector<1x128x384xbf16>
    %163 = vector.shape_cast %162 : vector<1x128x384xbf16> to vector<128x384xbf16>
    %cst_73 = arith.constant dense<0.000000e+00> : vector<8x384xf32>
    %164 = tpu.matmul %161, %163, %cst_73 {dimension_numbers = #tpu.dot_dimension_numbers<[1], [0], [0], [1], [0, 0, 1, 1], [], []>} : vector<8x128xbf16>, vector<128x384xbf16>, vector<8x384xf32> -> vector<8x384xf32>
    %165 = vector.extract_strided_slice %160 {offsets = [0, 0], sizes = [8, 128], strides = [1, 1]} : vector<8x384xf32> to vector<8x128xf32>
    %166 = vector.extract_strided_slice %164 {offsets = [0, 0], sizes = [8, 128], strides = [1, 1]} : vector<8x384xf32> to vector<8x128xf32>
    %167 = arith.addf %165, %166 : vector<8x128xf32>
    %168 = arith.negf %167 : vector<8x128xf32>
    %169 = math.exp %168 : vector<8x128xf32>
    %cst_74 = arith.constant 1.000000e+00 : f32
    %170 = vector.broadcast %cst_74 : f32 to vector<8x128xf32>
    %171 = arith.addf %170, %169 : vector<8x128xf32>
    %172 = arith.divf %170, %171 : vector<8x128xf32>
    %173 = vector.extract_strided_slice %160 {offsets = [0, 128], sizes = [8, 128], strides = [1, 1]} : vector<8x384xf32> to vector<8x128xf32>
    %174 = vector.extract_strided_slice %164 {offsets = [0, 128], sizes = [8, 128], strides = [1, 1]} : vector<8x384xf32> to vector<8x128xf32>
    %175 = arith.addf %173, %174 : vector<8x128xf32>
    %176 = arith.negf %175 : vector<8x128xf32>
    %177 = math.exp %176 : vector<8x128xf32>
    %cst_75 = arith.constant 1.000000e+00 : f32
    %178 = vector.broadcast %cst_75 : f32 to vector<8x128xf32>
    %179 = arith.addf %178, %177 : vector<8x128xf32>
    %180 = arith.divf %178, %179 : vector<8x128xf32>
    %181 = vector.extract_strided_slice %160 {offsets = [0, 256], sizes = [8, 128], strides = [1, 1]} : vector<8x384xf32> to vector<8x128xf32>
    %182 = vector.extract_strided_slice %164 {offsets = [0, 256], sizes = [8, 128], strides = [1, 1]} : vector<8x384xf32> to vector<8x128xf32>
    %183 = arith.addf %182, %44 : vector<8x128xf32>
    %184 = arith.mulf %172, %183 : vector<8x128xf32>
    %185 = arith.addf %181, %184 : vector<8x128xf32>
    %186 = math.tanh %185 : vector<8x128xf32>
    %cst_76 = arith.constant 1.000000e+00 : f32
    %187 = vector.broadcast %cst_76 : f32 to vector<8x128xf32>
    %188 = arith.subf %187, %180 : vector<8x128xf32>
    %189 = arith.mulf %188, %186 : vector<8x128xf32>
    %190 = arith.mulf %180, %154 : vector<8x128xf32>
    %191 = arith.addf %189, %190 : vector<8x128xf32>
    %192 = arith.index_cast %158 : i32 to index
    %c0_77 = arith.constant 0 : index
    %193 = vector.load %arg10[%192, %c0_77] : memref<64x128xf32, #tpu.memory_space<vmem>>, vector<8x128xf32>
    tpu.vector_store %arg10[%192, %c0_77], %191 {strides = array<i32>} : memref<64x128xf32, #tpu.memory_space<vmem>>, vector<8x128xf32>,
    %c4_i32 = arith.constant 4 : i32
    %c8_i32_78 = arith.constant 8 : i32
    %194 = arith.muli %c4_i32, %c8_i32_78 : i32
    %195 = tpu.assume_multiple %194, 8 : i32
    %196 = arith.index_cast %195 : i32 to index
    %c0_79 = arith.constant 0 : index
    %197 = vector.load %arg9[%196, %c0_79] : memref<64x384xf32, #tpu.memory_space<vmem>>, vector<8x384xf32>
    %198 = arith.truncf %191 : vector<8x128xf32> to vector<8x128xbf16>
    %c0_80 = arith.constant 0 : index
    %c0_81 = arith.constant 0 : index
    %c0_82 = arith.constant 0 : index
    %199 = vector.load %arg2[%c0_80, %c0_81, %c0_82] : memref<3x128x384xbf16, #tpu.memory_space<vmem>>, vector<1x128x384xbf16>
    %200 = vector.shape_cast %199 : vector<1x128x384xbf16> to vector<128x384xbf16>
    %cst_83 = arith.constant dense<0.000000e+00> : vector<8x384xf32>
    %201 = tpu.matmul %198, %200, %cst_83 {dimension_numbers = #tpu.dot_dimension_numbers<[1], [0], [0], [1], [0, 0, 1, 1], [], []>} : vector<8x128xbf16>, vector<128x384xbf16>, vector<8x384xf32> -> vector<8x384xf32>
    %202 = vector.extract_strided_slice %197 {offsets = [0, 0], sizes = [8, 128], strides = [1, 1]} : vector<8x384xf32> to vector<8x128xf32>
    %203 = vector.extract_strided_slice %201 {offsets = [0, 0], sizes = [8, 128], strides = [1, 1]} : vector<8x384xf32> to vector<8x128xf32>
    %204 = arith.addf %202, %203 : vector<8x128xf32>
    %205 = arith.negf %204 : vector<8x128xf32>
    %206 = math.exp %205 : vector<8x128xf32>
    %cst_84 = arith.constant 1.000000e+00 : f32
    %207 = vector.broadcast %cst_84 : f32 to vector<8x128xf32>
    %208 = arith.addf %207, %206 : vector<8x128xf32>
    %209 = arith.divf %207, %208 : vector<8x128xf32>
    %210 = vector.extract_strided_slice %197 {offsets = [0, 128], sizes = [8, 128], strides = [1, 1]} : vector<8x384xf32> to vector<8x128xf32>
    %211 = vector.extract_strided_slice %201 {offsets = [0, 128], sizes = [8, 128], strides = [1, 1]} : vector<8x384xf32> to vector<8x128xf32>
    %212 = arith.addf %210, %211 : vector<8x128xf32>
    %213 = arith.negf %212 : vector<8x128xf32>
    %214 = math.exp %213 : vector<8x128xf32>
    %cst_85 = arith.constant 1.000000e+00 : f32
    %215 = vector.broadcast %cst_85 : f32 to vector<8x128xf32>
    %216 = arith.addf %215, %214 : vector<8x128xf32>
    %217 = arith.divf %215, %216 : vector<8x128xf32>
    %218 = vector.extract_strided_slice %197 {offsets = [0, 256], sizes = [8, 128], strides = [1, 1]} : vector<8x384xf32> to vector<8x128xf32>
    %219 = vector.extract_strided_slice %201 {offsets = [0, 256], sizes = [8, 128], strides = [1, 1]} : vector<8x384xf32> to vector<8x128xf32>
    %220 = arith.addf %219, %44 : vector<8x128xf32>
    %221 = arith.mulf %209, %220 : vector<8x128xf32>
    %222 = arith.addf %218, %221 : vector<8x128xf32>
    %223 = math.tanh %222 : vector<8x128xf32>
    %cst_86 = arith.constant 1.000000e+00 : f32
    %224 = vector.broadcast %cst_86 : f32 to vector<8x128xf32>
    %225 = arith.subf %224, %217 : vector<8x128xf32>
    %226 = arith.mulf %225, %223 : vector<8x128xf32>
    %227 = arith.mulf %217, %191 : vector<8x128xf32>
    %228 = arith.addf %226, %227 : vector<8x128xf32>
    %229 = arith.index_cast %195 : i32 to index
    %c0_87 = arith.constant 0 : index
    %230 = vector.load %arg10[%229, %c0_87] : memref<64x128xf32, #tpu.memory_space<vmem>>, vector<8x128xf32>
    tpu.vector_store %arg10[%229, %c0_87], %228 {strides = array<i32>} : memref<64x128xf32, #tpu.memory_space<vmem>>, vector<8x128xf32>,
    %c5_i32 = arith.constant 5 : i32
    %c8_i32_88 = arith.constant 8 : i32
    %231 = arith.muli %c5_i32, %c8_i32_88 : i32
    %232 = tpu.assume_multiple %231, 8 : i32
    %233 = arith.index_cast %232 : i32 to index
    %c0_89 = arith.constant 0 : index
    %234 = vector.load %arg9[%233, %c0_89] : memref<64x384xf32, #tpu.memory_space<vmem>>, vector<8x384xf32>
    %235 = arith.truncf %228 : vector<8x128xf32> to vector<8x128xbf16>
    %c0_90 = arith.constant 0 : index
    %c0_91 = arith.constant 0 : index
    %c0_92 = arith.constant 0 : index
    %236 = vector.load %arg2[%c0_90, %c0_91, %c0_92] : memref<3x128x384xbf16, #tpu.memory_space<vmem>>, vector<1x128x384xbf16>
    %237 = vector.shape_cast %236 : vector<1x128x384xbf16> to vector<128x384xbf16>
    %cst_93 = arith.constant dense<0.000000e+00> : vector<8x384xf32>
    %238 = tpu.matmul %235, %237, %cst_93 {dimension_numbers = #tpu.dot_dimension_numbers<[1], [0], [0], [1], [0, 0, 1, 1], [], []>} : vector<8x128xbf16>, vector<128x384xbf16>, vector<8x384xf32> -> vector<8x384xf32>
    %239 = vector.extract_strided_slice %234 {offsets = [0, 0], sizes = [8, 128], strides = [1, 1]} : vector<8x384xf32> to vector<8x128xf32>
    %240 = vector.extract_strided_slice %238 {offsets = [0, 0], sizes = [8, 128], strides = [1, 1]} : vector<8x384xf32> to vector<8x128xf32>
    %241 = arith.addf %239, %240 : vector<8x128xf32>
    %242 = arith.negf %241 : vector<8x128xf32>
    %243 = math.exp %242 : vector<8x128xf32>
    %cst_94 = arith.constant 1.000000e+00 : f32
    %244 = vector.broadcast %cst_94 : f32 to vector<8x128xf32>
    %245 = arith.addf %244, %243 : vector<8x128xf32>
    %246 = arith.divf %244, %245 : vector<8x128xf32>
    %247 = vector.extract_strided_slice %234 {offsets = [0, 128], sizes = [8, 128], strides = [1, 1]} : vector<8x384xf32> to vector<8x128xf32>
    %248 = vector.extract_strided_slice %238 {offsets = [0, 128], sizes = [8, 128], strides = [1, 1]} : vector<8x384xf32> to vector<8x128xf32>
    %249 = arith.addf %247, %248 : vector<8x128xf32>
    %250 = arith.negf %249 : vector<8x128xf32>
    %251 = math.exp %250 : vector<8x128xf32>
    %cst_95 = arith.constant 1.000000e+00 : f32
    %252 = vector.broadcast %cst_95 : f32 to vector<8x128xf32>
    %253 = arith.addf %252, %251 : vector<8x128xf32>
    %254 = arith.divf %252, %253 : vector<8x128xf32>
    %255 = vector.extract_strided_slice %234 {offsets = [0, 256], sizes = [8, 128], strides = [1, 1]} : vector<8x384xf32> to vector<8x128xf32>
    %256 = vector.extract_strided_slice %238 {offsets = [0, 256], sizes = [8, 128], strides = [1, 1]} : vector<8x384xf32> to vector<8x128xf32>
    %257 = arith.addf %256, %44 : vector<8x128xf32>
    %258 = arith.mulf %246, %257 : vector<8x128xf32>
    %259 = arith.addf %255, %258 : vector<8x128xf32>
    %260 = math.tanh %259 : vector<8x128xf32>
    %cst_96 = arith.constant 1.000000e+00 : f32
    %261 = vector.broadcast %cst_96 : f32 to vector<8x128xf32>
    %262 = arith.subf %261, %254 : vector<8x128xf32>
    %263 = arith.mulf %262, %260 : vector<8x128xf32>
    %264 = arith.mulf %254, %228 : vector<8x128xf32>
    %265 = arith.addf %263, %264 : vector<8x128xf32>
    %266 = arith.index_cast %232 : i32 to index
    %c0_97 = arith.constant 0 : index
    %267 = vector.load %arg10[%266, %c0_97] : memref<64x128xf32, #tpu.memory_space<vmem>>, vector<8x128xf32>
    tpu.vector_store %arg10[%266, %c0_97], %265 {strides = array<i32>} : memref<64x128xf32, #tpu.memory_space<vmem>>, vector<8x128xf32>,
    %c6_i32 = arith.constant 6 : i32
    %c8_i32_98 = arith.constant 8 : i32
    %268 = arith.muli %c6_i32, %c8_i32_98 : i32
    %269 = tpu.assume_multiple %268, 8 : i32
    %270 = arith.index_cast %269 : i32 to index
    %c0_99 = arith.constant 0 : index
    %271 = vector.load %arg9[%270, %c0_99] : memref<64x384xf32, #tpu.memory_space<vmem>>, vector<8x384xf32>
    %272 = arith.truncf %265 : vector<8x128xf32> to vector<8x128xbf16>
    %c0_100 = arith.constant 0 : index
    %c0_101 = arith.constant 0 : index
    %c0_102 = arith.constant 0 : index
    %273 = vector.load %arg2[%c0_100, %c0_101, %c0_102] : memref<3x128x384xbf16, #tpu.memory_space<vmem>>, vector<1x128x384xbf16>
    %274 = vector.shape_cast %273 : vector<1x128x384xbf16> to vector<128x384xbf16>
    %cst_103 = arith.constant dense<0.000000e+00> : vector<8x384xf32>
    %275 = tpu.matmul %272, %274, %cst_103 {dimension_numbers = #tpu.dot_dimension_numbers<[1], [0], [0], [1], [0, 0, 1, 1], [], []>} : vector<8x128xbf16>, vector<128x384xbf16>, vector<8x384xf32> -> vector<8x384xf32>
    %276 = vector.extract_strided_slice %271 {offsets = [0, 0], sizes = [8, 128], strides = [1, 1]} : vector<8x384xf32> to vector<8x128xf32>
    %277 = vector.extract_strided_slice %275 {offsets = [0, 0], sizes = [8, 128], strides = [1, 1]} : vector<8x384xf32> to vector<8x128xf32>
    %278 = arith.addf %276, %277 : vector<8x128xf32>
    %279 = arith.negf %278 : vector<8x128xf32>
    %280 = math.exp %279 : vector<8x128xf32>
    %cst_104 = arith.constant 1.000000e+00 : f32
    %281 = vector.broadcast %cst_104 : f32 to vector<8x128xf32>
    %282 = arith.addf %281, %280 : vector<8x128xf32>
    %283 = arith.divf %281, %282 : vector<8x128xf32>
    %284 = vector.extract_strided_slice %271 {offsets = [0, 128], sizes = [8, 128], strides = [1, 1]} : vector<8x384xf32> to vector<8x128xf32>
    %285 = vector.extract_strided_slice %275 {offsets = [0, 128], sizes = [8, 128], strides = [1, 1]} : vector<8x384xf32> to vector<8x128xf32>
    %286 = arith.addf %284, %285 : vector<8x128xf32>
    %287 = arith.negf %286 : vector<8x128xf32>
    %288 = math.exp %287 : vector<8x128xf32>
    %cst_105 = arith.constant 1.000000e+00 : f32
    %289 = vector.broadcast %cst_105 : f32 to vector<8x128xf32>
    %290 = arith.addf %289, %288 : vector<8x128xf32>
    %291 = arith.divf %289, %290 : vector<8x128xf32>
    %292 = vector.extract_strided_slice %271 {offsets = [0, 256], sizes = [8, 128], strides = [1, 1]} : vector<8x384xf32> to vector<8x128xf32>
    %293 = vector.extract_strided_slice %275 {offsets = [0, 256], sizes = [8, 128], strides = [1, 1]} : vector<8x384xf32> to vector<8x128xf32>
    %294 = arith.addf %293, %44 : vector<8x128xf32>
    %295 = arith.mulf %283, %294 : vector<8x128xf32>
    %296 = arith.addf %292, %295 : vector<8x128xf32>
    %297 = math.tanh %296 : vector<8x128xf32>
    %cst_106 = arith.constant 1.000000e+00 : f32
    %298 = vector.broadcast %cst_106 : f32 to vector<8x128xf32>
    %299 = arith.subf %298, %291 : vector<8x128xf32>
    %300 = arith.mulf %299, %297 : vector<8x128xf32>
    %301 = arith.mulf %291, %265 : vector<8x128xf32>
    %302 = arith.addf %300, %301 : vector<8x128xf32>
    %303 = arith.index_cast %269 : i32 to index
    %c0_107 = arith.constant 0 : index
    %304 = vector.load %arg10[%303, %c0_107] : memref<64x128xf32, #tpu.memory_space<vmem>>, vector<8x128xf32>
    tpu.vector_store %arg10[%303, %c0_107], %302 {strides = array<i32>} : memref<64x128xf32, #tpu.memory_space<vmem>>, vector<8x128xf32>,
    %c7_i32 = arith.constant 7 : i32
    %c8_i32_108 = arith.constant 8 : i32
    %305 = arith.muli %c7_i32, %c8_i32_108 : i32
    %306 = tpu.assume_multiple %305, 8 : i32
    %307 = arith.index_cast %306 : i32 to index
    %c0_109 = arith.constant 0 : index
    %308 = vector.load %arg9[%307, %c0_109] : memref<64x384xf32, #tpu.memory_space<vmem>>, vector<8x384xf32>
    %309 = arith.truncf %302 : vector<8x128xf32> to vector<8x128xbf16>
    %c0_110 = arith.constant 0 : index
    %c0_111 = arith.constant 0 : index
    %c0_112 = arith.constant 0 : index
    %310 = vector.load %arg2[%c0_110, %c0_111, %c0_112] : memref<3x128x384xbf16, #tpu.memory_space<vmem>>, vector<1x128x384xbf16>
    %311 = vector.shape_cast %310 : vector<1x128x384xbf16> to vector<128x384xbf16>
    %cst_113 = arith.constant dense<0.000000e+00> : vector<8x384xf32>
    %312 = tpu.matmul %309, %311, %cst_113 {dimension_numbers = #tpu.dot_dimension_numbers<[1], [0], [0], [1], [0, 0, 1, 1], [], []>} : vector<8x128xbf16>, vector<128x384xbf16>, vector<8x384xf32> -> vector<8x384xf32>
    %313 = vector.extract_strided_slice %308 {offsets = [0, 0], sizes = [8, 128], strides = [1, 1]} : vector<8x384xf32> to vector<8x128xf32>
    %314 = vector.extract_strided_slice %312 {offsets = [0, 0], sizes = [8, 128], strides = [1, 1]} : vector<8x384xf32> to vector<8x128xf32>
    %315 = arith.addf %313, %314 : vector<8x128xf32>
    %316 = arith.negf %315 : vector<8x128xf32>
    %317 = math.exp %316 : vector<8x128xf32>
    %cst_114 = arith.constant 1.000000e+00 : f32
    %318 = vector.broadcast %cst_114 : f32 to vector<8x128xf32>
    %319 = arith.addf %318, %317 : vector<8x128xf32>
    %320 = arith.divf %318, %319 : vector<8x128xf32>
    %321 = vector.extract_strided_slice %308 {offsets = [0, 128], sizes = [8, 128], strides = [1, 1]} : vector<8x384xf32> to vector<8x128xf32>
    %322 = vector.extract_strided_slice %312 {offsets = [0, 128], sizes = [8, 128], strides = [1, 1]} : vector<8x384xf32> to vector<8x128xf32>
    %323 = arith.addf %321, %322 : vector<8x128xf32>
    %324 = arith.negf %323 : vector<8x128xf32>
    %325 = math.exp %324 : vector<8x128xf32>
    %cst_115 = arith.constant 1.000000e+00 : f32
    %326 = vector.broadcast %cst_115 : f32 to vector<8x128xf32>
    %327 = arith.addf %326, %325 : vector<8x128xf32>
    %328 = arith.divf %326, %327 : vector<8x128xf32>
    %329 = vector.extract_strided_slice %308 {offsets = [0, 256], sizes = [8, 128], strides = [1, 1]} : vector<8x384xf32> to vector<8x128xf32>
    %330 = vector.extract_strided_slice %312 {offsets = [0, 256], sizes = [8, 128], strides = [1, 1]} : vector<8x384xf32> to vector<8x128xf32>
    %331 = arith.addf %330, %44 : vector<8x128xf32>
    %332 = arith.mulf %320, %331 : vector<8x128xf32>
    %333 = arith.addf %329, %332 : vector<8x128xf32>
    %334 = math.tanh %333 : vector<8x128xf32>
    %cst_116 = arith.constant 1.000000e+00 : f32
    %335 = vector.broadcast %cst_116 : f32 to vector<8x128xf32>
    %336 = arith.subf %335, %328 : vector<8x128xf32>
    %337 = arith.mulf %336, %334 : vector<8x128xf32>
    %338 = arith.mulf %328, %302 : vector<8x128xf32>
    %339 = arith.addf %337, %338 : vector<8x128xf32>
    %340 = arith.index_cast %306 : i32 to index
    %c0_117 = arith.constant 0 : index
    %341 = vector.load %arg10[%340, %c0_117] : memref<64x128xf32, #tpu.memory_space<vmem>>, vector<8x128xf32>
    tpu.vector_store %arg10[%340, %c0_117], %339 {strides = array<i32>} : memref<64x128xf32, #tpu.memory_space<vmem>>, vector<8x128xf32>,
    %c8_i32_118 = arith.constant 8 : i32
    %c0_119 = arith.constant 0 : index
    %c0_120 = arith.constant 0 : index
    %342 = vector.load %arg10[%c0_119, %c0_120] : memref<64x128xf32, #tpu.memory_space<vmem>>, vector<8x128xf32>
    %c56_121 = arith.constant 56 : index
    %c0_122 = arith.constant 0 : index
    %343 = vector.load %arg10[%c56_121, %c0_122] : memref<64x128xf32, #tpu.memory_space<vmem>>, vector<8x128xf32>
    %344 = arith.select %7, %342, %343 : vector<8x128xi1>, vector<8x128xf32>
    %c0_123 = arith.constant 0 : index
    %c0_124 = arith.constant 0 : index
    %345 = vector.load %arg8[%c0_123, %c0_124] : memref<64x128xf32, #tpu.memory_space<vmem>>, vector<8x128xf32>
    tpu.vector_store %arg8[%c0_123, %c0_124], %344 {strides = array<i32>} : memref<64x128xf32, #tpu.memory_space<vmem>>, vector<8x128xf32>,
    %346 = arith.select %7, %343, %342 : vector<8x128xi1>, vector<8x128xf32>
    %c56_125 = arith.constant 56 : index
    %c0_126 = arith.constant 0 : index
    %347 = vector.load %arg8[%c56_125, %c0_126] : memref<64x128xf32, #tpu.memory_space<vmem>>, vector<8x128xf32>
    tpu.vector_store %arg8[%c56_125, %c0_126], %346 {strides = array<i32>} : memref<64x128xf32, #tpu.memory_space<vmem>>, vector<8x128xf32>,
    %c8_127 = arith.constant 8 : index
    %c0_128 = arith.constant 0 : index
    %348 = vector.load %arg10[%c8_127, %c0_128] : memref<64x128xf32, #tpu.memory_space<vmem>>, vector<8x128xf32>
    %c48_129 = arith.constant 48 : index
    %c0_130 = arith.constant 0 : index
    %349 = vector.load %arg10[%c48_129, %c0_130] : memref<64x128xf32, #tpu.memory_space<vmem>>, vector<8x128xf32>
    %350 = arith.select %7, %348, %349 : vector<8x128xi1>, vector<8x128xf32>
    %c8_131 = arith.constant 8 : index
    %c0_132 = arith.constant 0 : index
    %351 = vector.load %arg8[%c8_131, %c0_132] : memref<64x128xf32, #tpu.memory_space<vmem>>, vector<8x128xf32>
    tpu.vector_store %arg8[%c8_131, %c0_132], %350 {strides = array<i32>} : memref<64x128xf32, #tpu.memory_space<vmem>>, vector<8x128xf32>,
    %352 = arith.select %7, %349, %348 : vector<8x128xi1>, vector<8x128xf32>
    %c48_133 = arith.constant 48 : index
    %c0_134 = arith.constant 0 : index
    %353 = vector.load %arg8[%c48_133, %c0_134] : memref<64x128xf32, #tpu.memory_space<vmem>>, vector<8x128xf32>
    tpu.vector_store %arg8[%c48_133, %c0_134], %352 {strides = array<i32>} : memref<64x128xf32, #tpu.memory_space<vmem>>, vector<8x128xf32>,
    %c16_135 = arith.constant 16 : index
    %c0_136 = arith.constant 0 : index
    %354 = vector.load %arg10[%c16_135, %c0_136] : memref<64x128xf32, #tpu.memory_space<vmem>>, vector<8x128xf32>
    %c40_137 = arith.constant 40 : index
    %c0_138 = arith.constant 0 : index
    %355 = vector.load %arg10[%c40_137, %c0_138] : memref<64x128xf32, #tpu.memory_space<vmem>>, vector<8x128xf32>
    %356 = arith.select %7, %354, %355 : vector<8x128xi1>, vector<8x128xf32>
    %c16_139 = arith.constant 16 : index
    %c0_140 = arith.constant 0 : index
    %357 = vector.load %arg8[%c16_139, %c0_140] : memref<64x128xf32, #tpu.memory_space<vmem>>, vector<8x128xf32>
    tpu.vector_store %arg8[%c16_139, %c0_140], %356 {strides = array<i32>} : memref<64x128xf32, #tpu.memory_space<vmem>>, vector<8x128xf32>,
    %358 = arith.select %7, %355, %354 : vector<8x128xi1>, vector<8x128xf32>
    %c40_141 = arith.constant 40 : index
    %c0_142 = arith.constant 0 : index
    %359 = vector.load %arg8[%c40_141, %c0_142] : memref<64x128xf32, #tpu.memory_space<vmem>>, vector<8x128xf32>
    tpu.vector_store %arg8[%c40_141, %c0_142], %358 {strides = array<i32>} : memref<64x128xf32, #tpu.memory_space<vmem>>, vector<8x128xf32>,
    %c24_143 = arith.constant 24 : index
    %c0_144 = arith.constant 0 : index
    %360 = vector.load %arg10[%c24_143, %c0_144] : memref<64x128xf32, #tpu.memory_space<vmem>>, vector<8x128xf32>
    %c32_145 = arith.constant 32 : index
    %c0_146 = arith.constant 0 : index
    %361 = vector.load %arg10[%c32_145, %c0_146] : memref<64x128xf32, #tpu.memory_space<vmem>>, vector<8x128xf32>
    %362 = arith.select %7, %360, %361 : vector<8x128xi1>, vector<8x128xf32>
    %c24_147 = arith.constant 24 : index
    %c0_148 = arith.constant 0 : index
    %363 = vector.load %arg8[%c24_147, %c0_148] : memref<64x128xf32, #tpu.memory_space<vmem>>, vector<8x128xf32>
    tpu.vector_store %arg8[%c24_147, %c0_148], %362 {strides = array<i32>} : memref<64x128xf32, #tpu.memory_space<vmem>>, vector<8x128xf32>,
    %364 = arith.select %7, %361, %360 : vector<8x128xi1>, vector<8x128xf32>
    %c32_149 = arith.constant 32 : index
    %c0_150 = arith.constant 0 : index
    %365 = vector.load %arg8[%c32_149, %c0_150] : memref<64x128xf32, #tpu.memory_space<vmem>>, vector<8x128xf32>
    tpu.vector_store %arg8[%c32_149, %c0_150], %364 {strides = array<i32>} : memref<64x128xf32, #tpu.memory_space<vmem>>, vector<8x128xf32>,
    %c0_151 = arith.constant 0 : index
    %c0_152 = arith.constant 0 : index
    %366 = vector.load %arg8[%c0_151, %c0_152] : memref<64x128xf32, #tpu.memory_space<vmem>>, vector<64x128xf32>
    %367 = arith.truncf %366 : vector<64x128xf32> to vector<64x128xbf16>
    %c1 = arith.constant 1 : index
    %c0_153 = arith.constant 0 : index
    %c0_154 = arith.constant 0 : index
    %368 = vector.load %arg1[%c1, %c0_153, %c0_154] : memref<3x128x384xbf16, #tpu.memory_space<vmem>>, vector<1x128x384xbf16>
    %369 = vector.shape_cast %368 : vector<1x128x384xbf16> to vector<128x384xbf16>
    %cst_155 = arith.constant dense<0.000000e+00> : vector<64x384xf32>
    %370 = tpu.matmul %367, %369, %cst_155 {dimension_numbers = #tpu.dot_dimension_numbers<[1], [0], [0], [1], [0, 0, 1, 1], [], []>} : vector<64x128xbf16>, vector<128x384xbf16>, vector<64x384xf32> -> vector<64x384xf32>
    %c1_156 = arith.constant 1 : index
    %c0_157 = arith.constant 0 : index
    %c0_158 = arith.constant 0 : index
    %371 = vector.load %arg3[%c1_156, %c0_157, %c0_158] : memref<3x1x384xf32, #tpu.memory_space<vmem>>, vector<1x1x384xf32>
    %372 = vector.shape_cast %371 : vector<1x1x384xf32> to vector<1x384xf32>
    %373 = vector.broadcast %372 : vector<1x384xf32> to vector<64x384xf32>
    %374 = arith.addf %370, %373 : vector<64x384xf32>
    %c0_159 = arith.constant 0 : index
    %c0_160 = arith.constant 0 : index
    %375 = vector.load %arg9[%c0_159, %c0_160] : memref<64x384xf32, #tpu.memory_space<vmem>>, vector<64x384xf32>
    tpu.vector_store %arg9[%c0_159, %c0_160], %374 {strides = array<i32>} : memref<64x384xf32, #tpu.memory_space<vmem>>, vector<64x384xf32>,
    %c0_161 = arith.constant 0 : index
    %c0_162 = arith.constant 0 : index
    %376 = vector.load %arg9[%c0_161, %c0_162] : memref<64x384xf32, #tpu.memory_space<vmem>>, vector<8x384xf32>
    %c56_163 = arith.constant 56 : index
    %c0_164 = arith.constant 0 : index
    %377 = vector.load %arg9[%c56_163, %c0_164] : memref<64x384xf32, #tpu.memory_space<vmem>>, vector<8x384xf32>
    %378 = arith.select %4, %376, %377 : vector<8x384xi1>, vector<8x384xf32>
    %c0_165 = arith.constant 0 : index
    %c0_166 = arith.constant 0 : index
    %379 = vector.load %arg9[%c0_165, %c0_166] : memref<64x384xf32, #tpu.memory_space<vmem>>, vector<8x384xf32>
    tpu.vector_store %arg9[%c0_165, %c0_166], %378 {strides = array<i32>} : memref<64x384xf32, #tpu.memory_space<vmem>>, vector<8x384xf32>,
    %380 = arith.select %4, %377, %376 : vector<8x384xi1>, vector<8x384xf32>
    %c56_167 = arith.constant 56 : index
    %c0_168 = arith.constant 0 : index
    %381 = vector.load %arg9[%c56_167, %c0_168] : memref<64x384xf32, #tpu.memory_space<vmem>>, vector<8x384xf32>
    tpu.vector_store %arg9[%c56_167, %c0_168], %380 {strides = array<i32>} : memref<64x384xf32, #tpu.memory_space<vmem>>, vector<8x384xf32>,
    %c8_169 = arith.constant 8 : index
    %c0_170 = arith.constant 0 : index
    %382 = vector.load %arg9[%c8_169, %c0_170] : memref<64x384xf32, #tpu.memory_space<vmem>>, vector<8x384xf32>
    %c48_171 = arith.constant 48 : index
    %c0_172 = arith.constant 0 : index
    %383 = vector.load %arg9[%c48_171, %c0_172] : memref<64x384xf32, #tpu.memory_space<vmem>>, vector<8x384xf32>
    %384 = arith.select %4, %382, %383 : vector<8x384xi1>, vector<8x384xf32>
    %c8_173 = arith.constant 8 : index
    %c0_174 = arith.constant 0 : index
    %385 = vector.load %arg9[%c8_173, %c0_174] : memref<64x384xf32, #tpu.memory_space<vmem>>, vector<8x384xf32>
    tpu.vector_store %arg9[%c8_173, %c0_174], %384 {strides = array<i32>} : memref<64x384xf32, #tpu.memory_space<vmem>>, vector<8x384xf32>,
    %386 = arith.select %4, %383, %382 : vector<8x384xi1>, vector<8x384xf32>
    %c48_175 = arith.constant 48 : index
    %c0_176 = arith.constant 0 : index
    %387 = vector.load %arg9[%c48_175, %c0_176] : memref<64x384xf32, #tpu.memory_space<vmem>>, vector<8x384xf32>
    tpu.vector_store %arg9[%c48_175, %c0_176], %386 {strides = array<i32>} : memref<64x384xf32, #tpu.memory_space<vmem>>, vector<8x384xf32>,
    %c16_177 = arith.constant 16 : index
    %c0_178 = arith.constant 0 : index
    %388 = vector.load %arg9[%c16_177, %c0_178] : memref<64x384xf32, #tpu.memory_space<vmem>>, vector<8x384xf32>
    %c40_179 = arith.constant 40 : index
    %c0_180 = arith.constant 0 : index
    %389 = vector.load %arg9[%c40_179, %c0_180] : memref<64x384xf32, #tpu.memory_space<vmem>>, vector<8x384xf32>
    %390 = arith.select %4, %388, %389 : vector<8x384xi1>, vector<8x384xf32>
    %c16_181 = arith.constant 16 : index
    %c0_182 = arith.constant 0 : index
    %391 = vector.load %arg9[%c16_181, %c0_182] : memref<64x384xf32, #tpu.memory_space<vmem>>, vector<8x384xf32>
    tpu.vector_store %arg9[%c16_181, %c0_182], %390 {strides = array<i32>} : memref<64x384xf32, #tpu.memory_space<vmem>>, vector<8x384xf32>,
    %392 = arith.select %4, %389, %388 : vector<8x384xi1>, vector<8x384xf32>
    %c40_183 = arith.constant 40 : index
    %c0_184 = arith.constant 0 : index
    %393 = vector.load %arg9[%c40_183, %c0_184] : memref<64x384xf32, #tpu.memory_space<vmem>>, vector<8x384xf32>
    tpu.vector_store %arg9[%c40_183, %c0_184], %392 {strides = array<i32>} : memref<64x384xf32, #tpu.memory_space<vmem>>, vector<8x384xf32>,
    %c24_185 = arith.constant 24 : index
    %c0_186 = arith.constant 0 : index
    %394 = vector.load %arg9[%c24_185, %c0_186] : memref<64x384xf32, #tpu.memory_space<vmem>>, vector<8x384xf32>
    %c32_187 = arith.constant 32 : index
    %c0_188 = arith.constant 0 : index
    %395 = vector.load %arg9[%c32_187, %c0_188] : memref<64x384xf32, #tpu.memory_space<vmem>>, vector<8x384xf32>
    %396 = arith.select %4, %394, %395 : vector<8x384xi1>, vector<8x384xf32>
    %c24_189 = arith.constant 24 : index
    %c0_190 = arith.constant 0 : index
    %397 = vector.load %arg9[%c24_189, %c0_190] : memref<64x384xf32, #tpu.memory_space<vmem>>, vector<8x384xf32>
    tpu.vector_store %arg9[%c24_189, %c0_190], %396 {strides = array<i32>} : memref<64x384xf32, #tpu.memory_space<vmem>>, vector<8x384xf32>,
    %398 = arith.select %4, %395, %394 : vector<8x384xi1>, vector<8x384xf32>
    %c32_191 = arith.constant 32 : index
    %c0_192 = arith.constant 0 : index
    %399 = vector.load %arg9[%c32_191, %c0_192] : memref<64x384xf32, #tpu.memory_space<vmem>>, vector<8x384xf32>
    tpu.vector_store %arg9[%c32_191, %c0_192], %398 {strides = array<i32>} : memref<64x384xf32, #tpu.memory_space<vmem>>, vector<8x384xf32>,
    %c1_193 = arith.constant 1 : index
    %c0_194 = arith.constant 0 : index
    %c0_195 = arith.constant 0 : index
    %400 = vector.load %arg4[%c1_193, %c0_194, %c0_195] : memref<3x1x128xf32, #tpu.memory_space<vmem>>, vector<1x1x128xf32>
    %401 = vector.shape_cast %400 : vector<1x1x128xf32> to vector<1x128xf32>
    %402 = vector.shape_cast %401 : vector<1x128xf32> to vector<1x128xf32>
    %403 = vector.broadcast %402 : vector<1x128xf32> to vector<8x128xf32>
    %cst_196 = arith.constant 0.000000e+00 : f32
    %404 = vector.broadcast %cst_196 : f32 to vector<8x128xf32>
    %c0_i32_197 = arith.constant 0 : i32
    %c8_i32_198 = arith.constant 8 : i32
    %405 = arith.muli %c0_i32_197, %c8_i32_198 : i32
    %406 = tpu.assume_multiple %405, 8 : i32
    %407 = arith.index_cast %406 : i32 to index
    %c0_199 = arith.constant 0 : index
    %408 = vector.load %arg9[%407, %c0_199] : memref<64x384xf32, #tpu.memory_space<vmem>>, vector<8x384xf32>
    %409 = arith.truncf %404 : vector<8x128xf32> to vector<8x128xbf16>
    %c1_200 = arith.constant 1 : index
    %c0_201 = arith.constant 0 : index
    %c0_202 = arith.constant 0 : index
    %410 = vector.load %arg2[%c1_200, %c0_201, %c0_202] : memref<3x128x384xbf16, #tpu.memory_space<vmem>>, vector<1x128x384xbf16>
    %411 = vector.shape_cast %410 : vector<1x128x384xbf16> to vector<128x384xbf16>
    %cst_203 = arith.constant dense<0.000000e+00> : vector<8x384xf32>
    %412 = tpu.matmul %409, %411, %cst_203 {dimension_numbers = #tpu.dot_dimension_numbers<[1], [0], [0], [1], [0, 0, 1, 1], [], []>} : vector<8x128xbf16>, vector<128x384xbf16>, vector<8x384xf32> -> vector<8x384xf32>
    %413 = vector.extract_strided_slice %408 {offsets = [0, 0], sizes = [8, 128], strides = [1, 1]} : vector<8x384xf32> to vector<8x128xf32>
    %414 = vector.extract_strided_slice %412 {offsets = [0, 0], sizes = [8, 128], strides = [1, 1]} : vector<8x384xf32> to vector<8x128xf32>
    %415 = arith.addf %413, %414 : vector<8x128xf32>
    %416 = arith.negf %415 : vector<8x128xf32>
    %417 = math.exp %416 : vector<8x128xf32>
    %cst_204 = arith.constant 1.000000e+00 : f32
    %418 = vector.broadcast %cst_204 : f32 to vector<8x128xf32>
    %419 = arith.addf %418, %417 : vector<8x128xf32>
    %420 = arith.divf %418, %419 : vector<8x128xf32>
    %421 = vector.extract_strided_slice %408 {offsets = [0, 128], sizes = [8, 128], strides = [1, 1]} : vector<8x384xf32> to vector<8x128xf32>
    %422 = vector.extract_strided_slice %412 {offsets = [0, 128], sizes = [8, 128], strides = [1, 1]} : vector<8x384xf32> to vector<8x128xf32>
    %423 = arith.addf %421, %422 : vector<8x128xf32>
    %424 = arith.negf %423 : vector<8x128xf32>
    %425 = math.exp %424 : vector<8x128xf32>
    %cst_205 = arith.constant 1.000000e+00 : f32
    %426 = vector.broadcast %cst_205 : f32 to vector<8x128xf32>
    %427 = arith.addf %426, %425 : vector<8x128xf32>
    %428 = arith.divf %426, %427 : vector<8x128xf32>
    %429 = vector.extract_strided_slice %408 {offsets = [0, 256], sizes = [8, 128], strides = [1, 1]} : vector<8x384xf32> to vector<8x128xf32>
    %430 = vector.extract_strided_slice %412 {offsets = [0, 256], sizes = [8, 128], strides = [1, 1]} : vector<8x384xf32> to vector<8x128xf32>
    %431 = arith.addf %430, %403 : vector<8x128xf32>
    %432 = arith.mulf %420, %431 : vector<8x128xf32>
    %433 = arith.addf %429, %432 : vector<8x128xf32>
    %434 = math.tanh %433 : vector<8x128xf32>
    %cst_206 = arith.constant 1.000000e+00 : f32
    %435 = vector.broadcast %cst_206 : f32 to vector<8x128xf32>
    %436 = arith.subf %435, %428 : vector<8x128xf32>
    %437 = arith.mulf %436, %434 : vector<8x128xf32>
    %438 = arith.mulf %428, %404 : vector<8x128xf32>
    %439 = arith.addf %437, %438 : vector<8x128xf32>
    %440 = arith.index_cast %406 : i32 to index
    %c0_207 = arith.constant 0 : index
    %441 = vector.load %arg10[%440, %c0_207] : memref<64x128xf32, #tpu.memory_space<vmem>>, vector<8x128xf32>
    tpu.vector_store %arg10[%440, %c0_207], %439 {strides = array<i32>} : memref<64x128xf32, #tpu.memory_space<vmem>>, vector<8x128xf32>,
    %c1_i32_208 = arith.constant 1 : i32
    %c8_i32_209 = arith.constant 8 : i32
    %442 = arith.muli %c1_i32_208, %c8_i32_209 : i32
    %443 = tpu.assume_multiple %442, 8 : i32
    %444 = arith.index_cast %443 : i32 to index
    %c0_210 = arith.constant 0 : index
    %445 = vector.load %arg9[%444, %c0_210] : memref<64x384xf32, #tpu.memory_space<vmem>>, vector<8x384xf32>
    %446 = arith.truncf %439 : vector<8x128xf32> to vector<8x128xbf16>
    %c1_211 = arith.constant 1 : index
    %c0_212 = arith.constant 0 : index
    %c0_213 = arith.constant 0 : index
    %447 = vector.load %arg2[%c1_211, %c0_212, %c0_213] : memref<3x128x384xbf16, #tpu.memory_space<vmem>>, vector<1x128x384xbf16>
    %448 = vector.shape_cast %447 : vector<1x128x384xbf16> to vector<128x384xbf16>
    %cst_214 = arith.constant dense<0.000000e+00> : vector<8x384xf32>
    %449 = tpu.matmul %446, %448, %cst_214 {dimension_numbers = #tpu.dot_dimension_numbers<[1], [0], [0], [1], [0, 0, 1, 1], [], []>} : vector<8x128xbf16>, vector<128x384xbf16>, vector<8x384xf32> -> vector<8x384xf32>
    %450 = vector.extract_strided_slice %445 {offsets = [0, 0], sizes = [8, 128], strides = [1, 1]} : vector<8x384xf32> to vector<8x128xf32>
    %451 = vector.extract_strided_slice %449 {offsets = [0, 0], sizes = [8, 128], strides = [1, 1]} : vector<8x384xf32> to vector<8x128xf32>
    %452 = arith.addf %450, %451 : vector<8x128xf32>
    %453 = arith.negf %452 : vector<8x128xf32>
    %454 = math.exp %453 : vector<8x128xf32>
    %cst_215 = arith.constant 1.000000e+00 : f32
    %455 = vector.broadcast %cst_215 : f32 to vector<8x128xf32>
    %456 = arith.addf %455, %454 : vector<8x128xf32>
    %457 = arith.divf %455, %456 : vector<8x128xf32>
    %458 = vector.extract_strided_slice %445 {offsets = [0, 128], sizes = [8, 128], strides = [1, 1]} : vector<8x384xf32> to vector<8x128xf32>
    %459 = vector.extract_strided_slice %449 {offsets = [0, 128], sizes = [8, 128], strides = [1, 1]} : vector<8x384xf32> to vector<8x128xf32>
    %460 = arith.addf %458, %459 : vector<8x128xf32>
    %461 = arith.negf %460 : vector<8x128xf32>
    %462 = math.exp %461 : vector<8x128xf32>
    %cst_216 = arith.constant 1.000000e+00 : f32
    %463 = vector.broadcast %cst_216 : f32 to vector<8x128xf32>
    %464 = arith.addf %463, %462 : vector<8x128xf32>
    %465 = arith.divf %463, %464 : vector<8x128xf32>
    %466 = vector.extract_strided_slice %445 {offsets = [0, 256], sizes = [8, 128], strides = [1, 1]} : vector<8x384xf32> to vector<8x128xf32>
    %467 = vector.extract_strided_slice %449 {offsets = [0, 256], sizes = [8, 128], strides = [1, 1]} : vector<8x384xf32> to vector<8x128xf32>
    %468 = arith.addf %467, %403 : vector<8x128xf32>
    %469 = arith.mulf %457, %468 : vector<8x128xf32>
    %470 = arith.addf %466, %469 : vector<8x128xf32>
    %471 = math.tanh %470 : vector<8x128xf32>
    %cst_217 = arith.constant 1.000000e+00 : f32
    %472 = vector.broadcast %cst_217 : f32 to vector<8x128xf32>
    %473 = arith.subf %472, %465 : vector<8x128xf32>
    %474 = arith.mulf %473, %471 : vector<8x128xf32>
    %475 = arith.mulf %465, %439 : vector<8x128xf32>
    %476 = arith.addf %474, %475 : vector<8x128xf32>
    %477 = arith.index_cast %443 : i32 to index
    %c0_218 = arith.constant 0 : index
    %478 = vector.load %arg10[%477, %c0_218] : memref<64x128xf32, #tpu.memory_space<vmem>>, vector<8x128xf32>
    tpu.vector_store %arg10[%477, %c0_218], %476 {strides = array<i32>} : memref<64x128xf32, #tpu.memory_space<vmem>>, vector<8x128xf32>,
    %c2_i32_219 = arith.constant 2 : i32
    %c8_i32_220 = arith.constant 8 : i32
    %479 = arith.muli %c2_i32_219, %c8_i32_220 : i32
    %480 = tpu.assume_multiple %479, 8 : i32
    %481 = arith.index_cast %480 : i32 to index
    %c0_221 = arith.constant 0 : index
    %482 = vector.load %arg9[%481, %c0_221] : memref<64x384xf32, #tpu.memory_space<vmem>>, vector<8x384xf32>
    %483 = arith.truncf %476 : vector<8x128xf32> to vector<8x128xbf16>
    %c1_222 = arith.constant 1 : index
    %c0_223 = arith.constant 0 : index
    %c0_224 = arith.constant 0 : index
    %484 = vector.load %arg2[%c1_222, %c0_223, %c0_224] : memref<3x128x384xbf16, #tpu.memory_space<vmem>>, vector<1x128x384xbf16>
    %485 = vector.shape_cast %484 : vector<1x128x384xbf16> to vector<128x384xbf16>
    %cst_225 = arith.constant dense<0.000000e+00> : vector<8x384xf32>
    %486 = tpu.matmul %483, %485, %cst_225 {dimension_numbers = #tpu.dot_dimension_numbers<[1], [0], [0], [1], [0, 0, 1, 1], [], []>} : vector<8x128xbf16>, vector<128x384xbf16>, vector<8x384xf32> -> vector<8x384xf32>
    %487 = vector.extract_strided_slice %482 {offsets = [0, 0], sizes = [8, 128], strides = [1, 1]} : vector<8x384xf32> to vector<8x128xf32>
    %488 = vector.extract_strided_slice %486 {offsets = [0, 0], sizes = [8, 128], strides = [1, 1]} : vector<8x384xf32> to vector<8x128xf32>
    %489 = arith.addf %487, %488 : vector<8x128xf32>
    %490 = arith.negf %489 : vector<8x128xf32>
    %491 = math.exp %490 : vector<8x128xf32>
    %cst_226 = arith.constant 1.000000e+00 : f32
    %492 = vector.broadcast %cst_226 : f32 to vector<8x128xf32>
    %493 = arith.addf %492, %491 : vector<8x128xf32>
    %494 = arith.divf %492, %493 : vector<8x128xf32>
    %495 = vector.extract_strided_slice %482 {offsets = [0, 128], sizes = [8, 128], strides = [1, 1]} : vector<8x384xf32> to vector<8x128xf32>
    %496 = vector.extract_strided_slice %486 {offsets = [0, 128], sizes = [8, 128], strides = [1, 1]} : vector<8x384xf32> to vector<8x128xf32>
    %497 = arith.addf %495, %496 : vector<8x128xf32>
    %498 = arith.negf %497 : vector<8x128xf32>
    %499 = math.exp %498 : vector<8x128xf32>
    %cst_227 = arith.constant 1.000000e+00 : f32
    %500 = vector.broadcast %cst_227 : f32 to vector<8x128xf32>
    %501 = arith.addf %500, %499 : vector<8x128xf32>
    %502 = arith.divf %500, %501 : vector<8x128xf32>
    %503 = vector.extract_strided_slice %482 {offsets = [0, 256], sizes = [8, 128], strides = [1, 1]} : vector<8x384xf32> to vector<8x128xf32>
    %504 = vector.extract_strided_slice %486 {offsets = [0, 256], sizes = [8, 128], strides = [1, 1]} : vector<8x384xf32> to vector<8x128xf32>
    %505 = arith.addf %504, %403 : vector<8x128xf32>
    %506 = arith.mulf %494, %505 : vector<8x128xf32>
    %507 = arith.addf %503, %506 : vector<8x128xf32>
    %508 = math.tanh %507 : vector<8x128xf32>
    %cst_228 = arith.constant 1.000000e+00 : f32
    %509 = vector.broadcast %cst_228 : f32 to vector<8x128xf32>
    %510 = arith.subf %509, %502 : vector<8x128xf32>
    %511 = arith.mulf %510, %508 : vector<8x128xf32>
    %512 = arith.mulf %502, %476 : vector<8x128xf32>
    %513 = arith.addf %511, %512 : vector<8x128xf32>
    %514 = arith.index_cast %480 : i32 to index
    %c0_229 = arith.constant 0 : index
    %515 = vector.load %arg10[%514, %c0_229] : memref<64x128xf32, #tpu.memory_space<vmem>>, vector<8x128xf32>
    tpu.vector_store %arg10[%514, %c0_229], %513 {strides = array<i32>} : memref<64x128xf32, #tpu.memory_space<vmem>>, vector<8x128xf32>,
    %c3_i32_230 = arith.constant 3 : i32
    %c8_i32_231 = arith.constant 8 : i32
    %516 = arith.muli %c3_i32_230, %c8_i32_231 : i32
    %517 = tpu.assume_multiple %516, 8 : i32
    %518 = arith.index_cast %517 : i32 to index
    %c0_232 = arith.constant 0 : index
    %519 = vector.load %arg9[%518, %c0_232] : memref<64x384xf32, #tpu.memory_space<vmem>>, vector<8x384xf32>
    %520 = arith.truncf %513 : vector<8x128xf32> to vector<8x128xbf16>
    %c1_233 = arith.constant 1 : index
    %c0_234 = arith.constant 0 : index
    %c0_235 = arith.constant 0 : index
    %521 = vector.load %arg2[%c1_233, %c0_234, %c0_235] : memref<3x128x384xbf16, #tpu.memory_space<vmem>>, vector<1x128x384xbf16>
    %522 = vector.shape_cast %521 : vector<1x128x384xbf16> to vector<128x384xbf16>
    %cst_236 = arith.constant dense<0.000000e+00> : vector<8x384xf32>
    %523 = tpu.matmul %520, %522, %cst_236 {dimension_numbers = #tpu.dot_dimension_numbers<[1], [0], [0], [1], [0, 0, 1, 1], [], []>} : vector<8x128xbf16>, vector<128x384xbf16>, vector<8x384xf32> -> vector<8x384xf32>
    %524 = vector.extract_strided_slice %519 {offsets = [0, 0], sizes = [8, 128], strides = [1, 1]} : vector<8x384xf32> to vector<8x128xf32>
    %525 = vector.extract_strided_slice %523 {offsets = [0, 0], sizes = [8, 128], strides = [1, 1]} : vector<8x384xf32> to vector<8x128xf32>
    %526 = arith.addf %524, %525 : vector<8x128xf32>
    %527 = arith.negf %526 : vector<8x128xf32>
    %528 = math.exp %527 : vector<8x128xf32>
    %cst_237 = arith.constant 1.000000e+00 : f32
    %529 = vector.broadcast %cst_237 : f32 to vector<8x128xf32>
    %530 = arith.addf %529, %528 : vector<8x128xf32>
    %531 = arith.divf %529, %530 : vector<8x128xf32>
    %532 = vector.extract_strided_slice %519 {offsets = [0, 128], sizes = [8, 128], strides = [1, 1]} : vector<8x384xf32> to vector<8x128xf32>
    %533 = vector.extract_strided_slice %523 {offsets = [0, 128], sizes = [8, 128], strides = [1, 1]} : vector<8x384xf32> to vector<8x128xf32>
    %534 = arith.addf %532, %533 : vector<8x128xf32>
    %535 = arith.negf %534 : vector<8x128xf32>
    %536 = math.exp %535 : vector<8x128xf32>
    %cst_238 = arith.constant 1.000000e+00 : f32
    %537 = vector.broadcast %cst_238 : f32 to vector<8x128xf32>
    %538 = arith.addf %537, %536 : vector<8x128xf32>
    %539 = arith.divf %537, %538 : vector<8x128xf32>
    %540 = vector.extract_strided_slice %519 {offsets = [0, 256], sizes = [8, 128], strides = [1, 1]} : vector<8x384xf32> to vector<8x128xf32>
    %541 = vector.extract_strided_slice %523 {offsets = [0, 256], sizes = [8, 128], strides = [1, 1]} : vector<8x384xf32> to vector<8x128xf32>
    %542 = arith.addf %541, %403 : vector<8x128xf32>
    %543 = arith.mulf %531, %542 : vector<8x128xf32>
    %544 = arith.addf %540, %543 : vector<8x128xf32>
    %545 = math.tanh %544 : vector<8x128xf32>
    %cst_239 = arith.constant 1.000000e+00 : f32
    %546 = vector.broadcast %cst_239 : f32 to vector<8x128xf32>
    %547 = arith.subf %546, %539 : vector<8x128xf32>
    %548 = arith.mulf %547, %545 : vector<8x128xf32>
    %549 = arith.mulf %539, %513 : vector<8x128xf32>
    %550 = arith.addf %548, %549 : vector<8x128xf32>
    %551 = arith.index_cast %517 : i32 to index
    %c0_240 = arith.constant 0 : index
    %552 = vector.load %arg10[%551, %c0_240] : memref<64x128xf32, #tpu.memory_space<vmem>>, vector<8x128xf32>
    tpu.vector_store %arg10[%551, %c0_240], %550 {strides = array<i32>} : memref<64x128xf32, #tpu.memory_space<vmem>>, vector<8x128xf32>,
    %c4_i32_241 = arith.constant 4 : i32
    %c8_i32_242 = arith.constant 8 : i32
    %553 = arith.muli %c4_i32_241, %c8_i32_242 : i32
    %554 = tpu.assume_multiple %553, 8 : i32
    %555 = arith.index_cast %554 : i32 to index
    %c0_243 = arith.constant 0 : index
    %556 = vector.load %arg9[%555, %c0_243] : memref<64x384xf32, #tpu.memory_space<vmem>>, vector<8x384xf32>
    %557 = arith.truncf %550 : vector<8x128xf32> to vector<8x128xbf16>
    %c1_244 = arith.constant 1 : index
    %c0_245 = arith.constant 0 : index
    %c0_246 = arith.constant 0 : index
    %558 = vector.load %arg2[%c1_244, %c0_245, %c0_246] : memref<3x128x384xbf16, #tpu.memory_space<vmem>>, vector<1x128x384xbf16>
    %559 = vector.shape_cast %558 : vector<1x128x384xbf16> to vector<128x384xbf16>
    %cst_247 = arith.constant dense<0.000000e+00> : vector<8x384xf32>
    %560 = tpu.matmul %557, %559, %cst_247 {dimension_numbers = #tpu.dot_dimension_numbers<[1], [0], [0], [1], [0, 0, 1, 1], [], []>} : vector<8x128xbf16>, vector<128x384xbf16>, vector<8x384xf32> -> vector<8x384xf32>
    %561 = vector.extract_strided_slice %556 {offsets = [0, 0], sizes = [8, 128], strides = [1, 1]} : vector<8x384xf32> to vector<8x128xf32>
    %562 = vector.extract_strided_slice %560 {offsets = [0, 0], sizes = [8, 128], strides = [1, 1]} : vector<8x384xf32> to vector<8x128xf32>
    %563 = arith.addf %561, %562 : vector<8x128xf32>
    %564 = arith.negf %563 : vector<8x128xf32>
    %565 = math.exp %564 : vector<8x128xf32>
    %cst_248 = arith.constant 1.000000e+00 : f32
    %566 = vector.broadcast %cst_248 : f32 to vector<8x128xf32>
    %567 = arith.addf %566, %565 : vector<8x128xf32>
    %568 = arith.divf %566, %567 : vector<8x128xf32>
    %569 = vector.extract_strided_slice %556 {offsets = [0, 128], sizes = [8, 128], strides = [1, 1]} : vector<8x384xf32> to vector<8x128xf32>
    %570 = vector.extract_strided_slice %560 {offsets = [0, 128], sizes = [8, 128], strides = [1, 1]} : vector<8x384xf32> to vector<8x128xf32>
    %571 = arith.addf %569, %570 : vector<8x128xf32>
    %572 = arith.negf %571 : vector<8x128xf32>
    %573 = math.exp %572 : vector<8x128xf32>
    %cst_249 = arith.constant 1.000000e+00 : f32
    %574 = vector.broadcast %cst_249 : f32 to vector<8x128xf32>
    %575 = arith.addf %574, %573 : vector<8x128xf32>
    %576 = arith.divf %574, %575 : vector<8x128xf32>
    %577 = vector.extract_strided_slice %556 {offsets = [0, 256], sizes = [8, 128], strides = [1, 1]} : vector<8x384xf32> to vector<8x128xf32>
    %578 = vector.extract_strided_slice %560 {offsets = [0, 256], sizes = [8, 128], strides = [1, 1]} : vector<8x384xf32> to vector<8x128xf32>
    %579 = arith.addf %578, %403 : vector<8x128xf32>
    %580 = arith.mulf %568, %579 : vector<8x128xf32>
    %581 = arith.addf %577, %580 : vector<8x128xf32>
    %582 = math.tanh %581 : vector<8x128xf32>
    %cst_250 = arith.constant 1.000000e+00 : f32
    %583 = vector.broadcast %cst_250 : f32 to vector<8x128xf32>
    %584 = arith.subf %583, %576 : vector<8x128xf32>
    %585 = arith.mulf %584, %582 : vector<8x128xf32>
    %586 = arith.mulf %576, %550 : vector<8x128xf32>
    %587 = arith.addf %585, %586 : vector<8x128xf32>
    %588 = arith.index_cast %554 : i32 to index
    %c0_251 = arith.constant 0 : index
    %589 = vector.load %arg10[%588, %c0_251] : memref<64x128xf32, #tpu.memory_space<vmem>>, vector<8x128xf32>
    tpu.vector_store %arg10[%588, %c0_251], %587 {strides = array<i32>} : memref<64x128xf32, #tpu.memory_space<vmem>>, vector<8x128xf32>,
    %c5_i32_252 = arith.constant 5 : i32
    %c8_i32_253 = arith.constant 8 : i32
    %590 = arith.muli %c5_i32_252, %c8_i32_253 : i32
    %591 = tpu.assume_multiple %590, 8 : i32
    %592 = arith.index_cast %591 : i32 to index
    %c0_254 = arith.constant 0 : index
    %593 = vector.load %arg9[%592, %c0_254] : memref<64x384xf32, #tpu.memory_space<vmem>>, vector<8x384xf32>
    %594 = arith.truncf %587 : vector<8x128xf32> to vector<8x128xbf16>
    %c1_255 = arith.constant 1 : index
    %c0_256 = arith.constant 0 : index
    %c0_257 = arith.constant 0 : index
    %595 = vector.load %arg2[%c1_255, %c0_256, %c0_257] : memref<3x128x384xbf16, #tpu.memory_space<vmem>>, vector<1x128x384xbf16>
    %596 = vector.shape_cast %595 : vector<1x128x384xbf16> to vector<128x384xbf16>
    %cst_258 = arith.constant dense<0.000000e+00> : vector<8x384xf32>
    %597 = tpu.matmul %594, %596, %cst_258 {dimension_numbers = #tpu.dot_dimension_numbers<[1], [0], [0], [1], [0, 0, 1, 1], [], []>} : vector<8x128xbf16>, vector<128x384xbf16>, vector<8x384xf32> -> vector<8x384xf32>
    %598 = vector.extract_strided_slice %593 {offsets = [0, 0], sizes = [8, 128], strides = [1, 1]} : vector<8x384xf32> to vector<8x128xf32>
    %599 = vector.extract_strided_slice %597 {offsets = [0, 0], sizes = [8, 128], strides = [1, 1]} : vector<8x384xf32> to vector<8x128xf32>
    %600 = arith.addf %598, %599 : vector<8x128xf32>
    %601 = arith.negf %600 : vector<8x128xf32>
    %602 = math.exp %601 : vector<8x128xf32>
    %cst_259 = arith.constant 1.000000e+00 : f32
    %603 = vector.broadcast %cst_259 : f32 to vector<8x128xf32>
    %604 = arith.addf %603, %602 : vector<8x128xf32>
    %605 = arith.divf %603, %604 : vector<8x128xf32>
    %606 = vector.extract_strided_slice %593 {offsets = [0, 128], sizes = [8, 128], strides = [1, 1]} : vector<8x384xf32> to vector<8x128xf32>
    %607 = vector.extract_strided_slice %597 {offsets = [0, 128], sizes = [8, 128], strides = [1, 1]} : vector<8x384xf32> to vector<8x128xf32>
    %608 = arith.addf %606, %607 : vector<8x128xf32>
    %609 = arith.negf %608 : vector<8x128xf32>
    %610 = math.exp %609 : vector<8x128xf32>
    %cst_260 = arith.constant 1.000000e+00 : f32
    %611 = vector.broadcast %cst_260 : f32 to vector<8x128xf32>
    %612 = arith.addf %611, %610 : vector<8x128xf32>
    %613 = arith.divf %611, %612 : vector<8x128xf32>
    %614 = vector.extract_strided_slice %593 {offsets = [0, 256], sizes = [8, 128], strides = [1, 1]} : vector<8x384xf32> to vector<8x128xf32>
    %615 = vector.extract_strided_slice %597 {offsets = [0, 256], sizes = [8, 128], strides = [1, 1]} : vector<8x384xf32> to vector<8x128xf32>
    %616 = arith.addf %615, %403 : vector<8x128xf32>
    %617 = arith.mulf %605, %616 : vector<8x128xf32>
    %618 = arith.addf %614, %617 : vector<8x128xf32>
    %619 = math.tanh %618 : vector<8x128xf32>
    %cst_261 = arith.constant 1.000000e+00 : f32
    %620 = vector.broadcast %cst_261 : f32 to vector<8x128xf32>
    %621 = arith.subf %620, %613 : vector<8x128xf32>
    %622 = arith.mulf %621, %619 : vector<8x128xf32>
    %623 = arith.mulf %613, %587 : vector<8x128xf32>
    %624 = arith.addf %622, %623 : vector<8x128xf32>
    %625 = arith.index_cast %591 : i32 to index
    %c0_262 = arith.constant 0 : index
    %626 = vector.load %arg10[%625, %c0_262] : memref<64x128xf32, #tpu.memory_space<vmem>>, vector<8x128xf32>
    tpu.vector_store %arg10[%625, %c0_262], %624 {strides = array<i32>} : memref<64x128xf32, #tpu.memory_space<vmem>>, vector<8x128xf32>,
    %c6_i32_263 = arith.constant 6 : i32
    %c8_i32_264 = arith.constant 8 : i32
    %627 = arith.muli %c6_i32_263, %c8_i32_264 : i32
    %628 = tpu.assume_multiple %627, 8 : i32
    %629 = arith.index_cast %628 : i32 to index
    %c0_265 = arith.constant 0 : index
    %630 = vector.load %arg9[%629, %c0_265] : memref<64x384xf32, #tpu.memory_space<vmem>>, vector<8x384xf32>
    %631 = arith.truncf %624 : vector<8x128xf32> to vector<8x128xbf16>
    %c1_266 = arith.constant 1 : index
    %c0_267 = arith.constant 0 : index
    %c0_268 = arith.constant 0 : index
    %632 = vector.load %arg2[%c1_266, %c0_267, %c0_268] : memref<3x128x384xbf16, #tpu.memory_space<vmem>>, vector<1x128x384xbf16>
    %633 = vector.shape_cast %632 : vector<1x128x384xbf16> to vector<128x384xbf16>
    %cst_269 = arith.constant dense<0.000000e+00> : vector<8x384xf32>
    %634 = tpu.matmul %631, %633, %cst_269 {dimension_numbers = #tpu.dot_dimension_numbers<[1], [0], [0], [1], [0, 0, 1, 1], [], []>} : vector<8x128xbf16>, vector<128x384xbf16>, vector<8x384xf32> -> vector<8x384xf32>
    %635 = vector.extract_strided_slice %630 {offsets = [0, 0], sizes = [8, 128], strides = [1, 1]} : vector<8x384xf32> to vector<8x128xf32>
    %636 = vector.extract_strided_slice %634 {offsets = [0, 0], sizes = [8, 128], strides = [1, 1]} : vector<8x384xf32> to vector<8x128xf32>
    %637 = arith.addf %635, %636 : vector<8x128xf32>
    %638 = arith.negf %637 : vector<8x128xf32>
    %639 = math.exp %638 : vector<8x128xf32>
    %cst_270 = arith.constant 1.000000e+00 : f32
    %640 = vector.broadcast %cst_270 : f32 to vector<8x128xf32>
    %641 = arith.addf %640, %639 : vector<8x128xf32>
    %642 = arith.divf %640, %641 : vector<8x128xf32>
    %643 = vector.extract_strided_slice %630 {offsets = [0, 128], sizes = [8, 128], strides = [1, 1]} : vector<8x384xf32> to vector<8x128xf32>
    %644 = vector.extract_strided_slice %634 {offsets = [0, 128], sizes = [8, 128], strides = [1, 1]} : vector<8x384xf32> to vector<8x128xf32>
    %645 = arith.addf %643, %644 : vector<8x128xf32>
    %646 = arith.negf %645 : vector<8x128xf32>
    %647 = math.exp %646 : vector<8x128xf32>
    %cst_271 = arith.constant 1.000000e+00 : f32
    %648 = vector.broadcast %cst_271 : f32 to vector<8x128xf32>
    %649 = arith.addf %648, %647 : vector<8x128xf32>
    %650 = arith.divf %648, %649 : vector<8x128xf32>
    %651 = vector.extract_strided_slice %630 {offsets = [0, 256], sizes = [8, 128], strides = [1, 1]} : vector<8x384xf32> to vector<8x128xf32>
    %652 = vector.extract_strided_slice %634 {offsets = [0, 256], sizes = [8, 128], strides = [1, 1]} : vector<8x384xf32> to vector<8x128xf32>
    %653 = arith.addf %652, %403 : vector<8x128xf32>
    %654 = arith.mulf %642, %653 : vector<8x128xf32>
    %655 = arith.addf %651, %654 : vector<8x128xf32>
    %656 = math.tanh %655 : vector<8x128xf32>
    %cst_272 = arith.constant 1.000000e+00 : f32
    %657 = vector.broadcast %cst_272 : f32 to vector<8x128xf32>
    %658 = arith.subf %657, %650 : vector<8x128xf32>
    %659 = arith.mulf %658, %656 : vector<8x128xf32>
    %660 = arith.mulf %650, %624 : vector<8x128xf32>
    %661 = arith.addf %659, %660 : vector<8x128xf32>
    %662 = arith.index_cast %628 : i32 to index
    %c0_273 = arith.constant 0 : index
    %663 = vector.load %arg10[%662, %c0_273] : memref<64x128xf32, #tpu.memory_space<vmem>>, vector<8x128xf32>
    tpu.vector_store %arg10[%662, %c0_273], %661 {strides = array<i32>} : memref<64x128xf32, #tpu.memory_space<vmem>>, vector<8x128xf32>,
    %c7_i32_274 = arith.constant 7 : i32
    %c8_i32_275 = arith.constant 8 : i32
    %664 = arith.muli %c7_i32_274, %c8_i32_275 : i32
    %665 = tpu.assume_multiple %664, 8 : i32
    %666 = arith.index_cast %665 : i32 to index
    %c0_276 = arith.constant 0 : index
    %667 = vector.load %arg9[%666, %c0_276] : memref<64x384xf32, #tpu.memory_space<vmem>>, vector<8x384xf32>
    %668 = arith.truncf %661 : vector<8x128xf32> to vector<8x128xbf16>
    %c1_277 = arith.constant 1 : index
    %c0_278 = arith.constant 0 : index
    %c0_279 = arith.constant 0 : index
    %669 = vector.load %arg2[%c1_277, %c0_278, %c0_279] : memref<3x128x384xbf16, #tpu.memory_space<vmem>>, vector<1x128x384xbf16>
    %670 = vector.shape_cast %669 : vector<1x128x384xbf16> to vector<128x384xbf16>
    %cst_280 = arith.constant dense<0.000000e+00> : vector<8x384xf32>
    %671 = tpu.matmul %668, %670, %cst_280 {dimension_numbers = #tpu.dot_dimension_numbers<[1], [0], [0], [1], [0, 0, 1, 1], [], []>} : vector<8x128xbf16>, vector<128x384xbf16>, vector<8x384xf32> -> vector<8x384xf32>
    %672 = vector.extract_strided_slice %667 {offsets = [0, 0], sizes = [8, 128], strides = [1, 1]} : vector<8x384xf32> to vector<8x128xf32>
    %673 = vector.extract_strided_slice %671 {offsets = [0, 0], sizes = [8, 128], strides = [1, 1]} : vector<8x384xf32> to vector<8x128xf32>
    %674 = arith.addf %672, %673 : vector<8x128xf32>
    %675 = arith.negf %674 : vector<8x128xf32>
    %676 = math.exp %675 : vector<8x128xf32>
    %cst_281 = arith.constant 1.000000e+00 : f32
    %677 = vector.broadcast %cst_281 : f32 to vector<8x128xf32>
    %678 = arith.addf %677, %676 : vector<8x128xf32>
    %679 = arith.divf %677, %678 : vector<8x128xf32>
    %680 = vector.extract_strided_slice %667 {offsets = [0, 128], sizes = [8, 128], strides = [1, 1]} : vector<8x384xf32> to vector<8x128xf32>
    %681 = vector.extract_strided_slice %671 {offsets = [0, 128], sizes = [8, 128], strides = [1, 1]} : vector<8x384xf32> to vector<8x128xf32>
    %682 = arith.addf %680, %681 : vector<8x128xf32>
    %683 = arith.negf %682 : vector<8x128xf32>
    %684 = math.exp %683 : vector<8x128xf32>
    %cst_282 = arith.constant 1.000000e+00 : f32
    %685 = vector.broadcast %cst_282 : f32 to vector<8x128xf32>
    %686 = arith.addf %685, %684 : vector<8x128xf32>
    %687 = arith.divf %685, %686 : vector<8x128xf32>
    %688 = vector.extract_strided_slice %667 {offsets = [0, 256], sizes = [8, 128], strides = [1, 1]} : vector<8x384xf32> to vector<8x128xf32>
    %689 = vector.extract_strided_slice %671 {offsets = [0, 256], sizes = [8, 128], strides = [1, 1]} : vector<8x384xf32> to vector<8x128xf32>
    %690 = arith.addf %689, %403 : vector<8x128xf32>
    %691 = arith.mulf %679, %690 : vector<8x128xf32>
    %692 = arith.addf %688, %691 : vector<8x128xf32>
    %693 = math.tanh %692 : vector<8x128xf32>
    %cst_283 = arith.constant 1.000000e+00 : f32
    %694 = vector.broadcast %cst_283 : f32 to vector<8x128xf32>
    %695 = arith.subf %694, %687 : vector<8x128xf32>
    %696 = arith.mulf %695, %693 : vector<8x128xf32>
    %697 = arith.mulf %687, %661 : vector<8x128xf32>
    %698 = arith.addf %696, %697 : vector<8x128xf32>
    %699 = arith.index_cast %665 : i32 to index
    %c0_284 = arith.constant 0 : index
    %700 = vector.load %arg10[%699, %c0_284] : memref<64x128xf32, #tpu.memory_space<vmem>>, vector<8x128xf32>
    tpu.vector_store %arg10[%699, %c0_284], %698 {strides = array<i32>} : memref<64x128xf32, #tpu.memory_space<vmem>>, vector<8x128xf32>,
    %c8_i32_285 = arith.constant 8 : i32
    %c0_286 = arith.constant 0 : index
    %c0_287 = arith.constant 0 : index
    %701 = vector.load %arg10[%c0_286, %c0_287] : memref<64x128xf32, #tpu.memory_space<vmem>>, vector<8x128xf32>
    %c56_288 = arith.constant 56 : index
    %c0_289 = arith.constant 0 : index
    %702 = vector.load %arg10[%c56_288, %c0_289] : memref<64x128xf32, #tpu.memory_space<vmem>>, vector<8x128xf32>
    %703 = arith.select %7, %701, %702 : vector<8x128xi1>, vector<8x128xf32>
    %c0_290 = arith.constant 0 : index
    %c0_291 = arith.constant 0 : index
    %704 = vector.load %arg8[%c0_290, %c0_291] : memref<64x128xf32, #tpu.memory_space<vmem>>, vector<8x128xf32>
    tpu.vector_store %arg8[%c0_290, %c0_291], %703 {strides = array<i32>} : memref<64x128xf32, #tpu.memory_space<vmem>>, vector<8x128xf32>,
    %705 = arith.select %7, %702, %701 : vector<8x128xi1>, vector<8x128xf32>
    %c56_292 = arith.constant 56 : index
    %c0_293 = arith.constant 0 : index
    %706 = vector.load %arg8[%c56_292, %c0_293] : memref<64x128xf32, #tpu.memory_space<vmem>>, vector<8x128xf32>
    tpu.vector_store %arg8[%c56_292, %c0_293], %705 {strides = array<i32>} : memref<64x128xf32, #tpu.memory_space<vmem>>, vector<8x128xf32>,
    %c8_294 = arith.constant 8 : index
    %c0_295 = arith.constant 0 : index
    %707 = vector.load %arg10[%c8_294, %c0_295] : memref<64x128xf32, #tpu.memory_space<vmem>>, vector<8x128xf32>
    %c48_296 = arith.constant 48 : index
    %c0_297 = arith.constant 0 : index
    %708 = vector.load %arg10[%c48_296, %c0_297] : memref<64x128xf32, #tpu.memory_space<vmem>>, vector<8x128xf32>
    %709 = arith.select %7, %707, %708 : vector<8x128xi1>, vector<8x128xf32>
    %c8_298 = arith.constant 8 : index
    %c0_299 = arith.constant 0 : index
    %710 = vector.load %arg8[%c8_298, %c0_299] : memref<64x128xf32, #tpu.memory_space<vmem>>, vector<8x128xf32>
    tpu.vector_store %arg8[%c8_298, %c0_299], %709 {strides = array<i32>} : memref<64x128xf32, #tpu.memory_space<vmem>>, vector<8x128xf32>,
    %711 = arith.select %7, %708, %707 : vector<8x128xi1>, vector<8x128xf32>
    %c48_300 = arith.constant 48 : index
    %c0_301 = arith.constant 0 : index
    %712 = vector.load %arg8[%c48_300, %c0_301] : memref<64x128xf32, #tpu.memory_space<vmem>>, vector<8x128xf32>
    tpu.vector_store %arg8[%c48_300, %c0_301], %711 {strides = array<i32>} : memref<64x128xf32, #tpu.memory_space<vmem>>, vector<8x128xf32>,
    %c16_302 = arith.constant 16 : index
    %c0_303 = arith.constant 0 : index
    %713 = vector.load %arg10[%c16_302, %c0_303] : memref<64x128xf32, #tpu.memory_space<vmem>>, vector<8x128xf32>
    %c40_304 = arith.constant 40 : index
    %c0_305 = arith.constant 0 : index
    %714 = vector.load %arg10[%c40_304, %c0_305] : memref<64x128xf32, #tpu.memory_space<vmem>>, vector<8x128xf32>
    %715 = arith.select %7, %713, %714 : vector<8x128xi1>, vector<8x128xf32>
    %c16_306 = arith.constant 16 : index
    %c0_307 = arith.constant 0 : index
    %716 = vector.load %arg8[%c16_306, %c0_307] : memref<64x128xf32, #tpu.memory_space<vmem>>, vector<8x128xf32>
    tpu.vector_store %arg8[%c16_306, %c0_307], %715 {strides = array<i32>} : memref<64x128xf32, #tpu.memory_space<vmem>>, vector<8x128xf32>,
    %717 = arith.select %7, %714, %713 : vector<8x128xi1>, vector<8x128xf32>
    %c40_308 = arith.constant 40 : index
    %c0_309 = arith.constant 0 : index
    %718 = vector.load %arg8[%c40_308, %c0_309] : memref<64x128xf32, #tpu.memory_space<vmem>>, vector<8x128xf32>
    tpu.vector_store %arg8[%c40_308, %c0_309], %717 {strides = array<i32>} : memref<64x128xf32, #tpu.memory_space<vmem>>, vector<8x128xf32>,
    %c24_310 = arith.constant 24 : index
    %c0_311 = arith.constant 0 : index
    %719 = vector.load %arg10[%c24_310, %c0_311] : memref<64x128xf32, #tpu.memory_space<vmem>>, vector<8x128xf32>
    %c32_312 = arith.constant 32 : index
    %c0_313 = arith.constant 0 : index
    %720 = vector.load %arg10[%c32_312, %c0_313] : memref<64x128xf32, #tpu.memory_space<vmem>>, vector<8x128xf32>
    %721 = arith.select %7, %719, %720 : vector<8x128xi1>, vector<8x128xf32>
    %c24_314 = arith.constant 24 : index
    %c0_315 = arith.constant 0 : index
    %722 = vector.load %arg8[%c24_314, %c0_315] : memref<64x128xf32, #tpu.memory_space<vmem>>, vector<8x128xf32>
    tpu.vector_store %arg8[%c24_314, %c0_315], %721 {strides = array<i32>} : memref<64x128xf32, #tpu.memory_space<vmem>>, vector<8x128xf32>,
    %723 = arith.select %7, %720, %719 : vector<8x128xi1>, vector<8x128xf32>
    %c32_316 = arith.constant 32 : index
    %c0_317 = arith.constant 0 : index
    %724 = vector.load %arg8[%c32_316, %c0_317] : memref<64x128xf32, #tpu.memory_space<vmem>>, vector<8x128xf32>
    tpu.vector_store %arg8[%c32_316, %c0_317], %723 {strides = array<i32>} : memref<64x128xf32, #tpu.memory_space<vmem>>, vector<8x128xf32>,
    %c0_318 = arith.constant 0 : index
    %c0_319 = arith.constant 0 : index
    %725 = vector.load %arg8[%c0_318, %c0_319] : memref<64x128xf32, #tpu.memory_space<vmem>>, vector<64x128xf32>
    %726 = arith.truncf %725 : vector<64x128xf32> to vector<64x128xbf16>
    %c2 = arith.constant 2 : index
    %c0_320 = arith.constant 0 : index
    %c0_321 = arith.constant 0 : index
    %727 = vector.load %arg1[%c2, %c0_320, %c0_321] : memref<3x128x384xbf16, #tpu.memory_space<vmem>>, vector<1x128x384xbf16>
    %728 = vector.shape_cast %727 : vector<1x128x384xbf16> to vector<128x384xbf16>
    %cst_322 = arith.constant dense<0.000000e+00> : vector<64x384xf32>
    %729 = tpu.matmul %726, %728, %cst_322 {dimension_numbers = #tpu.dot_dimension_numbers<[1], [0], [0], [1], [0, 0, 1, 1], [], []>} : vector<64x128xbf16>, vector<128x384xbf16>, vector<64x384xf32> -> vector<64x384xf32>
    %c2_323 = arith.constant 2 : index
    %c0_324 = arith.constant 0 : index
    %c0_325 = arith.constant 0 : index
    %730 = vector.load %arg3[%c2_323, %c0_324, %c0_325] : memref<3x1x384xf32, #tpu.memory_space<vmem>>, vector<1x1x384xf32>
    %731 = vector.shape_cast %730 : vector<1x1x384xf32> to vector<1x384xf32>
    %732 = vector.broadcast %731 : vector<1x384xf32> to vector<64x384xf32>
    %733 = arith.addf %729, %732 : vector<64x384xf32>
    %c0_326 = arith.constant 0 : index
    %c0_327 = arith.constant 0 : index
    %734 = vector.load %arg9[%c0_326, %c0_327] : memref<64x384xf32, #tpu.memory_space<vmem>>, vector<64x384xf32>
    tpu.vector_store %arg9[%c0_326, %c0_327], %733 {strides = array<i32>} : memref<64x384xf32, #tpu.memory_space<vmem>>, vector<64x384xf32>,
    %c0_328 = arith.constant 0 : index
    %c0_329 = arith.constant 0 : index
    %735 = vector.load %arg9[%c0_328, %c0_329] : memref<64x384xf32, #tpu.memory_space<vmem>>, vector<8x384xf32>
    %c56_330 = arith.constant 56 : index
    %c0_331 = arith.constant 0 : index
    %736 = vector.load %arg9[%c56_330, %c0_331] : memref<64x384xf32, #tpu.memory_space<vmem>>, vector<8x384xf32>
    %737 = arith.select %4, %735, %736 : vector<8x384xi1>, vector<8x384xf32>
    %c0_332 = arith.constant 0 : index
    %c0_333 = arith.constant 0 : index
    %738 = vector.load %arg9[%c0_332, %c0_333] : memref<64x384xf32, #tpu.memory_space<vmem>>, vector<8x384xf32>
    tpu.vector_store %arg9[%c0_332, %c0_333], %737 {strides = array<i32>} : memref<64x384xf32, #tpu.memory_space<vmem>>, vector<8x384xf32>,
    %739 = arith.select %4, %736, %735 : vector<8x384xi1>, vector<8x384xf32>
    %c56_334 = arith.constant 56 : index
    %c0_335 = arith.constant 0 : index
    %740 = vector.load %arg9[%c56_334, %c0_335] : memref<64x384xf32, #tpu.memory_space<vmem>>, vector<8x384xf32>
    tpu.vector_store %arg9[%c56_334, %c0_335], %739 {strides = array<i32>} : memref<64x384xf32, #tpu.memory_space<vmem>>, vector<8x384xf32>,
    %c8_336 = arith.constant 8 : index
    %c0_337 = arith.constant 0 : index
    %741 = vector.load %arg9[%c8_336, %c0_337] : memref<64x384xf32, #tpu.memory_space<vmem>>, vector<8x384xf32>
    %c48_338 = arith.constant 48 : index
    %c0_339 = arith.constant 0 : index
    %742 = vector.load %arg9[%c48_338, %c0_339] : memref<64x384xf32, #tpu.memory_space<vmem>>, vector<8x384xf32>
    %743 = arith.select %4, %741, %742 : vector<8x384xi1>, vector<8x384xf32>
    %c8_340 = arith.constant 8 : index
    %c0_341 = arith.constant 0 : index
    %744 = vector.load %arg9[%c8_340, %c0_341] : memref<64x384xf32, #tpu.memory_space<vmem>>, vector<8x384xf32>
    tpu.vector_store %arg9[%c8_340, %c0_341], %743 {strides = array<i32>} : memref<64x384xf32, #tpu.memory_space<vmem>>, vector<8x384xf32>,
    %745 = arith.select %4, %742, %741 : vector<8x384xi1>, vector<8x384xf32>
    %c48_342 = arith.constant 48 : index
    %c0_343 = arith.constant 0 : index
    %746 = vector.load %arg9[%c48_342, %c0_343] : memref<64x384xf32, #tpu.memory_space<vmem>>, vector<8x384xf32>
    tpu.vector_store %arg9[%c48_342, %c0_343], %745 {strides = array<i32>} : memref<64x384xf32, #tpu.memory_space<vmem>>, vector<8x384xf32>,
    %c16_344 = arith.constant 16 : index
    %c0_345 = arith.constant 0 : index
    %747 = vector.load %arg9[%c16_344, %c0_345] : memref<64x384xf32, #tpu.memory_space<vmem>>, vector<8x384xf32>
    %c40_346 = arith.constant 40 : index
    %c0_347 = arith.constant 0 : index
    %748 = vector.load %arg9[%c40_346, %c0_347] : memref<64x384xf32, #tpu.memory_space<vmem>>, vector<8x384xf32>
    %749 = arith.select %4, %747, %748 : vector<8x384xi1>, vector<8x384xf32>
    %c16_348 = arith.constant 16 : index
    %c0_349 = arith.constant 0 : index
    %750 = vector.load %arg9[%c16_348, %c0_349] : memref<64x384xf32, #tpu.memory_space<vmem>>, vector<8x384xf32>
    tpu.vector_store %arg9[%c16_348, %c0_349], %749 {strides = array<i32>} : memref<64x384xf32, #tpu.memory_space<vmem>>, vector<8x384xf32>,
    %751 = arith.select %4, %748, %747 : vector<8x384xi1>, vector<8x384xf32>
    %c40_350 = arith.constant 40 : index
    %c0_351 = arith.constant 0 : index
    %752 = vector.load %arg9[%c40_350, %c0_351] : memref<64x384xf32, #tpu.memory_space<vmem>>, vector<8x384xf32>
    tpu.vector_store %arg9[%c40_350, %c0_351], %751 {strides = array<i32>} : memref<64x384xf32, #tpu.memory_space<vmem>>, vector<8x384xf32>,
    %c24_352 = arith.constant 24 : index
    %c0_353 = arith.constant 0 : index
    %753 = vector.load %arg9[%c24_352, %c0_353] : memref<64x384xf32, #tpu.memory_space<vmem>>, vector<8x384xf32>
    %c32_354 = arith.constant 32 : index
    %c0_355 = arith.constant 0 : index
    %754 = vector.load %arg9[%c32_354, %c0_355] : memref<64x384xf32, #tpu.memory_space<vmem>>, vector<8x384xf32>
    %755 = arith.select %4, %753, %754 : vector<8x384xi1>, vector<8x384xf32>
    %c24_356 = arith.constant 24 : index
    %c0_357 = arith.constant 0 : index
    %756 = vector.load %arg9[%c24_356, %c0_357] : memref<64x384xf32, #tpu.memory_space<vmem>>, vector<8x384xf32>
    tpu.vector_store %arg9[%c24_356, %c0_357], %755 {strides = array<i32>} : memref<64x384xf32, #tpu.memory_space<vmem>>, vector<8x384xf32>,
    %757 = arith.select %4, %754, %753 : vector<8x384xi1>, vector<8x384xf32>
    %c32_358 = arith.constant 32 : index
    %c0_359 = arith.constant 0 : index
    %758 = vector.load %arg9[%c32_358, %c0_359] : memref<64x384xf32, #tpu.memory_space<vmem>>, vector<8x384xf32>
    tpu.vector_store %arg9[%c32_358, %c0_359], %757 {strides = array<i32>} : memref<64x384xf32, #tpu.memory_space<vmem>>, vector<8x384xf32>,
    %c2_360 = arith.constant 2 : index
    %c0_361 = arith.constant 0 : index
    %c0_362 = arith.constant 0 : index
    %759 = vector.load %arg4[%c2_360, %c0_361, %c0_362] : memref<3x1x128xf32, #tpu.memory_space<vmem>>, vector<1x1x128xf32>
    %760 = vector.shape_cast %759 : vector<1x1x128xf32> to vector<1x128xf32>
    %761 = vector.shape_cast %760 : vector<1x128xf32> to vector<1x128xf32>
    %762 = vector.broadcast %761 : vector<1x128xf32> to vector<8x128xf32>
    %cst_363 = arith.constant 0.000000e+00 : f32
    %763 = vector.broadcast %cst_363 : f32 to vector<8x128xf32>
    %c0_i32_364 = arith.constant 0 : i32
    %c8_i32_365 = arith.constant 8 : i32
    %764 = arith.muli %c0_i32_364, %c8_i32_365 : i32
    %765 = tpu.assume_multiple %764, 8 : i32
    %766 = arith.index_cast %765 : i32 to index
    %c0_366 = arith.constant 0 : index
    %767 = vector.load %arg9[%766, %c0_366] : memref<64x384xf32, #tpu.memory_space<vmem>>, vector<8x384xf32>
    %768 = arith.truncf %763 : vector<8x128xf32> to vector<8x128xbf16>
    %c2_367 = arith.constant 2 : index
    %c0_368 = arith.constant 0 : index
    %c0_369 = arith.constant 0 : index
    %769 = vector.load %arg2[%c2_367, %c0_368, %c0_369] : memref<3x128x384xbf16, #tpu.memory_space<vmem>>, vector<1x128x384xbf16>
    %770 = vector.shape_cast %769 : vector<1x128x384xbf16> to vector<128x384xbf16>
    %cst_370 = arith.constant dense<0.000000e+00> : vector<8x384xf32>
    %771 = tpu.matmul %768, %770, %cst_370 {dimension_numbers = #tpu.dot_dimension_numbers<[1], [0], [0], [1], [0, 0, 1, 1], [], []>} : vector<8x128xbf16>, vector<128x384xbf16>, vector<8x384xf32> -> vector<8x384xf32>
    %772 = vector.extract_strided_slice %767 {offsets = [0, 0], sizes = [8, 128], strides = [1, 1]} : vector<8x384xf32> to vector<8x128xf32>
    %773 = vector.extract_strided_slice %771 {offsets = [0, 0], sizes = [8, 128], strides = [1, 1]} : vector<8x384xf32> to vector<8x128xf32>
    %774 = arith.addf %772, %773 : vector<8x128xf32>
    %775 = arith.negf %774 : vector<8x128xf32>
    %776 = math.exp %775 : vector<8x128xf32>
    %cst_371 = arith.constant 1.000000e+00 : f32
    %777 = vector.broadcast %cst_371 : f32 to vector<8x128xf32>
    %778 = arith.addf %777, %776 : vector<8x128xf32>
    %779 = arith.divf %777, %778 : vector<8x128xf32>
    %780 = vector.extract_strided_slice %767 {offsets = [0, 128], sizes = [8, 128], strides = [1, 1]} : vector<8x384xf32> to vector<8x128xf32>
    %781 = vector.extract_strided_slice %771 {offsets = [0, 128], sizes = [8, 128], strides = [1, 1]} : vector<8x384xf32> to vector<8x128xf32>
    %782 = arith.addf %780, %781 : vector<8x128xf32>
    %783 = arith.negf %782 : vector<8x128xf32>
    %784 = math.exp %783 : vector<8x128xf32>
    %cst_372 = arith.constant 1.000000e+00 : f32
    %785 = vector.broadcast %cst_372 : f32 to vector<8x128xf32>
    %786 = arith.addf %785, %784 : vector<8x128xf32>
    %787 = arith.divf %785, %786 : vector<8x128xf32>
    %788 = vector.extract_strided_slice %767 {offsets = [0, 256], sizes = [8, 128], strides = [1, 1]} : vector<8x384xf32> to vector<8x128xf32>
    %789 = vector.extract_strided_slice %771 {offsets = [0, 256], sizes = [8, 128], strides = [1, 1]} : vector<8x384xf32> to vector<8x128xf32>
    %790 = arith.addf %789, %762 : vector<8x128xf32>
    %791 = arith.mulf %779, %790 : vector<8x128xf32>
    %792 = arith.addf %788, %791 : vector<8x128xf32>
    %793 = math.tanh %792 : vector<8x128xf32>
    %cst_373 = arith.constant 1.000000e+00 : f32
    %794 = vector.broadcast %cst_373 : f32 to vector<8x128xf32>
    %795 = arith.subf %794, %787 : vector<8x128xf32>
    %796 = arith.mulf %795, %793 : vector<8x128xf32>
    %797 = arith.mulf %787, %763 : vector<8x128xf32>
    %798 = arith.addf %796, %797 : vector<8x128xf32>
    %799 = arith.index_cast %765 : i32 to index
    %c0_374 = arith.constant 0 : index
    %800 = vector.load %arg10[%799, %c0_374] : memref<64x128xf32, #tpu.memory_space<vmem>>, vector<8x128xf32>
    tpu.vector_store %arg10[%799, %c0_374], %798 {strides = array<i32>} : memref<64x128xf32, #tpu.memory_space<vmem>>, vector<8x128xf32>,
    %c1_i32_375 = arith.constant 1 : i32
    %c8_i32_376 = arith.constant 8 : i32
    %801 = arith.muli %c1_i32_375, %c8_i32_376 : i32
    %802 = tpu.assume_multiple %801, 8 : i32
    %803 = arith.index_cast %802 : i32 to index
    %c0_377 = arith.constant 0 : index
    %804 = vector.load %arg9[%803, %c0_377] : memref<64x384xf32, #tpu.memory_space<vmem>>, vector<8x384xf32>
    %805 = arith.truncf %798 : vector<8x128xf32> to vector<8x128xbf16>
    %c2_378 = arith.constant 2 : index
    %c0_379 = arith.constant 0 : index
    %c0_380 = arith.constant 0 : index
    %806 = vector.load %arg2[%c2_378, %c0_379, %c0_380] : memref<3x128x384xbf16, #tpu.memory_space<vmem>>, vector<1x128x384xbf16>
    %807 = vector.shape_cast %806 : vector<1x128x384xbf16> to vector<128x384xbf16>
    %cst_381 = arith.constant dense<0.000000e+00> : vector<8x384xf32>
    %808 = tpu.matmul %805, %807, %cst_381 {dimension_numbers = #tpu.dot_dimension_numbers<[1], [0], [0], [1], [0, 0, 1, 1], [], []>} : vector<8x128xbf16>, vector<128x384xbf16>, vector<8x384xf32> -> vector<8x384xf32>
    %809 = vector.extract_strided_slice %804 {offsets = [0, 0], sizes = [8, 128], strides = [1, 1]} : vector<8x384xf32> to vector<8x128xf32>
    %810 = vector.extract_strided_slice %808 {offsets = [0, 0], sizes = [8, 128], strides = [1, 1]} : vector<8x384xf32> to vector<8x128xf32>
    %811 = arith.addf %809, %810 : vector<8x128xf32>
    %812 = arith.negf %811 : vector<8x128xf32>
    %813 = math.exp %812 : vector<8x128xf32>
    %cst_382 = arith.constant 1.000000e+00 : f32
    %814 = vector.broadcast %cst_382 : f32 to vector<8x128xf32>
    %815 = arith.addf %814, %813 : vector<8x128xf32>
    %816 = arith.divf %814, %815 : vector<8x128xf32>
    %817 = vector.extract_strided_slice %804 {offsets = [0, 128], sizes = [8, 128], strides = [1, 1]} : vector<8x384xf32> to vector<8x128xf32>
    %818 = vector.extract_strided_slice %808 {offsets = [0, 128], sizes = [8, 128], strides = [1, 1]} : vector<8x384xf32> to vector<8x128xf32>
    %819 = arith.addf %817, %818 : vector<8x128xf32>
    %820 = arith.negf %819 : vector<8x128xf32>
    %821 = math.exp %820 : vector<8x128xf32>
    %cst_383 = arith.constant 1.000000e+00 : f32
    %822 = vector.broadcast %cst_383 : f32 to vector<8x128xf32>
    %823 = arith.addf %822, %821 : vector<8x128xf32>
    %824 = arith.divf %822, %823 : vector<8x128xf32>
    %825 = vector.extract_strided_slice %804 {offsets = [0, 256], sizes = [8, 128], strides = [1, 1]} : vector<8x384xf32> to vector<8x128xf32>
    %826 = vector.extract_strided_slice %808 {offsets = [0, 256], sizes = [8, 128], strides = [1, 1]} : vector<8x384xf32> to vector<8x128xf32>
    %827 = arith.addf %826, %762 : vector<8x128xf32>
    %828 = arith.mulf %816, %827 : vector<8x128xf32>
    %829 = arith.addf %825, %828 : vector<8x128xf32>
    %830 = math.tanh %829 : vector<8x128xf32>
    %cst_384 = arith.constant 1.000000e+00 : f32
    %831 = vector.broadcast %cst_384 : f32 to vector<8x128xf32>
    %832 = arith.subf %831, %824 : vector<8x128xf32>
    %833 = arith.mulf %832, %830 : vector<8x128xf32>
    %834 = arith.mulf %824, %798 : vector<8x128xf32>
    %835 = arith.addf %833, %834 : vector<8x128xf32>
    %836 = arith.index_cast %802 : i32 to index
    %c0_385 = arith.constant 0 : index
    %837 = vector.load %arg10[%836, %c0_385] : memref<64x128xf32, #tpu.memory_space<vmem>>, vector<8x128xf32>
    tpu.vector_store %arg10[%836, %c0_385], %835 {strides = array<i32>} : memref<64x128xf32, #tpu.memory_space<vmem>>, vector<8x128xf32>,
    %c2_i32_386 = arith.constant 2 : i32
    %c8_i32_387 = arith.constant 8 : i32
    %838 = arith.muli %c2_i32_386, %c8_i32_387 : i32
    %839 = tpu.assume_multiple %838, 8 : i32
    %840 = arith.index_cast %839 : i32 to index
    %c0_388 = arith.constant 0 : index
    %841 = vector.load %arg9[%840, %c0_388] : memref<64x384xf32, #tpu.memory_space<vmem>>, vector<8x384xf32>
    %842 = arith.truncf %835 : vector<8x128xf32> to vector<8x128xbf16>
    %c2_389 = arith.constant 2 : index
    %c0_390 = arith.constant 0 : index
    %c0_391 = arith.constant 0 : index
    %843 = vector.load %arg2[%c2_389, %c0_390, %c0_391] : memref<3x128x384xbf16, #tpu.memory_space<vmem>>, vector<1x128x384xbf16>
    %844 = vector.shape_cast %843 : vector<1x128x384xbf16> to vector<128x384xbf16>
    %cst_392 = arith.constant dense<0.000000e+00> : vector<8x384xf32>
    %845 = tpu.matmul %842, %844, %cst_392 {dimension_numbers = #tpu.dot_dimension_numbers<[1], [0], [0], [1], [0, 0, 1, 1], [], []>} : vector<8x128xbf16>, vector<128x384xbf16>, vector<8x384xf32> -> vector<8x384xf32>
    %846 = vector.extract_strided_slice %841 {offsets = [0, 0], sizes = [8, 128], strides = [1, 1]} : vector<8x384xf32> to vector<8x128xf32>
    %847 = vector.extract_strided_slice %845 {offsets = [0, 0], sizes = [8, 128], strides = [1, 1]} : vector<8x384xf32> to vector<8x128xf32>
    %848 = arith.addf %846, %847 : vector<8x128xf32>
    %849 = arith.negf %848 : vector<8x128xf32>
    %850 = math.exp %849 : vector<8x128xf32>
    %cst_393 = arith.constant 1.000000e+00 : f32
    %851 = vector.broadcast %cst_393 : f32 to vector<8x128xf32>
    %852 = arith.addf %851, %850 : vector<8x128xf32>
    %853 = arith.divf %851, %852 : vector<8x128xf32>
    %854 = vector.extract_strided_slice %841 {offsets = [0, 128], sizes = [8, 128], strides = [1, 1]} : vector<8x384xf32> to vector<8x128xf32>
    %855 = vector.extract_strided_slice %845 {offsets = [0, 128], sizes = [8, 128], strides = [1, 1]} : vector<8x384xf32> to vector<8x128xf32>
    %856 = arith.addf %854, %855 : vector<8x128xf32>
    %857 = arith.negf %856 : vector<8x128xf32>
    %858 = math.exp %857 : vector<8x128xf32>
    %cst_394 = arith.constant 1.000000e+00 : f32
    %859 = vector.broadcast %cst_394 : f32 to vector<8x128xf32>
    %860 = arith.addf %859, %858 : vector<8x128xf32>
    %861 = arith.divf %859, %860 : vector<8x128xf32>
    %862 = vector.extract_strided_slice %841 {offsets = [0, 256], sizes = [8, 128], strides = [1, 1]} : vector<8x384xf32> to vector<8x128xf32>
    %863 = vector.extract_strided_slice %845 {offsets = [0, 256], sizes = [8, 128], strides = [1, 1]} : vector<8x384xf32> to vector<8x128xf32>
    %864 = arith.addf %863, %762 : vector<8x128xf32>
    %865 = arith.mulf %853, %864 : vector<8x128xf32>
    %866 = arith.addf %862, %865 : vector<8x128xf32>
    %867 = math.tanh %866 : vector<8x128xf32>
    %cst_395 = arith.constant 1.000000e+00 : f32
    %868 = vector.broadcast %cst_395 : f32 to vector<8x128xf32>
    %869 = arith.subf %868, %861 : vector<8x128xf32>
    %870 = arith.mulf %869, %867 : vector<8x128xf32>
    %871 = arith.mulf %861, %835 : vector<8x128xf32>
    %872 = arith.addf %870, %871 : vector<8x128xf32>
    %873 = arith.index_cast %839 : i32 to index
    %c0_396 = arith.constant 0 : index
    %874 = vector.load %arg10[%873, %c0_396] : memref<64x128xf32, #tpu.memory_space<vmem>>, vector<8x128xf32>
    tpu.vector_store %arg10[%873, %c0_396], %872 {strides = array<i32>} : memref<64x128xf32, #tpu.memory_space<vmem>>, vector<8x128xf32>,
    %c3_i32_397 = arith.constant 3 : i32
    %c8_i32_398 = arith.constant 8 : i32
    %875 = arith.muli %c3_i32_397, %c8_i32_398 : i32
    %876 = tpu.assume_multiple %875, 8 : i32
    %877 = arith.index_cast %876 : i32 to index
    %c0_399 = arith.constant 0 : index
    %878 = vector.load %arg9[%877, %c0_399] : memref<64x384xf32, #tpu.memory_space<vmem>>, vector<8x384xf32>
    %879 = arith.truncf %872 : vector<8x128xf32> to vector<8x128xbf16>
    %c2_400 = arith.constant 2 : index
    %c0_401 = arith.constant 0 : index
    %c0_402 = arith.constant 0 : index
    %880 = vector.load %arg2[%c2_400, %c0_401, %c0_402] : memref<3x128x384xbf16, #tpu.memory_space<vmem>>, vector<1x128x384xbf16>
    %881 = vector.shape_cast %880 : vector<1x128x384xbf16> to vector<128x384xbf16>
    %cst_403 = arith.constant dense<0.000000e+00> : vector<8x384xf32>
    %882 = tpu.matmul %879, %881, %cst_403 {dimension_numbers = #tpu.dot_dimension_numbers<[1], [0], [0], [1], [0, 0, 1, 1], [], []>} : vector<8x128xbf16>, vector<128x384xbf16>, vector<8x384xf32> -> vector<8x384xf32>
    %883 = vector.extract_strided_slice %878 {offsets = [0, 0], sizes = [8, 128], strides = [1, 1]} : vector<8x384xf32> to vector<8x128xf32>
    %884 = vector.extract_strided_slice %882 {offsets = [0, 0], sizes = [8, 128], strides = [1, 1]} : vector<8x384xf32> to vector<8x128xf32>
    %885 = arith.addf %883, %884 : vector<8x128xf32>
    %886 = arith.negf %885 : vector<8x128xf32>
    %887 = math.exp %886 : vector<8x128xf32>
    %cst_404 = arith.constant 1.000000e+00 : f32
    %888 = vector.broadcast %cst_404 : f32 to vector<8x128xf32>
    %889 = arith.addf %888, %887 : vector<8x128xf32>
    %890 = arith.divf %888, %889 : vector<8x128xf32>
    %891 = vector.extract_strided_slice %878 {offsets = [0, 128], sizes = [8, 128], strides = [1, 1]} : vector<8x384xf32> to vector<8x128xf32>
    %892 = vector.extract_strided_slice %882 {offsets = [0, 128], sizes = [8, 128], strides = [1, 1]} : vector<8x384xf32> to vector<8x128xf32>
    %893 = arith.addf %891, %892 : vector<8x128xf32>
    %894 = arith.negf %893 : vector<8x128xf32>
    %895 = math.exp %894 : vector<8x128xf32>
    %cst_405 = arith.constant 1.000000e+00 : f32
    %896 = vector.broadcast %cst_405 : f32 to vector<8x128xf32>
    %897 = arith.addf %896, %895 : vector<8x128xf32>
    %898 = arith.divf %896, %897 : vector<8x128xf32>
    %899 = vector.extract_strided_slice %878 {offsets = [0, 256], sizes = [8, 128], strides = [1, 1]} : vector<8x384xf32> to vector<8x128xf32>
    %900 = vector.extract_strided_slice %882 {offsets = [0, 256], sizes = [8, 128], strides = [1, 1]} : vector<8x384xf32> to vector<8x128xf32>
    %901 = arith.addf %900, %762 : vector<8x128xf32>
    %902 = arith.mulf %890, %901 : vector<8x128xf32>
    %903 = arith.addf %899, %902 : vector<8x128xf32>
    %904 = math.tanh %903 : vector<8x128xf32>
    %cst_406 = arith.constant 1.000000e+00 : f32
    %905 = vector.broadcast %cst_406 : f32 to vector<8x128xf32>
    %906 = arith.subf %905, %898 : vector<8x128xf32>
    %907 = arith.mulf %906, %904 : vector<8x128xf32>
    %908 = arith.mulf %898, %872 : vector<8x128xf32>
    %909 = arith.addf %907, %908 : vector<8x128xf32>
    %910 = arith.index_cast %876 : i32 to index
    %c0_407 = arith.constant 0 : index
    %911 = vector.load %arg10[%910, %c0_407] : memref<64x128xf32, #tpu.memory_space<vmem>>, vector<8x128xf32>
    tpu.vector_store %arg10[%910, %c0_407], %909 {strides = array<i32>} : memref<64x128xf32, #tpu.memory_space<vmem>>, vector<8x128xf32>,
    %c4_i32_408 = arith.constant 4 : i32
    %c8_i32_409 = arith.constant 8 : i32
    %912 = arith.muli %c4_i32_408, %c8_i32_409 : i32
    %913 = tpu.assume_multiple %912, 8 : i32
    %914 = arith.index_cast %913 : i32 to index
    %c0_410 = arith.constant 0 : index
    %915 = vector.load %arg9[%914, %c0_410] : memref<64x384xf32, #tpu.memory_space<vmem>>, vector<8x384xf32>
    %916 = arith.truncf %909 : vector<8x128xf32> to vector<8x128xbf16>
    %c2_411 = arith.constant 2 : index
    %c0_412 = arith.constant 0 : index
    %c0_413 = arith.constant 0 : index
    %917 = vector.load %arg2[%c2_411, %c0_412, %c0_413] : memref<3x128x384xbf16, #tpu.memory_space<vmem>>, vector<1x128x384xbf16>
    %918 = vector.shape_cast %917 : vector<1x128x384xbf16> to vector<128x384xbf16>
    %cst_414 = arith.constant dense<0.000000e+00> : vector<8x384xf32>
    %919 = tpu.matmul %916, %918, %cst_414 {dimension_numbers = #tpu.dot_dimension_numbers<[1], [0], [0], [1], [0, 0, 1, 1], [], []>} : vector<8x128xbf16>, vector<128x384xbf16>, vector<8x384xf32> -> vector<8x384xf32>
    %920 = vector.extract_strided_slice %915 {offsets = [0, 0], sizes = [8, 128], strides = [1, 1]} : vector<8x384xf32> to vector<8x128xf32>
    %921 = vector.extract_strided_slice %919 {offsets = [0, 0], sizes = [8, 128], strides = [1, 1]} : vector<8x384xf32> to vector<8x128xf32>
    %922 = arith.addf %920, %921 : vector<8x128xf32>
    %923 = arith.negf %922 : vector<8x128xf32>
    %924 = math.exp %923 : vector<8x128xf32>
    %cst_415 = arith.constant 1.000000e+00 : f32
    %925 = vector.broadcast %cst_415 : f32 to vector<8x128xf32>
    %926 = arith.addf %925, %924 : vector<8x128xf32>
    %927 = arith.divf %925, %926 : vector<8x128xf32>
    %928 = vector.extract_strided_slice %915 {offsets = [0, 128], sizes = [8, 128], strides = [1, 1]} : vector<8x384xf32> to vector<8x128xf32>
    %929 = vector.extract_strided_slice %919 {offsets = [0, 128], sizes = [8, 128], strides = [1, 1]} : vector<8x384xf32> to vector<8x128xf32>
    %930 = arith.addf %928, %929 : vector<8x128xf32>
    %931 = arith.negf %930 : vector<8x128xf32>
    %932 = math.exp %931 : vector<8x128xf32>
    %cst_416 = arith.constant 1.000000e+00 : f32
    %933 = vector.broadcast %cst_416 : f32 to vector<8x128xf32>
    %934 = arith.addf %933, %932 : vector<8x128xf32>
    %935 = arith.divf %933, %934 : vector<8x128xf32>
    %936 = vector.extract_strided_slice %915 {offsets = [0, 256], sizes = [8, 128], strides = [1, 1]} : vector<8x384xf32> to vector<8x128xf32>
    %937 = vector.extract_strided_slice %919 {offsets = [0, 256], sizes = [8, 128], strides = [1, 1]} : vector<8x384xf32> to vector<8x128xf32>
    %938 = arith.addf %937, %762 : vector<8x128xf32>
    %939 = arith.mulf %927, %938 : vector<8x128xf32>
    %940 = arith.addf %936, %939 : vector<8x128xf32>
    %941 = math.tanh %940 : vector<8x128xf32>
    %cst_417 = arith.constant 1.000000e+00 : f32
    %942 = vector.broadcast %cst_417 : f32 to vector<8x128xf32>
    %943 = arith.subf %942, %935 : vector<8x128xf32>
    %944 = arith.mulf %943, %941 : vector<8x128xf32>
    %945 = arith.mulf %935, %909 : vector<8x128xf32>
    %946 = arith.addf %944, %945 : vector<8x128xf32>
    %947 = arith.index_cast %913 : i32 to index
    %c0_418 = arith.constant 0 : index
    %948 = vector.load %arg10[%947, %c0_418] : memref<64x128xf32, #tpu.memory_space<vmem>>, vector<8x128xf32>
    tpu.vector_store %arg10[%947, %c0_418], %946 {strides = array<i32>} : memref<64x128xf32, #tpu.memory_space<vmem>>, vector<8x128xf32>,
    %c5_i32_419 = arith.constant 5 : i32
    %c8_i32_420 = arith.constant 8 : i32
    %949 = arith.muli %c5_i32_419, %c8_i32_420 : i32
    %950 = tpu.assume_multiple %949, 8 : i32
    %951 = arith.index_cast %950 : i32 to index
    %c0_421 = arith.constant 0 : index
    %952 = vector.load %arg9[%951, %c0_421] : memref<64x384xf32, #tpu.memory_space<vmem>>, vector<8x384xf32>
    %953 = arith.truncf %946 : vector<8x128xf32> to vector<8x128xbf16>
    %c2_422 = arith.constant 2 : index
    %c0_423 = arith.constant 0 : index
    %c0_424 = arith.constant 0 : index
    %954 = vector.load %arg2[%c2_422, %c0_423, %c0_424] : memref<3x128x384xbf16, #tpu.memory_space<vmem>>, vector<1x128x384xbf16>
    %955 = vector.shape_cast %954 : vector<1x128x384xbf16> to vector<128x384xbf16>
    %cst_425 = arith.constant dense<0.000000e+00> : vector<8x384xf32>
    %956 = tpu.matmul %953, %955, %cst_425 {dimension_numbers = #tpu.dot_dimension_numbers<[1], [0], [0], [1], [0, 0, 1, 1], [], []>} : vector<8x128xbf16>, vector<128x384xbf16>, vector<8x384xf32> -> vector<8x384xf32>
    %957 = vector.extract_strided_slice %952 {offsets = [0, 0], sizes = [8, 128], strides = [1, 1]} : vector<8x384xf32> to vector<8x128xf32>
    %958 = vector.extract_strided_slice %956 {offsets = [0, 0], sizes = [8, 128], strides = [1, 1]} : vector<8x384xf32> to vector<8x128xf32>
    %959 = arith.addf %957, %958 : vector<8x128xf32>
    %960 = arith.negf %959 : vector<8x128xf32>
    %961 = math.exp %960 : vector<8x128xf32>
    %cst_426 = arith.constant 1.000000e+00 : f32
    %962 = vector.broadcast %cst_426 : f32 to vector<8x128xf32>
    %963 = arith.addf %962, %961 : vector<8x128xf32>
    %964 = arith.divf %962, %963 : vector<8x128xf32>
    %965 = vector.extract_strided_slice %952 {offsets = [0, 128], sizes = [8, 128], strides = [1, 1]} : vector<8x384xf32> to vector<8x128xf32>
    %966 = vector.extract_strided_slice %956 {offsets = [0, 128], sizes = [8, 128], strides = [1, 1]} : vector<8x384xf32> to vector<8x128xf32>
    %967 = arith.addf %965, %966 : vector<8x128xf32>
    %968 = arith.negf %967 : vector<8x128xf32>
    %969 = math.exp %968 : vector<8x128xf32>
    %cst_427 = arith.constant 1.000000e+00 : f32
    %970 = vector.broadcast %cst_427 : f32 to vector<8x128xf32>
    %971 = arith.addf %970, %969 : vector<8x128xf32>
    %972 = arith.divf %970, %971 : vector<8x128xf32>
    %973 = vector.extract_strided_slice %952 {offsets = [0, 256], sizes = [8, 128], strides = [1, 1]} : vector<8x384xf32> to vector<8x128xf32>
    %974 = vector.extract_strided_slice %956 {offsets = [0, 256], sizes = [8, 128], strides = [1, 1]} : vector<8x384xf32> to vector<8x128xf32>
    %975 = arith.addf %974, %762 : vector<8x128xf32>
    %976 = arith.mulf %964, %975 : vector<8x128xf32>
    %977 = arith.addf %973, %976 : vector<8x128xf32>
    %978 = math.tanh %977 : vector<8x128xf32>
    %cst_428 = arith.constant 1.000000e+00 : f32
    %979 = vector.broadcast %cst_428 : f32 to vector<8x128xf32>
    %980 = arith.subf %979, %972 : vector<8x128xf32>
    %981 = arith.mulf %980, %978 : vector<8x128xf32>
    %982 = arith.mulf %972, %946 : vector<8x128xf32>
    %983 = arith.addf %981, %982 : vector<8x128xf32>
    %984 = arith.index_cast %950 : i32 to index
    %c0_429 = arith.constant 0 : index
    %985 = vector.load %arg10[%984, %c0_429] : memref<64x128xf32, #tpu.memory_space<vmem>>, vector<8x128xf32>
    tpu.vector_store %arg10[%984, %c0_429], %983 {strides = array<i32>} : memref<64x128xf32, #tpu.memory_space<vmem>>, vector<8x128xf32>,
    %c6_i32_430 = arith.constant 6 : i32
    %c8_i32_431 = arith.constant 8 : i32
    %986 = arith.muli %c6_i32_430, %c8_i32_431 : i32
    %987 = tpu.assume_multiple %986, 8 : i32
    %988 = arith.index_cast %987 : i32 to index
    %c0_432 = arith.constant 0 : index
    %989 = vector.load %arg9[%988, %c0_432] : memref<64x384xf32, #tpu.memory_space<vmem>>, vector<8x384xf32>
    %990 = arith.truncf %983 : vector<8x128xf32> to vector<8x128xbf16>
    %c2_433 = arith.constant 2 : index
    %c0_434 = arith.constant 0 : index
    %c0_435 = arith.constant 0 : index
    %991 = vector.load %arg2[%c2_433, %c0_434, %c0_435] : memref<3x128x384xbf16, #tpu.memory_space<vmem>>, vector<1x128x384xbf16>
    %992 = vector.shape_cast %991 : vector<1x128x384xbf16> to vector<128x384xbf16>
    %cst_436 = arith.constant dense<0.000000e+00> : vector<8x384xf32>
    %993 = tpu.matmul %990, %992, %cst_436 {dimension_numbers = #tpu.dot_dimension_numbers<[1], [0], [0], [1], [0, 0, 1, 1], [], []>} : vector<8x128xbf16>, vector<128x384xbf16>, vector<8x384xf32> -> vector<8x384xf32>
    %994 = vector.extract_strided_slice %989 {offsets = [0, 0], sizes = [8, 128], strides = [1, 1]} : vector<8x384xf32> to vector<8x128xf32>
    %995 = vector.extract_strided_slice %993 {offsets = [0, 0], sizes = [8, 128], strides = [1, 1]} : vector<8x384xf32> to vector<8x128xf32>
    %996 = arith.addf %994, %995 : vector<8x128xf32>
    %997 = arith.negf %996 : vector<8x128xf32>
    %998 = math.exp %997 : vector<8x128xf32>
    %cst_437 = arith.constant 1.000000e+00 : f32
    %999 = vector.broadcast %cst_437 : f32 to vector<8x128xf32>
    %1000 = arith.addf %999, %998 : vector<8x128xf32>
    %1001 = arith.divf %999, %1000 : vector<8x128xf32>
    %1002 = vector.extract_strided_slice %989 {offsets = [0, 128], sizes = [8, 128], strides = [1, 1]} : vector<8x384xf32> to vector<8x128xf32>
    %1003 = vector.extract_strided_slice %993 {offsets = [0, 128], sizes = [8, 128], strides = [1, 1]} : vector<8x384xf32> to vector<8x128xf32>
    %1004 = arith.addf %1002, %1003 : vector<8x128xf32>
    %1005 = arith.negf %1004 : vector<8x128xf32>
    %1006 = math.exp %1005 : vector<8x128xf32>
    %cst_438 = arith.constant 1.000000e+00 : f32
    %1007 = vector.broadcast %cst_438 : f32 to vector<8x128xf32>
    %1008 = arith.addf %1007, %1006 : vector<8x128xf32>
    %1009 = arith.divf %1007, %1008 : vector<8x128xf32>
    %1010 = vector.extract_strided_slice %989 {offsets = [0, 256], sizes = [8, 128], strides = [1, 1]} : vector<8x384xf32> to vector<8x128xf32>
    %1011 = vector.extract_strided_slice %993 {offsets = [0, 256], sizes = [8, 128], strides = [1, 1]} : vector<8x384xf32> to vector<8x128xf32>
    %1012 = arith.addf %1011, %762 : vector<8x128xf32>
    %1013 = arith.mulf %1001, %1012 : vector<8x128xf32>
    %1014 = arith.addf %1010, %1013 : vector<8x128xf32>
    %1015 = math.tanh %1014 : vector<8x128xf32>
    %cst_439 = arith.constant 1.000000e+00 : f32
    %1016 = vector.broadcast %cst_439 : f32 to vector<8x128xf32>
    %1017 = arith.subf %1016, %1009 : vector<8x128xf32>
    %1018 = arith.mulf %1017, %1015 : vector<8x128xf32>
    %1019 = arith.mulf %1009, %983 : vector<8x128xf32>
    %1020 = arith.addf %1018, %1019 : vector<8x128xf32>
    %1021 = arith.index_cast %987 : i32 to index
    %c0_440 = arith.constant 0 : index
    %1022 = vector.load %arg10[%1021, %c0_440] : memref<64x128xf32, #tpu.memory_space<vmem>>, vector<8x128xf32>
    tpu.vector_store %arg10[%1021, %c0_440], %1020 {strides = array<i32>} : memref<64x128xf32, #tpu.memory_space<vmem>>, vector<8x128xf32>,
    %c7_i32_441 = arith.constant 7 : i32
    %c8_i32_442 = arith.constant 8 : i32
    %1023 = arith.muli %c7_i32_441, %c8_i32_442 : i32
    %1024 = tpu.assume_multiple %1023, 8 : i32
    %1025 = arith.index_cast %1024 : i32 to index
    %c0_443 = arith.constant 0 : index
    %1026 = vector.load %arg9[%1025, %c0_443] : memref<64x384xf32, #tpu.memory_space<vmem>>, vector<8x384xf32>
    %1027 = arith.truncf %1020 : vector<8x128xf32> to vector<8x128xbf16>
    %c2_444 = arith.constant 2 : index
    %c0_445 = arith.constant 0 : index
    %c0_446 = arith.constant 0 : index
    %1028 = vector.load %arg2[%c2_444, %c0_445, %c0_446] : memref<3x128x384xbf16, #tpu.memory_space<vmem>>, vector<1x128x384xbf16>
    %1029 = vector.shape_cast %1028 : vector<1x128x384xbf16> to vector<128x384xbf16>
    %cst_447 = arith.constant dense<0.000000e+00> : vector<8x384xf32>
    %1030 = tpu.matmul %1027, %1029, %cst_447 {dimension_numbers = #tpu.dot_dimension_numbers<[1], [0], [0], [1], [0, 0, 1, 1], [], []>} : vector<8x128xbf16>, vector<128x384xbf16>, vector<8x384xf32> -> vector<8x384xf32>
    %1031 = vector.extract_strided_slice %1026 {offsets = [0, 0], sizes = [8, 128], strides = [1, 1]} : vector<8x384xf32> to vector<8x128xf32>
    %1032 = vector.extract_strided_slice %1030 {offsets = [0, 0], sizes = [8, 128], strides = [1, 1]} : vector<8x384xf32> to vector<8x128xf32>
    %1033 = arith.addf %1031, %1032 : vector<8x128xf32>
    %1034 = arith.negf %1033 : vector<8x128xf32>
    %1035 = math.exp %1034 : vector<8x128xf32>
    %cst_448 = arith.constant 1.000000e+00 : f32
    %1036 = vector.broadcast %cst_448 : f32 to vector<8x128xf32>
    %1037 = arith.addf %1036, %1035 : vector<8x128xf32>
    %1038 = arith.divf %1036, %1037 : vector<8x128xf32>
    %1039 = vector.extract_strided_slice %1026 {offsets = [0, 128], sizes = [8, 128], strides = [1, 1]} : vector<8x384xf32> to vector<8x128xf32>
    %1040 = vector.extract_strided_slice %1030 {offsets = [0, 128], sizes = [8, 128], strides = [1, 1]} : vector<8x384xf32> to vector<8x128xf32>
    %1041 = arith.addf %1039, %1040 : vector<8x128xf32>
    %1042 = arith.negf %1041 : vector<8x128xf32>
    %1043 = math.exp %1042 : vector<8x128xf32>
    %cst_449 = arith.constant 1.000000e+00 : f32
    %1044 = vector.broadcast %cst_449 : f32 to vector<8x128xf32>
    %1045 = arith.addf %1044, %1043 : vector<8x128xf32>
    %1046 = arith.divf %1044, %1045 : vector<8x128xf32>
    %1047 = vector.extract_strided_slice %1026 {offsets = [0, 256], sizes = [8, 128], strides = [1, 1]} : vector<8x384xf32> to vector<8x128xf32>
    %1048 = vector.extract_strided_slice %1030 {offsets = [0, 256], sizes = [8, 128], strides = [1, 1]} : vector<8x384xf32> to vector<8x128xf32>
    %1049 = arith.addf %1048, %762 : vector<8x128xf32>
    %1050 = arith.mulf %1038, %1049 : vector<8x128xf32>
    %1051 = arith.addf %1047, %1050 : vector<8x128xf32>
    %1052 = math.tanh %1051 : vector<8x128xf32>
    %cst_450 = arith.constant 1.000000e+00 : f32
    %1053 = vector.broadcast %cst_450 : f32 to vector<8x128xf32>
    %1054 = arith.subf %1053, %1046 : vector<8x128xf32>
    %1055 = arith.mulf %1054, %1052 : vector<8x128xf32>
    %1056 = arith.mulf %1046, %1020 : vector<8x128xf32>
    %1057 = arith.addf %1055, %1056 : vector<8x128xf32>
    %1058 = arith.index_cast %1024 : i32 to index
    %c0_451 = arith.constant 0 : index
    %1059 = vector.load %arg10[%1058, %c0_451] : memref<64x128xf32, #tpu.memory_space<vmem>>, vector<8x128xf32>
    tpu.vector_store %arg10[%1058, %c0_451], %1057 {strides = array<i32>} : memref<64x128xf32, #tpu.memory_space<vmem>>, vector<8x128xf32>,
    %c8_i32_452 = arith.constant 8 : i32
    %c56_453 = arith.constant 56 : index
    %c0_454 = arith.constant 0 : index
    %1060 = vector.load %arg10[%c56_453, %c0_454] : memref<64x128xf32, #tpu.memory_space<vmem>>, vector<8x128xf32>
    %c0_455 = arith.constant 0 : index
    %c0_456 = arith.constant 0 : index
    %1061 = vector.load %arg10[%c0_455, %c0_456] : memref<64x128xf32, #tpu.memory_space<vmem>>, vector<8x128xf32>
    %1062 = arith.select %7, %1060, %1061 : vector<8x128xi1>, vector<8x128xf32>
    %1063 = arith.truncf %1062 : vector<8x128xf32> to vector<8x128xbf16>
    %c0_457 = arith.constant 0 : index
    %c0_458 = arith.constant 0 : index
    %1064 = vector.load %arg5[%c0_457, %c0_458] : memref<128x128xbf16, #tpu.memory_space<vmem>>, vector<128x128xbf16>
    %cst_459 = arith.constant dense<0.000000e+00> : vector<8x128xf32>
    %1065 = tpu.matmul %1063, %1064, %cst_459 {dimension_numbers = #tpu.dot_dimension_numbers<[1], [0], [0], [1], [0, 0, 1, 1], [], []>} : vector<8x128xbf16>, vector<128x128xbf16>, vector<8x128xf32> -> vector<8x128xf32>
    %c0_460 = arith.constant 0 : index
    %c0_461 = arith.constant 0 : index
    %1066 = vector.load %arg6[%c0_460, %c0_461] : memref<1x128xf32, #tpu.memory_space<vmem>>, vector<1x128xf32>
    %1067 = vector.broadcast %1066 : vector<1x128xf32> to vector<8x128xf32>
    %1068 = arith.addf %1065, %1067 : vector<8x128xf32>
    %1069 = arith.negf %1068 : vector<8x128xf32>
    %1070 = math.exp %1069 : vector<8x128xf32>
    %cst_462 = arith.constant 1.000000e+00 : f32
    %1071 = vector.broadcast %cst_462 : f32 to vector<8x128xf32>
    %1072 = arith.addf %1071, %1070 : vector<8x128xf32>
    %1073 = arith.divf %1071, %1072 : vector<8x128xf32>
    %c0_463 = arith.constant 0 : index
    %c0_464 = arith.constant 0 : index
    %1074 = vector.load %arg7[%c0_463, %c0_464] : memref<8x128xf32, #tpu.memory_space<vmem>>, vector<8x128xf32>
    tpu.vector_store %arg7[%c0_463, %c0_464], %1073 {strides = array<i32>} : memref<8x128xf32, #tpu.memory_space<vmem>>, vector<8x128xf32>,
    return
  }
}

</mosaic_0001>

<llo_original>
// kernel: fused_forward.1
$region0: #{fused_forward.1}
  #allocation0 [shape = 'u32[]', space=smem, size = 0x4, offset = 0x4, fixed_abs, tag = 'smem constant byte address 0x4 - core index']
  #allocation1 [shape = 'u32[144,128]{1,0:T(1,128)}', space=vmem, size = 0x12000, scoped, tag = 'internal scratch']
  #allocation2 [shape = 'f32[64,128]{1,0:T(8,128)}', space=vmem, size = 0x8000, scoped, tag = 'scratch operand']
  #allocation3 [shape = 'f32[64,384]{1,0:T(8,128)}', space=vmem, size = 0x18000, scoped, tag = 'scratch operand']
  #allocation4 [shape = 'f32[64,128]{1,0:T(8,128)}', space=vmem, size = 0x8000, scoped, tag = 'scratch operand']
  %s0 = inlined_call_operand.vmem [shape: bf16[64,128], index: 0, kind: input, shape index: {}]
  %s1 = inlined_call_operand.hbm [shape: bf16[3,128,384], index: 1, kind: input, shape index: {}]
  %s2 = inlined_call_operand.hbm [shape: bf16[3,128,384], index: 2, kind: input, shape index: {}]
  %s3 = inlined_call_operand.vmem [shape: f32[3,1,384], index: 3, kind: input, shape index: {}]
  %s4 = inlined_call_operand.vmem [shape: f32[3,1,128], index: 4, kind: input, shape index: {}]
  %s5 = inlined_call_operand.vmem [shape: bf16[128,128], index: 5, kind: input, shape index: {}]
  %s6 = inlined_call_operand.vmem [shape: f32[1,128], index: 6, kind: input, shape index: {}]
  %s7 = inlined_call_operand.hbm [shape: f32[8,128], index: 7, kind: output, shape index: {}]
  %s8 = sld [smem:[#allocation0]]
  $region46: #{fused_forward.1} parent=0
    _
  %s10 = ssub.s32 1, %s8
  %s11 = scalar_select 0, %s10, %s8
  $region1: #{fused_forward.1} parent=0
    #allocation5 [shape = 'u8[294912]{0}', space=vmem, size = 0x48000, scoped, tag = 'input window, operand 1, single buffered']
    #allocation6 [shape = 's32[1]{0}', space=sflag, size = 0x4, scoped, tag = 'scoped memory for fused_forward.1']
    #allocation7 [shape = 's32[1]{0}', space=sflag, size = 0x4, scoped, tag = 'scoped memory for fused_forward.1']
    #allocation8 [shape = 'u8[294912]{0}', space=vmem, size = 0x48000, scoped, tag = 'input window, operand 2, single buffered']
    #allocation9 [shape = 's32[1]{0}', space=sflag, size = 0x4, scoped, tag = 'scoped memory for fused_forward.1']
    #allocation10 [shape = 'u8[4096]{0}', space=vmem, size = 0x1000, scoped, tag = 'output window, operand 0, single buffered']
    %12 = vsyncpa [#allocation6], 0
    %13 = vsyncpa [#allocation9], 0
    %14 = vsyncpa [#allocation7], 0
    // Predicated region
    $region2: #{fused_forward.1} parent=1 // pred_check
      _
    $region3: #{fused_forward.1} parent=1 // pred_check_branch
      %16 = sbr.rel (0) target = $region5
    $region4: #{fused_forward.1} parent=1 // pred_region
      _
    $region5: #{fused_forward.1} parent=1 // pred_fallthru
      _
    // Predicated region
    $region6: #{fused_forward.1} parent=1 // pred_check
      _
    $region7: #{fused_forward.1} parent=1 // pred_check_branch
      %18 = sbr.rel (0) target = $region9
    $region8: #{fused_forward.1} parent=1 // pred_region
      %s20 = ssub.s32 9216, 9216
      %21 = vsyncadd [#allocation6], %s20
      %s22 = sshll.u32 [#allocation5], 4
      %s23 = int_to_ptr.vmem [resolvable:$true] %s22
      %28 = dma.hbm_to_vmem [thread:$0]  %s1, 9216, %s23, [#allocation6], 192, 192, 12
    $region9: #{fused_forward.1} parent=1 // pred_fallthru
      _
    // Predicated region
    $region10: #{fused_forward.1} parent=1 // pred_check
      _
    $region11: #{fused_forward.1} parent=1 // pred_check_branch
      %30 = sbr.rel (0) target = $region13
    $region12: #{fused_forward.1} parent=1 // pred_region
      %s32 = ssub.s32 9216, 9216
      %33 = vsyncadd [#allocation9], %s32
      %s34 = sshll.u32 [#allocation8], 4
      %s35 = int_to_ptr.vmem [resolvable:$true] %s34
      %40 = dma.hbm_to_vmem [thread:$0]  %s2, 9216, %s35, [#allocation9], 192, 192, 12
    $region13: #{fused_forward.1} parent=1 // pred_fallthru
      _
    // Predicated region
    $region14: #{fused_forward.1} parent=1 // pred_check
      _
    $region15: #{fused_forward.1} parent=1 // pred_check_branch
      %42 = sbr.rel (0) target = $region17
    $region16: #{fused_forward.1} parent=1 // pred_region
      _
    $region17: #{fused_forward.1} parent=1 // pred_fallthru
      _
    // Predicated region
    $region18: #{fused_forward.1} parent=1 // pred_check
      _
    $region19: #{fused_forward.1} parent=1 // pred_check_branch
      %44 = sbr.rel (0) target = $region21
    $region20: #{fused_forward.1} parent=1 // pred_region
      _
    $region21: #{fused_forward.1} parent=1 // pred_fallthru
      _
    // Predicated region
    $region22: #{fused_forward.1} parent=1 // pred_check
      _
    $region23: #{fused_forward.1} parent=1 // pred_check_branch
      %46 = sbr.rel (0) target = $region25
    $region24: #{fused_forward.1} parent=1 // pred_region
      _
    $region25: #{fused_forward.1} parent=1 // pred_fallthru
      _
    // Predicated region
    $region26: #{fused_forward.1} parent=1 // pred_check
      _
    $region27: #{fused_forward.1} parent=1 // pred_check_branch
      %48 = sbr.rel (0) target = $region29
    $region28: #{fused_forward.1} parent=1 // pred_region
      _
    $region29: #{fused_forward.1} parent=1 // pred_fallthru
      _
    // Predicated region
    $region30: #{fused_forward.1} parent=1 // pred_check
      _
    $region31: #{fused_forward.1} parent=1 // pred_check_branch
      %50 = sbr.rel (0) target = $region33
    $region32: #{fused_forward.1} parent=1 // pred_region
      %51 = dma.done [#allocation6], 9216
    $region33: #{fused_forward.1} parent=1 // pred_fallthru
      _
    // Predicated region
    $region34: #{fused_forward.1} parent=1 // pred_check
      _
    $region35: #{fused_forward.1} parent=1 // pred_check_branch
      %53 = sbr.rel (0) target = $region37
    $region36: #{fused_forward.1} parent=1 // pred_region
      %54 = dma.done [#allocation9], 9216
    $region37: #{fused_forward.1} parent=1 // pred_fallthru
      _
    %v56 = vlaneseq
    %v57 = vand.u32 %v56, 127
    %v58 = vadd.s32 %v57, 128
    %v59 = vadd.s32 %v57, 256
    %v60 = vand.u32 %v57, 127
    %v61 = vand.u32 %v58, 127
    %v62 = vand.u32 %v59, 127
    %vm63 = vcmp.lt.s32.totalorder %v60, 64
    %vm64 = vcmp.lt.s32.totalorder %v61, 64
    %vm65 = vcmp.lt.s32.totalorder %v62, 64
    %vm66 = vcmp.lt.s32.totalorder %v57, 64
    %v67 = vld [vmem:[%s0] sm:$0xf]
    %v68 = vld [vmem:[%s0 + $0x4] sm:$0xf]
    %v69 = vld [vmem:[%s0 + $0x8] sm:$0xf]
    %v70 = vld [vmem:[%s0 + $0xc] sm:$0xf]
    %v71 = vld [vmem:[%s0 + $0x10] sm:$0xf]
    %v72 = vld [vmem:[%s0 + $0x14] sm:$0xf]
    %v73 = vld [vmem:[%s0 + $0x18] sm:$0xf]
    %v74 = vld [vmem:[%s0 + $0x1c] sm:$0xf]
    %v75 = vld [vmem:[#allocation5] sm:$0xff]
    %v76 = vld [vmem:[#allocation5 + $0x8] sm:$0xf]
    %v77 = vld [vmem:[#allocation5 + $0xc] sm:$0xff]
    %v78 = vld [vmem:[#allocation5 + $0x14] sm:$0xf]
    %v79 = vld [vmem:[#allocation5 + $0x18] sm:$0xff]
    %v80 = vld [vmem:[#allocation5 + $0x20] sm:$0xf]
    %v81 = vld [vmem:[#allocation5 + $0x24] sm:$0xff]
    %v82 = vld [vmem:[#allocation5 + $0x2c] sm:$0xf]
    %v83 = vld [vmem:[#allocation5 + $0x30] sm:$0xff]
    %v84 = vld [vmem:[#allocation5 + $0x38] sm:$0xf]
    %v85 = vld [vmem:[#allocation5 + $0x3c] sm:$0xff]
    %v86 = vld [vmem:[#allocation5 + $0x44] sm:$0xf]
    %v87 = vld [vmem:[#allocation5 + $0x48] sm:$0xff]
    %v88 = vld [vmem:[#allocation5 + $0x50] sm:$0xf]
    %v89 = vld [vmem:[#allocation5 + $0x54] sm:$0xff]
    %v90 = vld [vmem:[#allocation5 + $0x5c] sm:$0xf]
    %v91 = vld [vmem:[#allocation5 + $0x60] sm:$0xff]
    %v92 = vld [vmem:[#allocation5 + $0x68] sm:$0xf]
    %v93 = vld [vmem:[#allocation5 + $0x6c] sm:$0xff]
    %v94 = vld [vmem:[#allocation5 + $0x74] sm:$0xf]
    %v95 = vld [vmem:[#allocation5 + $0x78] sm:$0xff]
    %v96 = vld [vmem:[#allocation5 + $0x80] sm:$0xf]
    %v97 = vld [vmem:[#allocation5 + $0x84] sm:$0xff]
    %v98 = vld [vmem:[#allocation5 + $0x8c] sm:$0xf]
    %v99 = vld [vmem:[#allocation5 + $0x90] sm:$0xff]
    %v100 = vld [vmem:[#allocation5 + $0x98] sm:$0xf]
    %v101 = vld [vmem:[#allocation5 + $0x9c] sm:$0xff]
    %v102 = vld [vmem:[#allocation5 + $0xa4] sm:$0xf]
    %v103 = vld [vmem:[#allocation5 + $0xa8] sm:$0xff]
    %v104 = vld [vmem:[#allocation5 + $0xb0] sm:$0xf]
    %v105 = vld [vmem:[#allocation5 + $0xb4] sm:$0xff]
    %v106 = vld [vmem:[#allocation5 + $0xbc] sm:$0xf]
    %v107 = vld [vmem:[%s3] sm:$0x7]
    %v109 = vlaneseq
    %v110 = vshrl.u32 %v109, 7
    %v111 = vsub.s32 0, %v110
    %v112 = vrot.slane %v107, %v111
    %v113 = vlaneseq
    %v114 = vshrl.u32 %v113, 7
    %v115 = vsub.s32 1, %v114
    %v116 = vrot.slane %v107, %v115
    %v117 = vlaneseq
    %v118 = vshrl.u32 %v117, 7
    %v119 = vsub.s32 2, %v118
    %v120 = vrot.slane %v107, %v119
    %v132 = vunpack.c.l.b16 %v67
    %v133 = vunpack.c.l.b16 %v68
    %v134 = vunpack.c.l.b16 %v69
    %v135 = vunpack.c.l.b16 %v70
    %v136 = vunpack.c.l.b16 %v71
    %v137 = vunpack.c.l.b16 %v72
    %v138 = vunpack.c.l.b16 %v73
    %v139 = vunpack.c.l.b16 %v74
    %v140 = vpack.c.b16 %v133, %v132
    %v141 = vpack.c.b16 %v135, %v134
    %v142 = vpack.c.b16 %v137, %v136
    %v143 = vpack.c.b16 %v139, %v138
    %v180 = vunpack.c.l.b16 %v75
    %v181 = vunpack.c.h.b16 %v75
    %v182 = vunpack.c.l.b16 %v76
    %v183 = vunpack.c.l.b16 %v77
    %v184 = vunpack.c.h.b16 %v77
    %v185 = vunpack.c.l.b16 %v78
    %v186 = vunpack.c.l.b16 %v79
    %v187 = vunpack.c.h.b16 %v79
    %v188 = vunpack.c.l.b16 %v80
    %v189 = vunpack.c.l.b16 %v81
    %v190 = vunpack.c.h.b16 %v81
    %v191 = vunpack.c.l.b16 %v82
    %v192 = vunpack.c.l.b16 %v83
    %v193 = vunpack.c.h.b16 %v83
    %v194 = vunpack.c.l.b16 %v84
    %v195 = vunpack.c.l.b16 %v85
    %v196 = vunpack.c.h.b16 %v85
    %v197 = vunpack.c.l.b16 %v86
    %v198 = vunpack.c.l.b16 %v87
    %v199 = vunpack.c.h.b16 %v87
    %v200 = vunpack.c.l.b16 %v88
    %v201 = vunpack.c.l.b16 %v89
    %v202 = vunpack.c.h.b16 %v89
    %v203 = vunpack.c.l.b16 %v90
    %v204 = vunpack.c.l.b16 %v91
    %v205 = vunpack.c.h.b16 %v91
    %v206 = vunpack.c.l.b16 %v92
    %v207 = vunpack.c.l.b16 %v93
    %v208 = vunpack.c.h.b16 %v93
    %v209 = vunpack.c.l.b16 %v94
    %v210 = vunpack.c.l.b16 %v95
    %v211 = vunpack.c.h.b16 %v95
    %v212 = vunpack.c.l.b16 %v96
    %v213 = vunpack.c.l.b16 %v97
    %v214 = vunpack.c.h.b16 %v97
    %v215 = vunpack.c.l.b16 %v98
    %v216 = vunpack.c.l.b16 %v99
    %v217 = vunpack.c.h.b16 %v99
    %v218 = vunpack.c.l.b16 %v100
    %v219 = vunpack.c.l.b16 %v101
    %v220 = vunpack.c.h.b16 %v101
    %v221 = vunpack.c.l.b16 %v102
    %v222 = vunpack.c.l.b16 %v103
    %v223 = vunpack.c.h.b16 %v103
    %v224 = vunpack.c.l.b16 %v104
    %v225 = vunpack.c.l.b16 %v105
    %v226 = vunpack.c.h.b16 %v105
    %v227 = vunpack.c.l.b16 %v106
    %v228 = vpack.c.b16 %v183, %v180
    %v229 = vpack.c.b16 %v184, %v181
    %v230 = vpack.c.b16 %v185, %v182
    %v231 = vpack.c.b16 %v189, %v186
    %v232 = vpack.c.b16 %v190, %v187
    %v233 = vpack.c.b16 %v191, %v188
    %v234 = vpack.c.b16 %v195, %v192
    %v235 = vpack.c.b16 %v196, %v193
    %v236 = vpack.c.b16 %v197, %v194
    %v237 = vpack.c.b16 %v201, %v198
    %v238 = vpack.c.b16 %v202, %v199
    %v239 = vpack.c.b16 %v203, %v200
    %v240 = vpack.c.b16 %v207, %v204
    %v241 = vpack.c.b16 %v208, %v205
    %v242 = vpack.c.b16 %v209, %v206
    %v243 = vpack.c.b16 %v213, %v210
    %v244 = vpack.c.b16 %v214, %v211
    %v245 = vpack.c.b16 %v215, %v212
    %v246 = vpack.c.b16 %v219, %v216
    %v247 = vpack.c.b16 %v220, %v217
    %v248 = vpack.c.b16 %v221, %v218
    %v249 = vpack.c.b16 %v225, %v222
    %v250 = vpack.c.b16 %v226, %v223
    %v251 = vpack.c.b16 %v227, %v224
    %276 = vmatprep.subr.bf16.mxu0 %v229
    %277 = vmatpush1.bf16.msra.mxu0 %v228
    %278 = vmatprep.subr.bf16.mxu0 %v232
    %279 = vmatpush1.bf16.msra.mxu0 %v231
    %280 = vmatprep.subr.bf16.mxu0 %v235
    %281 = vmatpush1.bf16.msra.mxu0 %v234
    %282 = vmatprep.subr.bf16.mxu0 %v238
    %283 = vmatpush1.bf16.msra.mxu0 %v237
    %284 = vmatprep.subr.bf16.mxu0 %v241
    %285 = vmatpush1.bf16.msra.mxu0 %v240
    %286 = vmatprep.subr.bf16.mxu0 %v244
    %287 = vmatpush1.bf16.msra.mxu0 %v243
    %288 = vmatprep.subr.bf16.mxu0 %v247
    %289 = vmatpush1.bf16.msra.mxu0 %v246
    %290 = vmatprep.subr.bf16.mxu0 %v250
    %291 = vmatpush1.bf16.msra.mxu0 %v249
    %292 = vmatprep.subr.bf16.mxu0 0
    %293 = vmatpush1.bf16.msra.mxu0 0
    %294 = vmatprep.subr.bf16.mxu0 0
    %295 = vmatpush1.bf16.msra.mxu0 0
    %296 = vmatprep.subr.bf16.mxu0 0
    %297 = vmatpush1.bf16.msra.mxu0 0
    %298 = vmatprep.subr.bf16.mxu0 0
    %299 = vmatpush1.bf16.msra.mxu0 0
    %300 = vmatprep.subr.bf16.mxu0 0
    %301 = vmatpush1.bf16.msra.mxu0 0
    %302 = vmatprep.subr.bf16.mxu0 0
    %303 = vmatpush1.bf16.msra.mxu0 0
    %304 = vmatprep.subr.bf16.mxu0 0
    %305 = vmatpush1.bf16.msra.mxu0 0
    %306 = vmatprep.subr.bf16.mxu0 0
    %307 = vmatpush1.bf16.msra.mxu0 0
    %308 = vmatprep.mubr.bf16.mxu0 0
    %309 = vmatmul.mubr.bf16.gmra.mrb[0].mxu0 %v140
    %v310 = vpop.f32.mrb[0].mxu0
    %v311 = vadd.f32 %v112, %v310
    %v312 = vpop.f32.mrb[0].mxu0
    %v313 = vadd.f32 %v116, %v312
    %v314 = vpop.f32.mrb[0].mxu0
    %v315 = vadd.f32 %v112, %v314
    %v316 = vpop.f32.mrb[0].mxu0
    %v317 = vadd.f32 %v116, %v316
    %318 = vmatprep.mubr.bf16.mxu0 0
    %319 = vmatmul.mubr.bf16.gmra.mrb[0].mxu0 %v141
    %v320 = vpop.f32.mrb[0].mxu0
    %v321 = vadd.f32 %v112, %v320
    %v322 = vpop.f32.mrb[0].mxu0
    %v323 = vadd.f32 %v116, %v322
    %v324 = vpop.f32.mrb[0].mxu0
    %v325 = vadd.f32 %v112, %v324
    %v326 = vpop.f32.mrb[0].mxu0
    %v327 = vadd.f32 %v116, %v326
    %328 = vmatprep.mubr.bf16.mxu0 0
    %329 = vmatmul.mubr.bf16.gmra.mrb[0].mxu0 %v142
    %v330 = vpop.f32.mrb[0].mxu0
    %v331 = vadd.f32 %v112, %v330
    %v332 = vpop.f32.mrb[0].mxu0
    %v333 = vadd.f32 %v116, %v332
    %v334 = vpop.f32.mrb[0].mxu0
    %v335 = vadd.f32 %v112, %v334
    %v336 = vpop.f32.mrb[0].mxu0
    %v337 = vadd.f32 %v116, %v336
    %338 = vmatprep.mubr.bf16.mxu0 0
    %339 = vmatmul.mubr.bf16.gmra.mrb[0].mxu0 %v143
    %v340 = vpop.f32.mrb[0].mxu0
    %v341 = vadd.f32 %v112, %v340
    %v342 = vpop.f32.mrb[0].mxu0
    %v343 = vadd.f32 %v116, %v342
    %v344 = vpop.f32.mrb[0].mxu0
    %v345 = vadd.f32 %v112, %v344
    %v346 = vpop.f32.mrb[0].mxu0
    %v347 = vadd.f32 %v116, %v346
    %348 = vdwg.mxu0
    %349 = vmatprep.subr.bf16.mxu0 0
    %350 = vmatpush1.bf16.msra.mxu0 %v230
    %351 = vmatprep.subr.bf16.mxu0 0
    %352 = vmatpush1.bf16.msra.mxu0 %v233
    %353 = vmatprep.subr.bf16.mxu0 0
    %354 = vmatpush1.bf16.msra.mxu0 %v236
    %355 = vmatprep.subr.bf16.mxu0 0
    %356 = vmatpush1.bf16.msra.mxu0 %v239
    %357 = vmatprep.subr.bf16.mxu0 0
    %358 = vmatpush1.bf16.msra.mxu0 %v242
    %359 = vmatprep.subr.bf16.mxu0 0
    %360 = vmatpush1.bf16.msra.mxu0 %v245
    %361 = vmatprep.subr.bf16.mxu0 0
    %362 = vmatpush1.bf16.msra.mxu0 %v248
    %363 = vmatprep.subr.bf16.mxu0 0
    %364 = vmatpush1.bf16.msra.mxu0 %v251
    %365 = vmatprep.subr.bf16.mxu0 0
    %366 = vmatpush1.bf16.msra.mxu0 0
    %367 = vmatprep.subr.bf16.mxu0 0
    %368 = vmatpush1.bf16.msra.mxu0 0
    %369 = vmatprep.subr.bf16.mxu0 0
    %370 = vmatpush1.bf16.msra.mxu0 0
    %371 = vmatprep.subr.bf16.mxu0 0
    %372 = vmatpush1.bf16.msra.mxu0 0
    %373 = vmatprep.subr.bf16.mxu0 0
    %374 = vmatpush1.bf16.msra.mxu0 0
    %375 = vmatprep.subr.bf16.mxu0 0
    %376 = vmatpush1.bf16.msra.mxu0 0
    %377 = vmatprep.subr.bf16.mxu0 0
    %378 = vmatpush1.bf16.msra.mxu0 0
    %379 = vmatprep.subr.bf16.mxu0 0
    %380 = vmatpush1.bf16.msra.mxu0 0
    %381 = vmatprep.mubr.bf16.mxu0 0
    %382 = vmatmul.mubr.bf16.gmra.mrb[0].mxu0 %v140
    %v383 = vpop.f32.mrb[0].mxu0
    %v384 = vadd.f32 %v120, %v383
    %v385 = vpop.f32.mrb[0].mxu0
    %v386 = vpop.f32.mrb[0].mxu0
    %v387 = vadd.f32 %v120, %v386
    %v388 = vpop.f32.mrb[0].mxu0
    %389 = vmatprep.mubr.bf16.mxu0 0
    %390 = vmatmul.mubr.bf16.gmra.mrb[0].mxu0 %v141
    %v391 = vpop.f32.mrb[0].mxu0
    %v392 = vadd.f32 %v120, %v391
    %v393 = vpop.f32.mrb[0].mxu0
    %v394 = vpop.f32.mrb[0].mxu0
    %v395 = vadd.f32 %v120, %v394
    %v396 = vpop.f32.mrb[0].mxu0
    %397 = vmatprep.mubr.bf16.mxu0 0
    %398 = vmatmul.mubr.bf16.gmra.mrb[0].mxu0 %v142
    %v399 = vpop.f32.mrb[0].mxu0
    %v400 = vadd.f32 %v120, %v399
    %v401 = vpop.f32.mrb[0].mxu0
    %v402 = vpop.f32.mrb[0].mxu0
    %v403 = vadd.f32 %v120, %v402
    %v404 = vpop.f32.mrb[0].mxu0
    %405 = vmatprep.mubr.bf16.mxu0 0
    %406 = vmatmul.mubr.bf16.gmra.mrb[0].mxu0 %v143
    %v407 = vpop.f32.mrb[0].mxu0
    %v408 = vadd.f32 %v120, %v407
    %v409 = vpop.f32.mrb[0].mxu0
    %v410 = vpop.f32.mrb[0].mxu0
    %v411 = vadd.f32 %v120, %v410
    %v412 = vpop.f32.mrb[0].mxu0
    %413 = vdwg.mxu0
    %414 = vst [vmem:[#allocation3] sm:$0xff] %v311
    %415 = vst [vmem:[#allocation3 + $0x8] sm:$0xff] %v313
    %416 = vst [vmem:[#allocation3 + $0x10] sm:$0xff] %v384
    %417 = vst [vmem:[#allocation3 + $0x18] sm:$0xff] %v315
    %418 = vst [vmem:[#allocation3 + $0x20] sm:$0xff] %v317
    %419 = vst [vmem:[#allocation3 + $0x28] sm:$0xff] %v387
    %420 = vst [vmem:[#allocation3 + $0x30] sm:$0xff] %v321
    %421 = vst [vmem:[#allocation3 + $0x38] sm:$0xff] %v323
    %422 = vst [vmem:[#allocation3 + $0x40] sm:$0xff] %v392
    %423 = vst [vmem:[#allocation3 + $0x48] sm:$0xff] %v325
    %424 = vst [vmem:[#allocation3 + $0x50] sm:$0xff] %v327
    %425 = vst [vmem:[#allocation3 + $0x58] sm:$0xff] %v395
    %426 = vst [vmem:[#allocation3 + $0x60] sm:$0xff] %v331
    %427 = vst [vmem:[#allocation3 + $0x68] sm:$0xff] %v333
    %428 = vst [vmem:[#allocation3 + $0x70] sm:$0xff] %v400
    %429 = vst [vmem:[#allocation3 + $0x78] sm:$0xff] %v335
    %430 = vst [vmem:[#allocation3 + $0x80] sm:$0xff] %v337
    %431 = vst [vmem:[#allocation3 + $0x88] sm:$0xff] %v403
    %432 = vst [vmem:[#allocation3 + $0x90] sm:$0xff] %v341
    %433 = vst [vmem:[#allocation3 + $0x98] sm:$0xff] %v343
    %434 = vst [vmem:[#allocation3 + $0xa0] sm:$0xff] %v408
    %435 = vst [vmem:[#allocation3 + $0xa8] sm:$0xff] %v345
    %436 = vst [vmem:[#allocation3 + $0xb0] sm:$0xff] %v347
    %437 = vst [vmem:[#allocation3 + $0xb8] sm:$0xff] %v411
    %v438 = vld [vmem:[#allocation3] sm:$0xff]
    %v439 = vld [vmem:[#allocation3 + $0x8] sm:$0xff]
    %v440 = vld [vmem:[#allocation3 + $0x10] sm:$0xff]
    %v441 = vld [vmem:[#allocation3 + $0xa8] sm:$0xff]
    %v442 = vld [vmem:[#allocation3 + $0xb0] sm:$0xff]
    %v443 = vld [vmem:[#allocation3 + $0xb8] sm:$0xff]
    %v444 = vsel %vm63, %v438, %v441
    %v445 = vsel %vm64, %v439, %v442
    %v446 = vsel %vm65, %v440, %v443
    %447 = vst [vmem:[#allocation3] sm:$0xff] %v444
    %448 = vst [vmem:[#allocation3 + $0x8] sm:$0xff] %v445
    %449 = vst [vmem:[#allocation3 + $0x10] sm:$0xff] %v446
    %v450 = vsel %vm63, %v441, %v438
    %v451 = vsel %vm64, %v442, %v439
    %v452 = vsel %vm65, %v443, %v440
    %453 = vst [vmem:[#allocation3 + $0xa8] sm:$0xff] %v450
    %454 = vst [vmem:[#allocation3 + $0xb0] sm:$0xff] %v451
    %455 = vst [vmem:[#allocation3 + $0xb8] sm:$0xff] %v452
    %v456 = vld [vmem:[#allocation3 + $0x18] sm:$0xff]
    %v457 = vld [vmem:[#allocation3 + $0x20] sm:$0xff]
    %v458 = vld [vmem:[#allocation3 + $0x28] sm:$0xff]
    %v459 = vld [vmem:[#allocation3 + $0x90] sm:$0xff]
    %v460 = vld [vmem:[#allocation3 + $0x98] sm:$0xff]
    %v461 = vld [vmem:[#allocation3 + $0xa0] sm:$0xff]
    %v462 = vsel %vm63, %v456, %v459
    %v463 = vsel %vm64, %v457, %v460
    %v464 = vsel %vm65, %v458, %v461
    %465 = vst [vmem:[#allocation3 + $0x18] sm:$0xff] %v462
    %466 = vst [vmem:[#allocation3 + $0x20] sm:$0xff] %v463
    %467 = vst [vmem:[#allocation3 + $0x28] sm:$0xff] %v464
    %v468 = vsel %vm63, %v459, %v456
    %v469 = vsel %vm64, %v460, %v457
    %v470 = vsel %vm65, %v461, %v458
    %471 = vst [vmem:[#allocation3 + $0x90] sm:$0xff] %v468
    %472 = vst [vmem:[#allocation3 + $0x98] sm:$0xff] %v469
    %473 = vst [vmem:[#allocation3 + $0xa0] sm:$0xff] %v470
    %v474 = vld [vmem:[#allocation3 + $0x30] sm:$0xff]
    %v475 = vld [vmem:[#allocation3 + $0x38] sm:$0xff]
    %v476 = vld [vmem:[#allocation3 + $0x40] sm:$0xff]
    %v477 = vld [vmem:[#allocation3 + $0x78] sm:$0xff]
    %v478 = vld [vmem:[#allocation3 + $0x80] sm:$0xff]
    %v479 = vld [vmem:[#allocation3 + $0x88] sm:$0xff]
    %v480 = vsel %vm63, %v474, %v477
    %v481 = vsel %vm64, %v475, %v478
    %v482 = vsel %vm65, %v476, %v479
    %483 = vst [vmem:[#allocation3 + $0x30] sm:$0xff] %v480
    %484 = vst [vmem:[#allocation3 + $0x38] sm:$0xff] %v481
    %485 = vst [vmem:[#allocation3 + $0x40] sm:$0xff] %v482
    %v486 = vsel %vm63, %v477, %v474
    %v487 = vsel %vm64, %v478, %v475
    %v488 = vsel %vm65, %v479, %v476
    %489 = vst [vmem:[#allocation3 + $0x78] sm:$0xff] %v486
    %490 = vst [vmem:[#allocation3 + $0x80] sm:$0xff] %v487
    %491 = vst [vmem:[#allocation3 + $0x88] sm:$0xff] %v488
    %v492 = vld [vmem:[#allocation3 + $0x48] sm:$0xff]
    %v493 = vld [vmem:[#allocation3 + $0x50] sm:$0xff]
    %v494 = vld [vmem:[#allocation3 + $0x58] sm:$0xff]
    %v495 = vld [vmem:[#allocation3 + $0x60] sm:$0xff]
    %v496 = vld [vmem:[#allocation3 + $0x68] sm:$0xff]
    %v497 = vld [vmem:[#allocation3 + $0x70] sm:$0xff]
    %v498 = vsel %vm63, %v492, %v495
    %v499 = vsel %vm64, %v493, %v496
    %v500 = vsel %vm65, %v494, %v497
    %501 = vst [vmem:[#allocation3 + $0x48] sm:$0xff] %v498
    %502 = vst [vmem:[#allocation3 + $0x50] sm:$0xff] %v499
    %503 = vst [vmem:[#allocation3 + $0x58] sm:$0xff] %v500
    %v504 = vsel %vm63, %v495, %v492
    %v505 = vsel %vm64, %v496, %v493
    %v506 = vsel %vm65, %v497, %v494
    %507 = vst [vmem:[#allocation3 + $0x60] sm:$0xff] %v504
    %508 = vst [vmem:[#allocation3 + $0x68] sm:$0xff] %v505
    %509 = vst [vmem:[#allocation3 + $0x70] sm:$0xff] %v506
    %v510 = vld [vmem:[%s4] sm:$0x1]
    %v512 = vlaneseq
    %v513 = vshrl.u32 %v512, 7
    %v514 = vsub.s32 0, %v513
    %v515 = vrot.slane %v510, %v514
    %s517 = smul.u32 0, 3
    %s518 = smul.addr %s517, 8
    %s519 = scalar_lea.vmem [#allocation3], %s518
    %v520 = vld [vmem:[%s519] sm:$0xff]
    %v521 = vld [vmem:[%s519 + $0x8] sm:$0xff]
    %v522 = vld [vmem:[%s519 + $0x10] sm:$0xff]
    %v523 = vld [vmem:[#allocation8] sm:$0xff]
    %v524 = vld [vmem:[#allocation8 + $0x8] sm:$0xf]
    %v525 = vld [vmem:[#allocation8 + $0xc] sm:$0xff]
    %v526 = vld [vmem:[#allocation8 + $0x14] sm:$0xf]
    %v527 = vld [vmem:[#allocation8 + $0x18] sm:$0xff]
    %v528 = vld [vmem:[#allocation8 + $0x20] sm:$0xf]
    %v529 = vld [vmem:[#allocation8 + $0x24] sm:$0xff]
    %v530 = vld [vmem:[#allocation8 + $0x2c] sm:$0xf]
    %v531 = vld [vmem:[#allocation8 + $0x30] sm:$0xff]
    %v532 = vld [vmem:[#allocation8 + $0x38] sm:$0xf]
    %v533 = vld [vmem:[#allocation8 + $0x3c] sm:$0xff]
    %v534 = vld [vmem:[#allocation8 + $0x44] sm:$0xf]
    %v535 = vld [vmem:[#allocation8 + $0x48] sm:$0xff]
    %v536 = vld [vmem:[#allocation8 + $0x50] sm:$0xf]
    %v537 = vld [vmem:[#allocation8 + $0x54] sm:$0xff]
    %v538 = vld [vmem:[#allocation8 + $0x5c] sm:$0xf]
    %v539 = vld [vmem:[#allocation8 + $0x60] sm:$0xff]
    %v540 = vld [vmem:[#allocation8 + $0x68] sm:$0xf]
    %v541 = vld [vmem:[#allocation8 + $0x6c] sm:$0xff]
    %v542 = vld [vmem:[#allocation8 + $0x74] sm:$0xf]
    %v543 = vld [vmem:[#allocation8 + $0x78] sm:$0xff]
    %v544 = vld [vmem:[#allocation8 + $0x80] sm:$0xf]
    %v545 = vld [vmem:[#allocation8 + $0x84] sm:$0xff]
    %v546 = vld [vmem:[#allocation8 + $0x8c] sm:$0xf]
    %v547 = vld [vmem:[#allocation8 + $0x90] sm:$0xff]
    %v548 = vld [vmem:[#allocation8 + $0x98] sm:$0xf]
    %v549 = vld [vmem:[#allocation8 + $0x9c] sm:$0xff]
    %v550 = vld [vmem:[#allocation8 + $0xa4] sm:$0xf]
    %v551 = vld [vmem:[#allocation8 + $0xa8] sm:$0xff]
    %v552 = vld [vmem:[#allocation8 + $0xb0] sm:$0xf]
    %v553 = vld [vmem:[#allocation8 + $0xb4] sm:$0xff]
    %v554 = vld [vmem:[#allocation8 + $0xbc] sm:$0xf]
    %v587 = vunpack.c.l.b16 %v523
    %v588 = vunpack.c.h.b16 %v523
    %v589 = vunpack.c.l.b16 %v524
    %v590 = vunpack.c.l.b16 %v525
    %v591 = vunpack.c.h.b16 %v525
    %v592 = vunpack.c.l.b16 %v526
    %v593 = vunpack.c.l.b16 %v527
    %v594 = vunpack.c.h.b16 %v527
    %v595 = vunpack.c.l.b16 %v528
    %v596 = vunpack.c.l.b16 %v529
    %v597 = vunpack.c.h.b16 %v529
    %v598 = vunpack.c.l.b16 %v530
    %v599 = vunpack.c.l.b16 %v531
    %v600 = vunpack.c.h.b16 %v531
    %v601 = vunpack.c.l.b16 %v532
    %v602 = vunpack.c.l.b16 %v533
    %v603 = vunpack.c.h.b16 %v533
    %v604 = vunpack.c.l.b16 %v534
    %v605 = vunpack.c.l.b16 %v535
    %v606 = vunpack.c.h.b16 %v535
    %v607 = vunpack.c.l.b16 %v536
    %v608 = vunpack.c.l.b16 %v537
    %v609 = vunpack.c.h.b16 %v537
    %v610 = vunpack.c.l.b16 %v538
    %v611 = vunpack.c.l.b16 %v539
    %v612 = vunpack.c.h.b16 %v539
    %v613 = vunpack.c.l.b16 %v540
    %v614 = vunpack.c.l.b16 %v541
    %v615 = vunpack.c.h.b16 %v541
    %v616 = vunpack.c.l.b16 %v542
    %v617 = vunpack.c.l.b16 %v543
    %v618 = vunpack.c.h.b16 %v543
    %v619 = vunpack.c.l.b16 %v544
    %v620 = vunpack.c.l.b16 %v545
    %v621 = vunpack.c.h.b16 %v545
    %v622 = vunpack.c.l.b16 %v546
    %v623 = vunpack.c.l.b16 %v547
    %v624 = vunpack.c.h.b16 %v547
    %v625 = vunpack.c.l.b16 %v548
    %v626 = vunpack.c.l.b16 %v549
    %v627 = vunpack.c.h.b16 %v549
    %v628 = vunpack.c.l.b16 %v550
    %v629 = vunpack.c.l.b16 %v551
    %v630 = vunpack.c.h.b16 %v551
    %v631 = vunpack.c.l.b16 %v552
    %v632 = vunpack.c.l.b16 %v553
    %v633 = vunpack.c.h.b16 %v553
    %v634 = vunpack.c.l.b16 %v554
    %v635 = vpack.c.b16 %v590, %v587
    %v636 = vpack.c.b16 %v591, %v588
    %v637 = vpack.c.b16 %v592, %v589
    %v638 = vpack.c.b16 %v596, %v593
    %v639 = vpack.c.b16 %v597, %v594
    %v640 = vpack.c.b16 %v598, %v595
    %v641 = vpack.c.b16 %v602, %v599
    %v642 = vpack.c.b16 %v603, %v600
    %v643 = vpack.c.b16 %v604, %v601
    %v644 = vpack.c.b16 %v608, %v605
    %v645 = vpack.c.b16 %v609, %v606
    %v646 = vpack.c.b16 %v610, %v607
    %v647 = vpack.c.b16 %v614, %v611
    %v648 = vpack.c.b16 %v615, %v612
    %v649 = vpack.c.b16 %v616, %v613
    %v650 = vpack.c.b16 %v620, %v617
    %v651 = vpack.c.b16 %v621, %v618
    %v652 = vpack.c.b16 %v622, %v619
    %v653 = vpack.c.b16 %v626, %v623
    %v654 = vpack.c.b16 %v627, %v624
    %v655 = vpack.c.b16 %v628, %v625
    %v656 = vpack.c.b16 %v632, %v629
    %v657 = vpack.c.b16 %v633, %v630
    %v658 = vpack.c.b16 %v634, %v631
    %683 = vmatprep.subr.bf16.mxu0 %v636
    %684 = vmatpush1.bf16.msra.mxu0 %v635
    %685 = vmatprep.subr.bf16.mxu0 %v639
    %686 = vmatpush1.bf16.msra.mxu0 %v638
    %687 = vmatprep.subr.bf16.mxu0 %v642
    %688 = vmatpush1.bf16.msra.mxu0 %v641
    %689 = vmatprep.subr.bf16.mxu0 %v645
    %690 = vmatpush1.bf16.msra.mxu0 %v644
    %691 = vmatprep.subr.bf16.mxu0 %v648
    %692 = vmatpush1.bf16.msra.mxu0 %v647
    %693 = vmatprep.subr.bf16.mxu0 %v651
    %694 = vmatpush1.bf16.msra.mxu0 %v650
    %695 = vmatprep.subr.bf16.mxu0 %v654
    %696 = vmatpush1.bf16.msra.mxu0 %v653
    %697 = vmatprep.subr.bf16.mxu0 %v657
    %698 = vmatpush1.bf16.msra.mxu0 %v656
    %699 = vmatprep.subr.bf16.mxu0 0
    %700 = vmatpush1.bf16.msra.mxu0 0
    %701 = vmatprep.subr.bf16.mxu0 0
    %702 = vmatpush1.bf16.msra.mxu0 0
    %703 = vmatprep.subr.bf16.mxu0 0
    %704 = vmatpush1.bf16.msra.mxu0 0
    %705 = vmatprep.subr.bf16.mxu0 0
    %706 = vmatpush1.bf16.msra.mxu0 0
    %707 = vmatprep.subr.bf16.mxu0 0
    %708 = vmatpush1.bf16.msra.mxu0 0
    %709 = vmatprep.subr.bf16.mxu0 0
    %710 = vmatpush1.bf16.msra.mxu0 0
    %711 = vmatprep.subr.bf16.mxu0 0
    %712 = vmatpush1.bf16.msra.mxu0 0
    %713 = vmatprep.subr.bf16.mxu0 0
    %714 = vmatpush1.bf16.msra.mxu0 0
    %715 = vmatprep.mubr.bf16.mxu0 0
    %716 = vmatmul.mubr.bf16.gmra.mrb[0].mxu0 0
    %v717 = vpop.f32.mrb[0].mxu0
    %v718 = vadd.f32 0.0, %v717
    %v719 = vpop.f32.mrb[0].mxu0
    %v720 = vadd.f32 0.0, %v719
    %v721 = vpop.f32.mrb[0].mxu0
    %v722 = vpop.f32.mrb[0].mxu0
    %723 = vdwg.mxu0
    %724 = vmatprep.subr.bf16.mxu0 0
    %725 = vmatpush1.bf16.msra.mxu0 %v637
    %726 = vmatprep.subr.bf16.mxu0 0
    %727 = vmatpush1.bf16.msra.mxu0 %v640
    %728 = vmatprep.subr.bf16.mxu0 0
    %729 = vmatpush1.bf16.msra.mxu0 %v643
    %730 = vmatprep.subr.bf16.mxu0 0
    %731 = vmatpush1.bf16.msra.mxu0 %v646
    %732 = vmatprep.subr.bf16.mxu0 0
    %733 = vmatpush1.bf16.msra.mxu0 %v649
    %734 = vmatprep.subr.bf16.mxu0 0
    %735 = vmatpush1.bf16.msra.mxu0 %v652
    %736 = vmatprep.subr.bf16.mxu0 0
    %737 = vmatpush1.bf16.msra.mxu0 %v655
    %738 = vmatprep.subr.bf16.mxu0 0
    %739 = vmatpush1.bf16.msra.mxu0 %v658
    %740 = vmatprep.subr.bf16.mxu0 0
    %741 = vmatpush1.bf16.msra.mxu0 0
    %742 = vmatprep.subr.bf16.mxu0 0
    %743 = vmatpush1.bf16.msra.mxu0 0
    %744 = vmatprep.subr.bf16.mxu0 0
    %745 = vmatpush1.bf16.msra.mxu0 0
    %746 = vmatprep.subr.bf16.mxu0 0
    %747 = vmatpush1.bf16.msra.mxu0 0
    %748 = vmatprep.subr.bf16.mxu0 0
    %749 = vmatpush1.bf16.msra.mxu0 0
    %750 = vmatprep.subr.bf16.mxu0 0
    %751 = vmatpush1.bf16.msra.mxu0 0
    %752 = vmatprep.subr.bf16.mxu0 0
    %753 = vmatpush1.bf16.msra.mxu0 0
    %754 = vmatprep.subr.bf16.mxu0 0
    %755 = vmatpush1.bf16.msra.mxu0 0
    %756 = vmatprep.mubr.bf16.mxu0 0
    %757 = vmatmul.mubr.bf16.gmra.mrb[0].mxu0 0
    %v758 = vpop.f32.mrb[0].mxu0
    %v759 = vadd.f32 0.0, %v758
    %v760 = vpop.f32.mrb[0].mxu0
    %v761 = vpop.f32.mrb[0].mxu0
    %v762 = vpop.f32.mrb[0].mxu0
    %763 = vdwg.mxu0
    %v764 = vadd.f32 %v520, %v718
    %v765 = vxor.u32 %v764, 2147483648
    %v766 = vmul.f32 %v765, 1.442695
    %v767 = vpow.pop %v766
    %v768 = vadd.f32 %v767, 1.0
    %v769 = vrcp.pop %v768
    %v770 = vmul.f32 1.0, %v769
    %v771 = vadd.f32 %v521, %v720
    %v772 = vxor.u32 %v771, 2147483648
    %v773 = vmul.f32 %v772, 1.442695
    %v774 = vpow.pop %v773
    %v775 = vadd.f32 %v774, 1.0
    %v776 = vrcp.pop %v775
    %v777 = vmul.f32 1.0, %v776
    %v778 = vadd.f32 %v759, %v515
    %v779 = vmul.f32 %v770, %v778
    %v780 = vadd.f32 %v522, %v779
    %v781 = vtanh.pop %v780
    %v782 = vsub.f32 1.0, %v777
    %v783 = vmul.f32 %v782, %v781
    %v784 = vmul.f32 %v777, 0.0
    %v785 = vadd.f32 %v783, %v784
    %786 = vst [vmem:[#allocation4] sm:$0xff] %v785
    %s787 = smul.u32 1, 3
    %s788 = smul.addr %s787, 8
    %s789 = scalar_lea.vmem [#allocation3], %s788
    %v790 = vld [vmem:[%s789] sm:$0xff]
    %v791 = vld [vmem:[%s789 + $0x8] sm:$0xff]
    %v792 = vld [vmem:[%s789 + $0x10] sm:$0xff]
    %v793 = vpack.c.bf16 %v785, %v785
    %v794 = vld [vmem:[#allocation8] sm:$0xff]
    %v795 = vld [vmem:[#allocation8 + $0x8] sm:$0xf]
    %v796 = vld [vmem:[#allocation8 + $0xc] sm:$0xff]
    %v797 = vld [vmem:[#allocation8 + $0x14] sm:$0xf]
    %v798 = vld [vmem:[#allocation8 + $0x18] sm:$0xff]
    %v799 = vld [vmem:[#allocation8 + $0x20] sm:$0xf]
    %v800 = vld [vmem:[#allocation8 + $0x24] sm:$0xff]
    %v801 = vld [vmem:[#allocation8 + $0x2c] sm:$0xf]
    %v802 = vld [vmem:[#allocation8 + $0x30] sm:$0xff]
    %v803 = vld [vmem:[#allocation8 + $0x38] sm:$0xf]
    %v804 = vld [vmem:[#allocation8 + $0x3c] sm:$0xff]
    %v805 = vld [vmem:[#allocation8 + $0x44] sm:$0xf]
    %v806 = vld [vmem:[#allocation8 + $0x48] sm:$0xff]
    %v807 = vld [vmem:[#allocation8 + $0x50] sm:$0xf]
    %v808 = vld [vmem:[#allocation8 + $0x54] sm:$0xff]
    %v809 = vld [vmem:[#allocation8 + $0x5c] sm:$0xf]
    %v810 = vld [vmem:[#allocation8 + $0x60] sm:$0xff]
    %v811 = vld [vmem:[#allocation8 + $0x68] sm:$0xf]
    %v812 = vld [vmem:[#allocation8 + $0x6c] sm:$0xff]
    %v813 = vld [vmem:[#allocation8 + $0x74] sm:$0xf]
    %v814 = vld [vmem:[#allocation8 + $0x78] sm:$0xff]
    %v815 = vld [vmem:[#allocation8 + $0x80] sm:$0xf]
    %v816 = vld [vmem:[#allocation8 + $0x84] sm:$0xff]
    %v817 = vld [vmem:[#allocation8 + $0x8c] sm:$0xf]
    %v818 = vld [vmem:[#allocation8 + $0x90] sm:$0xff]
    %v819 = vld [vmem:[#allocation8 + $0x98] sm:$0xf]
    %v820 = vld [vmem:[#allocation8 + $0x9c] sm:$0xff]
    %v821 = vld [vmem:[#allocation8 + $0xa4] sm:$0xf]
    %v822 = vld [vmem:[#allocation8 + $0xa8] sm:$0xff]
    %v823 = vld [vmem:[#allocation8 + $0xb0] sm:$0xf]
    %v824 = vld [vmem:[#allocation8 + $0xb4] sm:$0xff]
    %v825 = vld [vmem:[#allocation8 + $0xbc] sm:$0xf]
    %v858 = vunpack.c.l.b16 %v794
    %v859 = vunpack.c.h.b16 %v794
    %v860 = vunpack.c.l.b16 %v795
    %v861 = vunpack.c.l.b16 %v796
    %v862 = vunpack.c.h.b16 %v796
    %v863 = vunpack.c.l.b16 %v797
    %v864 = vunpack.c.l.b16 %v798
    %v865 = vunpack.c.h.b16 %v798
    %v866 = vunpack.c.l.b16 %v799
    %v867 = vunpack.c.l.b16 %v800
    %v868 = vunpack.c.h.b16 %v800
    %v869 = vunpack.c.l.b16 %v801
    %v870 = vunpack.c.l.b16 %v802
    %v871 = vunpack.c.h.b16 %v802
    %v872 = vunpack.c.l.b16 %v803
    %v873 = vunpack.c.l.b16 %v804
    %v874 = vunpack.c.h.b16 %v804
    %v875 = vunpack.c.l.b16 %v805
    %v876 = vunpack.c.l.b16 %v806
    %v877 = vunpack.c.h.b16 %v806
    %v878 = vunpack.c.l.b16 %v807
    %v879 = vunpack.c.l.b16 %v808
    %v880 = vunpack.c.h.b16 %v808
    %v881 = vunpack.c.l.b16 %v809
    %v882 = vunpack.c.l.b16 %v810
    %v883 = vunpack.c.h.b16 %v810
    %v884 = vunpack.c.l.b16 %v811
    %v885 = vunpack.c.l.b16 %v812
    %v886 = vunpack.c.h.b16 %v812
    %v887 = vunpack.c.l.b16 %v813
    %v888 = vunpack.c.l.b16 %v814
    %v889 = vunpack.c.h.b16 %v814
    %v890 = vunpack.c.l.b16 %v815
    %v891 = vunpack.c.l.b16 %v816
    %v892 = vunpack.c.h.b16 %v816
    %v893 = vunpack.c.l.b16 %v817
    %v894 = vunpack.c.l.b16 %v818
    %v895 = vunpack.c.h.b16 %v818
    %v896 = vunpack.c.l.b16 %v819
    %v897 = vunpack.c.l.b16 %v820
    %v898 = vunpack.c.h.b16 %v820
    %v899 = vunpack.c.l.b16 %v821
    %v900 = vunpack.c.l.b16 %v822
    %v901 = vunpack.c.h.b16 %v822
    %v902 = vunpack.c.l.b16 %v823
    %v903 = vunpack.c.l.b16 %v824
    %v904 = vunpack.c.h.b16 %v824
    %v905 = vunpack.c.l.b16 %v825
    %v906 = vpack.c.b16 %v861, %v858
    %v907 = vpack.c.b16 %v862, %v859
    %v908 = vpack.c.b16 %v863, %v860
    %v909 = vpack.c.b16 %v867, %v864
    %v910 = vpack.c.b16 %v868, %v865
    %v911 = vpack.c.b16 %v869, %v866
    %v912 = vpack.c.b16 %v873, %v870
    %v913 = vpack.c.b16 %v874, %v871
    %v914 = vpack.c.b16 %v875, %v872
    %v915 = vpack.c.b16 %v879, %v876
    %v916 = vpack.c.b16 %v880, %v877
    %v917 = vpack.c.b16 %v881, %v878
    %v918 = vpack.c.b16 %v885, %v882
    %v919 = vpack.c.b16 %v886, %v883
    %v920 = vpack.c.b16 %v887, %v884
    %v921 = vpack.c.b16 %v891, %v888
    %v922 = vpack.c.b16 %v892, %v889
    %v923 = vpack.c.b16 %v893, %v890
    %v924 = vpack.c.b16 %v897, %v894
    %v925 = vpack.c.b16 %v898, %v895
    %v926 = vpack.c.b16 %v899, %v896
    %v927 = vpack.c.b16 %v903, %v900
    %v928 = vpack.c.b16 %v904, %v901
    %v929 = vpack.c.b16 %v905, %v902
    %954 = vmatprep.subr.bf16.mxu0 %v907
    %955 = vmatpush1.bf16.msra.mxu0 %v906
    %956 = vmatprep.subr.bf16.mxu0 %v910
    %957 = vmatpush1.bf16.msra.mxu0 %v909
    %958 = vmatprep.subr.bf16.mxu0 %v913
    %959 = vmatpush1.bf16.msra.mxu0 %v912
    %960 = vmatprep.subr.bf16.mxu0 %v916
    %961 = vmatpush1.bf16.msra.mxu0 %v915
    %962 = vmatprep.subr.bf16.mxu0 %v919
    %963 = vmatpush1.bf16.msra.mxu0 %v918
    %964 = vmatprep.subr.bf16.mxu0 %v922
    %965 = vmatpush1.bf16.msra.mxu0 %v921
    %966 = vmatprep.subr.bf16.mxu0 %v925
    %967 = vmatpush1.bf16.msra.mxu0 %v924
    %968 = vmatprep.subr.bf16.mxu0 %v928
    %969 = vmatpush1.bf16.msra.mxu0 %v927
    %970 = vmatprep.subr.bf16.mxu0 0
    %971 = vmatpush1.bf16.msra.mxu0 0
    %972 = vmatprep.subr.bf16.mxu0 0
    %973 = vmatpush1.bf16.msra.mxu0 0
    %974 = vmatprep.subr.bf16.mxu0 0
    %975 = vmatpush1.bf16.msra.mxu0 0
    %976 = vmatprep.subr.bf16.mxu0 0
    %977 = vmatpush1.bf16.msra.mxu0 0
    %978 = vmatprep.subr.bf16.mxu0 0
    %979 = vmatpush1.bf16.msra.mxu0 0
    %980 = vmatprep.subr.bf16.mxu0 0
    %981 = vmatpush1.bf16.msra.mxu0 0
    %982 = vmatprep.subr.bf16.mxu0 0
    %983 = vmatpush1.bf16.msra.mxu0 0
    %984 = vmatprep.subr.bf16.mxu0 0
    %985 = vmatpush1.bf16.msra.mxu0 0
    %986 = vmatprep.mubr.bf16.mxu0 0
    %987 = vmatmul.mubr.bf16.gmra.mrb[0].mxu0 %v793
    %v988 = vpop.f32.mrb[0].mxu0
    %v989 = vadd.f32 0.0, %v988
    %v990 = vpop.f32.mrb[0].mxu0
    %v991 = vadd.f32 0.0, %v990
    %v992 = vpop.f32.mrb[0].mxu0
    %v993 = vpop.f32.mrb[0].mxu0
    %994 = vdwg.mxu0
    %995 = vmatprep.subr.bf16.mxu0 0
    %996 = vmatpush1.bf16.msra.mxu0 %v908
    %997 = vmatprep.subr.bf16.mxu0 0
    %998 = vmatpush1.bf16.msra.mxu0 %v911
    %999 = vmatprep.subr.bf16.mxu0 0
    %1000 = vmatpush1.bf16.msra.mxu0 %v914
    %1001 = vmatprep.subr.bf16.mxu0 0
    %1002 = vmatpush1.bf16.msra.mxu0 %v917
    %1003 = vmatprep.subr.bf16.mxu0 0
    %1004 = vmatpush1.bf16.msra.mxu0 %v920
    %1005 = vmatprep.subr.bf16.mxu0 0
    %1006 = vmatpush1.bf16.msra.mxu0 %v923
    %1007 = vmatprep.subr.bf16.mxu0 0
    %1008 = vmatpush1.bf16.msra.mxu0 %v926
    %1009 = vmatprep.subr.bf16.mxu0 0
    %1010 = vmatpush1.bf16.msra.mxu0 %v929
    %1011 = vmatprep.subr.bf16.mxu0 0
    %1012 = vmatpush1.bf16.msra.mxu0 0
    %1013 = vmatprep.subr.bf16.mxu0 0
    %1014 = vmatpush1.bf16.msra.mxu0 0
    %1015 = vmatprep.subr.bf16.mxu0 0
    %1016 = vmatpush1.bf16.msra.mxu0 0
    %1017 = vmatprep.subr.bf16.mxu0 0
    %1018 = vmatpush1.bf16.msra.mxu0 0
    %1019 = vmatprep.subr.bf16.mxu0 0
    %1020 = vmatpush1.bf16.msra.mxu0 0
    %1021 = vmatprep.subr.bf16.mxu0 0
    %1022 = vmatpush1.bf16.msra.mxu0 0
    %1023 = vmatprep.subr.bf16.mxu0 0
    %1024 = vmatpush1.bf16.msra.mxu0 0
    %1025 = vmatprep.subr.bf16.mxu0 0
    %1026 = vmatpush1.bf16.msra.mxu0 0
    %1027 = vmatprep.mubr.bf16.mxu0 0
    %1028 = vmatmul.mubr.bf16.gmra.mrb[0].mxu0 %v793
    %v1029 = vpop.f32.mrb[0].mxu0
    %v1030 = vadd.f32 0.0, %v1029
    %v1031 = vpop.f32.mrb[0].mxu0
    %v1032 = vpop.f32.mrb[0].mxu0
    %v1033 = vpop.f32.mrb[0].mxu0
    %1034 = vdwg.mxu0
    %v1035 = vadd.f32 %v790, %v989
    %v1036 = vxor.u32 %v1035, 2147483648
    %v1037 = vmul.f32 %v1036, 1.442695
    %v1038 = vpow.pop %v1037
    %v1039 = vadd.f32 %v1038, 1.0
    %v1040 = vrcp.pop %v1039
    %v1041 = vmul.f32 1.0, %v1040
    %v1042 = vadd.f32 %v791, %v991
    %v1043 = vxor.u32 %v1042, 2147483648
    %v1044 = vmul.f32 %v1043, 1.442695
    %v1045 = vpow.pop %v1044
    %v1046 = vadd.f32 %v1045, 1.0
    %v1047 = vrcp.pop %v1046
    %v1048 = vmul.f32 1.0, %v1047
    %v1049 = vadd.f32 %v1030, %v515
    %v1050 = vmul.f32 %v1041, %v1049
    %v1051 = vadd.f32 %v792, %v1050
    %v1052 = vtanh.pop %v1051
    %v1053 = vsub.f32 1.0, %v1048
    %v1054 = vmul.f32 %v1053, %v1052
    %v1055 = vmul.f32 %v1048, %v785
    %v1056 = vadd.f32 %v1054, %v1055
    %s1057 = scalar_lea.vmem [#allocation4], 8
    %1058 = vst [vmem:[%s1057] sm:$0xff] %v1056
    %s1059 = smul.u32 2, 3
    %s1060 = smul.addr %s1059, 8
    %s1061 = scalar_lea.vmem [#allocation3], %s1060
    %v1062 = vld [vmem:[%s1061] sm:$0xff]
    %v1063 = vld [vmem:[%s1061 + $0x8] sm:$0xff]
    %v1064 = vld [vmem:[%s1061 + $0x10] sm:$0xff]
    %v1065 = vpack.c.bf16 %v1056, %v1056
    %v1066 = vld [vmem:[#allocation8] sm:$0xff]
    %v1067 = vld [vmem:[#allocation8 + $0x8] sm:$0xf]
    %v1068 = vld [vmem:[#allocation8 + $0xc] sm:$0xff]
    %v1069 = vld [vmem:[#allocation8 + $0x14] sm:$0xf]
    %v1070 = vld [vmem:[#allocation8 + $0x18] sm:$0xff]
    %v1071 = vld [vmem:[#allocation8 + $0x20] sm:$0xf]
    %v1072 = vld [vmem:[#allocation8 + $0x24] sm:$0xff]
    %v1073 = vld [vmem:[#allocation8 + $0x2c] sm:$0xf]
    %v1074 = vld [vmem:[#allocation8 + $0x30] sm:$0xff]
    %v1075 = vld [vmem:[#allocation8 + $0x38] sm:$0xf]
    %v1076 = vld [vmem:[#allocation8 + $0x3c] sm:$0xff]
    %v1077 = vld [vmem:[#allocation8 + $0x44] sm:$0xf]
    %v1078 = vld [vmem:[#allocation8 + $0x48] sm:$0xff]
    %v1079 = vld [vmem:[#allocation8 + $0x50] sm:$0xf]
    %v1080 = vld [vmem:[#allocation8 + $0x54] sm:$0xff]
    %v1081 = vld [vmem:[#allocation8 + $0x5c] sm:$0xf]
    %v1082 = vld [vmem:[#allocation8 + $0x60] sm:$0xff]
    %v1083 = vld [vmem:[#allocation8 + $0x68] sm:$0xf]
    %v1084 = vld [vmem:[#allocation8 + $0x6c] sm:$0xff]
    %v1085 = vld [vmem:[#allocation8 + $0x74] sm:$0xf]
    %v1086 = vld [vmem:[#allocation8 + $0x78] sm:$0xff]
    %v1087 = vld [vmem:[#allocation8 + $0x80] sm:$0xf]
    %v1088 = vld [vmem:[#allocation8 + $0x84] sm:$0xff]
    %v1089 = vld [vmem:[#allocation8 + $0x8c] sm:$0xf]
    %v1090 = vld [vmem:[#allocation8 + $0x90] sm:$0xff]
    %v1091 = vld [vmem:[#allocation8 + $0x98] sm:$0xf]
    %v1092 = vld [vmem:[#allocation8 + $0x9c] sm:$0xff]
    %v1093 = vld [vmem:[#allocation8 + $0xa4] sm:$0xf]
    %v1094 = vld [vmem:[#allocation8 + $0xa8] sm:$0xff]
    %v1095 = vld [vmem:[#allocation8 + $0xb0] sm:$0xf]
    %v1096 = vld [vmem:[#allocation8 + $0xb4] sm:$0xff]
    %v1097 = vld [vmem:[#allocation8 + $0xbc] sm:$0xf]
    %v1130 = vunpack.c.l.b16 %v1066
    %v1131 = vunpack.c.h.b16 %v1066
    %v1132 = vunpack.c.l.b16 %v1067
    %v1133 = vunpack.c.l.b16 %v1068
    %v1134 = vunpack.c.h.b16 %v1068
    %v1135 = vunpack.c.l.b16 %v1069
    %v1136 = vunpack.c.l.b16 %v1070
    %v1137 = vunpack.c.h.b16 %v1070
    %v1138 = vunpack.c.l.b16 %v1071
    %v1139 = vunpack.c.l.b16 %v1072
    %v1140 = vunpack.c.h.b16 %v1072
    %v1141 = vunpack.c.l.b16 %v1073
    %v1142 = vunpack.c.l.b16 %v1074
    %v1143 = vunpack.c.h.b16 %v1074
    %v1144 = vunpack.c.l.b16 %v1075
    %v1145 = vunpack.c.l.b16 %v1076
    %v1146 = vunpack.c.h.b16 %v1076
    %v1147 = vunpack.c.l.b16 %v1077
    %v1148 = vunpack.c.l.b16 %v1078
    %v1149 = vunpack.c.h.b16 %v1078
    %v1150 = vunpack.c.l.b16 %v1079
    %v1151 = vunpack.c.l.b16 %v1080
    %v1152 = vunpack.c.h.b16 %v1080
    %v1153 = vunpack.c.l.b16 %v1081
    %v1154 = vunpack.c.l.b16 %v1082
    %v1155 = vunpack.c.h.b16 %v1082
    %v1156 = vunpack.c.l.b16 %v1083
    %v1157 = vunpack.c.l.b16 %v1084
    %v1158 = vunpack.c.h.b16 %v1084
    %v1159 = vunpack.c.l.b16 %v1085
    %v1160 = vunpack.c.l.b16 %v1086
    %v1161 = vunpack.c.h.b16 %v1086
    %v1162 = vunpack.c.l.b16 %v1087
    %v1163 = vunpack.c.l.b16 %v1088
    %v1164 = vunpack.c.h.b16 %v1088
    %v1165 = vunpack.c.l.b16 %v1089
    %v1166 = vunpack.c.l.b16 %v1090
    %v1167 = vunpack.c.h.b16 %v1090
    %v1168 = vunpack.c.l.b16 %v1091
    %v1169 = vunpack.c.l.b16 %v1092
    %v1170 = vunpack.c.h.b16 %v1092
    %v1171 = vunpack.c.l.b16 %v1093
    %v1172 = vunpack.c.l.b16 %v1094
    %v1173 = vunpack.c.h.b16 %v1094
    %v1174 = vunpack.c.l.b16 %v1095
    %v1175 = vunpack.c.l.b16 %v1096
    %v1176 = vunpack.c.h.b16 %v1096
    %v1177 = vunpack.c.l.b16 %v1097
    %v1178 = vpack.c.b16 %v1133, %v1130
    %v1179 = vpack.c.b16 %v1134, %v1131
    %v1180 = vpack.c.b16 %v1135, %v1132
    %v1181 = vpack.c.b16 %v1139, %v1136
    %v1182 = vpack.c.b16 %v1140, %v1137
    %v1183 = vpack.c.b16 %v1141, %v1138
    %v1184 = vpack.c.b16 %v1145, %v1142
    %v1185 = vpack.c.b16 %v1146, %v1143
    %v1186 = vpack.c.b16 %v1147, %v1144
    %v1187 = vpack.c.b16 %v1151, %v1148
    %v1188 = vpack.c.b16 %v1152, %v1149
    %v1189 = vpack.c.b16 %v1153, %v1150
    %v1190 = vpack.c.b16 %v1157, %v1154
    %v1191 = vpack.c.b16 %v1158, %v1155
    %v1192 = vpack.c.b16 %v1159, %v1156
    %v1193 = vpack.c.b16 %v1163, %v1160
    %v1194 = vpack.c.b16 %v1164, %v1161
    %v1195 = vpack.c.b16 %v1165, %v1162
    %v1196 = vpack.c.b16 %v1169, %v1166
    %v1197 = vpack.c.b16 %v1170, %v1167
    %v1198 = vpack.c.b16 %v1171, %v1168
    %v1199 = vpack.c.b16 %v1175, %v1172
    %v1200 = vpack.c.b16 %v1176, %v1173
    %v1201 = vpack.c.b16 %v1177, %v1174
    %1226 = vmatprep.subr.bf16.mxu0 %v1179
    %1227 = vmatpush1.bf16.msra.mxu0 %v1178
    %1228 = vmatprep.subr.bf16.mxu0 %v1182
    %1229 = vmatpush1.bf16.msra.mxu0 %v1181
    %1230 = vmatprep.subr.bf16.mxu0 %v1185
    %1231 = vmatpush1.bf16.msra.mxu0 %v1184
    %1232 = vmatprep.subr.bf16.mxu0 %v1188
    %1233 = vmatpush1.bf16.msra.mxu0 %v1187
    %1234 = vmatprep.subr.bf16.mxu0 %v1191
    %1235 = vmatpush1.bf16.msra.mxu0 %v1190
    %1236 = vmatprep.subr.bf16.mxu0 %v1194
    %1237 = vmatpush1.bf16.msra.mxu0 %v1193
    %1238 = vmatprep.subr.bf16.mxu0 %v1197
    %1239 = vmatpush1.bf16.msra.mxu0 %v1196
    %1240 = vmatprep.subr.bf16.mxu0 %v1200
    %1241 = vmatpush1.bf16.msra.mxu0 %v1199
    %1242 = vmatprep.subr.bf16.mxu0 0
    %1243 = vmatpush1.bf16.msra.mxu0 0
    %1244 = vmatprep.subr.bf16.mxu0 0
    %1245 = vmatpush1.bf16.msra.mxu0 0
    %1246 = vmatprep.subr.bf16.mxu0 0
    %1247 = vmatpush1.bf16.msra.mxu0 0
    %1248 = vmatprep.subr.bf16.mxu0 0
    %1249 = vmatpush1.bf16.msra.mxu0 0
    %1250 = vmatprep.subr.bf16.mxu0 0
    %1251 = vmatpush1.bf16.msra.mxu0 0
    %1252 = vmatprep.subr.bf16.mxu0 0
    %1253 = vmatpush1.bf16.msra.mxu0 0
    %1254 = vmatprep.subr.bf16.mxu0 0
    %1255 = vmatpush1.bf16.msra.mxu0 0
    %1256 = vmatprep.subr.bf16.mxu0 0
    %1257 = vmatpush1.bf16.msra.mxu0 0
    %1258 = vmatprep.mubr.bf16.mxu0 0
    %1259 = vmatmul.mubr.bf16.gmra.mrb[0].mxu0 %v1065
    %v1260 = vpop.f32.mrb[0].mxu0
    %v1261 = vadd.f32 0.0, %v1260
    %v1262 = vpop.f32.mrb[0].mxu0
    %v1263 = vadd.f32 0.0, %v1262
    %v1264 = vpop.f32.mrb[0].mxu0
    %v1265 = vpop.f32.mrb[0].mxu0
    %1266 = vdwg.mxu0
    %1267 = vmatprep.subr.bf16.mxu0 0
    %1268 = vmatpush1.bf16.msra.mxu0 %v1180
    %1269 = vmatprep.subr.bf16.mxu0 0
    %1270 = vmatpush1.bf16.msra.mxu0 %v1183
    %1271 = vmatprep.subr.bf16.mxu0 0
    %1272 = vmatpush1.bf16.msra.mxu0 %v1186
    %1273 = vmatprep.subr.bf16.mxu0 0
    %1274 = vmatpush1.bf16.msra.mxu0 %v1189
    %1275 = vmatprep.subr.bf16.mxu0 0
    %1276 = vmatpush1.bf16.msra.mxu0 %v1192
    %1277 = vmatprep.subr.bf16.mxu0 0
    %1278 = vmatpush1.bf16.msra.mxu0 %v1195
    %1279 = vmatprep.subr.bf16.mxu0 0
    %1280 = vmatpush1.bf16.msra.mxu0 %v1198
    %1281 = vmatprep.subr.bf16.mxu0 0
    %1282 = vmatpush1.bf16.msra.mxu0 %v1201
    %1283 = vmatprep.subr.bf16.mxu0 0
    %1284 = vmatpush1.bf16.msra.mxu0 0
    %1285 = vmatprep.subr.bf16.mxu0 0
    %1286 = vmatpush1.bf16.msra.mxu0 0
    %1287 = vmatprep.subr.bf16.mxu0 0
    %1288 = vmatpush1.bf16.msra.mxu0 0
    %1289 = vmatprep.subr.bf16.mxu0 0
    %1290 = vmatpush1.bf16.msra.mxu0 0
    %1291 = vmatprep.subr.bf16.mxu0 0
    %1292 = vmatpush1.bf16.msra.mxu0 0
    %1293 = vmatprep.subr.bf16.mxu0 0
    %1294 = vmatpush1.bf16.msra.mxu0 0
    %1295 = vmatprep.subr.bf16.mxu0 0
    %1296 = vmatpush1.bf16.msra.mxu0 0
    %1297 = vmatprep.subr.bf16.mxu0 0
    %1298 = vmatpush1.bf16.msra.mxu0 0
    %1299 = vmatprep.mubr.bf16.mxu0 0
    %1300 = vmatmul.mubr.bf16.gmra.mrb[0].mxu0 %v1065
    %v1301 = vpop.f32.mrb[0].mxu0
    %v1302 = vadd.f32 0.0, %v1301
    %v1303 = vpop.f32.mrb[0].mxu0
    %v1304 = vpop.f32.mrb[0].mxu0
    %v1305 = vpop.f32.mrb[0].mxu0
    %1306 = vdwg.mxu0
    %v1307 = vadd.f32 %v1062, %v1261
    %v1308 = vxor.u32 %v1307, 2147483648
    %v1309 = vmul.f32 %v1308, 1.442695
    %v1310 = vpow.pop %v1309
    %v1311 = vadd.f32 %v1310, 1.0
    %v1312 = vrcp.pop %v1311
    %v1313 = vmul.f32 1.0, %v1312
    %v1314 = vadd.f32 %v1063, %v1263
    %v1315 = vxor.u32 %v1314, 2147483648
    %v1316 = vmul.f32 %v1315, 1.442695
    %v1317 = vpow.pop %v1316
    %v1318 = vadd.f32 %v1317, 1.0
    %v1319 = vrcp.pop %v1318
    %v1320 = vmul.f32 1.0, %v1319
    %v1321 = vadd.f32 %v1302, %v515
    %v1322 = vmul.f32 %v1313, %v1321
    %v1323 = vadd.f32 %v1064, %v1322
    %v1324 = vtanh.pop %v1323
    %v1325 = vsub.f32 1.0, %v1320
    %v1326 = vmul.f32 %v1325, %v1324
    %v1327 = vmul.f32 %v1320, %v1056
    %v1328 = vadd.f32 %v1326, %v1327
    %s1329 = scalar_lea.vmem [#allocation4], 16
    %1330 = vst [vmem:[%s1329] sm:$0xff] %v1328
    %s1331 = smul.u32 3, 3
    %s1332 = smul.addr %s1331, 8
    %s1333 = scalar_lea.vmem [#allocation3], %s1332
    %v1334 = vld [vmem:[%s1333] sm:$0xff]
    %v1335 = vld [vmem:[%s1333 + $0x8] sm:$0xff]
    %v1336 = vld [vmem:[%s1333 + $0x10] sm:$0xff]
    %v1337 = vpack.c.bf16 %v1328, %v1328
    %v1338 = vld [vmem:[#allocation8] sm:$0xff]
    %v1339 = vld [vmem:[#allocation8 + $0x8] sm:$0xf]
    %v1340 = vld [vmem:[#allocation8 + $0xc] sm:$0xff]
    %v1341 = vld [vmem:[#allocation8 + $0x14] sm:$0xf]
    %v1342 = vld [vmem:[#allocation8 + $0x18] sm:$0xff]
    %v1343 = vld [vmem:[#allocation8 + $0x20] sm:$0xf]
    %v1344 = vld [vmem:[#allocation8 + $0x24] sm:$0xff]
    %v1345 = vld [vmem:[#allocation8 + $0x2c] sm:$0xf]
    %v1346 = vld [vmem:[#allocation8 + $0x30] sm:$0xff]
    %v1347 = vld [vmem:[#allocation8 + $0x38] sm:$0xf]
    %v1348 = vld [vmem:[#allocation8 + $0x3c] sm:$0xff]
    %v1349 = vld [vmem:[#allocation8 + $0x44] sm:$0xf]
    %v1350 = vld [vmem:[#allocation8 + $0x48] sm:$0xff]
    %v1351 = vld [vmem:[#allocation8 + $0x50] sm:$0xf]
    %v1352 = vld [vmem:[#allocation8 + $0x54] sm:$0xff]
    %v1353 = vld [vmem:[#allocation8 + $0x5c] sm:$0xf]
    %v1354 = vld [vmem:[#allocation8 + $0x60] sm:$0xff]
    %v1355 = vld [vmem:[#allocation8 + $0x68] sm:$0xf]
    %v1356 = vld [vmem:[#allocation8 + $0x6c] sm:$0xff]
    %v1357 = vld [vmem:[#allocation8 + $0x74] sm:$0xf]
    %v1358 = vld [vmem:[#allocation8 + $0x78] sm:$0xff]
    %v1359 = vld [vmem:[#allocation8 + $0x80] sm:$0xf]
    %v1360 = vld [vmem:[#allocation8 + $0x84] sm:$0xff]
    %v1361 = vld [vmem:[#allocation8 + $0x8c] sm:$0xf]
    %v1362 = vld [vmem:[#allocation8 + $0x90] sm:$0xff]
    %v1363 = vld [vmem:[#allocation8 + $0x98] sm:$0xf]
    %v1364 = vld [vmem:[#allocation8 + $0x9c] sm:$0xff]
    %v1365 = vld [vmem:[#allocation8 + $0xa4] sm:$0xf]
    %v1366 = vld [vmem:[#allocation8 + $0xa8] sm:$0xff]
    %v1367 = vld [vmem:[#allocation8 + $0xb0] sm:$0xf]
    %v1368 = vld [vmem:[#allocation8 + $0xb4] sm:$0xff]
    %v1369 = vld [vmem:[#allocation8 + $0xbc] sm:$0xf]
    %v1402 = vunpack.c.l.b16 %v1338
    %v1403 = vunpack.c.h.b16 %v1338
    %v1404 = vunpack.c.l.b16 %v1339
    %v1405 = vunpack.c.l.b16 %v1340
    %v1406 = vunpack.c.h.b16 %v1340
    %v1407 = vunpack.c.l.b16 %v1341
    %v1408 = vunpack.c.l.b16 %v1342
    %v1409 = vunpack.c.h.b16 %v1342
    %v1410 = vunpack.c.l.b16 %v1343
    %v1411 = vunpack.c.l.b16 %v1344
    %v1412 = vunpack.c.h.b16 %v1344
    %v1413 = vunpack.c.l.b16 %v1345
    %v1414 = vunpack.c.l.b16 %v1346
    %v1415 = vunpack.c.h.b16 %v1346
    %v1416 = vunpack.c.l.b16 %v1347
    %v1417 = vunpack.c.l.b16 %v1348
    %v1418 = vunpack.c.h.b16 %v1348
    %v1419 = vunpack.c.l.b16 %v1349
    %v1420 = vunpack.c.l.b16 %v1350
    %v1421 = vunpack.c.h.b16 %v1350
    %v1422 = vunpack.c.l.b16 %v1351
    %v1423 = vunpack.c.l.b16 %v1352
    %v1424 = vunpack.c.h.b16 %v1352
    %v1425 = vunpack.c.l.b16 %v1353
    %v1426 = vunpack.c.l.b16 %v1354
    %v1427 = vunpack.c.h.b16 %v1354
    %v1428 = vunpack.c.l.b16 %v1355
    %v1429 = vunpack.c.l.b16 %v1356
    %v1430 = vunpack.c.h.b16 %v1356
    %v1431 = vunpack.c.l.b16 %v1357
    %v1432 = vunpack.c.l.b16 %v1358
    %v1433 = vunpack.c.h.b16 %v1358
    %v1434 = vunpack.c.l.b16 %v1359
    %v1435 = vunpack.c.l.b16 %v1360
    %v1436 = vunpack.c.h.b16 %v1360
    %v1437 = vunpack.c.l.b16 %v1361
    %v1438 = vunpack.c.l.b16 %v1362
    %v1439 = vunpack.c.h.b16 %v1362
    %v1440 = vunpack.c.l.b16 %v1363
    %v1441 = vunpack.c.l.b16 %v1364
    %v1442 = vunpack.c.h.b16 %v1364
    %v1443 = vunpack.c.l.b16 %v1365
    %v1444 = vunpack.c.l.b16 %v1366
    %v1445 = vunpack.c.h.b16 %v1366
    %v1446 = vunpack.c.l.b16 %v1367
    %v1447 = vunpack.c.l.b16 %v1368
    %v1448 = vunpack.c.h.b16 %v1368
    %v1449 = vunpack.c.l.b16 %v1369
    %v1450 = vpack.c.b16 %v1405, %v1402
    %v1451 = vpack.c.b16 %v1406, %v1403
    %v1452 = vpack.c.b16 %v1407, %v1404
    %v1453 = vpack.c.b16 %v1411, %v1408
    %v1454 = vpack.c.b16 %v1412, %v1409
    %v1455 = vpack.c.b16 %v1413, %v1410
    %v1456 = vpack.c.b16 %v1417, %v1414
    %v1457 = vpack.c.b16 %v1418, %v1415
    %v1458 = vpack.c.b16 %v1419, %v1416
    %v1459 = vpack.c.b16 %v1423, %v1420
    %v1460 = vpack.c.b16 %v1424, %v1421
    %v1461 = vpack.c.b16 %v1425, %v1422
    %v1462 = vpack.c.b16 %v1429, %v1426
    %v1463 = vpack.c.b16 %v1430, %v1427
    %v1464 = vpack.c.b16 %v1431, %v1428
    %v1465 = vpack.c.b16 %v1435, %v1432
    %v1466 = vpack.c.b16 %v1436, %v1433
    %v1467 = vpack.c.b16 %v1437, %v1434
    %v1468 = vpack.c.b16 %v1441, %v1438
    %v1469 = vpack.c.b16 %v1442, %v1439
    %v1470 = vpack.c.b16 %v1443, %v1440
    %v1471 = vpack.c.b16 %v1447, %v1444
    %v1472 = vpack.c.b16 %v1448, %v1445
    %v1473 = vpack.c.b16 %v1449, %v1446
    %1498 = vmatprep.subr.bf16.mxu0 %v1451
    %1499 = vmatpush1.bf16.msra.mxu0 %v1450
    %1500 = vmatprep.subr.bf16.mxu0 %v1454
    %1501 = vmatpush1.bf16.msra.mxu0 %v1453
    %1502 = vmatprep.subr.bf16.mxu0 %v1457
    %1503 = vmatpush1.bf16.msra.mxu0 %v1456
    %1504 = vmatprep.subr.bf16.mxu0 %v1460
    %1505 = vmatpush1.bf16.msra.mxu0 %v1459
    %1506 = vmatprep.subr.bf16.mxu0 %v1463
    %1507 = vmatpush1.bf16.msra.mxu0 %v1462
    %1508 = vmatprep.subr.bf16.mxu0 %v1466
    %1509 = vmatpush1.bf16.msra.mxu0 %v1465
    %1510 = vmatprep.subr.bf16.mxu0 %v1469
    %1511 = vmatpush1.bf16.msra.mxu0 %v1468
    %1512 = vmatprep.subr.bf16.mxu0 %v1472
    %1513 = vmatpush1.bf16.msra.mxu0 %v1471
    %1514 = vmatprep.subr.bf16.mxu0 0
    %1515 = vmatpush1.bf16.msra.mxu0 0
    %1516 = vmatprep.subr.bf16.mxu0 0
    %1517 = vmatpush1.bf16.msra.mxu0 0
    %1518 = vmatprep.subr.bf16.mxu0 0
    %1519 = vmatpush1.bf16.msra.mxu0 0
    %1520 = vmatprep.subr.bf16.mxu0 0
    %1521 = vmatpush1.bf16.msra.mxu0 0
    %1522 = vmatprep.subr.bf16.mxu0 0
    %1523 = vmatpush1.bf16.msra.mxu0 0
    %1524 = vmatprep.subr.bf16.mxu0 0
    %1525 = vmatpush1.bf16.msra.mxu0 0
    %1526 = vmatprep.subr.bf16.mxu0 0
    %1527 = vmatpush1.bf16.msra.mxu0 0
    %1528 = vmatprep.subr.bf16.mxu0 0
    %1529 = vmatpush1.bf16.msra.mxu0 0
    %1530 = vmatprep.mubr.bf16.mxu0 0
    %1531 = vmatmul.mubr.bf16.gmra.mrb[0].mxu0 %v1337
    %v1532 = vpop.f32.mrb[0].mxu0
    %v1533 = vadd.f32 0.0, %v1532
    %v1534 = vpop.f32.mrb[0].mxu0
    %v1535 = vadd.f32 0.0, %v1534
    %v1536 = vpop.f32.mrb[0].mxu0
    %v1537 = vpop.f32.mrb[0].mxu0
    %1538 = vdwg.mxu0
    %1539 = vmatprep.subr.bf16.mxu0 0
    %1540 = vmatpush1.bf16.msra.mxu0 %v1452
    %1541 = vmatprep.subr.bf16.mxu0 0
    %1542 = vmatpush1.bf16.msra.mxu0 %v1455
    %1543 = vmatprep.subr.bf16.mxu0 0
    %1544 = vmatpush1.bf16.msra.mxu0 %v1458
    %1545 = vmatprep.subr.bf16.mxu0 0
    %1546 = vmatpush1.bf16.msra.mxu0 %v1461
    %1547 = vmatprep.subr.bf16.mxu0 0
    %1548 = vmatpush1.bf16.msra.mxu0 %v1464
    %1549 = vmatprep.subr.bf16.mxu0 0
    %1550 = vmatpush1.bf16.msra.mxu0 %v1467
    %1551 = vmatprep.subr.bf16.mxu0 0
    %1552 = vmatpush1.bf16.msra.mxu0 %v1470
    %1553 = vmatprep.subr.bf16.mxu0 0
    %1554 = vmatpush1.bf16.msra.mxu0 %v1473
    %1555 = vmatprep.subr.bf16.mxu0 0
    %1556 = vmatpush1.bf16.msra.mxu0 0
    %1557 = vmatprep.subr.bf16.mxu0 0
    %1558 = vmatpush1.bf16.msra.mxu0 0
    %1559 = vmatprep.subr.bf16.mxu0 0
    %1560 = vmatpush1.bf16.msra.mxu0 0
    %1561 = vmatprep.subr.bf16.mxu0 0
    %1562 = vmatpush1.bf16.msra.mxu0 0
    %1563 = vmatprep.subr.bf16.mxu0 0
    %1564 = vmatpush1.bf16.msra.mxu0 0
    %1565 = vmatprep.subr.bf16.mxu0 0
    %1566 = vmatpush1.bf16.msra.mxu0 0
    %1567 = vmatprep.subr.bf16.mxu0 0
    %1568 = vmatpush1.bf16.msra.mxu0 0
    %1569 = vmatprep.subr.bf16.mxu0 0
    %1570 = vmatpush1.bf16.msra.mxu0 0
    %1571 = vmatprep.mubr.bf16.mxu0 0
    %1572 = vmatmul.mubr.bf16.gmra.mrb[0].mxu0 %v1337
    %v1573 = vpop.f32.mrb[0].mxu0
    %v1574 = vadd.f32 0.0, %v1573
    %v1575 = vpop.f32.mrb[0].mxu0
    %v1576 = vpop.f32.mrb[0].mxu0
    %v1577 = vpop.f32.mrb[0].mxu0
    %1578 = vdwg.mxu0
    %v1579 = vadd.f32 %v1334, %v1533
    %v1580 = vxor.u32 %v1579, 2147483648
    %v1581 = vmul.f32 %v1580, 1.442695
    %v1582 = vpow.pop %v1581
    %v1583 = vadd.f32 %v1582, 1.0
    %v1584 = vrcp.pop %v1583
    %v1585 = vmul.f32 1.0, %v1584
    %v1586 = vadd.f32 %v1335, %v1535
    %v1587 = vxor.u32 %v1586, 2147483648
    %v1588 = vmul.f32 %v1587, 1.442695
    %v1589 = vpow.pop %v1588
    %v1590 = vadd.f32 %v1589, 1.0
    %v1591 = vrcp.pop %v1590
    %v1592 = vmul.f32 1.0, %v1591
    %v1593 = vadd.f32 %v1574, %v515
    %v1594 = vmul.f32 %v1585, %v1593
    %v1595 = vadd.f32 %v1336, %v1594
    %v1596 = vtanh.pop %v1595
    %v1597 = vsub.f32 1.0, %v1592
    %v1598 = vmul.f32 %v1597, %v1596
    %v1599 = vmul.f32 %v1592, %v1328
    %v1600 = vadd.f32 %v1598, %v1599
    %s1601 = scalar_lea.vmem [#allocation4], 24
    %1602 = vst [vmem:[%s1601] sm:$0xff] %v1600
    %s1603 = smul.u32 4, 3
    %s1604 = smul.addr %s1603, 8
    %s1605 = scalar_lea.vmem [#allocation3], %s1604
    %v1606 = vld [vmem:[%s1605] sm:$0xff]
    %v1607 = vld [vmem:[%s1605 + $0x8] sm:$0xff]
    %v1608 = vld [vmem:[%s1605 + $0x10] sm:$0xff]
    %v1609 = vpack.c.bf16 %v1600, %v1600
    %v1610 = vld [vmem:[#allocation8] sm:$0xff]
    %v1611 = vld [vmem:[#allocation8 + $0x8] sm:$0xf]
    %v1612 = vld [vmem:[#allocation8 + $0xc] sm:$0xff]
    %v1613 = vld [vmem:[#allocation8 + $0x14] sm:$0xf]
    %v1614 = vld [vmem:[#allocation8 + $0x18] sm:$0xff]
    %v1615 = vld [vmem:[#allocation8 + $0x20] sm:$0xf]
    %v1616 = vld [vmem:[#allocation8 + $0x24] sm:$0xff]
    %v1617 = vld [vmem:[#allocation8 + $0x2c] sm:$0xf]
    %v1618 = vld [vmem:[#allocation8 + $0x30] sm:$0xff]
    %v1619 = vld [vmem:[#allocation8 + $0x38] sm:$0xf]
    %v1620 = vld [vmem:[#allocation8 + $0x3c] sm:$0xff]
    %v1621 = vld [vmem:[#allocation8 + $0x44] sm:$0xf]
    %v1622 = vld [vmem:[#allocation8 + $0x48] sm:$0xff]
    %v1623 = vld [vmem:[#allocation8 + $0x50] sm:$0xf]
    %v1624 = vld [vmem:[#allocation8 + $0x54] sm:$0xff]
    %v1625 = vld [vmem:[#allocation8 + $0x5c] sm:$0xf]
    %v1626 = vld [vmem:[#allocation8 + $0x60] sm:$0xff]
    %v1627 = vld [vmem:[#allocation8 + $0x68] sm:$0xf]
    %v1628 = vld [vmem:[#allocation8 + $0x6c] sm:$0xff]
    %v1629 = vld [vmem:[#allocation8 + $0x74] sm:$0xf]
    %v1630 = vld [vmem:[#allocation8 + $0x78] sm:$0xff]
    %v1631 = vld [vmem:[#allocation8 + $0x80] sm:$0xf]
    %v1632 = vld [vmem:[#allocation8 + $0x84] sm:$0xff]
    %v1633 = vld [vmem:[#allocation8 + $0x8c] sm:$0xf]
    %v1634 = vld [vmem:[#allocation8 + $0x90] sm:$0xff]
    %v1635 = vld [vmem:[#allocation8 + $0x98] sm:$0xf]
    %v1636 = vld [vmem:[#allocation8 + $0x9c] sm:$0xff]
    %v1637 = vld [vmem:[#allocation8 + $0xa4] sm:$0xf]
    %v1638 = vld [vmem:[#allocation8 + $0xa8] sm:$0xff]
    %v1639 = vld [vmem:[#allocation8 + $0xb0] sm:$0xf]
    %v1640 = vld [vmem:[#allocation8 + $0xb4] sm:$0xff]
    %v1641 = vld [vmem:[#allocation8 + $0xbc] sm:$0xf]
    %v1674 = vunpack.c.l.b16 %v1610
    %v1675 = vunpack.c.h.b16 %v1610
    %v1676 = vunpack.c.l.b16 %v1611
    %v1677 = vunpack.c.l.b16 %v1612
    %v1678 = vunpack.c.h.b16 %v1612
    %v1679 = vunpack.c.l.b16 %v1613
    %v1680 = vunpack.c.l.b16 %v1614
    %v1681 = vunpack.c.h.b16 %v1614
    %v1682 = vunpack.c.l.b16 %v1615
    %v1683 = vunpack.c.l.b16 %v1616
    %v1684 = vunpack.c.h.b16 %v1616
    %v1685 = vunpack.c.l.b16 %v1617
    %v1686 = vunpack.c.l.b16 %v1618
    %v1687 = vunpack.c.h.b16 %v1618
    %v1688 = vunpack.c.l.b16 %v1619
    %v1689 = vunpack.c.l.b16 %v1620
    %v1690 = vunpack.c.h.b16 %v1620
    %v1691 = vunpack.c.l.b16 %v1621
    %v1692 = vunpack.c.l.b16 %v1622
    %v1693 = vunpack.c.h.b16 %v1622
    %v1694 = vunpack.c.l.b16 %v1623
    %v1695 = vunpack.c.l.b16 %v1624
    %v1696 = vunpack.c.h.b16 %v1624
    %v1697 = vunpack.c.l.b16 %v1625
    %v1698 = vunpack.c.l.b16 %v1626
    %v1699 = vunpack.c.h.b16 %v1626
    %v1700 = vunpack.c.l.b16 %v1627
    %v1701 = vunpack.c.l.b16 %v1628
    %v1702 = vunpack.c.h.b16 %v1628
    %v1703 = vunpack.c.l.b16 %v1629
    %v1704 = vunpack.c.l.b16 %v1630
    %v1705 = vunpack.c.h.b16 %v1630
    %v1706 = vunpack.c.l.b16 %v1631
    %v1707 = vunpack.c.l.b16 %v1632
    %v1708 = vunpack.c.h.b16 %v1632
    %v1709 = vunpack.c.l.b16 %v1633
    %v1710 = vunpack.c.l.b16 %v1634
    %v1711 = vunpack.c.h.b16 %v1634
    %v1712 = vunpack.c.l.b16 %v1635
    %v1713 = vunpack.c.l.b16 %v1636
    %v1714 = vunpack.c.h.b16 %v1636
    %v1715 = vunpack.c.l.b16 %v1637
    %v1716 = vunpack.c.l.b16 %v1638
    %v1717 = vunpack.c.h.b16 %v1638
    %v1718 = vunpack.c.l.b16 %v1639
    %v1719 = vunpack.c.l.b16 %v1640
    %v1720 = vunpack.c.h.b16 %v1640
    %v1721 = vunpack.c.l.b16 %v1641
    %v1722 = vpack.c.b16 %v1677, %v1674
    %v1723 = vpack.c.b16 %v1678, %v1675
    %v1724 = vpack.c.b16 %v1679, %v1676
    %v1725 = vpack.c.b16 %v1683, %v1680
    %v1726 = vpack.c.b16 %v1684, %v1681
    %v1727 = vpack.c.b16 %v1685, %v1682
    %v1728 = vpack.c.b16 %v1689, %v1686
    %v1729 = vpack.c.b16 %v1690, %v1687
    %v1730 = vpack.c.b16 %v1691, %v1688
    %v1731 = vpack.c.b16 %v1695, %v1692
    %v1732 = vpack.c.b16 %v1696, %v1693
    %v1733 = vpack.c.b16 %v1697, %v1694
    %v1734 = vpack.c.b16 %v1701, %v1698
    %v1735 = vpack.c.b16 %v1702, %v1699
    %v1736 = vpack.c.b16 %v1703, %v1700
    %v1737 = vpack.c.b16 %v1707, %v1704
    %v1738 = vpack.c.b16 %v1708, %v1705
    %v1739 = vpack.c.b16 %v1709, %v1706
    %v1740 = vpack.c.b16 %v1713, %v1710
    %v1741 = vpack.c.b16 %v1714, %v1711
    %v1742 = vpack.c.b16 %v1715, %v1712
    %v1743 = vpack.c.b16 %v1719, %v1716
    %v1744 = vpack.c.b16 %v1720, %v1717
    %v1745 = vpack.c.b16 %v1721, %v1718
    %1770 = vmatprep.subr.bf16.mxu0 %v1723
    %1771 = vmatpush1.bf16.msra.mxu0 %v1722
    %1772 = vmatprep.subr.bf16.mxu0 %v1726
    %1773 = vmatpush1.bf16.msra.mxu0 %v1725
    %1774 = vmatprep.subr.bf16.mxu0 %v1729
    %1775 = vmatpush1.bf16.msra.mxu0 %v1728
    %1776 = vmatprep.subr.bf16.mxu0 %v1732
    %1777 = vmatpush1.bf16.msra.mxu0 %v1731
    %1778 = vmatprep.subr.bf16.mxu0 %v1735
    %1779 = vmatpush1.bf16.msra.mxu0 %v1734
    %1780 = vmatprep.subr.bf16.mxu0 %v1738
    %1781 = vmatpush1.bf16.msra.mxu0 %v1737
    %1782 = vmatprep.subr.bf16.mxu0 %v1741
    %1783 = vmatpush1.bf16.msra.mxu0 %v1740
    %1784 = vmatprep.subr.bf16.mxu0 %v1744
    %1785 = vmatpush1.bf16.msra.mxu0 %v1743
    %1786 = vmatprep.subr.bf16.mxu0 0
    %1787 = vmatpush1.bf16.msra.mxu0 0
    %1788 = vmatprep.subr.bf16.mxu0 0
    %1789 = vmatpush1.bf16.msra.mxu0 0
    %1790 = vmatprep.subr.bf16.mxu0 0
    %1791 = vmatpush1.bf16.msra.mxu0 0
    %1792 = vmatprep.subr.bf16.mxu0 0
    %1793 = vmatpush1.bf16.msra.mxu0 0
    %1794 = vmatprep.subr.bf16.mxu0 0
    %1795 = vmatpush1.bf16.msra.mxu0 0
    %1796 = vmatprep.subr.bf16.mxu0 0
    %1797 = vmatpush1.bf16.msra.mxu0 0
    %1798 = vmatprep.subr.bf16.mxu0 0
    %1799 = vmatpush1.bf16.msra.mxu0 0
    %1800 = vmatprep.subr.bf16.mxu0 0
    %1801 = vmatpush1.bf16.msra.mxu0 0
    %1802 = vmatprep.mubr.bf16.mxu0 0
    %1803 = vmatmul.mubr.bf16.gmra.mrb[0].mxu0 %v1609
    %v1804 = vpop.f32.mrb[0].mxu0
    %v1805 = vadd.f32 0.0, %v1804
    %v1806 = vpop.f32.mrb[0].mxu0
    %v1807 = vadd.f32 0.0, %v1806
    %v1808 = vpop.f32.mrb[0].mxu0
    %v1809 = vpop.f32.mrb[0].mxu0
    %1810 = vdwg.mxu0
    %1811 = vmatprep.subr.bf16.mxu0 0
    %1812 = vmatpush1.bf16.msra.mxu0 %v1724
    %1813 = vmatprep.subr.bf16.mxu0 0
    %1814 = vmatpush1.bf16.msra.mxu0 %v1727
    %1815 = vmatprep.subr.bf16.mxu0 0
    %1816 = vmatpush1.bf16.msra.mxu0 %v1730
    %1817 = vmatprep.subr.bf16.mxu0 0
    %1818 = vmatpush1.bf16.msra.mxu0 %v1733
    %1819 = vmatprep.subr.bf16.mxu0 0
    %1820 = vmatpush1.bf16.msra.mxu0 %v1736
    %1821 = vmatprep.subr.bf16.mxu0 0
    %1822 = vmatpush1.bf16.msra.mxu0 %v1739
    %1823 = vmatprep.subr.bf16.mxu0 0
    %1824 = vmatpush1.bf16.msra.mxu0 %v1742
    %1825 = vmatprep.subr.bf16.mxu0 0
    %1826 = vmatpush1.bf16.msra.mxu0 %v1745
    %1827 = vmatprep.subr.bf16.mxu0 0
    %1828 = vmatpush1.bf16.msra.mxu0 0
    %1829 = vmatprep.subr.bf16.mxu0 0
    %1830 = vmatpush1.bf16.msra.mxu0 0
    %1831 = vmatprep.subr.bf16.mxu0 0
    %1832 = vmatpush1.bf16.msra.mxu0 0
    %1833 = vmatprep.subr.bf16.mxu0 0
    %1834 = vmatpush1.bf16.msra.mxu0 0
    %1835 = vmatprep.subr.bf16.mxu0 0
    %1836 = vmatpush1.bf16.msra.mxu0 0
    %1837 = vmatprep.subr.bf16.mxu0 0
    %1838 = vmatpush1.bf16.msra.mxu0 0
    %1839 = vmatprep.subr.bf16.mxu0 0
    %1840 = vmatpush1.bf16.msra.mxu0 0
    %1841 = vmatprep.subr.bf16.mxu0 0
    %1842 = vmatpush1.bf16.msra.mxu0 0
    %1843 = vmatprep.mubr.bf16.mxu0 0
    %1844 = vmatmul.mubr.bf16.gmra.mrb[0].mxu0 %v1609
    %v1845 = vpop.f32.mrb[0].mxu0
    %v1846 = vadd.f32 0.0, %v1845
    %v1847 = vpop.f32.mrb[0].mxu0
    %v1848 = vpop.f32.mrb[0].mxu0
    %v1849 = vpop.f32.mrb[0].mxu0
    %1850 = vdwg.mxu0
    %v1851 = vadd.f32 %v1606, %v1805
    %v1852 = vxor.u32 %v1851, 2147483648
    %v1853 = vmul.f32 %v1852, 1.442695
    %v1854 = vpow.pop %v1853
    %v1855 = vadd.f32 %v1854, 1.0
    %v1856 = vrcp.pop %v1855
    %v1857 = vmul.f32 1.0, %v1856
    %v1858 = vadd.f32 %v1607, %v1807
    %v1859 = vxor.u32 %v1858, 2147483648
    %v1860 = vmul.f32 %v1859, 1.442695
    %v1861 = vpow.pop %v1860
    %v1862 = vadd.f32 %v1861, 1.0
    %v1863 = vrcp.pop %v1862
    %v1864 = vmul.f32 1.0, %v1863
    %v1865 = vadd.f32 %v1846, %v515
    %v1866 = vmul.f32 %v1857, %v1865
    %v1867 = vadd.f32 %v1608, %v1866
    %v1868 = vtanh.pop %v1867
    %v1869 = vsub.f32 1.0, %v1864
    %v1870 = vmul.f32 %v1869, %v1868
    %v1871 = vmul.f32 %v1864, %v1600
    %v1872 = vadd.f32 %v1870, %v1871
    %s1873 = scalar_lea.vmem [#allocation4], 32
    %1874 = vst [vmem:[%s1873] sm:$0xff] %v1872
    %s1875 = smul.u32 5, 3
    %s1876 = smul.addr %s1875, 8
    %s1877 = scalar_lea.vmem [#allocation3], %s1876
    %v1878 = vld [vmem:[%s1877] sm:$0xff]
    %v1879 = vld [vmem:[%s1877 + $0x8] sm:$0xff]
    %v1880 = vld [vmem:[%s1877 + $0x10] sm:$0xff]
    %v1881 = vpack.c.bf16 %v1872, %v1872
    %v1882 = vld [vmem:[#allocation8] sm:$0xff]
    %v1883 = vld [vmem:[#allocation8 + $0x8] sm:$0xf]
    %v1884 = vld [vmem:[#allocation8 + $0xc] sm:$0xff]
    %v1885 = vld [vmem:[#allocation8 + $0x14] sm:$0xf]
    %v1886 = vld [vmem:[#allocation8 + $0x18] sm:$0xff]
    %v1887 = vld [vmem:[#allocation8 + $0x20] sm:$0xf]
    %v1888 = vld [vmem:[#allocation8 + $0x24] sm:$0xff]
    %v1889 = vld [vmem:[#allocation8 + $0x2c] sm:$0xf]
    %v1890 = vld [vmem:[#allocation8 + $0x30] sm:$0xff]
    %v1891 = vld [vmem:[#allocation8 + $0x38] sm:$0xf]
    %v1892 = vld [vmem:[#allocation8 + $0x3c] sm:$0xff]
    %v1893 = vld [vmem:[#allocation8 + $0x44] sm:$0xf]
    %v1894 = vld [vmem:[#allocation8 + $0x48] sm:$0xff]
    %v1895 = vld [vmem:[#allocation8 + $0x50] sm:$0xf]
    %v1896 = vld [vmem:[#allocation8 + $0x54] sm:$0xff]
    %v1897 = vld [vmem:[#allocation8 + $0x5c] sm:$0xf]
    %v1898 = vld [vmem:[#allocation8 + $0x60] sm:$0xff]
    %v1899 = vld [vmem:[#allocation8 + $0x68] sm:$0xf]
    %v1900 = vld [vmem:[#allocation8 + $0x6c] sm:$0xff]
    %v1901 = vld [vmem:[#allocation8 + $0x74] sm:$0xf]
    %v1902 = vld [vmem:[#allocation8 + $0x78] sm:$0xff]
    %v1903 = vld [vmem:[#allocation8 + $0x80] sm:$0xf]
    %v1904 = vld [vmem:[#allocation8 + $0x84] sm:$0xff]
    %v1905 = vld [vmem:[#allocation8 + $0x8c] sm:$0xf]
    %v1906 = vld [vmem:[#allocation8 + $0x90] sm:$0xff]
    %v1907 = vld [vmem:[#allocation8 + $0x98] sm:$0xf]
    %v1908 = vld [vmem:[#allocation8 + $0x9c] sm:$0xff]
    %v1909 = vld [vmem:[#allocation8 + $0xa4] sm:$0xf]
    %v1910 = vld [vmem:[#allocation8 + $0xa8] sm:$0xff]
    %v1911 = vld [vmem:[#allocation8 + $0xb0] sm:$0xf]
    %v1912 = vld [vmem:[#allocation8 + $0xb4] sm:$0xff]
    %v1913 = vld [vmem:[#allocation8 + $0xbc] sm:$0xf]
    %v1946 = vunpack.c.l.b16 %v1882
    %v1947 = vunpack.c.h.b16 %v1882
    %v1948 = vunpack.c.l.b16 %v1883
    %v1949 = vunpack.c.l.b16 %v1884
    %v1950 = vunpack.c.h.b16 %v1884
    %v1951 = vunpack.c.l.b16 %v1885
    %v1952 = vunpack.c.l.b16 %v1886
    %v1953 = vunpack.c.h.b16 %v1886
    %v1954 = vunpack.c.l.b16 %v1887
    %v1955 = vunpack.c.l.b16 %v1888
    %v1956 = vunpack.c.h.b16 %v1888
    %v1957 = vunpack.c.l.b16 %v1889
    %v1958 = vunpack.c.l.b16 %v1890
    %v1959 = vunpack.c.h.b16 %v1890
    %v1960 = vunpack.c.l.b16 %v1891
    %v1961 = vunpack.c.l.b16 %v1892
    %v1962 = vunpack.c.h.b16 %v1892
    %v1963 = vunpack.c.l.b16 %v1893
    %v1964 = vunpack.c.l.b16 %v1894
    %v1965 = vunpack.c.h.b16 %v1894
    %v1966 = vunpack.c.l.b16 %v1895
    %v1967 = vunpack.c.l.b16 %v1896
    %v1968 = vunpack.c.h.b16 %v1896
    %v1969 = vunpack.c.l.b16 %v1897
    %v1970 = vunpack.c.l.b16 %v1898
    %v1971 = vunpack.c.h.b16 %v1898
    %v1972 = vunpack.c.l.b16 %v1899
    %v1973 = vunpack.c.l.b16 %v1900
    %v1974 = vunpack.c.h.b16 %v1900
    %v1975 = vunpack.c.l.b16 %v1901
    %v1976 = vunpack.c.l.b16 %v1902
    %v1977 = vunpack.c.h.b16 %v1902
    %v1978 = vunpack.c.l.b16 %v1903
    %v1979 = vunpack.c.l.b16 %v1904
    %v1980 = vunpack.c.h.b16 %v1904
    %v1981 = vunpack.c.l.b16 %v1905
    %v1982 = vunpack.c.l.b16 %v1906
    %v1983 = vunpack.c.h.b16 %v1906
    %v1984 = vunpack.c.l.b16 %v1907
    %v1985 = vunpack.c.l.b16 %v1908
    %v1986 = vunpack.c.h.b16 %v1908
    %v1987 = vunpack.c.l.b16 %v1909
    %v1988 = vunpack.c.l.b16 %v1910
    %v1989 = vunpack.c.h.b16 %v1910
    %v1990 = vunpack.c.l.b16 %v1911
    %v1991 = vunpack.c.l.b16 %v1912
    %v1992 = vunpack.c.h.b16 %v1912
    %v1993 = vunpack.c.l.b16 %v1913
    %v1994 = vpack.c.b16 %v1949, %v1946
    %v1995 = vpack.c.b16 %v1950, %v1947
    %v1996 = vpack.c.b16 %v1951, %v1948
    %v1997 = vpack.c.b16 %v1955, %v1952
    %v1998 = vpack.c.b16 %v1956, %v1953
    %v1999 = vpack.c.b16 %v1957, %v1954
    %v2000 = vpack.c.b16 %v1961, %v1958
    %v2001 = vpack.c.b16 %v1962, %v1959
    %v2002 = vpack.c.b16 %v1963, %v1960
    %v2003 = vpack.c.b16 %v1967, %v1964
    %v2004 = vpack.c.b16 %v1968, %v1965
    %v2005 = vpack.c.b16 %v1969, %v1966
    %v2006 = vpack.c.b16 %v1973, %v1970
    %v2007 = vpack.c.b16 %v1974, %v1971
    %v2008 = vpack.c.b16 %v1975, %v1972
    %v2009 = vpack.c.b16 %v1979, %v1976
    %v2010 = vpack.c.b16 %v1980, %v1977
    %v2011 = vpack.c.b16 %v1981, %v1978
    %v2012 = vpack.c.b16 %v1985, %v1982
    %v2013 = vpack.c.b16 %v1986, %v1983
    %v2014 = vpack.c.b16 %v1987, %v1984
    %v2015 = vpack.c.b16 %v1991, %v1988
    %v2016 = vpack.c.b16 %v1992, %v1989
    %v2017 = vpack.c.b16 %v1993, %v1990
    %2042 = vmatprep.subr.bf16.mxu0 %v1995
    %2043 = vmatpush1.bf16.msra.mxu0 %v1994
    %2044 = vmatprep.subr.bf16.mxu0 %v1998
    %2045 = vmatpush1.bf16.msra.mxu0 %v1997
    %2046 = vmatprep.subr.bf16.mxu0 %v2001
    %2047 = vmatpush1.bf16.msra.mxu0 %v2000
    %2048 = vmatprep.subr.bf16.mxu0 %v2004
    %2049 = vmatpush1.bf16.msra.mxu0 %v2003
    %2050 = vmatprep.subr.bf16.mxu0 %v2007
    %2051 = vmatpush1.bf16.msra.mxu0 %v2006
    %2052 = vmatprep.subr.bf16.mxu0 %v2010
    %2053 = vmatpush1.bf16.msra.mxu0 %v2009
    %2054 = vmatprep.subr.bf16.mxu0 %v2013
    %2055 = vmatpush1.bf16.msra.mxu0 %v2012
    %2056 = vmatprep.subr.bf16.mxu0 %v2016
    %2057 = vmatpush1.bf16.msra.mxu0 %v2015
    %2058 = vmatprep.subr.bf16.mxu0 0
    %2059 = vmatpush1.bf16.msra.mxu0 0
    %2060 = vmatprep.subr.bf16.mxu0 0
    %2061 = vmatpush1.bf16.msra.mxu0 0
    %2062 = vmatprep.subr.bf16.mxu0 0
    %2063 = vmatpush1.bf16.msra.mxu0 0
    %2064 = vmatprep.subr.bf16.mxu0 0
    %2065 = vmatpush1.bf16.msra.mxu0 0
    %2066 = vmatprep.subr.bf16.mxu0 0
    %2067 = vmatpush1.bf16.msra.mxu0 0
    %2068 = vmatprep.subr.bf16.mxu0 0
    %2069 = vmatpush1.bf16.msra.mxu0 0
    %2070 = vmatprep.subr.bf16.mxu0 0
    %2071 = vmatpush1.bf16.msra.mxu0 0
    %2072 = vmatprep.subr.bf16.mxu0 0
    %2073 = vmatpush1.bf16.msra.mxu0 0
    %2074 = vmatprep.mubr.bf16.mxu0 0
    %2075 = vmatmul.mubr.bf16.gmra.mrb[0].mxu0 %v1881
    %v2076 = vpop.f32.mrb[0].mxu0
    %v2077 = vadd.f32 0.0, %v2076
    %v2078 = vpop.f32.mrb[0].mxu0
    %v2079 = vadd.f32 0.0, %v2078
    %v2080 = vpop.f32.mrb[0].mxu0
    %v2081 = vpop.f32.mrb[0].mxu0
    %2082 = vdwg.mxu0
    %2083 = vmatprep.subr.bf16.mxu0 0
    %2084 = vmatpush1.bf16.msra.mxu0 %v1996
    %2085 = vmatprep.subr.bf16.mxu0 0
    %2086 = vmatpush1.bf16.msra.mxu0 %v1999
    %2087 = vmatprep.subr.bf16.mxu0 0
    %2088 = vmatpush1.bf16.msra.mxu0 %v2002
    %2089 = vmatprep.subr.bf16.mxu0 0
    %2090 = vmatpush1.bf16.msra.mxu0 %v2005
    %2091 = vmatprep.subr.bf16.mxu0 0
    %2092 = vmatpush1.bf16.msra.mxu0 %v2008
    %2093 = vmatprep.subr.bf16.mxu0 0
    %2094 = vmatpush1.bf16.msra.mxu0 %v2011
    %2095 = vmatprep.subr.bf16.mxu0 0
    %2096 = vmatpush1.bf16.msra.mxu0 %v2014
    %2097 = vmatprep.subr.bf16.mxu0 0
    %2098 = vmatpush1.bf16.msra.mxu0 %v2017
    %2099 = vmatprep.subr.bf16.mxu0 0
    %2100 = vmatpush1.bf16.msra.mxu0 0
    %2101 = vmatprep.subr.bf16.mxu0 0
    %2102 = vmatpush1.bf16.msra.mxu0 0
    %2103 = vmatprep.subr.bf16.mxu0 0
    %2104 = vmatpush1.bf16.msra.mxu0 0
    %2105 = vmatprep.subr.bf16.mxu0 0
    %2106 = vmatpush1.bf16.msra.mxu0 0
    %2107 = vmatprep.subr.bf16.mxu0 0
    %2108 = vmatpush1.bf16.msra.mxu0 0
    %2109 = vmatprep.subr.bf16.mxu0 0
    %2110 = vmatpush1.bf16.msra.mxu0 0
    %2111 = vmatprep.subr.bf16.mxu0 0
    %2112 = vmatpush1.bf16.msra.mxu0 0
    %2113 = vmatprep.subr.bf16.mxu0 0
    %2114 = vmatpush1.bf16.msra.mxu0 0
    %2115 = vmatprep.mubr.bf16.mxu0 0
    %2116 = vmatmul.mubr.bf16.gmra.mrb[0].mxu0 %v1881
    %v2117 = vpop.f32.mrb[0].mxu0
    %v2118 = vadd.f32 0.0, %v2117
    %v2119 = vpop.f32.mrb[0].mxu0
    %v2120 = vpop.f32.mrb[0].mxu0
    %v2121 = vpop.f32.mrb[0].mxu0
    %2122 = vdwg.mxu0
    %v2123 = vadd.f32 %v1878, %v2077
    %v2124 = vxor.u32 %v2123, 2147483648
    %v2125 = vmul.f32 %v2124, 1.442695
    %v2126 = vpow.pop %v2125
    %v2127 = vadd.f32 %v2126, 1.0
    %v2128 = vrcp.pop %v2127
    %v2129 = vmul.f32 1.0, %v2128
    %v2130 = vadd.f32 %v1879, %v2079
    %v2131 = vxor.u32 %v2130, 2147483648
    %v2132 = vmul.f32 %v2131, 1.442695
    %v2133 = vpow.pop %v2132
    %v2134 = vadd.f32 %v2133, 1.0
    %v2135 = vrcp.pop %v2134
    %v2136 = vmul.f32 1.0, %v2135
    %v2137 = vadd.f32 %v2118, %v515
    %v2138 = vmul.f32 %v2129, %v2137
    %v2139 = vadd.f32 %v1880, %v2138
    %v2140 = vtanh.pop %v2139
    %v2141 = vsub.f32 1.0, %v2136
    %v2142 = vmul.f32 %v2141, %v2140
    %v2143 = vmul.f32 %v2136, %v1872
    %v2144 = vadd.f32 %v2142, %v2143
    %s2145 = scalar_lea.vmem [#allocation4], 40
    %2146 = vst [vmem:[%s2145] sm:$0xff] %v2144
    %s2147 = smul.u32 6, 3
    %s2148 = smul.addr %s2147, 8
    %s2149 = scalar_lea.vmem [#allocation3], %s2148
    %v2150 = vld [vmem:[%s2149] sm:$0xff]
    %v2151 = vld [vmem:[%s2149 + $0x8] sm:$0xff]
    %v2152 = vld [vmem:[%s2149 + $0x10] sm:$0xff]
    %v2153 = vpack.c.bf16 %v2144, %v2144
    %v2154 = vld [vmem:[#allocation8] sm:$0xff]
    %v2155 = vld [vmem:[#allocation8 + $0x8] sm:$0xf]
    %v2156 = vld [vmem:[#allocation8 + $0xc] sm:$0xff]
    %v2157 = vld [vmem:[#allocation8 + $0x14] sm:$0xf]
    %v2158 = vld [vmem:[#allocation8 + $0x18] sm:$0xff]
    %v2159 = vld [vmem:[#allocation8 + $0x20] sm:$0xf]
    %v2160 = vld [vmem:[#allocation8 + $0x24] sm:$0xff]
    %v2161 = vld [vmem:[#allocation8 + $0x2c] sm:$0xf]
    %v2162 = vld [vmem:[#allocation8 + $0x30] sm:$0xff]
    %v2163 = vld [vmem:[#allocation8 + $0x38] sm:$0xf]
    %v2164 = vld [vmem:[#allocation8 + $0x3c] sm:$0xff]
    %v2165 = vld [vmem:[#allocation8 + $0x44] sm:$0xf]
    %v2166 = vld [vmem:[#allocation8 + $0x48] sm:$0xff]
    %v2167 = vld [vmem:[#allocation8 + $0x50] sm:$0xf]
    %v2168 = vld [vmem:[#allocation8 + $0x54] sm:$0xff]
    %v2169 = vld [vmem:[#allocation8 + $0x5c] sm:$0xf]
    %v2170 = vld [vmem:[#allocation8 + $0x60] sm:$0xff]
    %v2171 = vld [vmem:[#allocation8 + $0x68] sm:$0xf]
    %v2172 = vld [vmem:[#allocation8 + $0x6c] sm:$0xff]
    %v2173 = vld [vmem:[#allocation8 + $0x74] sm:$0xf]
    %v2174 = vld [vmem:[#allocation8 + $0x78] sm:$0xff]
    %v2175 = vld [vmem:[#allocation8 + $0x80] sm:$0xf]
    %v2176 = vld [vmem:[#allocation8 + $0x84] sm:$0xff]
    %v2177 = vld [vmem:[#allocation8 + $0x8c] sm:$0xf]
    %v2178 = vld [vmem:[#allocation8 + $0x90] sm:$0xff]
    %v2179 = vld [vmem:[#allocation8 + $0x98] sm:$0xf]
    %v2180 = vld [vmem:[#allocation8 + $0x9c] sm:$0xff]
    %v2181 = vld [vmem:[#allocation8 + $0xa4] sm:$0xf]
    %v2182 = vld [vmem:[#allocation8 + $0xa8] sm:$0xff]
    %v2183 = vld [vmem:[#allocation8 + $0xb0] sm:$0xf]
    %v2184 = vld [vmem:[#allocation8 + $0xb4] sm:$0xff]
    %v2185 = vld [vmem:[#allocation8 + $0xbc] sm:$0xf]
    %v2218 = vunpack.c.l.b16 %v2154
    %v2219 = vunpack.c.h.b16 %v2154
    %v2220 = vunpack.c.l.b16 %v2155
    %v2221 = vunpack.c.l.b16 %v2156
    %v2222 = vunpack.c.h.b16 %v2156
    %v2223 = vunpack.c.l.b16 %v2157
    %v2224 = vunpack.c.l.b16 %v2158
    %v2225 = vunpack.c.h.b16 %v2158
    %v2226 = vunpack.c.l.b16 %v2159
    %v2227 = vunpack.c.l.b16 %v2160
    %v2228 = vunpack.c.h.b16 %v2160
    %v2229 = vunpack.c.l.b16 %v2161
    %v2230 = vunpack.c.l.b16 %v2162
    %v2231 = vunpack.c.h.b16 %v2162
    %v2232 = vunpack.c.l.b16 %v2163
    %v2233 = vunpack.c.l.b16 %v2164
    %v2234 = vunpack.c.h.b16 %v2164
    %v2235 = vunpack.c.l.b16 %v2165
    %v2236 = vunpack.c.l.b16 %v2166
    %v2237 = vunpack.c.h.b16 %v2166
    %v2238 = vunpack.c.l.b16 %v2167
    %v2239 = vunpack.c.l.b16 %v2168
    %v2240 = vunpack.c.h.b16 %v2168
    %v2241 = vunpack.c.l.b16 %v2169
    %v2242 = vunpack.c.l.b16 %v2170
    %v2243 = vunpack.c.h.b16 %v2170
    %v2244 = vunpack.c.l.b16 %v2171
    %v2245 = vunpack.c.l.b16 %v2172
    %v2246 = vunpack.c.h.b16 %v2172
    %v2247 = vunpack.c.l.b16 %v2173
    %v2248 = vunpack.c.l.b16 %v2174
    %v2249 = vunpack.c.h.b16 %v2174
    %v2250 = vunpack.c.l.b16 %v2175
    %v2251 = vunpack.c.l.b16 %v2176
    %v2252 = vunpack.c.h.b16 %v2176
    %v2253 = vunpack.c.l.b16 %v2177
    %v2254 = vunpack.c.l.b16 %v2178
    %v2255 = vunpack.c.h.b16 %v2178
    %v2256 = vunpack.c.l.b16 %v2179
    %v2257 = vunpack.c.l.b16 %v2180
    %v2258 = vunpack.c.h.b16 %v2180
    %v2259 = vunpack.c.l.b16 %v2181
    %v2260 = vunpack.c.l.b16 %v2182
    %v2261 = vunpack.c.h.b16 %v2182
    %v2262 = vunpack.c.l.b16 %v2183
    %v2263 = vunpack.c.l.b16 %v2184
    %v2264 = vunpack.c.h.b16 %v2184
    %v2265 = vunpack.c.l.b16 %v2185
    %v2266 = vpack.c.b16 %v2221, %v2218
    %v2267 = vpack.c.b16 %v2222, %v2219
    %v2268 = vpack.c.b16 %v2223, %v2220
    %v2269 = vpack.c.b16 %v2227, %v2224
    %v2270 = vpack.c.b16 %v2228, %v2225
    %v2271 = vpack.c.b16 %v2229, %v2226
    %v2272 = vpack.c.b16 %v2233, %v2230
    %v2273 = vpack.c.b16 %v2234, %v2231
    %v2274 = vpack.c.b16 %v2235, %v2232
    %v2275 = vpack.c.b16 %v2239, %v2236
    %v2276 = vpack.c.b16 %v2240, %v2237
    %v2277 = vpack.c.b16 %v2241, %v2238
    %v2278 = vpack.c.b16 %v2245, %v2242
    %v2279 = vpack.c.b16 %v2246, %v2243
    %v2280 = vpack.c.b16 %v2247, %v2244
    %v2281 = vpack.c.b16 %v2251, %v2248
    %v2282 = vpack.c.b16 %v2252, %v2249
    %v2283 = vpack.c.b16 %v2253, %v2250
    %v2284 = vpack.c.b16 %v2257, %v2254
    %v2285 = vpack.c.b16 %v2258, %v2255
    %v2286 = vpack.c.b16 %v2259, %v2256
    %v2287 = vpack.c.b16 %v2263, %v2260
    %v2288 = vpack.c.b16 %v2264, %v2261
    %v2289 = vpack.c.b16 %v2265, %v2262
    %2314 = vmatprep.subr.bf16.mxu0 %v2267
    %2315 = vmatpush1.bf16.msra.mxu0 %v2266
    %2316 = vmatprep.subr.bf16.mxu0 %v2270
    %2317 = vmatpush1.bf16.msra.mxu0 %v2269
    %2318 = vmatprep.subr.bf16.mxu0 %v2273
    %2319 = vmatpush1.bf16.msra.mxu0 %v2272
    %2320 = vmatprep.subr.bf16.mxu0 %v2276
    %2321 = vmatpush1.bf16.msra.mxu0 %v2275
    %2322 = vmatprep.subr.bf16.mxu0 %v2279
    %2323 = vmatpush1.bf16.msra.mxu0 %v2278
    %2324 = vmatprep.subr.bf16.mxu0 %v2282
    %2325 = vmatpush1.bf16.msra.mxu0 %v2281
    %2326 = vmatprep.subr.bf16.mxu0 %v2285
    %2327 = vmatpush1.bf16.msra.mxu0 %v2284
    %2328 = vmatprep.subr.bf16.mxu0 %v2288
    %2329 = vmatpush1.bf16.msra.mxu0 %v2287
    %2330 = vmatprep.subr.bf16.mxu0 0
    %2331 = vmatpush1.bf16.msra.mxu0 0
    %2332 = vmatprep.subr.bf16.mxu0 0
    %2333 = vmatpush1.bf16.msra.mxu0 0
    %2334 = vmatprep.subr.bf16.mxu0 0
    %2335 = vmatpush1.bf16.msra.mxu0 0
    %2336 = vmatprep.subr.bf16.mxu0 0
    %2337 = vmatpush1.bf16.msra.mxu0 0
    %2338 = vmatprep.subr.bf16.mxu0 0
    %2339 = vmatpush1.bf16.msra.mxu0 0
    %2340 = vmatprep.subr.bf16.mxu0 0
    %2341 = vmatpush1.bf16.msra.mxu0 0
    %2342 = vmatprep.subr.bf16.mxu0 0
    %2343 = vmatpush1.bf16.msra.mxu0 0
    %2344 = vmatprep.subr.bf16.mxu0 0
    %2345 = vmatpush1.bf16.msra.mxu0 0
    %2346 = vmatprep.mubr.bf16.mxu0 0
    %2347 = vmatmul.mubr.bf16.gmra.mrb[0].mxu0 %v2153
    %v2348 = vpop.f32.mrb[0].mxu0
    %v2349 = vadd.f32 0.0, %v2348
    %v2350 = vpop.f32.mrb[0].mxu0
    %v2351 = vadd.f32 0.0, %v2350
    %v2352 = vpop.f32.mrb[0].mxu0
    %v2353 = vpop.f32.mrb[0].mxu0
    %2354 = vdwg.mxu0
    %2355 = vmatprep.subr.bf16.mxu0 0
    %2356 = vmatpush1.bf16.msra.mxu0 %v2268
    %2357 = vmatprep.subr.bf16.mxu0 0
    %2358 = vmatpush1.bf16.msra.mxu0 %v2271
    %2359 = vmatprep.subr.bf16.mxu0 0
    %2360 = vmatpush1.bf16.msra.mxu0 %v2274
    %2361 = vmatprep.subr.bf16.mxu0 0
    %2362 = vmatpush1.bf16.msra.mxu0 %v2277
    %2363 = vmatprep.subr.bf16.mxu0 0
    %2364 = vmatpush1.bf16.msra.mxu0 %v2280
    %2365 = vmatprep.subr.bf16.mxu0 0
    %2366 = vmatpush1.bf16.msra.mxu0 %v2283
    %2367 = vmatprep.subr.bf16.mxu0 0
    %2368 = vmatpush1.bf16.msra.mxu0 %v2286
    %2369 = vmatprep.subr.bf16.mxu0 0
    %2370 = vmatpush1.bf16.msra.mxu0 %v2289
    %2371 = vmatprep.subr.bf16.mxu0 0
    %2372 = vmatpush1.bf16.msra.mxu0 0
    %2373 = vmatprep.subr.bf16.mxu0 0
    %2374 = vmatpush1.bf16.msra.mxu0 0
    %2375 = vmatprep.subr.bf16.mxu0 0
    %2376 = vmatpush1.bf16.msra.mxu0 0
    %2377 = vmatprep.subr.bf16.mxu0 0
    %2378 = vmatpush1.bf16.msra.mxu0 0
    %2379 = vmatprep.subr.bf16.mxu0 0
    %2380 = vmatpush1.bf16.msra.mxu0 0
    %2381 = vmatprep.subr.bf16.mxu0 0
    %2382 = vmatpush1.bf16.msra.mxu0 0
    %2383 = vmatprep.subr.bf16.mxu0 0
    %2384 = vmatpush1.bf16.msra.mxu0 0
    %2385 = vmatprep.subr.bf16.mxu0 0
    %2386 = vmatpush1.bf16.msra.mxu0 0
    %2387 = vmatprep.mubr.bf16.mxu0 0
    %2388 = vmatmul.mubr.bf16.gmra.mrb[0].mxu0 %v2153
    %v2389 = vpop.f32.mrb[0].mxu0
    %v2390 = vadd.f32 0.0, %v2389
    %v2391 = vpop.f32.mrb[0].mxu0
    %v2392 = vpop.f32.mrb[0].mxu0
    %v2393 = vpop.f32.mrb[0].mxu0
    %2394 = vdwg.mxu0
    %v2395 = vadd.f32 %v2150, %v2349
    %v2396 = vxor.u32 %v2395, 2147483648
    %v2397 = vmul.f32 %v2396, 1.442695
    %v2398 = vpow.pop %v2397
    %v2399 = vadd.f32 %v2398, 1.0
    %v2400 = vrcp.pop %v2399
    %v2401 = vmul.f32 1.0, %v2400
    %v2402 = vadd.f32 %v2151, %v2351
    %v2403 = vxor.u32 %v2402, 2147483648
    %v2404 = vmul.f32 %v2403, 1.442695
    %v2405 = vpow.pop %v2404
    %v2406 = vadd.f32 %v2405, 1.0
    %v2407 = vrcp.pop %v2406
    %v2408 = vmul.f32 1.0, %v2407
    %v2409 = vadd.f32 %v2390, %v515
    %v2410 = vmul.f32 %v2401, %v2409
    %v2411 = vadd.f32 %v2152, %v2410
    %v2412 = vtanh.pop %v2411
    %v2413 = vsub.f32 1.0, %v2408
    %v2414 = vmul.f32 %v2413, %v2412
    %v2415 = vmul.f32 %v2408, %v2144
    %v2416 = vadd.f32 %v2414, %v2415
    %s2417 = scalar_lea.vmem [#allocation4], 48
    %2418 = vst [vmem:[%s2417] sm:$0xff] %v2416
    %s2419 = smul.u32 7, 3
    %s2420 = smul.addr %s2419, 8
    %s2421 = scalar_lea.vmem [#allocation3], %s2420
    %v2422 = vld [vmem:[%s2421] sm:$0xff]
    %v2423 = vld [vmem:[%s2421 + $0x8] sm:$0xff]
    %v2424 = vld [vmem:[%s2421 + $0x10] sm:$0xff]
    %v2425 = vpack.c.bf16 %v2416, %v2416
    %v2426 = vld [vmem:[#allocation8] sm:$0xff]
    %v2427 = vld [vmem:[#allocation8 + $0x8] sm:$0xf]
    %v2428 = vld [vmem:[#allocation8 + $0xc] sm:$0xff]
    %v2429 = vld [vmem:[#allocation8 + $0x14] sm:$0xf]
    %v2430 = vld [vmem:[#allocation8 + $0x18] sm:$0xff]
    %v2431 = vld [vmem:[#allocation8 + $0x20] sm:$0xf]
    %v2432 = vld [vmem:[#allocation8 + $0x24] sm:$0xff]
    %v2433 = vld [vmem:[#allocation8 + $0x2c] sm:$0xf]
    %v2434 = vld [vmem:[#allocation8 + $0x30] sm:$0xff]
    %v2435 = vld [vmem:[#allocation8 + $0x38] sm:$0xf]
    %v2436 = vld [vmem:[#allocation8 + $0x3c] sm:$0xff]
    %v2437 = vld [vmem:[#allocation8 + $0x44] sm:$0xf]
    %v2438 = vld [vmem:[#allocation8 + $0x48] sm:$0xff]
    %v2439 = vld [vmem:[#allocation8 + $0x50] sm:$0xf]
    %v2440 = vld [vmem:[#allocation8 + $0x54] sm:$0xff]
    %v2441 = vld [vmem:[#allocation8 + $0x5c] sm:$0xf]
    %v2442 = vld [vmem:[#allocation8 + $0x60] sm:$0xff]
    %v2443 = vld [vmem:[#allocation8 + $0x68] sm:$0xf]
    %v2444 = vld [vmem:[#allocation8 + $0x6c] sm:$0xff]
    %v2445 = vld [vmem:[#allocation8 + $0x74] sm:$0xf]
    %v2446 = vld [vmem:[#allocation8 + $0x78] sm:$0xff]
    %v2447 = vld [vmem:[#allocation8 + $0x80] sm:$0xf]
    %v2448 = vld [vmem:[#allocation8 + $0x84] sm:$0xff]
    %v2449 = vld [vmem:[#allocation8 + $0x8c] sm:$0xf]
    %v2450 = vld [vmem:[#allocation8 + $0x90] sm:$0xff]
    %v2451 = vld [vmem:[#allocation8 + $0x98] sm:$0xf]
    %v2452 = vld [vmem:[#allocation8 + $0x9c] sm:$0xff]
    %v2453 = vld [vmem:[#allocation8 + $0xa4] sm:$0xf]
    %v2454 = vld [vmem:[#allocation8 + $0xa8] sm:$0xff]
    %v2455 = vld [vmem:[#allocation8 + $0xb0] sm:$0xf]
    %v2456 = vld [vmem:[#allocation8 + $0xb4] sm:$0xff]
    %v2457 = vld [vmem:[#allocation8 + $0xbc] sm:$0xf]
    %v2490 = vunpack.c.l.b16 %v2426
    %v2491 = vunpack.c.h.b16 %v2426
    %v2492 = vunpack.c.l.b16 %v2427
    %v2493 = vunpack.c.l.b16 %v2428
    %v2494 = vunpack.c.h.b16 %v2428
    %v2495 = vunpack.c.l.b16 %v2429
    %v2496 = vunpack.c.l.b16 %v2430
    %v2497 = vunpack.c.h.b16 %v2430
    %v2498 = vunpack.c.l.b16 %v2431
    %v2499 = vunpack.c.l.b16 %v2432
    %v2500 = vunpack.c.h.b16 %v2432
    %v2501 = vunpack.c.l.b16 %v2433
    %v2502 = vunpack.c.l.b16 %v2434
    %v2503 = vunpack.c.h.b16 %v2434
    %v2504 = vunpack.c.l.b16 %v2435
    %v2505 = vunpack.c.l.b16 %v2436
    %v2506 = vunpack.c.h.b16 %v2436
    %v2507 = vunpack.c.l.b16 %v2437
    %v2508 = vunpack.c.l.b16 %v2438
    %v2509 = vunpack.c.h.b16 %v2438
    %v2510 = vunpack.c.l.b16 %v2439
    %v2511 = vunpack.c.l.b16 %v2440
    %v2512 = vunpack.c.h.b16 %v2440
    %v2513 = vunpack.c.l.b16 %v2441
    %v2514 = vunpack.c.l.b16 %v2442
    %v2515 = vunpack.c.h.b16 %v2442
    %v2516 = vunpack.c.l.b16 %v2443
    %v2517 = vunpack.c.l.b16 %v2444
    %v2518 = vunpack.c.h.b16 %v2444
    %v2519 = vunpack.c.l.b16 %v2445
    %v2520 = vunpack.c.l.b16 %v2446
    %v2521 = vunpack.c.h.b16 %v2446
    %v2522 = vunpack.c.l.b16 %v2447
    %v2523 = vunpack.c.l.b16 %v2448
    %v2524 = vunpack.c.h.b16 %v2448
    %v2525 = vunpack.c.l.b16 %v2449
    %v2526 = vunpack.c.l.b16 %v2450
    %v2527 = vunpack.c.h.b16 %v2450
    %v2528 = vunpack.c.l.b16 %v2451
    %v2529 = vunpack.c.l.b16 %v2452
    %v2530 = vunpack.c.h.b16 %v2452
    %v2531 = vunpack.c.l.b16 %v2453
    %v2532 = vunpack.c.l.b16 %v2454
    %v2533 = vunpack.c.h.b16 %v2454
    %v2534 = vunpack.c.l.b16 %v2455
    %v2535 = vunpack.c.l.b16 %v2456
    %v2536 = vunpack.c.h.b16 %v2456
    %v2537 = vunpack.c.l.b16 %v2457
    %v2538 = vpack.c.b16 %v2493, %v2490
    %v2539 = vpack.c.b16 %v2494, %v2491
    %v2540 = vpack.c.b16 %v2495, %v2492
    %v2541 = vpack.c.b16 %v2499, %v2496
    %v2542 = vpack.c.b16 %v2500, %v2497
    %v2543 = vpack.c.b16 %v2501, %v2498
    %v2544 = vpack.c.b16 %v2505, %v2502
    %v2545 = vpack.c.b16 %v2506, %v2503
    %v2546 = vpack.c.b16 %v2507, %v2504
    %v2547 = vpack.c.b16 %v2511, %v2508
    %v2548 = vpack.c.b16 %v2512, %v2509
    %v2549 = vpack.c.b16 %v2513, %v2510
    %v2550 = vpack.c.b16 %v2517, %v2514
    %v2551 = vpack.c.b16 %v2518, %v2515
    %v2552 = vpack.c.b16 %v2519, %v2516
    %v2553 = vpack.c.b16 %v2523, %v2520
    %v2554 = vpack.c.b16 %v2524, %v2521
    %v2555 = vpack.c.b16 %v2525, %v2522
    %v2556 = vpack.c.b16 %v2529, %v2526
    %v2557 = vpack.c.b16 %v2530, %v2527
    %v2558 = vpack.c.b16 %v2531, %v2528
    %v2559 = vpack.c.b16 %v2535, %v2532
    %v2560 = vpack.c.b16 %v2536, %v2533
    %v2561 = vpack.c.b16 %v2537, %v2534
    %2586 = vmatprep.subr.bf16.mxu0 %v2539
    %2587 = vmatpush1.bf16.msra.mxu0 %v2538
    %2588 = vmatprep.subr.bf16.mxu0 %v2542
    %2589 = vmatpush1.bf16.msra.mxu0 %v2541
    %2590 = vmatprep.subr.bf16.mxu0 %v2545
    %2591 = vmatpush1.bf16.msra.mxu0 %v2544
    %2592 = vmatprep.subr.bf16.mxu0 %v2548
    %2593 = vmatpush1.bf16.msra.mxu0 %v2547
    %2594 = vmatprep.subr.bf16.mxu0 %v2551
    %2595 = vmatpush1.bf16.msra.mxu0 %v2550
    %2596 = vmatprep.subr.bf16.mxu0 %v2554
    %2597 = vmatpush1.bf16.msra.mxu0 %v2553
    %2598 = vmatprep.subr.bf16.mxu0 %v2557
    %2599 = vmatpush1.bf16.msra.mxu0 %v2556
    %2600 = vmatprep.subr.bf16.mxu0 %v2560
    %2601 = vmatpush1.bf16.msra.mxu0 %v2559
    %2602 = vmatprep.subr.bf16.mxu0 0
    %2603 = vmatpush1.bf16.msra.mxu0 0
    %2604 = vmatprep.subr.bf16.mxu0 0
    %2605 = vmatpush1.bf16.msra.mxu0 0
    %2606 = vmatprep.subr.bf16.mxu0 0
    %2607 = vmatpush1.bf16.msra.mxu0 0
    %2608 = vmatprep.subr.bf16.mxu0 0
    %2609 = vmatpush1.bf16.msra.mxu0 0
    %2610 = vmatprep.subr.bf16.mxu0 0
    %2611 = vmatpush1.bf16.msra.mxu0 0
    %2612 = vmatprep.subr.bf16.mxu0 0
    %2613 = vmatpush1.bf16.msra.mxu0 0
    %2614 = vmatprep.subr.bf16.mxu0 0
    %2615 = vmatpush1.bf16.msra.mxu0 0
    %2616 = vmatprep.subr.bf16.mxu0 0
    %2617 = vmatpush1.bf16.msra.mxu0 0
    %2618 = vmatprep.mubr.bf16.mxu0 0
    %2619 = vmatmul.mubr.bf16.gmra.mrb[0].mxu0 %v2425
    %v2620 = vpop.f32.mrb[0].mxu0
    %v2621 = vadd.f32 0.0, %v2620
    %v2622 = vpop.f32.mrb[0].mxu0
    %v2623 = vadd.f32 0.0, %v2622
    %v2624 = vpop.f32.mrb[0].mxu0
    %v2625 = vpop.f32.mrb[0].mxu0
    %2626 = vdwg.mxu0
    %2627 = vmatprep.subr.bf16.mxu0 0
    %2628 = vmatpush1.bf16.msra.mxu0 %v2540
    %2629 = vmatprep.subr.bf16.mxu0 0
    %2630 = vmatpush1.bf16.msra.mxu0 %v2543
    %2631 = vmatprep.subr.bf16.mxu0 0
    %2632 = vmatpush1.bf16.msra.mxu0 %v2546
    %2633 = vmatprep.subr.bf16.mxu0 0
    %2634 = vmatpush1.bf16.msra.mxu0 %v2549
    %2635 = vmatprep.subr.bf16.mxu0 0
    %2636 = vmatpush1.bf16.msra.mxu0 %v2552
    %2637 = vmatprep.subr.bf16.mxu0 0
    %2638 = vmatpush1.bf16.msra.mxu0 %v2555
    %2639 = vmatprep.subr.bf16.mxu0 0
    %2640 = vmatpush1.bf16.msra.mxu0 %v2558
    %2641 = vmatprep.subr.bf16.mxu0 0
    %2642 = vmatpush1.bf16.msra.mxu0 %v2561
    %2643 = vmatprep.subr.bf16.mxu0 0
    %2644 = vmatpush1.bf16.msra.mxu0 0
    %2645 = vmatprep.subr.bf16.mxu0 0
    %2646 = vmatpush1.bf16.msra.mxu0 0
    %2647 = vmatprep.subr.bf16.mxu0 0
    %2648 = vmatpush1.bf16.msra.mxu0 0
    %2649 = vmatprep.subr.bf16.mxu0 0
    %2650 = vmatpush1.bf16.msra.mxu0 0
    %2651 = vmatprep.subr.bf16.mxu0 0
    %2652 = vmatpush1.bf16.msra.mxu0 0
    %2653 = vmatprep.subr.bf16.mxu0 0
    %2654 = vmatpush1.bf16.msra.mxu0 0
    %2655 = vmatprep.subr.bf16.mxu0 0
    %2656 = vmatpush1.bf16.msra.mxu0 0
    %2657 = vmatprep.subr.bf16.mxu0 0
    %2658 = vmatpush1.bf16.msra.mxu0 0
    %2659 = vmatprep.mubr.bf16.mxu0 0
    %2660 = vmatmul.mubr.bf16.gmra.mrb[0].mxu0 %v2425
    %v2661 = vpop.f32.mrb[0].mxu0
    %v2662 = vadd.f32 0.0, %v2661
    %v2663 = vpop.f32.mrb[0].mxu0
    %v2664 = vpop.f32.mrb[0].mxu0
    %v2665 = vpop.f32.mrb[0].mxu0
    %2666 = vdwg.mxu0
    %v2667 = vadd.f32 %v2422, %v2621
    %v2668 = vxor.u32 %v2667, 2147483648
    %v2669 = vmul.f32 %v2668, 1.442695
    %v2670 = vpow.pop %v2669
    %v2671 = vadd.f32 %v2670, 1.0
    %v2672 = vrcp.pop %v2671
    %v2673 = vmul.f32 1.0, %v2672
    %v2674 = vadd.f32 %v2423, %v2623
    %v2675 = vxor.u32 %v2674, 2147483648
    %v2676 = vmul.f32 %v2675, 1.442695
    %v2677 = vpow.pop %v2676
    %v2678 = vadd.f32 %v2677, 1.0
    %v2679 = vrcp.pop %v2678
    %v2680 = vmul.f32 1.0, %v2679
    %v2681 = vadd.f32 %v2662, %v515
    %v2682 = vmul.f32 %v2673, %v2681
    %v2683 = vadd.f32 %v2424, %v2682
    %v2684 = vtanh.pop %v2683
    %v2685 = vsub.f32 1.0, %v2680
    %v2686 = vmul.f32 %v2685, %v2684
    %v2687 = vmul.f32 %v2680, %v2416
    %v2688 = vadd.f32 %v2686, %v2687
    %s2689 = scalar_lea.vmem [#allocation4], 56
    %2690 = vst [vmem:[%s2689] sm:$0xff] %v2688
    %v2691 = vld [vmem:[#allocation4] sm:$0xff]
    %v2692 = vld [vmem:[#allocation4 + $0x38] sm:$0xff]
    %v2693 = vsel %vm66, %v2691, %v2692
    %2694 = vst [vmem:[#allocation2] sm:$0xff] %v2693
    %v2695 = vsel %vm66, %v2692, %v2691
    %2696 = vst [vmem:[#allocation2 + $0x38] sm:$0xff] %v2695
    %v2697 = vld [vmem:[#allocation4 + $0x8] sm:$0xff]
    %v2698 = vld [vmem:[#allocation4 + $0x30] sm:$0xff]
    %v2699 = vsel %vm66, %v2697, %v2698
    %2700 = vst [vmem:[#allocation2 + $0x8] sm:$0xff] %v2699
    %v2701 = vsel %vm66, %v2698, %v2697
    %2702 = vst [vmem:[#allocation2 + $0x30] sm:$0xff] %v2701
    %v2703 = vld [vmem:[#allocation4 + $0x10] sm:$0xff]
    %v2704 = vld [vmem:[#allocation4 + $0x28] sm:$0xff]
    %v2705 = vsel %vm66, %v2703, %v2704
    %2706 = vst [vmem:[#allocation2 + $0x10] sm:$0xff] %v2705
    %v2707 = vsel %vm66, %v2704, %v2703
    %2708 = vst [vmem:[#allocation2 + $0x28] sm:$0xff] %v2707
    %v2709 = vld [vmem:[#allocation4 + $0x18] sm:$0xff]
    %v2710 = vld [vmem:[#allocation4 + $0x20] sm:$0xff]
    %v2711 = vsel %vm66, %v2709, %v2710
    %2712 = vst [vmem:[#allocation2 + $0x18] sm:$0xff] %v2711
    %v2713 = vsel %vm66, %v2710, %v2709
    %2714 = vst [vmem:[#allocation2 + $0x20] sm:$0xff] %v2713
    %v2715 = vld [vmem:[#allocation2] sm:$0xff]
    %v2716 = vld [vmem:[#allocation2 + $0x8] sm:$0xff]
    %v2717 = vld [vmem:[#allocation2 + $0x10] sm:$0xff]
    %v2718 = vld [vmem:[#allocation2 + $0x18] sm:$0xff]
    %v2719 = vld [vmem:[#allocation2 + $0x20] sm:$0xff]
    %v2720 = vld [vmem:[#allocation2 + $0x28] sm:$0xff]
    %v2721 = vld [vmem:[#allocation2 + $0x30] sm:$0xff]
    %v2722 = vld [vmem:[#allocation2 + $0x38] sm:$0xff]
    %v2723 = vpack.c.bf16 %v2716, %v2715
    %v2724 = vpack.c.bf16 %v2718, %v2717
    %v2725 = vpack.c.bf16 %v2720, %v2719
    %v2726 = vpack.c.bf16 %v2722, %v2721
    %s2727 = scalar_lea.vmem [#allocation5], 192
    %v2728 = vld [vmem:[%s2727] sm:$0xff]
    %v2729 = vld [vmem:[%s2727 + $0x8] sm:$0xf]
    %v2730 = vld [vmem:[%s2727 + $0xc] sm:$0xff]
    %v2731 = vld [vmem:[%s2727 + $0x14] sm:$0xf]
    %v2732 = vld [vmem:[%s2727 + $0x18] sm:$0xff]
    %v2733 = vld [vmem:[%s2727 + $0x20] sm:$0xf]
    %v2734 = vld [vmem:[%s2727 + $0x24] sm:$0xff]
    %v2735 = vld [vmem:[%s2727 + $0x2c] sm:$0xf]
    %v2736 = vld [vmem:[%s2727 + $0x30] sm:$0xff]
    %v2737 = vld [vmem:[%s2727 + $0x38] sm:$0xf]
    %v2738 = vld [vmem:[%s2727 + $0x3c] sm:$0xff]
    %v2739 = vld [vmem:[%s2727 + $0x44] sm:$0xf]
    %v2740 = vld [vmem:[%s2727 + $0x48] sm:$0xff]
    %v2741 = vld [vmem:[%s2727 + $0x50] sm:$0xf]
    %v2742 = vld [vmem:[%s2727 + $0x54] sm:$0xff]
    %v2743 = vld [vmem:[%s2727 + $0x5c] sm:$0xf]
    %v2744 = vld [vmem:[%s2727 + $0x60] sm:$0xff]
    %v2745 = vld [vmem:[%s2727 + $0x68] sm:$0xf]
    %v2746 = vld [vmem:[%s2727 + $0x6c] sm:$0xff]
    %v2747 = vld [vmem:[%s2727 + $0x74] sm:$0xf]
    %v2748 = vld [vmem:[%s2727 + $0x78] sm:$0xff]
    %v2749 = vld [vmem:[%s2727 + $0x80] sm:$0xf]
    %v2750 = vld [vmem:[%s2727 + $0x84] sm:$0xff]
    %v2751 = vld [vmem:[%s2727 + $0x8c] sm:$0xf]
    %v2752 = vld [vmem:[%s2727 + $0x90] sm:$0xff]
    %v2753 = vld [vmem:[%s2727 + $0x98] sm:$0xf]
    %v2754 = vld [vmem:[%s2727 + $0x9c] sm:$0xff]
    %v2755 = vld [vmem:[%s2727 + $0xa4] sm:$0xf]
    %v2756 = vld [vmem:[%s2727 + $0xa8] sm:$0xff]
    %v2757 = vld [vmem:[%s2727 + $0xb0] sm:$0xf]
    %v2758 = vld [vmem:[%s2727 + $0xb4] sm:$0xff]
    %v2759 = vld [vmem:[%s2727 + $0xbc] sm:$0xf]
    %s2760 = scalar_lea.vmem %s3, 3
    %v2761 = vld [vmem:[%s2760] sm:$0x7]
    %v2763 = vlaneseq
    %v2764 = vshrl.u32 %v2763, 7
    %v2765 = vsub.s32 0, %v2764
    %v2766 = vrot.slane %v2761, %v2765
    %v2767 = vlaneseq
    %v2768 = vshrl.u32 %v2767, 7
    %v2769 = vsub.s32 1, %v2768
    %v2770 = vrot.slane %v2761, %v2769
    %v2771 = vlaneseq
    %v2772 = vshrl.u32 %v2771, 7
    %v2773 = vsub.s32 2, %v2772
    %v2774 = vrot.slane %v2761, %v2773
    %v2810 = vunpack.c.l.b16 %v2728
    %v2811 = vunpack.c.h.b16 %v2728
    %v2812 = vunpack.c.l.b16 %v2729
    %v2813 = vunpack.c.l.b16 %v2730
    %v2814 = vunpack.c.h.b16 %v2730
    %v2815 = vunpack.c.l.b16 %v2731
    %v2816 = vunpack.c.l.b16 %v2732
    %v2817 = vunpack.c.h.b16 %v2732
    %v2818 = vunpack.c.l.b16 %v2733
    %v2819 = vunpack.c.l.b16 %v2734
    %v2820 = vunpack.c.h.b16 %v2734
    %v2821 = vunpack.c.l.b16 %v2735
    %v2822 = vunpack.c.l.b16 %v2736
    %v2823 = vunpack.c.h.b16 %v2736
    %v2824 = vunpack.c.l.b16 %v2737
    %v2825 = vunpack.c.l.b16 %v2738
    %v2826 = vunpack.c.h.b16 %v2738
    %v2827 = vunpack.c.l.b16 %v2739
    %v2828 = vunpack.c.l.b16 %v2740
    %v2829 = vunpack.c.h.b16 %v2740
    %v2830 = vunpack.c.l.b16 %v2741
    %v2831 = vunpack.c.l.b16 %v2742
    %v2832 = vunpack.c.h.b16 %v2742
    %v2833 = vunpack.c.l.b16 %v2743
    %v2834 = vunpack.c.l.b16 %v2744
    %v2835 = vunpack.c.h.b16 %v2744
    %v2836 = vunpack.c.l.b16 %v2745
    %v2837 = vunpack.c.l.b16 %v2746
    %v2838 = vunpack.c.h.b16 %v2746
    %v2839 = vunpack.c.l.b16 %v2747
    %v2840 = vunpack.c.l.b16 %v2748
    %v2841 = vunpack.c.h.b16 %v2748
    %v2842 = vunpack.c.l.b16 %v2749
    %v2843 = vunpack.c.l.b16 %v2750
    %v2844 = vunpack.c.h.b16 %v2750
    %v2845 = vunpack.c.l.b16 %v2751
    %v2846 = vunpack.c.l.b16 %v2752
    %v2847 = vunpack.c.h.b16 %v2752
    %v2848 = vunpack.c.l.b16 %v2753
    %v2849 = vunpack.c.l.b16 %v2754
    %v2850 = vunpack.c.h.b16 %v2754
    %v2851 = vunpack.c.l.b16 %v2755
    %v2852 = vunpack.c.l.b16 %v2756
    %v2853 = vunpack.c.h.b16 %v2756
    %v2854 = vunpack.c.l.b16 %v2757
    %v2855 = vunpack.c.l.b16 %v2758
    %v2856 = vunpack.c.h.b16 %v2758
    %v2857 = vunpack.c.l.b16 %v2759
    %v2858 = vpack.c.b16 %v2813, %v2810
    %v2859 = vpack.c.b16 %v2814, %v2811
    %v2860 = vpack.c.b16 %v2815, %v2812
    %v2861 = vpack.c.b16 %v2819, %v2816
    %v2862 = vpack.c.b16 %v2820, %v2817
    %v2863 = vpack.c.b16 %v2821, %v2818
    %v2864 = vpack.c.b16 %v2825, %v2822
    %v2865 = vpack.c.b16 %v2826, %v2823
    %v2866 = vpack.c.b16 %v2827, %v2824
    %v2867 = vpack.c.b16 %v2831, %v2828
    %v2868 = vpack.c.b16 %v2832, %v2829
    %v2869 = vpack.c.b16 %v2833, %v2830
    %v2870 = vpack.c.b16 %v2837, %v2834
    %v2871 = vpack.c.b16 %v2838, %v2835
    %v2872 = vpack.c.b16 %v2839, %v2836
    %v2873 = vpack.c.b16 %v2843, %v2840
    %v2874 = vpack.c.b16 %v2844, %v2841
    %v2875 = vpack.c.b16 %v2845, %v2842
    %v2876 = vpack.c.b16 %v2849, %v2846
    %v2877 = vpack.c.b16 %v2850, %v2847
    %v2878 = vpack.c.b16 %v2851, %v2848
    %v2879 = vpack.c.b16 %v2855, %v2852
    %v2880 = vpack.c.b16 %v2856, %v2853
    %v2881 = vpack.c.b16 %v2857, %v2854
    %2906 = vmatprep.subr.bf16.mxu0 %v2859
    %2907 = vmatpush1.bf16.msra.mxu0 %v2858
    %2908 = vmatprep.subr.bf16.mxu0 %v2862
    %2909 = vmatpush1.bf16.msra.mxu0 %v2861
    %2910 = vmatprep.subr.bf16.mxu0 %v2865
    %2911 = vmatpush1.bf16.msra.mxu0 %v2864
    %2912 = vmatprep.subr.bf16.mxu0 %v2868
    %2913 = vmatpush1.bf16.msra.mxu0 %v2867
    %2914 = vmatprep.subr.bf16.mxu0 %v2871
    %2915 = vmatpush1.bf16.msra.mxu0 %v2870
    %2916 = vmatprep.subr.bf16.mxu0 %v2874
    %2917 = vmatpush1.bf16.msra.mxu0 %v2873
    %2918 = vmatprep.subr.bf16.mxu0 %v2877
    %2919 = vmatpush1.bf16.msra.mxu0 %v2876
    %2920 = vmatprep.subr.bf16.mxu0 %v2880
    %2921 = vmatpush1.bf16.msra.mxu0 %v2879
    %2922 = vmatprep.subr.bf16.mxu0 0
    %2923 = vmatpush1.bf16.msra.mxu0 0
    %2924 = vmatprep.subr.bf16.mxu0 0
    %2925 = vmatpush1.bf16.msra.mxu0 0
    %2926 = vmatprep.subr.bf16.mxu0 0
    %2927 = vmatpush1.bf16.msra.mxu0 0
    %2928 = vmatprep.subr.bf16.mxu0 0
    %2929 = vmatpush1.bf16.msra.mxu0 0
    %2930 = vmatprep.subr.bf16.mxu0 0
    %2931 = vmatpush1.bf16.msra.mxu0 0
    %2932 = vmatprep.subr.bf16.mxu0 0
    %2933 = vmatpush1.bf16.msra.mxu0 0
    %2934 = vmatprep.subr.bf16.mxu0 0
    %2935 = vmatpush1.bf16.msra.mxu0 0
    %2936 = vmatprep.subr.bf16.mxu0 0
    %2937 = vmatpush1.bf16.msra.mxu0 0
    %2938 = vmatprep.mubr.bf16.mxu0 0
    %2939 = vmatmul.mubr.bf16.gmra.mrb[0].mxu0 %v2723
    %v2940 = vpop.f32.mrb[0].mxu0
    %v2941 = vadd.f32 %v2766, %v2940
    %v2942 = vpop.f32.mrb[0].mxu0
    %v2943 = vadd.f32 %v2770, %v2942
    %v2944 = vpop.f32.mrb[0].mxu0
    %v2945 = vadd.f32 %v2766, %v2944
    %v2946 = vpop.f32.mrb[0].mxu0
    %v2947 = vadd.f32 %v2770, %v2946
    %2948 = vmatprep.mubr.bf16.mxu0 0
    %2949 = vmatmul.mubr.bf16.gmra.mrb[0].mxu0 %v2724
    %v2950 = vpop.f32.mrb[0].mxu0
    %v2951 = vadd.f32 %v2766, %v2950
    %v2952 = vpop.f32.mrb[0].mxu0
    %v2953 = vadd.f32 %v2770, %v2952
    %v2954 = vpop.f32.mrb[0].mxu0
    %v2955 = vadd.f32 %v2766, %v2954
    %v2956 = vpop.f32.mrb[0].mxu0
    %v2957 = vadd.f32 %v2770, %v2956
    %2958 = vmatprep.mubr.bf16.mxu0 0
    %2959 = vmatmul.mubr.bf16.gmra.mrb[0].mxu0 %v2725
    %v2960 = vpop.f32.mrb[0].mxu0
    %v2961 = vadd.f32 %v2766, %v2960
    %v2962 = vpop.f32.mrb[0].mxu0
    %v2963 = vadd.f32 %v2770, %v2962
    %v2964 = vpop.f32.mrb[0].mxu0
    %v2965 = vadd.f32 %v2766, %v2964
    %v2966 = vpop.f32.mrb[0].mxu0
    %v2967 = vadd.f32 %v2770, %v2966
    %2968 = vmatprep.mubr.bf16.mxu0 0
    %2969 = vmatmul.mubr.bf16.gmra.mrb[0].mxu0 %v2726
    %v2970 = vpop.f32.mrb[0].mxu0
    %v2971 = vadd.f32 %v2766, %v2970
    %v2972 = vpop.f32.mrb[0].mxu0
    %v2973 = vadd.f32 %v2770, %v2972
    %v2974 = vpop.f32.mrb[0].mxu0
    %v2975 = vadd.f32 %v2766, %v2974
    %v2976 = vpop.f32.mrb[0].mxu0
    %v2977 = vadd.f32 %v2770, %v2976
    %2978 = vdwg.mxu0
    %2979 = vmatprep.subr.bf16.mxu0 0
    %2980 = vmatpush1.bf16.msra.mxu0 %v2860
    %2981 = vmatprep.subr.bf16.mxu0 0
    %2982 = vmatpush1.bf16.msra.mxu0 %v2863
    %2983 = vmatprep.subr.bf16.mxu0 0
    %2984 = vmatpush1.bf16.msra.mxu0 %v2866
    %2985 = vmatprep.subr.bf16.mxu0 0
    %2986 = vmatpush1.bf16.msra.mxu0 %v2869
    %2987 = vmatprep.subr.bf16.mxu0 0
    %2988 = vmatpush1.bf16.msra.mxu0 %v2872
    %2989 = vmatprep.subr.bf16.mxu0 0
    %2990 = vmatpush1.bf16.msra.mxu0 %v2875
    %2991 = vmatprep.subr.bf16.mxu0 0
    %2992 = vmatpush1.bf16.msra.mxu0 %v2878
    %2993 = vmatprep.subr.bf16.mxu0 0
    %2994 = vmatpush1.bf16.msra.mxu0 %v2881
    %2995 = vmatprep.subr.bf16.mxu0 0
    %2996 = vmatpush1.bf16.msra.mxu0 0
    %2997 = vmatprep.subr.bf16.mxu0 0
    %2998 = vmatpush1.bf16.msra.mxu0 0
    %2999 = vmatprep.subr.bf16.mxu0 0
    %3000 = vmatpush1.bf16.msra.mxu0 0
    %3001 = vmatprep.subr.bf16.mxu0 0
    %3002 = vmatpush1.bf16.msra.mxu0 0
    %3003 = vmatprep.subr.bf16.mxu0 0
    %3004 = vmatpush1.bf16.msra.mxu0 0
    %3005 = vmatprep.subr.bf16.mxu0 0
    %3006 = vmatpush1.bf16.msra.mxu0 0
    %3007 = vmatprep.subr.bf16.mxu0 0
    %3008 = vmatpush1.bf16.msra.mxu0 0
    %3009 = vmatprep.subr.bf16.mxu0 0
    %3010 = vmatpush1.bf16.msra.mxu0 0
    %3011 = vmatprep.mubr.bf16.mxu0 0
    %3012 = vmatmul.mubr.bf16.gmra.mrb[0].mxu0 %v2723
    %v3013 = vpop.f32.mrb[0].mxu0
    %v3014 = vadd.f32 %v2774, %v3013
    %v3015 = vpop.f32.mrb[0].mxu0
    %v3016 = vpop.f32.mrb[0].mxu0
    %v3017 = vadd.f32 %v2774, %v3016
    %v3018 = vpop.f32.mrb[0].mxu0
    %3019 = vmatprep.mubr.bf16.mxu0 0
    %3020 = vmatmul.mubr.bf16.gmra.mrb[0].mxu0 %v2724
    %v3021 = vpop.f32.mrb[0].mxu0
    %v3022 = vadd.f32 %v2774, %v3021
    %v3023 = vpop.f32.mrb[0].mxu0
    %v3024 = vpop.f32.mrb[0].mxu0
    %v3025 = vadd.f32 %v2774, %v3024
    %v3026 = vpop.f32.mrb[0].mxu0
    %3027 = vmatprep.mubr.bf16.mxu0 0
    %3028 = vmatmul.mubr.bf16.gmra.mrb[0].mxu0 %v2725
    %v3029 = vpop.f32.mrb[0].mxu0
    %v3030 = vadd.f32 %v2774, %v3029
    %v3031 = vpop.f32.mrb[0].mxu0
    %v3032 = vpop.f32.mrb[0].mxu0
    %v3033 = vadd.f32 %v2774, %v3032
    %v3034 = vpop.f32.mrb[0].mxu0
    %3035 = vmatprep.mubr.bf16.mxu0 0
    %3036 = vmatmul.mubr.bf16.gmra.mrb[0].mxu0 %v2726
    %v3037 = vpop.f32.mrb[0].mxu0
    %v3038 = vadd.f32 %v2774, %v3037
    %v3039 = vpop.f32.mrb[0].mxu0
    %v3040 = vpop.f32.mrb[0].mxu0
    %v3041 = vadd.f32 %v2774, %v3040
    %v3042 = vpop.f32.mrb[0].mxu0
    %3043 = vdwg.mxu0
    %3044 = vst [vmem:[#allocation3] sm:$0xff] %v2941
    %3045 = vst [vmem:[#allocation3 + $0x8] sm:$0xff] %v2943
    %3046 = vst [vmem:[#allocation3 + $0x10] sm:$0xff] %v3014
    %3047 = vst [vmem:[#allocation3 + $0x18] sm:$0xff] %v2945
    %3048 = vst [vmem:[#allocation3 + $0x20] sm:$0xff] %v2947
    %3049 = vst [vmem:[#allocation3 + $0x28] sm:$0xff] %v3017
    %3050 = vst [vmem:[#allocation3 + $0x30] sm:$0xff] %v2951
    %3051 = vst [vmem:[#allocation3 + $0x38] sm:$0xff] %v2953
    %3052 = vst [vmem:[#allocation3 + $0x40] sm:$0xff] %v3022
    %3053 = vst [vmem:[#allocation3 + $0x48] sm:$0xff] %v2955
    %3054 = vst [vmem:[#allocation3 + $0x50] sm:$0xff] %v2957
    %3055 = vst [vmem:[#allocation3 + $0x58] sm:$0xff] %v3025
    %3056 = vst [vmem:[#allocation3 + $0x60] sm:$0xff] %v2961
    %3057 = vst [vmem:[#allocation3 + $0x68] sm:$0xff] %v2963
    %3058 = vst [vmem:[#allocation3 + $0x70] sm:$0xff] %v3030
    %3059 = vst [vmem:[#allocation3 + $0x78] sm:$0xff] %v2965
    %3060 = vst [vmem:[#allocation3 + $0x80] sm:$0xff] %v2967
    %3061 = vst [vmem:[#allocation3 + $0x88] sm:$0xff] %v3033
    %3062 = vst [vmem:[#allocation3 + $0x90] sm:$0xff] %v2971
    %3063 = vst [vmem:[#allocation3 + $0x98] sm:$0xff] %v2973
    %3064 = vst [vmem:[#allocation3 + $0xa0] sm:$0xff] %v3038
    %3065 = vst [vmem:[#allocation3 + $0xa8] sm:$0xff] %v2975
    %3066 = vst [vmem:[#allocation3 + $0xb0] sm:$0xff] %v2977
    %3067 = vst [vmem:[#allocation3 + $0xb8] sm:$0xff] %v3041
    %v3068 = vld [vmem:[#allocation3] sm:$0xff]
    %v3069 = vld [vmem:[#allocation3 + $0x8] sm:$0xff]
    %v3070 = vld [vmem:[#allocation3 + $0x10] sm:$0xff]
    %v3071 = vld [vmem:[#allocation3 + $0xa8] sm:$0xff]
    %v3072 = vld [vmem:[#allocation3 + $0xb0] sm:$0xff]
    %v3073 = vld [vmem:[#allocation3 + $0xb8] sm:$0xff]
    %v3074 = vsel %vm63, %v3068, %v3071
    %v3075 = vsel %vm64, %v3069, %v3072
    %v3076 = vsel %vm65, %v3070, %v3073
    %3077 = vst [vmem:[#allocation3] sm:$0xff] %v3074
    %3078 = vst [vmem:[#allocation3 + $0x8] sm:$0xff] %v3075
    %3079 = vst [vmem:[#allocation3 + $0x10] sm:$0xff] %v3076
    %v3080 = vsel %vm63, %v3071, %v3068
    %v3081 = vsel %vm64, %v3072, %v3069
    %v3082 = vsel %vm65, %v3073, %v3070
    %3083 = vst [vmem:[#allocation3 + $0xa8] sm:$0xff] %v3080
    %3084 = vst [vmem:[#allocation3 + $0xb0] sm:$0xff] %v3081
    %3085 = vst [vmem:[#allocation3 + $0xb8] sm:$0xff] %v3082
    %v3086 = vld [vmem:[#allocation3 + $0x18] sm:$0xff]
    %v3087 = vld [vmem:[#allocation3 + $0x20] sm:$0xff]
    %v3088 = vld [vmem:[#allocation3 + $0x28] sm:$0xff]
    %v3089 = vld [vmem:[#allocation3 + $0x90] sm:$0xff]
    %v3090 = vld [vmem:[#allocation3 + $0x98] sm:$0xff]
    %v3091 = vld [vmem:[#allocation3 + $0xa0] sm:$0xff]
    %v3092 = vsel %vm63, %v3086, %v3089
    %v3093 = vsel %vm64, %v3087, %v3090
    %v3094 = vsel %vm65, %v3088, %v3091
    %3095 = vst [vmem:[#allocation3 + $0x18] sm:$0xff] %v3092
    %3096 = vst [vmem:[#allocation3 + $0x20] sm:$0xff] %v3093
    %3097 = vst [vmem:[#allocation3 + $0x28] sm:$0xff] %v3094
    %v3098 = vsel %vm63, %v3089, %v3086
    %v3099 = vsel %vm64, %v3090, %v3087
    %v3100 = vsel %vm65, %v3091, %v3088
    %3101 = vst [vmem:[#allocation3 + $0x90] sm:$0xff] %v3098
    %3102 = vst [vmem:[#allocation3 + $0x98] sm:$0xff] %v3099
    %3103 = vst [vmem:[#allocation3 + $0xa0] sm:$0xff] %v3100
    %v3104 = vld [vmem:[#allocation3 + $0x30] sm:$0xff]
    %v3105 = vld [vmem:[#allocation3 + $0x38] sm:$0xff]
    %v3106 = vld [vmem:[#allocation3 + $0x40] sm:$0xff]
    %v3107 = vld [vmem:[#allocation3 + $0x78] sm:$0xff]
    %v3108 = vld [vmem:[#allocation3 + $0x80] sm:$0xff]
    %v3109 = vld [vmem:[#allocation3 + $0x88] sm:$0xff]
    %v3110 = vsel %vm63, %v3104, %v3107
    %v3111 = vsel %vm64, %v3105, %v3108
    %v3112 = vsel %vm65, %v3106, %v3109
    %3113 = vst [vmem:[#allocation3 + $0x30] sm:$0xff] %v3110
    %3114 = vst [vmem:[#allocation3 + $0x38] sm:$0xff] %v3111
    %3115 = vst [vmem:[#allocation3 + $0x40] sm:$0xff] %v3112
    %v3116 = vsel %vm63, %v3107, %v3104
    %v3117 = vsel %vm64, %v3108, %v3105
    %v3118 = vsel %vm65, %v3109, %v3106
    %3119 = vst [vmem:[#allocation3 + $0x78] sm:$0xff] %v3116
    %3120 = vst [vmem:[#allocation3 + $0x80] sm:$0xff] %v3117
    %3121 = vst [vmem:[#allocation3 + $0x88] sm:$0xff] %v3118
    %v3122 = vld [vmem:[#allocation3 + $0x48] sm:$0xff]
    %v3123 = vld [vmem:[#allocation3 + $0x50] sm:$0xff]
    %v3124 = vld [vmem:[#allocation3 + $0x58] sm:$0xff]
    %v3125 = vld [vmem:[#allocation3 + $0x60] sm:$0xff]
    %v3126 = vld [vmem:[#allocation3 + $0x68] sm:$0xff]
    %v3127 = vld [vmem:[#allocation3 + $0x70] sm:$0xff]
    %v3128 = vsel %vm63, %v3122, %v3125
    %v3129 = vsel %vm64, %v3123, %v3126
    %v3130 = vsel %vm65, %v3124, %v3127
    %3131 = vst [vmem:[#allocation3 + $0x48] sm:$0xff] %v3128
    %3132 = vst [vmem:[#allocation3 + $0x50] sm:$0xff] %v3129
    %3133 = vst [vmem:[#allocation3 + $0x58] sm:$0xff] %v3130
    %v3134 = vsel %vm63, %v3125, %v3122
    %v3135 = vsel %vm64, %v3126, %v3123
    %v3136 = vsel %vm65, %v3127, %v3124
    %3137 = vst [vmem:[#allocation3 + $0x60] sm:$0xff] %v3134
    %3138 = vst [vmem:[#allocation3 + $0x68] sm:$0xff] %v3135
    %3139 = vst [vmem:[#allocation3 + $0x70] sm:$0xff] %v3136
    %s3140 = scalar_lea.vmem %s4, 1
    %v3141 = vld [vmem:[%s3140] sm:$0x1]
    %v3143 = vlaneseq
    %v3144 = vshrl.u32 %v3143, 7
    %v3145 = vsub.s32 0, %v3144
    %v3146 = vrot.slane %v3141, %v3145
    %v3148 = vld [vmem:[%s519] sm:$0xff]
    %v3149 = vld [vmem:[%s519 + $0x8] sm:$0xff]
    %v3150 = vld [vmem:[%s519 + $0x10] sm:$0xff]
    %s3151 = scalar_lea.vmem [#allocation8], 192
    %v3152 = vld [vmem:[%s3151] sm:$0xff]
    %v3153 = vld [vmem:[%s3151 + $0x8] sm:$0xf]
    %v3154 = vld [vmem:[%s3151 + $0xc] sm:$0xff]
    %v3155 = vld [vmem:[%s3151 + $0x14] sm:$0xf]
    %v3156 = vld [vmem:[%s3151 + $0x18] sm:$0xff]
    %v3157 = vld [vmem:[%s3151 + $0x20] sm:$0xf]
    %v3158 = vld [vmem:[%s3151 + $0x24] sm:$0xff]
    %v3159 = vld [vmem:[%s3151 + $0x2c] sm:$0xf]
    %v3160 = vld [vmem:[%s3151 + $0x30] sm:$0xff]
    %v3161 = vld [vmem:[%s3151 + $0x38] sm:$0xf]
    %v3162 = vld [vmem:[%s3151 + $0x3c] sm:$0xff]
    %v3163 = vld [vmem:[%s3151 + $0x44] sm:$0xf]
    %v3164 = vld [vmem:[%s3151 + $0x48] sm:$0xff]
    %v3165 = vld [vmem:[%s3151 + $0x50] sm:$0xf]
    %v3166 = vld [vmem:[%s3151 + $0x54] sm:$0xff]
    %v3167 = vld [vmem:[%s3151 + $0x5c] sm:$0xf]
    %v3168 = vld [vmem:[%s3151 + $0x60] sm:$0xff]
    %v3169 = vld [vmem:[%s3151 + $0x68] sm:$0xf]
    %v3170 = vld [vmem:[%s3151 + $0x6c] sm:$0xff]
    %v3171 = vld [vmem:[%s3151 + $0x74] sm:$0xf]
    %v3172 = vld [vmem:[%s3151 + $0x78] sm:$0xff]
    %v3173 = vld [vmem:[%s3151 + $0x80] sm:$0xf]
    %v3174 = vld [vmem:[%s3151 + $0x84] sm:$0xff]
    %v3175 = vld [vmem:[%s3151 + $0x8c] sm:$0xf]
    %v3176 = vld [vmem:[%s3151 + $0x90] sm:$0xff]
    %v3177 = vld [vmem:[%s3151 + $0x98] sm:$0xf]
    %v3178 = vld [vmem:[%s3151 + $0x9c] sm:$0xff]
    %v3179 = vld [vmem:[%s3151 + $0xa4] sm:$0xf]
    %v3180 = vld [vmem:[%s3151 + $0xa8] sm:$0xff]
    %v3181 = vld [vmem:[%s3151 + $0xb0] sm:$0xf]
    %v3182 = vld [vmem:[%s3151 + $0xb4] sm:$0xff]
    %v3183 = vld [vmem:[%s3151 + $0xbc] sm:$0xf]
    %v3216 = vunpack.c.l.b16 %v3152
    %v3217 = vunpack.c.h.b16 %v3152
    %v3218 = vunpack.c.l.b16 %v3153
    %v3219 = vunpack.c.l.b16 %v3154
    %v3220 = vunpack.c.h.b16 %v3154
    %v3221 = vunpack.c.l.b16 %v3155
    %v3222 = vunpack.c.l.b16 %v3156
    %v3223 = vunpack.c.h.b16 %v3156
    %v3224 = vunpack.c.l.b16 %v3157
    %v3225 = vunpack.c.l.b16 %v3158
    %v3226 = vunpack.c.h.b16 %v3158
    %v3227 = vunpack.c.l.b16 %v3159
    %v3228 = vunpack.c.l.b16 %v3160
    %v3229 = vunpack.c.h.b16 %v3160
    %v3230 = vunpack.c.l.b16 %v3161
    %v3231 = vunpack.c.l.b16 %v3162
    %v3232 = vunpack.c.h.b16 %v3162
    %v3233 = vunpack.c.l.b16 %v3163
    %v3234 = vunpack.c.l.b16 %v3164
    %v3235 = vunpack.c.h.b16 %v3164
    %v3236 = vunpack.c.l.b16 %v3165
    %v3237 = vunpack.c.l.b16 %v3166
    %v3238 = vunpack.c.h.b16 %v3166
    %v3239 = vunpack.c.l.b16 %v3167
    %v3240 = vunpack.c.l.b16 %v3168
    %v3241 = vunpack.c.h.b16 %v3168
    %v3242 = vunpack.c.l.b16 %v3169
    %v3243 = vunpack.c.l.b16 %v3170
    %v3244 = vunpack.c.h.b16 %v3170
    %v3245 = vunpack.c.l.b16 %v3171
    %v3246 = vunpack.c.l.b16 %v3172
    %v3247 = vunpack.c.h.b16 %v3172
    %v3248 = vunpack.c.l.b16 %v3173
    %v3249 = vunpack.c.l.b16 %v3174
    %v3250 = vunpack.c.h.b16 %v3174
    %v3251 = vunpack.c.l.b16 %v3175
    %v3252 = vunpack.c.l.b16 %v3176
    %v3253 = vunpack.c.h.b16 %v3176
    %v3254 = vunpack.c.l.b16 %v3177
    %v3255 = vunpack.c.l.b16 %v3178
    %v3256 = vunpack.c.h.b16 %v3178
    %v3257 = vunpack.c.l.b16 %v3179
    %v3258 = vunpack.c.l.b16 %v3180
    %v3259 = vunpack.c.h.b16 %v3180
    %v3260 = vunpack.c.l.b16 %v3181
    %v3261 = vunpack.c.l.b16 %v3182
    %v3262 = vunpack.c.h.b16 %v3182
    %v3263 = vunpack.c.l.b16 %v3183
    %v3264 = vpack.c.b16 %v3219, %v3216
    %v3265 = vpack.c.b16 %v3220, %v3217
    %v3266 = vpack.c.b16 %v3221, %v3218
    %v3267 = vpack.c.b16 %v3225, %v3222
    %v3268 = vpack.c.b16 %v3226, %v3223
    %v3269 = vpack.c.b16 %v3227, %v3224
    %v3270 = vpack.c.b16 %v3231, %v3228
    %v3271 = vpack.c.b16 %v3232, %v3229
    %v3272 = vpack.c.b16 %v3233, %v3230
    %v3273 = vpack.c.b16 %v3237, %v3234
    %v3274 = vpack.c.b16 %v3238, %v3235
    %v3275 = vpack.c.b16 %v3239, %v3236
    %v3276 = vpack.c.b16 %v3243, %v3240
    %v3277 = vpack.c.b16 %v3244, %v3241
    %v3278 = vpack.c.b16 %v3245, %v3242
    %v3279 = vpack.c.b16 %v3249, %v3246
    %v3280 = vpack.c.b16 %v3250, %v3247
    %v3281 = vpack.c.b16 %v3251, %v3248
    %v3282 = vpack.c.b16 %v3255, %v3252
    %v3283 = vpack.c.b16 %v3256, %v3253
    %v3284 = vpack.c.b16 %v3257, %v3254
    %v3285 = vpack.c.b16 %v3261, %v3258
    %v3286 = vpack.c.b16 %v3262, %v3259
    %v3287 = vpack.c.b16 %v3263, %v3260
    %3312 = vmatprep.subr.bf16.mxu0 %v3265
    %3313 = vmatpush1.bf16.msra.mxu0 %v3264
    %3314 = vmatprep.subr.bf16.mxu0 %v3268
    %3315 = vmatpush1.bf16.msra.mxu0 %v3267
    %3316 = vmatprep.subr.bf16.mxu0 %v3271
    %3317 = vmatpush1.bf16.msra.mxu0 %v3270
    %3318 = vmatprep.subr.bf16.mxu0 %v3274
    %3319 = vmatpush1.bf16.msra.mxu0 %v3273
    %3320 = vmatprep.subr.bf16.mxu0 %v3277
    %3321 = vmatpush1.bf16.msra.mxu0 %v3276
    %3322 = vmatprep.subr.bf16.mxu0 %v3280
    %3323 = vmatpush1.bf16.msra.mxu0 %v3279
    %3324 = vmatprep.subr.bf16.mxu0 %v3283
    %3325 = vmatpush1.bf16.msra.mxu0 %v3282
    %3326 = vmatprep.subr.bf16.mxu0 %v3286
    %3327 = vmatpush1.bf16.msra.mxu0 %v3285
    %3328 = vmatprep.subr.bf16.mxu0 0
    %3329 = vmatpush1.bf16.msra.mxu0 0
    %3330 = vmatprep.subr.bf16.mxu0 0
    %3331 = vmatpush1.bf16.msra.mxu0 0
    %3332 = vmatprep.subr.bf16.mxu0 0
    %3333 = vmatpush1.bf16.msra.mxu0 0
    %3334 = vmatprep.subr.bf16.mxu0 0
    %3335 = vmatpush1.bf16.msra.mxu0 0
    %3336 = vmatprep.subr.bf16.mxu0 0
    %3337 = vmatpush1.bf16.msra.mxu0 0
    %3338 = vmatprep.subr.bf16.mxu0 0
    %3339 = vmatpush1.bf16.msra.mxu0 0
    %3340 = vmatprep.subr.bf16.mxu0 0
    %3341 = vmatpush1.bf16.msra.mxu0 0
    %3342 = vmatprep.subr.bf16.mxu0 0
    %3343 = vmatpush1.bf16.msra.mxu0 0
    %3344 = vmatprep.mubr.bf16.mxu0 0
    %3345 = vmatmul.mubr.bf16.gmra.mrb[0].mxu0 0
    %v3346 = vpop.f32.mrb[0].mxu0
    %v3347 = vadd.f32 0.0, %v3346
    %v3348 = vpop.f32.mrb[0].mxu0
    %v3349 = vadd.f32 0.0, %v3348
    %v3350 = vpop.f32.mrb[0].mxu0
    %v3351 = vpop.f32.mrb[0].mxu0
    %3352 = vdwg.mxu0
    %3353 = vmatprep.subr.bf16.mxu0 0
    %3354 = vmatpush1.bf16.msra.mxu0 %v3266
    %3355 = vmatprep.subr.bf16.mxu0 0
    %3356 = vmatpush1.bf16.msra.mxu0 %v3269
    %3357 = vmatprep.subr.bf16.mxu0 0
    %3358 = vmatpush1.bf16.msra.mxu0 %v3272
    %3359 = vmatprep.subr.bf16.mxu0 0
    %3360 = vmatpush1.bf16.msra.mxu0 %v3275
    %3361 = vmatprep.subr.bf16.mxu0 0
    %3362 = vmatpush1.bf16.msra.mxu0 %v3278
    %3363 = vmatprep.subr.bf16.mxu0 0
    %3364 = vmatpush1.bf16.msra.mxu0 %v3281
    %3365 = vmatprep.subr.bf16.mxu0 0
    %3366 = vmatpush1.bf16.msra.mxu0 %v3284
    %3367 = vmatprep.subr.bf16.mxu0 0
    %3368 = vmatpush1.bf16.msra.mxu0 %v3287
    %3369 = vmatprep.subr.bf16.mxu0 0
    %3370 = vmatpush1.bf16.msra.mxu0 0
    %3371 = vmatprep.subr.bf16.mxu0 0
    %3372 = vmatpush1.bf16.msra.mxu0 0
    %3373 = vmatprep.subr.bf16.mxu0 0
    %3374 = vmatpush1.bf16.msra.mxu0 0
    %3375 = vmatprep.subr.bf16.mxu0 0
    %3376 = vmatpush1.bf16.msra.mxu0 0
    %3377 = vmatprep.subr.bf16.mxu0 0
    %3378 = vmatpush1.bf16.msra.mxu0 0
    %3379 = vmatprep.subr.bf16.mxu0 0
    %3380 = vmatpush1.bf16.msra.mxu0 0
    %3381 = vmatprep.subr.bf16.mxu0 0
    %3382 = vmatpush1.bf16.msra.mxu0 0
    %3383 = vmatprep.subr.bf16.mxu0 0
    %3384 = vmatpush1.bf16.msra.mxu0 0
    %3385 = vmatprep.mubr.bf16.mxu0 0
    %3386 = vmatmul.mubr.bf16.gmra.mrb[0].mxu0 0
    %v3387 = vpop.f32.mrb[0].mxu0
    %v3388 = vadd.f32 0.0, %v3387
    %v3389 = vpop.f32.mrb[0].mxu0
    %v3390 = vpop.f32.mrb[0].mxu0
    %v3391 = vpop.f32.mrb[0].mxu0
    %3392 = vdwg.mxu0
    %v3393 = vadd.f32 %v3148, %v3347
    %v3394 = vxor.u32 %v3393, 2147483648
    %v3395 = vmul.f32 %v3394, 1.442695
    %v3396 = vpow.pop %v3395
    %v3397 = vadd.f32 %v3396, 1.0
    %v3398 = vrcp.pop %v3397
    %v3399 = vmul.f32 1.0, %v3398
    %v3400 = vadd.f32 %v3149, %v3349
    %v3401 = vxor.u32 %v3400, 2147483648
    %v3402 = vmul.f32 %v3401, 1.442695
    %v3403 = vpow.pop %v3402
    %v3404 = vadd.f32 %v3403, 1.0
    %v3405 = vrcp.pop %v3404
    %v3406 = vmul.f32 1.0, %v3405
    %v3407 = vadd.f32 %v3388, %v3146
    %v3408 = vmul.f32 %v3399, %v3407
    %v3409 = vadd.f32 %v3150, %v3408
    %v3410 = vtanh.pop %v3409
    %v3411 = vsub.f32 1.0, %v3406
    %v3412 = vmul.f32 %v3411, %v3410
    %v3413 = vmul.f32 %v3406, 0.0
    %v3414 = vadd.f32 %v3412, %v3413
    %3415 = vst [vmem:[#allocation4] sm:$0xff] %v3414
    %v3416 = vld [vmem:[%s789] sm:$0xff]
    %v3417 = vld [vmem:[%s789 + $0x8] sm:$0xff]
    %v3418 = vld [vmem:[%s789 + $0x10] sm:$0xff]
    %v3419 = vpack.c.bf16 %v3414, %v3414
    %v3420 = vld [vmem:[%s3151] sm:$0xff]
    %v3421 = vld [vmem:[%s3151 + $0x8] sm:$0xf]
    %v3422 = vld [vmem:[%s3151 + $0xc] sm:$0xff]
    %v3423 = vld [vmem:[%s3151 + $0x14] sm:$0xf]
    %v3424 = vld [vmem:[%s3151 + $0x18] sm:$0xff]
    %v3425 = vld [vmem:[%s3151 + $0x20] sm:$0xf]
    %v3426 = vld [vmem:[%s3151 + $0x24] sm:$0xff]
    %v3427 = vld [vmem:[%s3151 + $0x2c] sm:$0xf]
    %v3428 = vld [vmem:[%s3151 + $0x30] sm:$0xff]
    %v3429 = vld [vmem:[%s3151 + $0x38] sm:$0xf]
    %v3430 = vld [vmem:[%s3151 + $0x3c] sm:$0xff]
    %v3431 = vld [vmem:[%s3151 + $0x44] sm:$0xf]
    %v3432 = vld [vmem:[%s3151 + $0x48] sm:$0xff]
    %v3433 = vld [vmem:[%s3151 + $0x50] sm:$0xf]
    %v3434 = vld [vmem:[%s3151 + $0x54] sm:$0xff]
    %v3435 = vld [vmem:[%s3151 + $0x5c] sm:$0xf]
    %v3436 = vld [vmem:[%s3151 + $0x60] sm:$0xff]
    %v3437 = vld [vmem:[%s3151 + $0x68] sm:$0xf]
    %v3438 = vld [vmem:[%s3151 + $0x6c] sm:$0xff]
    %v3439 = vld [vmem:[%s3151 + $0x74] sm:$0xf]
    %v3440 = vld [vmem:[%s3151 + $0x78] sm:$0xff]
    %v3441 = vld [vmem:[%s3151 + $0x80] sm:$0xf]
    %v3442 = vld [vmem:[%s3151 + $0x84] sm:$0xff]
    %v3443 = vld [vmem:[%s3151 + $0x8c] sm:$0xf]
    %v3444 = vld [vmem:[%s3151 + $0x90] sm:$0xff]
    %v3445 = vld [vmem:[%s3151 + $0x98] sm:$0xf]
    %v3446 = vld [vmem:[%s3151 + $0x9c] sm:$0xff]
    %v3447 = vld [vmem:[%s3151 + $0xa4] sm:$0xf]
    %v3448 = vld [vmem:[%s3151 + $0xa8] sm:$0xff]
    %v3449 = vld [vmem:[%s3151 + $0xb0] sm:$0xf]
    %v3450 = vld [vmem:[%s3151 + $0xb4] sm:$0xff]
    %v3451 = vld [vmem:[%s3151 + $0xbc] sm:$0xf]
    %v3484 = vunpack.c.l.b16 %v3420
    %v3485 = vunpack.c.h.b16 %v3420
    %v3486 = vunpack.c.l.b16 %v3421
    %v3487 = vunpack.c.l.b16 %v3422
    %v3488 = vunpack.c.h.b16 %v3422
    %v3489 = vunpack.c.l.b16 %v3423
    %v3490 = vunpack.c.l.b16 %v3424
    %v3491 = vunpack.c.h.b16 %v3424
    %v3492 = vunpack.c.l.b16 %v3425
    %v3493 = vunpack.c.l.b16 %v3426
    %v3494 = vunpack.c.h.b16 %v3426
    %v3495 = vunpack.c.l.b16 %v3427
    %v3496 = vunpack.c.l.b16 %v3428
    %v3497 = vunpack.c.h.b16 %v3428
    %v3498 = vunpack.c.l.b16 %v3429
    %v3499 = vunpack.c.l.b16 %v3430
    %v3500 = vunpack.c.h.b16 %v3430
    %v3501 = vunpack.c.l.b16 %v3431
    %v3502 = vunpack.c.l.b16 %v3432
    %v3503 = vunpack.c.h.b16 %v3432
    %v3504 = vunpack.c.l.b16 %v3433
    %v3505 = vunpack.c.l.b16 %v3434
    %v3506 = vunpack.c.h.b16 %v3434
    %v3507 = vunpack.c.l.b16 %v3435
    %v3508 = vunpack.c.l.b16 %v3436
    %v3509 = vunpack.c.h.b16 %v3436
    %v3510 = vunpack.c.l.b16 %v3437
    %v3511 = vunpack.c.l.b16 %v3438
    %v3512 = vunpack.c.h.b16 %v3438
    %v3513 = vunpack.c.l.b16 %v3439
    %v3514 = vunpack.c.l.b16 %v3440
    %v3515 = vunpack.c.h.b16 %v3440
    %v3516 = vunpack.c.l.b16 %v3441
    %v3517 = vunpack.c.l.b16 %v3442
    %v3518 = vunpack.c.h.b16 %v3442
    %v3519 = vunpack.c.l.b16 %v3443
    %v3520 = vunpack.c.l.b16 %v3444
    %v3521 = vunpack.c.h.b16 %v3444
    %v3522 = vunpack.c.l.b16 %v3445
    %v3523 = vunpack.c.l.b16 %v3446
    %v3524 = vunpack.c.h.b16 %v3446
    %v3525 = vunpack.c.l.b16 %v3447
    %v3526 = vunpack.c.l.b16 %v3448
    %v3527 = vunpack.c.h.b16 %v3448
    %v3528 = vunpack.c.l.b16 %v3449
    %v3529 = vunpack.c.l.b16 %v3450
    %v3530 = vunpack.c.h.b16 %v3450
    %v3531 = vunpack.c.l.b16 %v3451
    %v3532 = vpack.c.b16 %v3487, %v3484
    %v3533 = vpack.c.b16 %v3488, %v3485
    %v3534 = vpack.c.b16 %v3489, %v3486
    %v3535 = vpack.c.b16 %v3493, %v3490
    %v3536 = vpack.c.b16 %v3494, %v3491
    %v3537 = vpack.c.b16 %v3495, %v3492
    %v3538 = vpack.c.b16 %v3499, %v3496
    %v3539 = vpack.c.b16 %v3500, %v3497
    %v3540 = vpack.c.b16 %v3501, %v3498
    %v3541 = vpack.c.b16 %v3505, %v3502
    %v3542 = vpack.c.b16 %v3506, %v3503
    %v3543 = vpack.c.b16 %v3507, %v3504
    %v3544 = vpack.c.b16 %v3511, %v3508
    %v3545 = vpack.c.b16 %v3512, %v3509
    %v3546 = vpack.c.b16 %v3513, %v3510
    %v3547 = vpack.c.b16 %v3517, %v3514
    %v3548 = vpack.c.b16 %v3518, %v3515
    %v3549 = vpack.c.b16 %v3519, %v3516
    %v3550 = vpack.c.b16 %v3523, %v3520
    %v3551 = vpack.c.b16 %v3524, %v3521
    %v3552 = vpack.c.b16 %v3525, %v3522
    %v3553 = vpack.c.b16 %v3529, %v3526
    %v3554 = vpack.c.b16 %v3530, %v3527
    %v3555 = vpack.c.b16 %v3531, %v3528
    %3580 = vmatprep.subr.bf16.mxu0 %v3533
    %3581 = vmatpush1.bf16.msra.mxu0 %v3532
    %3582 = vmatprep.subr.bf16.mxu0 %v3536
    %3583 = vmatpush1.bf16.msra.mxu0 %v3535
    %3584 = vmatprep.subr.bf16.mxu0 %v3539
    %3585 = vmatpush1.bf16.msra.mxu0 %v3538
    %3586 = vmatprep.subr.bf16.mxu0 %v3542
    %3587 = vmatpush1.bf16.msra.mxu0 %v3541
    %3588 = vmatprep.subr.bf16.mxu0 %v3545
    %3589 = vmatpush1.bf16.msra.mxu0 %v3544
    %3590 = vmatprep.subr.bf16.mxu0 %v3548
    %3591 = vmatpush1.bf16.msra.mxu0 %v3547
    %3592 = vmatprep.subr.bf16.mxu0 %v3551
    %3593 = vmatpush1.bf16.msra.mxu0 %v3550
    %3594 = vmatprep.subr.bf16.mxu0 %v3554
    %3595 = vmatpush1.bf16.msra.mxu0 %v3553
    %3596 = vmatprep.subr.bf16.mxu0 0
    %3597 = vmatpush1.bf16.msra.mxu0 0
    %3598 = vmatprep.subr.bf16.mxu0 0
    %3599 = vmatpush1.bf16.msra.mxu0 0
    %3600 = vmatprep.subr.bf16.mxu0 0
    %3601 = vmatpush1.bf16.msra.mxu0 0
    %3602 = vmatprep.subr.bf16.mxu0 0
    %3603 = vmatpush1.bf16.msra.mxu0 0
    %3604 = vmatprep.subr.bf16.mxu0 0
    %3605 = vmatpush1.bf16.msra.mxu0 0
    %3606 = vmatprep.subr.bf16.mxu0 0
    %3607 = vmatpush1.bf16.msra.mxu0 0
    %3608 = vmatprep.subr.bf16.mxu0 0
    %3609 = vmatpush1.bf16.msra.mxu0 0
    %3610 = vmatprep.subr.bf16.mxu0 0
    %3611 = vmatpush1.bf16.msra.mxu0 0
    %3612 = vmatprep.mubr.bf16.mxu0 0
    %3613 = vmatmul.mubr.bf16.gmra.mrb[0].mxu0 %v3419
    %v3614 = vpop.f32.mrb[0].mxu0
    %v3615 = vadd.f32 0.0, %v3614
    %v3616 = vpop.f32.mrb[0].mxu0
    %v3617 = vadd.f32 0.0, %v3616
    %v3618 = vpop.f32.mrb[0].mxu0
    %v3619 = vpop.f32.mrb[0].mxu0
    %3620 = vdwg.mxu0
    %3621 = vmatprep.subr.bf16.mxu0 0
    %3622 = vmatpush1.bf16.msra.mxu0 %v3534
    %3623 = vmatprep.subr.bf16.mxu0 0
    %3624 = vmatpush1.bf16.msra.mxu0 %v3537
    %3625 = vmatprep.subr.bf16.mxu0 0
    %3626 = vmatpush1.bf16.msra.mxu0 %v3540
    %3627 = vmatprep.subr.bf16.mxu0 0
    %3628 = vmatpush1.bf16.msra.mxu0 %v3543
    %3629 = vmatprep.subr.bf16.mxu0 0
    %3630 = vmatpush1.bf16.msra.mxu0 %v3546
    %3631 = vmatprep.subr.bf16.mxu0 0
    %3632 = vmatpush1.bf16.msra.mxu0 %v3549
    %3633 = vmatprep.subr.bf16.mxu0 0
    %3634 = vmatpush1.bf16.msra.mxu0 %v3552
    %3635 = vmatprep.subr.bf16.mxu0 0
    %3636 = vmatpush1.bf16.msra.mxu0 %v3555
    %3637 = vmatprep.subr.bf16.mxu0 0
    %3638 = vmatpush1.bf16.msra.mxu0 0
    %3639 = vmatprep.subr.bf16.mxu0 0
    %3640 = vmatpush1.bf16.msra.mxu0 0
    %3641 = vmatprep.subr.bf16.mxu0 0
    %3642 = vmatpush1.bf16.msra.mxu0 0
    %3643 = vmatprep.subr.bf16.mxu0 0
    %3644 = vmatpush1.bf16.msra.mxu0 0
    %3645 = vmatprep.subr.bf16.mxu0 0
    %3646 = vmatpush1.bf16.msra.mxu0 0
    %3647 = vmatprep.subr.bf16.mxu0 0
    %3648 = vmatpush1.bf16.msra.mxu0 0
    %3649 = vmatprep.subr.bf16.mxu0 0
    %3650 = vmatpush1.bf16.msra.mxu0 0
    %3651 = vmatprep.subr.bf16.mxu0 0
    %3652 = vmatpush1.bf16.msra.mxu0 0
    %3653 = vmatprep.mubr.bf16.mxu0 0
    %3654 = vmatmul.mubr.bf16.gmra.mrb[0].mxu0 %v3419
    %v3655 = vpop.f32.mrb[0].mxu0
    %v3656 = vadd.f32 0.0, %v3655
    %v3657 = vpop.f32.mrb[0].mxu0
    %v3658 = vpop.f32.mrb[0].mxu0
    %v3659 = vpop.f32.mrb[0].mxu0
    %3660 = vdwg.mxu0
    %v3661 = vadd.f32 %v3416, %v3615
    %v3662 = vxor.u32 %v3661, 2147483648
    %v3663 = vmul.f32 %v3662, 1.442695
    %v3664 = vpow.pop %v3663
    %v3665 = vadd.f32 %v3664, 1.0
    %v3666 = vrcp.pop %v3665
    %v3667 = vmul.f32 1.0, %v3666
    %v3668 = vadd.f32 %v3417, %v3617
    %v3669 = vxor.u32 %v3668, 2147483648
    %v3670 = vmul.f32 %v3669, 1.442695
    %v3671 = vpow.pop %v3670
    %v3672 = vadd.f32 %v3671, 1.0
    %v3673 = vrcp.pop %v3672
    %v3674 = vmul.f32 1.0, %v3673
    %v3675 = vadd.f32 %v3656, %v3146
    %v3676 = vmul.f32 %v3667, %v3675
    %v3677 = vadd.f32 %v3418, %v3676
    %v3678 = vtanh.pop %v3677
    %v3679 = vsub.f32 1.0, %v3674
    %v3680 = vmul.f32 %v3679, %v3678
    %v3681 = vmul.f32 %v3674, %v3414
    %v3682 = vadd.f32 %v3680, %v3681
    %3683 = vst [vmem:[%s1057] sm:$0xff] %v3682
    %v3684 = vld [vmem:[%s1061] sm:$0xff]
    %v3685 = vld [vmem:[%s1061 + $0x8] sm:$0xff]
    %v3686 = vld [vmem:[%s1061 + $0x10] sm:$0xff]
    %v3687 = vpack.c.bf16 %v3682, %v3682
    %v3688 = vld [vmem:[%s3151] sm:$0xff]
    %v3689 = vld [vmem:[%s3151 + $0x8] sm:$0xf]
    %v3690 = vld [vmem:[%s3151 + $0xc] sm:$0xff]
    %v3691 = vld [vmem:[%s3151 + $0x14] sm:$0xf]
    %v3692 = vld [vmem:[%s3151 + $0x18] sm:$0xff]
    %v3693 = vld [vmem:[%s3151 + $0x20] sm:$0xf]
    %v3694 = vld [vmem:[%s3151 + $0x24] sm:$0xff]
    %v3695 = vld [vmem:[%s3151 + $0x2c] sm:$0xf]
    %v3696 = vld [vmem:[%s3151 + $0x30] sm:$0xff]
    %v3697 = vld [vmem:[%s3151 + $0x38] sm:$0xf]
    %v3698 = vld [vmem:[%s3151 + $0x3c] sm:$0xff]
    %v3699 = vld [vmem:[%s3151 + $0x44] sm:$0xf]
    %v3700 = vld [vmem:[%s3151 + $0x48] sm:$0xff]
    %v3701 = vld [vmem:[%s3151 + $0x50] sm:$0xf]
    %v3702 = vld [vmem:[%s3151 + $0x54] sm:$0xff]
    %v3703 = vld [vmem:[%s3151 + $0x5c] sm:$0xf]
    %v3704 = vld [vmem:[%s3151 + $0x60] sm:$0xff]
    %v3705 = vld [vmem:[%s3151 + $0x68] sm:$0xf]
    %v3706 = vld [vmem:[%s3151 + $0x6c] sm:$0xff]
    %v3707 = vld [vmem:[%s3151 + $0x74] sm:$0xf]
    %v3708 = vld [vmem:[%s3151 + $0x78] sm:$0xff]
    %v3709 = vld [vmem:[%s3151 + $0x80] sm:$0xf]
    %v3710 = vld [vmem:[%s3151 + $0x84] sm:$0xff]
    %v3711 = vld [vmem:[%s3151 + $0x8c] sm:$0xf]
    %v3712 = vld [vmem:[%s3151 + $0x90] sm:$0xff]
    %v3713 = vld [vmem:[%s3151 + $0x98] sm:$0xf]
    %v3714 = vld [vmem:[%s3151 + $0x9c] sm:$0xff]
    %v3715 = vld [vmem:[%s3151 + $0xa4] sm:$0xf]
    %v3716 = vld [vmem:[%s3151 + $0xa8] sm:$0xff]
    %v3717 = vld [vmem:[%s3151 + $0xb0] sm:$0xf]
    %v3718 = vld [vmem:[%s3151 + $0xb4] sm:$0xff]
    %v3719 = vld [vmem:[%s3151 + $0xbc] sm:$0xf]
    %v3752 = vunpack.c.l.b16 %v3688
    %v3753 = vunpack.c.h.b16 %v3688
    %v3754 = vunpack.c.l.b16 %v3689
    %v3755 = vunpack.c.l.b16 %v3690
    %v3756 = vunpack.c.h.b16 %v3690
    %v3757 = vunpack.c.l.b16 %v3691
    %v3758 = vunpack.c.l.b16 %v3692
    %v3759 = vunpack.c.h.b16 %v3692
    %v3760 = vunpack.c.l.b16 %v3693
    %v3761 = vunpack.c.l.b16 %v3694
    %v3762 = vunpack.c.h.b16 %v3694
    %v3763 = vunpack.c.l.b16 %v3695
    %v3764 = vunpack.c.l.b16 %v3696
    %v3765 = vunpack.c.h.b16 %v3696
    %v3766 = vunpack.c.l.b16 %v3697
    %v3767 = vunpack.c.l.b16 %v3698
    %v3768 = vunpack.c.h.b16 %v3698
    %v3769 = vunpack.c.l.b16 %v3699
    %v3770 = vunpack.c.l.b16 %v3700
    %v3771 = vunpack.c.h.b16 %v3700
    %v3772 = vunpack.c.l.b16 %v3701
    %v3773 = vunpack.c.l.b16 %v3702
    %v3774 = vunpack.c.h.b16 %v3702
    %v3775 = vunpack.c.l.b16 %v3703
    %v3776 = vunpack.c.l.b16 %v3704
    %v3777 = vunpack.c.h.b16 %v3704
    %v3778 = vunpack.c.l.b16 %v3705
    %v3779 = vunpack.c.l.b16 %v3706
    %v3780 = vunpack.c.h.b16 %v3706
    %v3781 = vunpack.c.l.b16 %v3707
    %v3782 = vunpack.c.l.b16 %v3708
    %v3783 = vunpack.c.h.b16 %v3708
    %v3784 = vunpack.c.l.b16 %v3709
    %v3785 = vunpack.c.l.b16 %v3710
    %v3786 = vunpack.c.h.b16 %v3710
    %v3787 = vunpack.c.l.b16 %v3711
    %v3788 = vunpack.c.l.b16 %v3712
    %v3789 = vunpack.c.h.b16 %v3712
    %v3790 = vunpack.c.l.b16 %v3713
    %v3791 = vunpack.c.l.b16 %v3714
    %v3792 = vunpack.c.h.b16 %v3714
    %v3793 = vunpack.c.l.b16 %v3715
    %v3794 = vunpack.c.l.b16 %v3716
    %v3795 = vunpack.c.h.b16 %v3716
    %v3796 = vunpack.c.l.b16 %v3717
    %v3797 = vunpack.c.l.b16 %v3718
    %v3798 = vunpack.c.h.b16 %v3718
    %v3799 = vunpack.c.l.b16 %v3719
    %v3800 = vpack.c.b16 %v3755, %v3752
    %v3801 = vpack.c.b16 %v3756, %v3753
    %v3802 = vpack.c.b16 %v3757, %v3754
    %v3803 = vpack.c.b16 %v3761, %v3758
    %v3804 = vpack.c.b16 %v3762, %v3759
    %v3805 = vpack.c.b16 %v3763, %v3760
    %v3806 = vpack.c.b16 %v3767, %v3764
    %v3807 = vpack.c.b16 %v3768, %v3765
    %v3808 = vpack.c.b16 %v3769, %v3766
    %v3809 = vpack.c.b16 %v3773, %v3770
    %v3810 = vpack.c.b16 %v3774, %v3771
    %v3811 = vpack.c.b16 %v3775, %v3772
    %v3812 = vpack.c.b16 %v3779, %v3776
    %v3813 = vpack.c.b16 %v3780, %v3777
    %v3814 = vpack.c.b16 %v3781, %v3778
    %v3815 = vpack.c.b16 %v3785, %v3782
    %v3816 = vpack.c.b16 %v3786, %v3783
    %v3817 = vpack.c.b16 %v3787, %v3784
    %v3818 = vpack.c.b16 %v3791, %v3788
    %v3819 = vpack.c.b16 %v3792, %v3789
    %v3820 = vpack.c.b16 %v3793, %v3790
    %v3821 = vpack.c.b16 %v3797, %v3794
    %v3822 = vpack.c.b16 %v3798, %v3795
    %v3823 = vpack.c.b16 %v3799, %v3796
    %3848 = vmatprep.subr.bf16.mxu0 %v3801
    %3849 = vmatpush1.bf16.msra.mxu0 %v3800
    %3850 = vmatprep.subr.bf16.mxu0 %v3804
    %3851 = vmatpush1.bf16.msra.mxu0 %v3803
    %3852 = vmatprep.subr.bf16.mxu0 %v3807
    %3853 = vmatpush1.bf16.msra.mxu0 %v3806
    %3854 = vmatprep.subr.bf16.mxu0 %v3810
    %3855 = vmatpush1.bf16.msra.mxu0 %v3809
    %3856 = vmatprep.subr.bf16.mxu0 %v3813
    %3857 = vmatpush1.bf16.msra.mxu0 %v3812
    %3858 = vmatprep.subr.bf16.mxu0 %v3816
    %3859 = vmatpush1.bf16.msra.mxu0 %v3815
    %3860 = vmatprep.subr.bf16.mxu0 %v3819
    %3861 = vmatpush1.bf16.msra.mxu0 %v3818
    %3862 = vmatprep.subr.bf16.mxu0 %v3822
    %3863 = vmatpush1.bf16.msra.mxu0 %v3821
    %3864 = vmatprep.subr.bf16.mxu0 0
    %3865 = vmatpush1.bf16.msra.mxu0 0
    %3866 = vmatprep.subr.bf16.mxu0 0
    %3867 = vmatpush1.bf16.msra.mxu0 0
    %3868 = vmatprep.subr.bf16.mxu0 0
    %3869 = vmatpush1.bf16.msra.mxu0 0
    %3870 = vmatprep.subr.bf16.mxu0 0
    %3871 = vmatpush1.bf16.msra.mxu0 0
    %3872 = vmatprep.subr.bf16.mxu0 0
    %3873 = vmatpush1.bf16.msra.mxu0 0
    %3874 = vmatprep.subr.bf16.mxu0 0
    %3875 = vmatpush1.bf16.msra.mxu0 0
    %3876 = vmatprep.subr.bf16.mxu0 0
    %3877 = vmatpush1.bf16.msra.mxu0 0
    %3878 = vmatprep.subr.bf16.mxu0 0
    %3879 = vmatpush1.bf16.msra.mxu0 0
    %3880 = vmatprep.mubr.bf16.mxu0 0
    %3881 = vmatmul.mubr.bf16.gmra.mrb[0].mxu0 %v3687
    %v3882 = vpop.f32.mrb[0].mxu0
    %v3883 = vadd.f32 0.0, %v3882
    %v3884 = vpop.f32.mrb[0].mxu0
    %v3885 = vadd.f32 0.0, %v3884
    %v3886 = vpop.f32.mrb[0].mxu0
    %v3887 = vpop.f32.mrb[0].mxu0
    %3888 = vdwg.mxu0
    %3889 = vmatprep.subr.bf16.mxu0 0
    %3890 = vmatpush1.bf16.msra.mxu0 %v3802
    %3891 = vmatprep.subr.bf16.mxu0 0
    %3892 = vmatpush1.bf16.msra.mxu0 %v3805
    %3893 = vmatprep.subr.bf16.mxu0 0
    %3894 = vmatpush1.bf16.msra.mxu0 %v3808
    %3895 = vmatprep.subr.bf16.mxu0 0
    %3896 = vmatpush1.bf16.msra.mxu0 %v3811
    %3897 = vmatprep.subr.bf16.mxu0 0
    %3898 = vmatpush1.bf16.msra.mxu0 %v3814
    %3899 = vmatprep.subr.bf16.mxu0 0
    %3900 = vmatpush1.bf16.msra.mxu0 %v3817
    %3901 = vmatprep.subr.bf16.mxu0 0
    %3902 = vmatpush1.bf16.msra.mxu0 %v3820
    %3903 = vmatprep.subr.bf16.mxu0 0
    %3904 = vmatpush1.bf16.msra.mxu0 %v3823
    %3905 = vmatprep.subr.bf16.mxu0 0
    %3906 = vmatpush1.bf16.msra.mxu0 0
    %3907 = vmatprep.subr.bf16.mxu0 0
    %3908 = vmatpush1.bf16.msra.mxu0 0
    %3909 = vmatprep.subr.bf16.mxu0 0
    %3910 = vmatpush1.bf16.msra.mxu0 0
    %3911 = vmatprep.subr.bf16.mxu0 0
    %3912 = vmatpush1.bf16.msra.mxu0 0
    %3913 = vmatprep.subr.bf16.mxu0 0
    %3914 = vmatpush1.bf16.msra.mxu0 0
    %3915 = vmatprep.subr.bf16.mxu0 0
    %3916 = vmatpush1.bf16.msra.mxu0 0
    %3917 = vmatprep.subr.bf16.mxu0 0
    %3918 = vmatpush1.bf16.msra.mxu0 0
    %3919 = vmatprep.subr.bf16.mxu0 0
    %3920 = vmatpush1.bf16.msra.mxu0 0
    %3921 = vmatprep.mubr.bf16.mxu0 0
    %3922 = vmatmul.mubr.bf16.gmra.mrb[0].mxu0 %v3687
    %v3923 = vpop.f32.mrb[0].mxu0
    %v3924 = vadd.f32 0.0, %v3923
    %v3925 = vpop.f32.mrb[0].mxu0
    %v3926 = vpop.f32.mrb[0].mxu0
    %v3927 = vpop.f32.mrb[0].mxu0
    %3928 = vdwg.mxu0
    %v3929 = vadd.f32 %v3684, %v3883
    %v3930 = vxor.u32 %v3929, 2147483648
    %v3931 = vmul.f32 %v3930, 1.442695
    %v3932 = vpow.pop %v3931
    %v3933 = vadd.f32 %v3932, 1.0
    %v3934 = vrcp.pop %v3933
    %v3935 = vmul.f32 1.0, %v3934
    %v3936 = vadd.f32 %v3685, %v3885
    %v3937 = vxor.u32 %v3936, 2147483648
    %v3938 = vmul.f32 %v3937, 1.442695
    %v3939 = vpow.pop %v3938
    %v3940 = vadd.f32 %v3939, 1.0
    %v3941 = vrcp.pop %v3940
    %v3942 = vmul.f32 1.0, %v3941
    %v3943 = vadd.f32 %v3924, %v3146
    %v3944 = vmul.f32 %v3935, %v3943
    %v3945 = vadd.f32 %v3686, %v3944
    %v3946 = vtanh.pop %v3945
    %v3947 = vsub.f32 1.0, %v3942
    %v3948 = vmul.f32 %v3947, %v3946
    %v3949 = vmul.f32 %v3942, %v3682
    %v3950 = vadd.f32 %v3948, %v3949
    %3951 = vst [vmem:[%s1329] sm:$0xff] %v3950
    %v3952 = vld [vmem:[%s1333] sm:$0xff]
    %v3953 = vld [vmem:[%s1333 + $0x8] sm:$0xff]
    %v3954 = vld [vmem:[%s1333 + $0x10] sm:$0xff]
    %v3955 = vpack.c.bf16 %v3950, %v3950
    %v3956 = vld [vmem:[%s3151] sm:$0xff]
    %v3957 = vld [vmem:[%s3151 + $0x8] sm:$0xf]
    %v3958 = vld [vmem:[%s3151 + $0xc] sm:$0xff]
    %v3959 = vld [vmem:[%s3151 + $0x14] sm:$0xf]
    %v3960 = vld [vmem:[%s3151 + $0x18] sm:$0xff]
    %v3961 = vld [vmem:[%s3151 + $0x20] sm:$0xf]
    %v3962 = vld [vmem:[%s3151 + $0x24] sm:$0xff]
    %v3963 = vld [vmem:[%s3151 + $0x2c] sm:$0xf]
    %v3964 = vld [vmem:[%s3151 + $0x30] sm:$0xff]
    %v3965 = vld [vmem:[%s3151 + $0x38] sm:$0xf]
    %v3966 = vld [vmem:[%s3151 + $0x3c] sm:$0xff]
    %v3967 = vld [vmem:[%s3151 + $0x44] sm:$0xf]
    %v3968 = vld [vmem:[%s3151 + $0x48] sm:$0xff]
    %v3969 = vld [vmem:[%s3151 + $0x50] sm:$0xf]
    %v3970 = vld [vmem:[%s3151 + $0x54] sm:$0xff]
    %v3971 = vld [vmem:[%s3151 + $0x5c] sm:$0xf]
    %v3972 = vld [vmem:[%s3151 + $0x60] sm:$0xff]
    %v3973 = vld [vmem:[%s3151 + $0x68] sm:$0xf]
    %v3974 = vld [vmem:[%s3151 + $0x6c] sm:$0xff]
    %v3975 = vld [vmem:[%s3151 + $0x74] sm:$0xf]
    %v3976 = vld [vmem:[%s3151 + $0x78] sm:$0xff]
    %v3977 = vld [vmem:[%s3151 + $0x80] sm:$0xf]
    %v3978 = vld [vmem:[%s3151 + $0x84] sm:$0xff]
    %v3979 = vld [vmem:[%s3151 + $0x8c] sm:$0xf]
    %v3980 = vld [vmem:[%s3151 + $0x90] sm:$0xff]
    %v3981 = vld [vmem:[%s3151 + $0x98] sm:$0xf]
    %v3982 = vld [vmem:[%s3151 + $0x9c] sm:$0xff]
    %v3983 = vld [vmem:[%s3151 + $0xa4] sm:$0xf]
    %v3984 = vld [vmem:[%s3151 + $0xa8] sm:$0xff]
    %v3985 = vld [vmem:[%s3151 + $0xb0] sm:$0xf]
    %v3986 = vld [vmem:[%s3151 + $0xb4] sm:$0xff]
    %v3987 = vld [vmem:[%s3151 + $0xbc] sm:$0xf]
    %v4020 = vunpack.c.l.b16 %v3956
    %v4021 = vunpack.c.h.b16 %v3956
    %v4022 = vunpack.c.l.b16 %v3957
    %v4023 = vunpack.c.l.b16 %v3958
    %v4024 = vunpack.c.h.b16 %v3958
    %v4025 = vunpack.c.l.b16 %v3959
    %v4026 = vunpack.c.l.b16 %v3960
    %v4027 = vunpack.c.h.b16 %v3960
    %v4028 = vunpack.c.l.b16 %v3961
    %v4029 = vunpack.c.l.b16 %v3962
    %v4030 = vunpack.c.h.b16 %v3962
    %v4031 = vunpack.c.l.b16 %v3963
    %v4032 = vunpack.c.l.b16 %v3964
    %v4033 = vunpack.c.h.b16 %v3964
    %v4034 = vunpack.c.l.b16 %v3965
    %v4035 = vunpack.c.l.b16 %v3966
    %v4036 = vunpack.c.h.b16 %v3966
    %v4037 = vunpack.c.l.b16 %v3967
    %v4038 = vunpack.c.l.b16 %v3968
    %v4039 = vunpack.c.h.b16 %v3968
    %v4040 = vunpack.c.l.b16 %v3969
    %v4041 = vunpack.c.l.b16 %v3970
    %v4042 = vunpack.c.h.b16 %v3970
    %v4043 = vunpack.c.l.b16 %v3971
    %v4044 = vunpack.c.l.b16 %v3972
    %v4045 = vunpack.c.h.b16 %v3972
    %v4046 = vunpack.c.l.b16 %v3973
    %v4047 = vunpack.c.l.b16 %v3974
    %v4048 = vunpack.c.h.b16 %v3974
    %v4049 = vunpack.c.l.b16 %v3975
    %v4050 = vunpack.c.l.b16 %v3976
    %v4051 = vunpack.c.h.b16 %v3976
    %v4052 = vunpack.c.l.b16 %v3977
    %v4053 = vunpack.c.l.b16 %v3978
    %v4054 = vunpack.c.h.b16 %v3978
    %v4055 = vunpack.c.l.b16 %v3979
    %v4056 = vunpack.c.l.b16 %v3980
    %v4057 = vunpack.c.h.b16 %v3980
    %v4058 = vunpack.c.l.b16 %v3981
    %v4059 = vunpack.c.l.b16 %v3982
    %v4060 = vunpack.c.h.b16 %v3982
    %v4061 = vunpack.c.l.b16 %v3983
    %v4062 = vunpack.c.l.b16 %v3984
    %v4063 = vunpack.c.h.b16 %v3984
    %v4064 = vunpack.c.l.b16 %v3985
    %v4065 = vunpack.c.l.b16 %v3986
    %v4066 = vunpack.c.h.b16 %v3986
    %v4067 = vunpack.c.l.b16 %v3987
    %v4068 = vpack.c.b16 %v4023, %v4020
    %v4069 = vpack.c.b16 %v4024, %v4021
    %v4070 = vpack.c.b16 %v4025, %v4022
    %v4071 = vpack.c.b16 %v4029, %v4026
    %v4072 = vpack.c.b16 %v4030, %v4027
    %v4073 = vpack.c.b16 %v4031, %v4028
    %v4074 = vpack.c.b16 %v4035, %v4032
    %v4075 = vpack.c.b16 %v4036, %v4033
    %v4076 = vpack.c.b16 %v4037, %v4034
    %v4077 = vpack.c.b16 %v4041, %v4038
    %v4078 = vpack.c.b16 %v4042, %v4039
    %v4079 = vpack.c.b16 %v4043, %v4040
    %v4080 = vpack.c.b16 %v4047, %v4044
    %v4081 = vpack.c.b16 %v4048, %v4045
    %v4082 = vpack.c.b16 %v4049, %v4046
    %v4083 = vpack.c.b16 %v4053, %v4050
    %v4084 = vpack.c.b16 %v4054, %v4051
    %v4085 = vpack.c.b16 %v4055, %v4052
    %v4086 = vpack.c.b16 %v4059, %v4056
    %v4087 = vpack.c.b16 %v4060, %v4057
    %v4088 = vpack.c.b16 %v4061, %v4058
    %v4089 = vpack.c.b16 %v4065, %v4062
    %v4090 = vpack.c.b16 %v4066, %v4063
    %v4091 = vpack.c.b16 %v4067, %v4064
    %4116 = vmatprep.subr.bf16.mxu0 %v4069
    %4117 = vmatpush1.bf16.msra.mxu0 %v4068
    %4118 = vmatprep.subr.bf16.mxu0 %v4072
    %4119 = vmatpush1.bf16.msra.mxu0 %v4071
    %4120 = vmatprep.subr.bf16.mxu0 %v4075
    %4121 = vmatpush1.bf16.msra.mxu0 %v4074
    %4122 = vmatprep.subr.bf16.mxu0 %v4078
    %4123 = vmatpush1.bf16.msra.mxu0 %v4077
    %4124 = vmatprep.subr.bf16.mxu0 %v4081
    %4125 = vmatpush1.bf16.msra.mxu0 %v4080
    %4126 = vmatprep.subr.bf16.mxu0 %v4084
    %4127 = vmatpush1.bf16.msra.mxu0 %v4083
    %4128 = vmatprep.subr.bf16.mxu0 %v4087
    %4129 = vmatpush1.bf16.msra.mxu0 %v4086
    %4130 = vmatprep.subr.bf16.mxu0 %v4090
    %4131 = vmatpush1.bf16.msra.mxu0 %v4089
    %4132 = vmatprep.subr.bf16.mxu0 0
    %4133 = vmatpush1.bf16.msra.mxu0 0
    %4134 = vmatprep.subr.bf16.mxu0 0
    %4135 = vmatpush1.bf16.msra.mxu0 0
    %4136 = vmatprep.subr.bf16.mxu0 0
    %4137 = vmatpush1.bf16.msra.mxu0 0
    %4138 = vmatprep.subr.bf16.mxu0 0
    %4139 = vmatpush1.bf16.msra.mxu0 0
    %4140 = vmatprep.subr.bf16.mxu0 0
    %4141 = vmatpush1.bf16.msra.mxu0 0
    %4142 = vmatprep.subr.bf16.mxu0 0
    %4143 = vmatpush1.bf16.msra.mxu0 0
    %4144 = vmatprep.subr.bf16.mxu0 0
    %4145 = vmatpush1.bf16.msra.mxu0 0
    %4146 = vmatprep.subr.bf16.mxu0 0
    %4147 = vmatpush1.bf16.msra.mxu0 0
    %4148 = vmatprep.mubr.bf16.mxu0 0
    %4149 = vmatmul.mubr.bf16.gmra.mrb[0].mxu0 %v3955
    %v4150 = vpop.f32.mrb[0].mxu0
    %v4151 = vadd.f32 0.0, %v4150
    %v4152 = vpop.f32.mrb[0].mxu0
    %v4153 = vadd.f32 0.0, %v4152
    %v4154 = vpop.f32.mrb[0].mxu0
    %v4155 = vpop.f32.mrb[0].mxu0
    %4156 = vdwg.mxu0
    %4157 = vmatprep.subr.bf16.mxu0 0
    %4158 = vmatpush1.bf16.msra.mxu0 %v4070
    %4159 = vmatprep.subr.bf16.mxu0 0
    %4160 = vmatpush1.bf16.msra.mxu0 %v4073
    %4161 = vmatprep.subr.bf16.mxu0 0
    %4162 = vmatpush1.bf16.msra.mxu0 %v4076
    %4163 = vmatprep.subr.bf16.mxu0 0
    %4164 = vmatpush1.bf16.msra.mxu0 %v4079
    %4165 = vmatprep.subr.bf16.mxu0 0
    %4166 = vmatpush1.bf16.msra.mxu0 %v4082
    %4167 = vmatprep.subr.bf16.mxu0 0
    %4168 = vmatpush1.bf16.msra.mxu0 %v4085
    %4169 = vmatprep.subr.bf16.mxu0 0
    %4170 = vmatpush1.bf16.msra.mxu0 %v4088
    %4171 = vmatprep.subr.bf16.mxu0 0
    %4172 = vmatpush1.bf16.msra.mxu0 %v4091
    %4173 = vmatprep.subr.bf16.mxu0 0
    %4174 = vmatpush1.bf16.msra.mxu0 0
    %4175 = vmatprep.subr.bf16.mxu0 0
    %4176 = vmatpush1.bf16.msra.mxu0 0
    %4177 = vmatprep.subr.bf16.mxu0 0
    %4178 = vmatpush1.bf16.msra.mxu0 0
    %4179 = vmatprep.subr.bf16.mxu0 0
    %4180 = vmatpush1.bf16.msra.mxu0 0
    %4181 = vmatprep.subr.bf16.mxu0 0
    %4182 = vmatpush1.bf16.msra.mxu0 0
    %4183 = vmatprep.subr.bf16.mxu0 0
    %4184 = vmatpush1.bf16.msra.mxu0 0
    %4185 = vmatprep.subr.bf16.mxu0 0
    %4186 = vmatpush1.bf16.msra.mxu0 0
    %4187 = vmatprep.subr.bf16.mxu0 0
    %4188 = vmatpush1.bf16.msra.mxu0 0
    %4189 = vmatprep.mubr.bf16.mxu0 0
    %4190 = vmatmul.mubr.bf16.gmra.mrb[0].mxu0 %v3955
    %v4191 = vpop.f32.mrb[0].mxu0
    %v4192 = vadd.f32 0.0, %v4191
    %v4193 = vpop.f32.mrb[0].mxu0
    %v4194 = vpop.f32.mrb[0].mxu0
    %v4195 = vpop.f32.mrb[0].mxu0
    %4196 = vdwg.mxu0
    %v4197 = vadd.f32 %v3952, %v4151
    %v4198 = vxor.u32 %v4197, 2147483648
    %v4199 = vmul.f32 %v4198, 1.442695
    %v4200 = vpow.pop %v4199
    %v4201 = vadd.f32 %v4200, 1.0
    %v4202 = vrcp.pop %v4201
    %v4203 = vmul.f32 1.0, %v4202
    %v4204 = vadd.f32 %v3953, %v4153
    %v4205 = vxor.u32 %v4204, 2147483648
    %v4206 = vmul.f32 %v4205, 1.442695
    %v4207 = vpow.pop %v4206
    %v4208 = vadd.f32 %v4207, 1.0
    %v4209 = vrcp.pop %v4208
    %v4210 = vmul.f32 1.0, %v4209
    %v4211 = vadd.f32 %v4192, %v3146
    %v4212 = vmul.f32 %v4203, %v4211
    %v4213 = vadd.f32 %v3954, %v4212
    %v4214 = vtanh.pop %v4213
    %v4215 = vsub.f32 1.0, %v4210
    %v4216 = vmul.f32 %v4215, %v4214
    %v4217 = vmul.f32 %v4210, %v3950
    %v4218 = vadd.f32 %v4216, %v4217
    %4219 = vst [vmem:[%s1601] sm:$0xff] %v4218
    %v4220 = vld [vmem:[%s1605] sm:$0xff]
    %v4221 = vld [vmem:[%s1605 + $0x8] sm:$0xff]
    %v4222 = vld [vmem:[%s1605 + $0x10] sm:$0xff]
    %v4223 = vpack.c.bf16 %v4218, %v4218
    %v4224 = vld [vmem:[%s3151] sm:$0xff]
    %v4225 = vld [vmem:[%s3151 + $0x8] sm:$0xf]
    %v4226 = vld [vmem:[%s3151 + $0xc] sm:$0xff]
    %v4227 = vld [vmem:[%s3151 + $0x14] sm:$0xf]
    %v4228 = vld [vmem:[%s3151 + $0x18] sm:$0xff]
    %v4229 = vld [vmem:[%s3151 + $0x20] sm:$0xf]
    %v4230 = vld [vmem:[%s3151 + $0x24] sm:$0xff]
    %v4231 = vld [vmem:[%s3151 + $0x2c] sm:$0xf]
    %v4232 = vld [vmem:[%s3151 + $0x30] sm:$0xff]
    %v4233 = vld [vmem:[%s3151 + $0x38] sm:$0xf]
    %v4234 = vld [vmem:[%s3151 + $0x3c] sm:$0xff]
    %v4235 = vld [vmem:[%s3151 + $0x44] sm:$0xf]
    %v4236 = vld [vmem:[%s3151 + $0x48] sm:$0xff]
    %v4237 = vld [vmem:[%s3151 + $0x50] sm:$0xf]
    %v4238 = vld [vmem:[%s3151 + $0x54] sm:$0xff]
    %v4239 = vld [vmem:[%s3151 + $0x5c] sm:$0xf]
    %v4240 = vld [vmem:[%s3151 + $0x60] sm:$0xff]
    %v4241 = vld [vmem:[%s3151 + $0x68] sm:$0xf]
    %v4242 = vld [vmem:[%s3151 + $0x6c] sm:$0xff]
    %v4243 = vld [vmem:[%s3151 + $0x74] sm:$0xf]
    %v4244 = vld [vmem:[%s3151 + $0x78] sm:$0xff]
    %v4245 = vld [vmem:[%s3151 + $0x80] sm:$0xf]
    %v4246 = vld [vmem:[%s3151 + $0x84] sm:$0xff]
    %v4247 = vld [vmem:[%s3151 + $0x8c] sm:$0xf]
    %v4248 = vld [vmem:[%s3151 + $0x90] sm:$0xff]
    %v4249 = vld [vmem:[%s3151 + $0x98] sm:$0xf]
    %v4250 = vld [vmem:[%s3151 + $0x9c] sm:$0xff]
    %v4251 = vld [vmem:[%s3151 + $0xa4] sm:$0xf]
    %v4252 = vld [vmem:[%s3151 + $0xa8] sm:$0xff]
    %v4253 = vld [vmem:[%s3151 + $0xb0] sm:$0xf]
    %v4254 = vld [vmem:[%s3151 + $0xb4] sm:$0xff]
    %v4255 = vld [vmem:[%s3151 + $0xbc] sm:$0xf]
    %v4288 = vunpack.c.l.b16 %v4224
    %v4289 = vunpack.c.h.b16 %v4224
    %v4290 = vunpack.c.l.b16 %v4225
    %v4291 = vunpack.c.l.b16 %v4226
    %v4292 = vunpack.c.h.b16 %v4226
    %v4293 = vunpack.c.l.b16 %v4227
    %v4294 = vunpack.c.l.b16 %v4228
    %v4295 = vunpack.c.h.b16 %v4228
    %v4296 = vunpack.c.l.b16 %v4229
    %v4297 = vunpack.c.l.b16 %v4230
    %v4298 = vunpack.c.h.b16 %v4230
    %v4299 = vunpack.c.l.b16 %v4231
    %v4300 = vunpack.c.l.b16 %v4232
    %v4301 = vunpack.c.h.b16 %v4232
    %v4302 = vunpack.c.l.b16 %v4233
    %v4303 = vunpack.c.l.b16 %v4234
    %v4304 = vunpack.c.h.b16 %v4234
    %v4305 = vunpack.c.l.b16 %v4235
    %v4306 = vunpack.c.l.b16 %v4236
    %v4307 = vunpack.c.h.b16 %v4236
    %v4308 = vunpack.c.l.b16 %v4237
    %v4309 = vunpack.c.l.b16 %v4238
    %v4310 = vunpack.c.h.b16 %v4238
    %v4311 = vunpack.c.l.b16 %v4239
    %v4312 = vunpack.c.l.b16 %v4240
    %v4313 = vunpack.c.h.b16 %v4240
    %v4314 = vunpack.c.l.b16 %v4241
    %v4315 = vunpack.c.l.b16 %v4242
    %v4316 = vunpack.c.h.b16 %v4242
    %v4317 = vunpack.c.l.b16 %v4243
    %v4318 = vunpack.c.l.b16 %v4244
    %v4319 = vunpack.c.h.b16 %v4244
    %v4320 = vunpack.c.l.b16 %v4245
    %v4321 = vunpack.c.l.b16 %v4246
    %v4322 = vunpack.c.h.b16 %v4246
    %v4323 = vunpack.c.l.b16 %v4247
    %v4324 = vunpack.c.l.b16 %v4248
    %v4325 = vunpack.c.h.b16 %v4248
    %v4326 = vunpack.c.l.b16 %v4249
    %v4327 = vunpack.c.l.b16 %v4250
    %v4328 = vunpack.c.h.b16 %v4250
    %v4329 = vunpack.c.l.b16 %v4251
    %v4330 = vunpack.c.l.b16 %v4252
    %v4331 = vunpack.c.h.b16 %v4252
    %v4332 = vunpack.c.l.b16 %v4253
    %v4333 = vunpack.c.l.b16 %v4254
    %v4334 = vunpack.c.h.b16 %v4254
    %v4335 = vunpack.c.l.b16 %v4255
    %v4336 = vpack.c.b16 %v4291, %v4288
    %v4337 = vpack.c.b16 %v4292, %v4289
    %v4338 = vpack.c.b16 %v4293, %v4290
    %v4339 = vpack.c.b16 %v4297, %v4294
    %v4340 = vpack.c.b16 %v4298, %v4295
    %v4341 = vpack.c.b16 %v4299, %v4296
    %v4342 = vpack.c.b16 %v4303, %v4300
    %v4343 = vpack.c.b16 %v4304, %v4301
    %v4344 = vpack.c.b16 %v4305, %v4302
    %v4345 = vpack.c.b16 %v4309, %v4306
    %v4346 = vpack.c.b16 %v4310, %v4307
    %v4347 = vpack.c.b16 %v4311, %v4308
    %v4348 = vpack.c.b16 %v4315, %v4312
    %v4349 = vpack.c.b16 %v4316, %v4313
    %v4350 = vpack.c.b16 %v4317, %v4314
    %v4351 = vpack.c.b16 %v4321, %v4318
    %v4352 = vpack.c.b16 %v4322, %v4319
    %v4353 = vpack.c.b16 %v4323, %v4320
    %v4354 = vpack.c.b16 %v4327, %v4324
    %v4355 = vpack.c.b16 %v4328, %v4325
    %v4356 = vpack.c.b16 %v4329, %v4326
    %v4357 = vpack.c.b16 %v4333, %v4330
    %v4358 = vpack.c.b16 %v4334, %v4331
    %v4359 = vpack.c.b16 %v4335, %v4332
    %4384 = vmatprep.subr.bf16.mxu0 %v4337
    %4385 = vmatpush1.bf16.msra.mxu0 %v4336
    %4386 = vmatprep.subr.bf16.mxu0 %v4340
    %4387 = vmatpush1.bf16.msra.mxu0 %v4339
    %4388 = vmatprep.subr.bf16.mxu0 %v4343
    %4389 = vmatpush1.bf16.msra.mxu0 %v4342
    %4390 = vmatprep.subr.bf16.mxu0 %v4346
    %4391 = vmatpush1.bf16.msra.mxu0 %v4345
    %4392 = vmatprep.subr.bf16.mxu0 %v4349
    %4393 = vmatpush1.bf16.msra.mxu0 %v4348
    %4394 = vmatprep.subr.bf16.mxu0 %v4352
    %4395 = vmatpush1.bf16.msra.mxu0 %v4351
    %4396 = vmatprep.subr.bf16.mxu0 %v4355
    %4397 = vmatpush1.bf16.msra.mxu0 %v4354
    %4398 = vmatprep.subr.bf16.mxu0 %v4358
    %4399 = vmatpush1.bf16.msra.mxu0 %v4357
    %4400 = vmatprep.subr.bf16.mxu0 0
    %4401 = vmatpush1.bf16.msra.mxu0 0
    %4402 = vmatprep.subr.bf16.mxu0 0
    %4403 = vmatpush1.bf16.msra.mxu0 0
    %4404 = vmatprep.subr.bf16.mxu0 0
    %4405 = vmatpush1.bf16.msra.mxu0 0
    %4406 = vmatprep.subr.bf16.mxu0 0
    %4407 = vmatpush1.bf16.msra.mxu0 0
    %4408 = vmatprep.subr.bf16.mxu0 0
    %4409 = vmatpush1.bf16.msra.mxu0 0
    %4410 = vmatprep.subr.bf16.mxu0 0
    %4411 = vmatpush1.bf16.msra.mxu0 0
    %4412 = vmatprep.subr.bf16.mxu0 0
    %4413 = vmatpush1.bf16.msra.mxu0 0
    %4414 = vmatprep.subr.bf16.mxu0 0
    %4415 = vmatpush1.bf16.msra.mxu0 0
    %4416 = vmatprep.mubr.bf16.mxu0 0
    %4417 = vmatmul.mubr.bf16.gmra.mrb[0].mxu0 %v4223
    %v4418 = vpop.f32.mrb[0].mxu0
    %v4419 = vadd.f32 0.0, %v4418
    %v4420 = vpop.f32.mrb[0].mxu0
    %v4421 = vadd.f32 0.0, %v4420
    %v4422 = vpop.f32.mrb[0].mxu0
    %v4423 = vpop.f32.mrb[0].mxu0
    %4424 = vdwg.mxu0
    %4425 = vmatprep.subr.bf16.mxu0 0
    %4426 = vmatpush1.bf16.msra.mxu0 %v4338
    %4427 = vmatprep.subr.bf16.mxu0 0
    %4428 = vmatpush1.bf16.msra.mxu0 %v4341
    %4429 = vmatprep.subr.bf16.mxu0 0
    %4430 = vmatpush1.bf16.msra.mxu0 %v4344
    %4431 = vmatprep.subr.bf16.mxu0 0
    %4432 = vmatpush1.bf16.msra.mxu0 %v4347
    %4433 = vmatprep.subr.bf16.mxu0 0
    %4434 = vmatpush1.bf16.msra.mxu0 %v4350
    %4435 = vmatprep.subr.bf16.mxu0 0
    %4436 = vmatpush1.bf16.msra.mxu0 %v4353
    %4437 = vmatprep.subr.bf16.mxu0 0
    %4438 = vmatpush1.bf16.msra.mxu0 %v4356
    %4439 = vmatprep.subr.bf16.mxu0 0
    %4440 = vmatpush1.bf16.msra.mxu0 %v4359
    %4441 = vmatprep.subr.bf16.mxu0 0
    %4442 = vmatpush1.bf16.msra.mxu0 0
    %4443 = vmatprep.subr.bf16.mxu0 0
    %4444 = vmatpush1.bf16.msra.mxu0 0
    %4445 = vmatprep.subr.bf16.mxu0 0
    %4446 = vmatpush1.bf16.msra.mxu0 0
    %4447 = vmatprep.subr.bf16.mxu0 0
    %4448 = vmatpush1.bf16.msra.mxu0 0
    %4449 = vmatprep.subr.bf16.mxu0 0
    %4450 = vmatpush1.bf16.msra.mxu0 0
    %4451 = vmatprep.subr.bf16.mxu0 0
    %4452 = vmatpush1.bf16.msra.mxu0 0
    %4453 = vmatprep.subr.bf16.mxu0 0
    %4454 = vmatpush1.bf16.msra.mxu0 0
    %4455 = vmatprep.subr.bf16.mxu0 0
    %4456 = vmatpush1.bf16.msra.mxu0 0
    %4457 = vmatprep.mubr.bf16.mxu0 0
    %4458 = vmatmul.mubr.bf16.gmra.mrb[0].mxu0 %v4223
    %v4459 = vpop.f32.mrb[0].mxu0
    %v4460 = vadd.f32 0.0, %v4459
    %v4461 = vpop.f32.mrb[0].mxu0
    %v4462 = vpop.f32.mrb[0].mxu0
    %v4463 = vpop.f32.mrb[0].mxu0
    %4464 = vdwg.mxu0
    %v4465 = vadd.f32 %v4220, %v4419
    %v4466 = vxor.u32 %v4465, 2147483648
    %v4467 = vmul.f32 %v4466, 1.442695
    %v4468 = vpow.pop %v4467
    %v4469 = vadd.f32 %v4468, 1.0
    %v4470 = vrcp.pop %v4469
    %v4471 = vmul.f32 1.0, %v4470
    %v4472 = vadd.f32 %v4221, %v4421
    %v4473 = vxor.u32 %v4472, 2147483648
    %v4474 = vmul.f32 %v4473, 1.442695
    %v4475 = vpow.pop %v4474
    %v4476 = vadd.f32 %v4475, 1.0
    %v4477 = vrcp.pop %v4476
    %v4478 = vmul.f32 1.0, %v4477
    %v4479 = vadd.f32 %v4460, %v3146
    %v4480 = vmul.f32 %v4471, %v4479
    %v4481 = vadd.f32 %v4222, %v4480
    %v4482 = vtanh.pop %v4481
    %v4483 = vsub.f32 1.0, %v4478
    %v4484 = vmul.f32 %v4483, %v4482
    %v4485 = vmul.f32 %v4478, %v4218
    %v4486 = vadd.f32 %v4484, %v4485
    %4487 = vst [vmem:[%s1873] sm:$0xff] %v4486
    %v4488 = vld [vmem:[%s1877] sm:$0xff]
    %v4489 = vld [vmem:[%s1877 + $0x8] sm:$0xff]
    %v4490 = vld [vmem:[%s1877 + $0x10] sm:$0xff]
    %v4491 = vpack.c.bf16 %v4486, %v4486
    %v4492 = vld [vmem:[%s3151] sm:$0xff]
    %v4493 = vld [vmem:[%s3151 + $0x8] sm:$0xf]
    %v4494 = vld [vmem:[%s3151 + $0xc] sm:$0xff]
    %v4495 = vld [vmem:[%s3151 + $0x14] sm:$0xf]
    %v4496 = vld [vmem:[%s3151 + $0x18] sm:$0xff]
    %v4497 = vld [vmem:[%s3151 + $0x20] sm:$0xf]
    %v4498 = vld [vmem:[%s3151 + $0x24] sm:$0xff]
    %v4499 = vld [vmem:[%s3151 + $0x2c] sm:$0xf]
    %v4500 = vld [vmem:[%s3151 + $0x30] sm:$0xff]
    %v4501 = vld [vmem:[%s3151 + $0x38] sm:$0xf]
    %v4502 = vld [vmem:[%s3151 + $0x3c] sm:$0xff]
    %v4503 = vld [vmem:[%s3151 + $0x44] sm:$0xf]
    %v4504 = vld [vmem:[%s3151 + $0x48] sm:$0xff]
    %v4505 = vld [vmem:[%s3151 + $0x50] sm:$0xf]
    %v4506 = vld [vmem:[%s3151 + $0x54] sm:$0xff]
    %v4507 = vld [vmem:[%s3151 + $0x5c] sm:$0xf]
    %v4508 = vld [vmem:[%s3151 + $0x60] sm:$0xff]
    %v4509 = vld [vmem:[%s3151 + $0x68] sm:$0xf]
    %v4510 = vld [vmem:[%s3151 + $0x6c] sm:$0xff]
    %v4511 = vld [vmem:[%s3151 + $0x74] sm:$0xf]
    %v4512 = vld [vmem:[%s3151 + $0x78] sm:$0xff]
    %v4513 = vld [vmem:[%s3151 + $0x80] sm:$0xf]
    %v4514 = vld [vmem:[%s3151 + $0x84] sm:$0xff]
    %v4515 = vld [vmem:[%s3151 + $0x8c] sm:$0xf]
    %v4516 = vld [vmem:[%s3151 + $0x90] sm:$0xff]
    %v4517 = vld [vmem:[%s3151 + $0x98] sm:$0xf]
    %v4518 = vld [vmem:[%s3151 + $0x9c] sm:$0xff]
    %v4519 = vld [vmem:[%s3151 + $0xa4] sm:$0xf]
    %v4520 = vld [vmem:[%s3151 + $0xa8] sm:$0xff]
    %v4521 = vld [vmem:[%s3151 + $0xb0] sm:$0xf]
    %v4522 = vld [vmem:[%s3151 + $0xb4] sm:$0xff]
    %v4523 = vld [vmem:[%s3151 + $0xbc] sm:$0xf]
    %v4556 = vunpack.c.l.b16 %v4492
    %v4557 = vunpack.c.h.b16 %v4492
    %v4558 = vunpack.c.l.b16 %v4493
    %v4559 = vunpack.c.l.b16 %v4494
    %v4560 = vunpack.c.h.b16 %v4494
    %v4561 = vunpack.c.l.b16 %v4495
    %v4562 = vunpack.c.l.b16 %v4496
    %v4563 = vunpack.c.h.b16 %v4496
    %v4564 = vunpack.c.l.b16 %v4497
    %v4565 = vunpack.c.l.b16 %v4498
    %v4566 = vunpack.c.h.b16 %v4498
    %v4567 = vunpack.c.l.b16 %v4499
    %v4568 = vunpack.c.l.b16 %v4500
    %v4569 = vunpack.c.h.b16 %v4500
    %v4570 = vunpack.c.l.b16 %v4501
    %v4571 = vunpack.c.l.b16 %v4502
    %v4572 = vunpack.c.h.b16 %v4502
    %v4573 = vunpack.c.l.b16 %v4503
    %v4574 = vunpack.c.l.b16 %v4504
    %v4575 = vunpack.c.h.b16 %v4504
    %v4576 = vunpack.c.l.b16 %v4505
    %v4577 = vunpack.c.l.b16 %v4506
    %v4578 = vunpack.c.h.b16 %v4506
    %v4579 = vunpack.c.l.b16 %v4507
    %v4580 = vunpack.c.l.b16 %v4508
    %v4581 = vunpack.c.h.b16 %v4508
    %v4582 = vunpack.c.l.b16 %v4509
    %v4583 = vunpack.c.l.b16 %v4510
    %v4584 = vunpack.c.h.b16 %v4510
    %v4585 = vunpack.c.l.b16 %v4511
    %v4586 = vunpack.c.l.b16 %v4512
    %v4587 = vunpack.c.h.b16 %v4512
    %v4588 = vunpack.c.l.b16 %v4513
    %v4589 = vunpack.c.l.b16 %v4514
    %v4590 = vunpack.c.h.b16 %v4514
    %v4591 = vunpack.c.l.b16 %v4515
    %v4592 = vunpack.c.l.b16 %v4516
    %v4593 = vunpack.c.h.b16 %v4516
    %v4594 = vunpack.c.l.b16 %v4517
    %v4595 = vunpack.c.l.b16 %v4518
    %v4596 = vunpack.c.h.b16 %v4518
    %v4597 = vunpack.c.l.b16 %v4519
    %v4598 = vunpack.c.l.b16 %v4520
    %v4599 = vunpack.c.h.b16 %v4520
    %v4600 = vunpack.c.l.b16 %v4521
    %v4601 = vunpack.c.l.b16 %v4522
    %v4602 = vunpack.c.h.b16 %v4522
    %v4603 = vunpack.c.l.b16 %v4523
    %v4604 = vpack.c.b16 %v4559, %v4556
    %v4605 = vpack.c.b16 %v4560, %v4557
    %v4606 = vpack.c.b16 %v4561, %v4558
    %v4607 = vpack.c.b16 %v4565, %v4562
    %v4608 = vpack.c.b16 %v4566, %v4563
    %v4609 = vpack.c.b16 %v4567, %v4564
    %v4610 = vpack.c.b16 %v4571, %v4568
    %v4611 = vpack.c.b16 %v4572, %v4569
    %v4612 = vpack.c.b16 %v4573, %v4570
    %v4613 = vpack.c.b16 %v4577, %v4574
    %v4614 = vpack.c.b16 %v4578, %v4575
    %v4615 = vpack.c.b16 %v4579, %v4576
    %v4616 = vpack.c.b16 %v4583, %v4580
    %v4617 = vpack.c.b16 %v4584, %v4581
    %v4618 = vpack.c.b16 %v4585, %v4582
    %v4619 = vpack.c.b16 %v4589, %v4586
    %v4620 = vpack.c.b16 %v4590, %v4587
    %v4621 = vpack.c.b16 %v4591, %v4588
    %v4622 = vpack.c.b16 %v4595, %v4592
    %v4623 = vpack.c.b16 %v4596, %v4593
    %v4624 = vpack.c.b16 %v4597, %v4594
    %v4625 = vpack.c.b16 %v4601, %v4598
    %v4626 = vpack.c.b16 %v4602, %v4599
    %v4627 = vpack.c.b16 %v4603, %v4600
    %4652 = vmatprep.subr.bf16.mxu0 %v4605
    %4653 = vmatpush1.bf16.msra.mxu0 %v4604
    %4654 = vmatprep.subr.bf16.mxu0 %v4608
    %4655 = vmatpush1.bf16.msra.mxu0 %v4607
    %4656 = vmatprep.subr.bf16.mxu0 %v4611
    %4657 = vmatpush1.bf16.msra.mxu0 %v4610
    %4658 = vmatprep.subr.bf16.mxu0 %v4614
    %4659 = vmatpush1.bf16.msra.mxu0 %v4613
    %4660 = vmatprep.subr.bf16.mxu0 %v4617
    %4661 = vmatpush1.bf16.msra.mxu0 %v4616
    %4662 = vmatprep.subr.bf16.mxu0 %v4620
    %4663 = vmatpush1.bf16.msra.mxu0 %v4619
    %4664 = vmatprep.subr.bf16.mxu0 %v4623
    %4665 = vmatpush1.bf16.msra.mxu0 %v4622
    %4666 = vmatprep.subr.bf16.mxu0 %v4626
    %4667 = vmatpush1.bf16.msra.mxu0 %v4625
    %4668 = vmatprep.subr.bf16.mxu0 0
    %4669 = vmatpush1.bf16.msra.mxu0 0
    %4670 = vmatprep.subr.bf16.mxu0 0
    %4671 = vmatpush1.bf16.msra.mxu0 0
    %4672 = vmatprep.subr.bf16.mxu0 0
    %4673 = vmatpush1.bf16.msra.mxu0 0
    %4674 = vmatprep.subr.bf16.mxu0 0
    %4675 = vmatpush1.bf16.msra.mxu0 0
    %4676 = vmatprep.subr.bf16.mxu0 0
    %4677 = vmatpush1.bf16.msra.mxu0 0
    %4678 = vmatprep.subr.bf16.mxu0 0
    %4679 = vmatpush1.bf16.msra.mxu0 0
    %4680 = vmatprep.subr.bf16.mxu0 0
    %4681 = vmatpush1.bf16.msra.mxu0 0
    %4682 = vmatprep.subr.bf16.mxu0 0
    %4683 = vmatpush1.bf16.msra.mxu0 0
    %4684 = vmatprep.mubr.bf16.mxu0 0
    %4685 = vmatmul.mubr.bf16.gmra.mrb[0].mxu0 %v4491
    %v4686 = vpop.f32.mrb[0].mxu0
    %v4687 = vadd.f32 0.0, %v4686
    %v4688 = vpop.f32.mrb[0].mxu0
    %v4689 = vadd.f32 0.0, %v4688
    %v4690 = vpop.f32.mrb[0].mxu0
    %v4691 = vpop.f32.mrb[0].mxu0
    %4692 = vdwg.mxu0
    %4693 = vmatprep.subr.bf16.mxu0 0
    %4694 = vmatpush1.bf16.msra.mxu0 %v4606
    %4695 = vmatprep.subr.bf16.mxu0 0
    %4696 = vmatpush1.bf16.msra.mxu0 %v4609
    %4697 = vmatprep.subr.bf16.mxu0 0
    %4698 = vmatpush1.bf16.msra.mxu0 %v4612
    %4699 = vmatprep.subr.bf16.mxu0 0
    %4700 = vmatpush1.bf16.msra.mxu0 %v4615
    %4701 = vmatprep.subr.bf16.mxu0 0
    %4702 = vmatpush1.bf16.msra.mxu0 %v4618
    %4703 = vmatprep.subr.bf16.mxu0 0
    %4704 = vmatpush1.bf16.msra.mxu0 %v4621
    %4705 = vmatprep.subr.bf16.mxu0 0
    %4706 = vmatpush1.bf16.msra.mxu0 %v4624
    %4707 = vmatprep.subr.bf16.mxu0 0
    %4708 = vmatpush1.bf16.msra.mxu0 %v4627
    %4709 = vmatprep.subr.bf16.mxu0 0
    %4710 = vmatpush1.bf16.msra.mxu0 0
    %4711 = vmatprep.subr.bf16.mxu0 0
    %4712 = vmatpush1.bf16.msra.mxu0 0
    %4713 = vmatprep.subr.bf16.mxu0 0
    %4714 = vmatpush1.bf16.msra.mxu0 0
    %4715 = vmatprep.subr.bf16.mxu0 0
    %4716 = vmatpush1.bf16.msra.mxu0 0
    %4717 = vmatprep.subr.bf16.mxu0 0
    %4718 = vmatpush1.bf16.msra.mxu0 0
    %4719 = vmatprep.subr.bf16.mxu0 0
    %4720 = vmatpush1.bf16.msra.mxu0 0
    %4721 = vmatprep.subr.bf16.mxu0 0
    %4722 = vmatpush1.bf16.msra.mxu0 0
    %4723 = vmatprep.subr.bf16.mxu0 0
    %4724 = vmatpush1.bf16.msra.mxu0 0
    %4725 = vmatprep.mubr.bf16.mxu0 0
    %4726 = vmatmul.mubr.bf16.gmra.mrb[0].mxu0 %v4491
    %v4727 = vpop.f32.mrb[0].mxu0
    %v4728 = vadd.f32 0.0, %v4727
    %v4729 = vpop.f32.mrb[0].mxu0
    %v4730 = vpop.f32.mrb[0].mxu0
    %v4731 = vpop.f32.mrb[0].mxu0
    %4732 = vdwg.mxu0
    %v4733 = vadd.f32 %v4488, %v4687
    %v4734 = vxor.u32 %v4733, 2147483648
    %v4735 = vmul.f32 %v4734, 1.442695
    %v4736 = vpow.pop %v4735
    %v4737 = vadd.f32 %v4736, 1.0
    %v4738 = vrcp.pop %v4737
    %v4739 = vmul.f32 1.0, %v4738
    %v4740 = vadd.f32 %v4489, %v4689
    %v4741 = vxor.u32 %v4740, 2147483648
    %v4742 = vmul.f32 %v4741, 1.442695
    %v4743 = vpow.pop %v4742
    %v4744 = vadd.f32 %v4743, 1.0
    %v4745 = vrcp.pop %v4744
    %v4746 = vmul.f32 1.0, %v4745
    %v4747 = vadd.f32 %v4728, %v3146
    %v4748 = vmul.f32 %v4739, %v4747
    %v4749 = vadd.f32 %v4490, %v4748
    %v4750 = vtanh.pop %v4749
    %v4751 = vsub.f32 1.0, %v4746
    %v4752 = vmul.f32 %v4751, %v4750
    %v4753 = vmul.f32 %v4746, %v4486
    %v4754 = vadd.f32 %v4752, %v4753
    %4755 = vst [vmem:[%s2145] sm:$0xff] %v4754
    %v4756 = vld [vmem:[%s2149] sm:$0xff]
    %v4757 = vld [vmem:[%s2149 + $0x8] sm:$0xff]
    %v4758 = vld [vmem:[%s2149 + $0x10] sm:$0xff]
    %v4759 = vpack.c.bf16 %v4754, %v4754
    %v4760 = vld [vmem:[%s3151] sm:$0xff]
    %v4761 = vld [vmem:[%s3151 + $0x8] sm:$0xf]
    %v4762 = vld [vmem:[%s3151 + $0xc] sm:$0xff]
    %v4763 = vld [vmem:[%s3151 + $0x14] sm:$0xf]
    %v4764 = vld [vmem:[%s3151 + $0x18] sm:$0xff]
    %v4765 = vld [vmem:[%s3151 + $0x20] sm:$0xf]
    %v4766 = vld [vmem:[%s3151 + $0x24] sm:$0xff]
    %v4767 = vld [vmem:[%s3151 + $0x2c] sm:$0xf]
    %v4768 = vld [vmem:[%s3151 + $0x30] sm:$0xff]
    %v4769 = vld [vmem:[%s3151 + $0x38] sm:$0xf]
    %v4770 = vld [vmem:[%s3151 + $0x3c] sm:$0xff]
    %v4771 = vld [vmem:[%s3151 + $0x44] sm:$0xf]
    %v4772 = vld [vmem:[%s3151 + $0x48] sm:$0xff]
    %v4773 = vld [vmem:[%s3151 + $0x50] sm:$0xf]
    %v4774 = vld [vmem:[%s3151 + $0x54] sm:$0xff]
    %v4775 = vld [vmem:[%s3151 + $0x5c] sm:$0xf]
    %v4776 = vld [vmem:[%s3151 + $0x60] sm:$0xff]
    %v4777 = vld [vmem:[%s3151 + $0x68] sm:$0xf]
    %v4778 = vld [vmem:[%s3151 + $0x6c] sm:$0xff]
    %v4779 = vld [vmem:[%s3151 + $0x74] sm:$0xf]
    %v4780 = vld [vmem:[%s3151 + $0x78] sm:$0xff]
    %v4781 = vld [vmem:[%s3151 + $0x80] sm:$0xf]
    %v4782 = vld [vmem:[%s3151 + $0x84] sm:$0xff]
    %v4783 = vld [vmem:[%s3151 + $0x8c] sm:$0xf]
    %v4784 = vld [vmem:[%s3151 + $0x90] sm:$0xff]
    %v4785 = vld [vmem:[%s3151 + $0x98] sm:$0xf]
    %v4786 = vld [vmem:[%s3151 + $0x9c] sm:$0xff]
    %v4787 = vld [vmem:[%s3151 + $0xa4] sm:$0xf]
    %v4788 = vld [vmem:[%s3151 + $0xa8] sm:$0xff]
    %v4789 = vld [vmem:[%s3151 + $0xb0] sm:$0xf]
    %v4790 = vld [vmem:[%s3151 + $0xb4] sm:$0xff]
    %v4791 = vld [vmem:[%s3151 + $0xbc] sm:$0xf]
    %v4824 = vunpack.c.l.b16 %v4760
    %v4825 = vunpack.c.h.b16 %v4760
    %v4826 = vunpack.c.l.b16 %v4761
    %v4827 = vunpack.c.l.b16 %v4762
    %v4828 = vunpack.c.h.b16 %v4762
    %v4829 = vunpack.c.l.b16 %v4763
    %v4830 = vunpack.c.l.b16 %v4764
    %v4831 = vunpack.c.h.b16 %v4764
    %v4832 = vunpack.c.l.b16 %v4765
    %v4833 = vunpack.c.l.b16 %v4766
    %v4834 = vunpack.c.h.b16 %v4766
    %v4835 = vunpack.c.l.b16 %v4767
    %v4836 = vunpack.c.l.b16 %v4768
    %v4837 = vunpack.c.h.b16 %v4768
    %v4838 = vunpack.c.l.b16 %v4769
    %v4839 = vunpack.c.l.b16 %v4770
    %v4840 = vunpack.c.h.b16 %v4770
    %v4841 = vunpack.c.l.b16 %v4771
    %v4842 = vunpack.c.l.b16 %v4772
    %v4843 = vunpack.c.h.b16 %v4772
    %v4844 = vunpack.c.l.b16 %v4773
    %v4845 = vunpack.c.l.b16 %v4774
    %v4846 = vunpack.c.h.b16 %v4774
    %v4847 = vunpack.c.l.b16 %v4775
    %v4848 = vunpack.c.l.b16 %v4776
    %v4849 = vunpack.c.h.b16 %v4776
    %v4850 = vunpack.c.l.b16 %v4777
    %v4851 = vunpack.c.l.b16 %v4778
    %v4852 = vunpack.c.h.b16 %v4778
    %v4853 = vunpack.c.l.b16 %v4779
    %v4854 = vunpack.c.l.b16 %v4780
    %v4855 = vunpack.c.h.b16 %v4780
    %v4856 = vunpack.c.l.b16 %v4781
    %v4857 = vunpack.c.l.b16 %v4782
    %v4858 = vunpack.c.h.b16 %v4782
    %v4859 = vunpack.c.l.b16 %v4783
    %v4860 = vunpack.c.l.b16 %v4784
    %v4861 = vunpack.c.h.b16 %v4784
    %v4862 = vunpack.c.l.b16 %v4785
    %v4863 = vunpack.c.l.b16 %v4786
    %v4864 = vunpack.c.h.b16 %v4786
    %v4865 = vunpack.c.l.b16 %v4787
    %v4866 = vunpack.c.l.b16 %v4788
    %v4867 = vunpack.c.h.b16 %v4788
    %v4868 = vunpack.c.l.b16 %v4789
    %v4869 = vunpack.c.l.b16 %v4790
    %v4870 = vunpack.c.h.b16 %v4790
    %v4871 = vunpack.c.l.b16 %v4791
    %v4872 = vpack.c.b16 %v4827, %v4824
    %v4873 = vpack.c.b16 %v4828, %v4825
    %v4874 = vpack.c.b16 %v4829, %v4826
    %v4875 = vpack.c.b16 %v4833, %v4830
    %v4876 = vpack.c.b16 %v4834, %v4831
    %v4877 = vpack.c.b16 %v4835, %v4832
    %v4878 = vpack.c.b16 %v4839, %v4836
    %v4879 = vpack.c.b16 %v4840, %v4837
    %v4880 = vpack.c.b16 %v4841, %v4838
    %v4881 = vpack.c.b16 %v4845, %v4842
    %v4882 = vpack.c.b16 %v4846, %v4843
    %v4883 = vpack.c.b16 %v4847, %v4844
    %v4884 = vpack.c.b16 %v4851, %v4848
    %v4885 = vpack.c.b16 %v4852, %v4849
    %v4886 = vpack.c.b16 %v4853, %v4850
    %v4887 = vpack.c.b16 %v4857, %v4854
    %v4888 = vpack.c.b16 %v4858, %v4855
    %v4889 = vpack.c.b16 %v4859, %v4856
    %v4890 = vpack.c.b16 %v4863, %v4860
    %v4891 = vpack.c.b16 %v4864, %v4861
    %v4892 = vpack.c.b16 %v4865, %v4862
    %v4893 = vpack.c.b16 %v4869, %v4866
    %v4894 = vpack.c.b16 %v4870, %v4867
    %v4895 = vpack.c.b16 %v4871, %v4868
    %4920 = vmatprep.subr.bf16.mxu0 %v4873
    %4921 = vmatpush1.bf16.msra.mxu0 %v4872
    %4922 = vmatprep.subr.bf16.mxu0 %v4876
    %4923 = vmatpush1.bf16.msra.mxu0 %v4875
    %4924 = vmatprep.subr.bf16.mxu0 %v4879
    %4925 = vmatpush1.bf16.msra.mxu0 %v4878
    %4926 = vmatprep.subr.bf16.mxu0 %v4882
    %4927 = vmatpush1.bf16.msra.mxu0 %v4881
    %4928 = vmatprep.subr.bf16.mxu0 %v4885
    %4929 = vmatpush1.bf16.msra.mxu0 %v4884
    %4930 = vmatprep.subr.bf16.mxu0 %v4888
    %4931 = vmatpush1.bf16.msra.mxu0 %v4887
    %4932 = vmatprep.subr.bf16.mxu0 %v4891
    %4933 = vmatpush1.bf16.msra.mxu0 %v4890
    %4934 = vmatprep.subr.bf16.mxu0 %v4894
    %4935 = vmatpush1.bf16.msra.mxu0 %v4893
    %4936 = vmatprep.subr.bf16.mxu0 0
    %4937 = vmatpush1.bf16.msra.mxu0 0
    %4938 = vmatprep.subr.bf16.mxu0 0
    %4939 = vmatpush1.bf16.msra.mxu0 0
    %4940 = vmatprep.subr.bf16.mxu0 0
    %4941 = vmatpush1.bf16.msra.mxu0 0
    %4942 = vmatprep.subr.bf16.mxu0 0
    %4943 = vmatpush1.bf16.msra.mxu0 0
    %4944 = vmatprep.subr.bf16.mxu0 0
    %4945 = vmatpush1.bf16.msra.mxu0 0
    %4946 = vmatprep.subr.bf16.mxu0 0
    %4947 = vmatpush1.bf16.msra.mxu0 0
    %4948 = vmatprep.subr.bf16.mxu0 0
    %4949 = vmatpush1.bf16.msra.mxu0 0
    %4950 = vmatprep.subr.bf16.mxu0 0
    %4951 = vmatpush1.bf16.msra.mxu0 0
    %4952 = vmatprep.mubr.bf16.mxu0 0
    %4953 = vmatmul.mubr.bf16.gmra.mrb[0].mxu0 %v4759
    %v4954 = vpop.f32.mrb[0].mxu0
    %v4955 = vadd.f32 0.0, %v4954
    %v4956 = vpop.f32.mrb[0].mxu0
    %v4957 = vadd.f32 0.0, %v4956
    %v4958 = vpop.f32.mrb[0].mxu0
    %v4959 = vpop.f32.mrb[0].mxu0
    %4960 = vdwg.mxu0
    %4961 = vmatprep.subr.bf16.mxu0 0
    %4962 = vmatpush1.bf16.msra.mxu0 %v4874
    %4963 = vmatprep.subr.bf16.mxu0 0
    %4964 = vmatpush1.bf16.msra.mxu0 %v4877
    %4965 = vmatprep.subr.bf16.mxu0 0
    %4966 = vmatpush1.bf16.msra.mxu0 %v4880
    %4967 = vmatprep.subr.bf16.mxu0 0
    %4968 = vmatpush1.bf16.msra.mxu0 %v4883
    %4969 = vmatprep.subr.bf16.mxu0 0
    %4970 = vmatpush1.bf16.msra.mxu0 %v4886
    %4971 = vmatprep.subr.bf16.mxu0 0
    %4972 = vmatpush1.bf16.msra.mxu0 %v4889
    %4973 = vmatprep.subr.bf16.mxu0 0
    %4974 = vmatpush1.bf16.msra.mxu0 %v4892
    %4975 = vmatprep.subr.bf16.mxu0 0
    %4976 = vmatpush1.bf16.msra.mxu0 %v4895
    %4977 = vmatprep.subr.bf16.mxu0 0
    %4978 = vmatpush1.bf16.msra.mxu0 0
    %4979 = vmatprep.subr.bf16.mxu0 0
    %4980 = vmatpush1.bf16.msra.mxu0 0
    %4981 = vmatprep.subr.bf16.mxu0 0
    %4982 = vmatpush1.bf16.msra.mxu0 0
    %4983 = vmatprep.subr.bf16.mxu0 0
    %4984 = vmatpush1.bf16.msra.mxu0 0
    %4985 = vmatprep.subr.bf16.mxu0 0
    %4986 = vmatpush1.bf16.msra.mxu0 0
    %4987 = vmatprep.subr.bf16.mxu0 0
    %4988 = vmatpush1.bf16.msra.mxu0 0
    %4989 = vmatprep.subr.bf16.mxu0 0
    %4990 = vmatpush1.bf16.msra.mxu0 0
    %4991 = vmatprep.subr.bf16.mxu0 0
    %4992 = vmatpush1.bf16.msra.mxu0 0
    %4993 = vmatprep.mubr.bf16.mxu0 0
    %4994 = vmatmul.mubr.bf16.gmra.mrb[0].mxu0 %v4759
    %v4995 = vpop.f32.mrb[0].mxu0
    %v4996 = vadd.f32 0.0, %v4995
    %v4997 = vpop.f32.mrb[0].mxu0
    %v4998 = vpop.f32.mrb[0].mxu0
    %v4999 = vpop.f32.mrb[0].mxu0
    %5000 = vdwg.mxu0
    %v5001 = vadd.f32 %v4756, %v4955
    %v5002 = vxor.u32 %v5001, 2147483648
    %v5003 = vmul.f32 %v5002, 1.442695
    %v5004 = vpow.pop %v5003
    %v5005 = vadd.f32 %v5004, 1.0
    %v5006 = vrcp.pop %v5005
    %v5007 = vmul.f32 1.0, %v5006
    %v5008 = vadd.f32 %v4757, %v4957
    %v5009 = vxor.u32 %v5008, 2147483648
    %v5010 = vmul.f32 %v5009, 1.442695
    %v5011 = vpow.pop %v5010
    %v5012 = vadd.f32 %v5011, 1.0
    %v5013 = vrcp.pop %v5012
    %v5014 = vmul.f32 1.0, %v5013
    %v5015 = vadd.f32 %v4996, %v3146
    %v5016 = vmul.f32 %v5007, %v5015
    %v5017 = vadd.f32 %v4758, %v5016
    %v5018 = vtanh.pop %v5017
    %v5019 = vsub.f32 1.0, %v5014
    %v5020 = vmul.f32 %v5019, %v5018
    %v5021 = vmul.f32 %v5014, %v4754
    %v5022 = vadd.f32 %v5020, %v5021
    %5023 = vst [vmem:[%s2417] sm:$0xff] %v5022
    %v5024 = vld [vmem:[%s2421] sm:$0xff]
    %v5025 = vld [vmem:[%s2421 + $0x8] sm:$0xff]
    %v5026 = vld [vmem:[%s2421 + $0x10] sm:$0xff]
    %v5027 = vpack.c.bf16 %v5022, %v5022
    %v5028 = vld [vmem:[%s3151] sm:$0xff]
    %v5029 = vld [vmem:[%s3151 + $0x8] sm:$0xf]
    %v5030 = vld [vmem:[%s3151 + $0xc] sm:$0xff]
    %v5031 = vld [vmem:[%s3151 + $0x14] sm:$0xf]
    %v5032 = vld [vmem:[%s3151 + $0x18] sm:$0xff]
    %v5033 = vld [vmem:[%s3151 + $0x20] sm:$0xf]
    %v5034 = vld [vmem:[%s3151 + $0x24] sm:$0xff]
    %v5035 = vld [vmem:[%s3151 + $0x2c] sm:$0xf]
    %v5036 = vld [vmem:[%s3151 + $0x30] sm:$0xff]
    %v5037 = vld [vmem:[%s3151 + $0x38] sm:$0xf]
    %v5038 = vld [vmem:[%s3151 + $0x3c] sm:$0xff]
    %v5039 = vld [vmem:[%s3151 + $0x44] sm:$0xf]
    %v5040 = vld [vmem:[%s3151 + $0x48] sm:$0xff]
    %v5041 = vld [vmem:[%s3151 + $0x50] sm:$0xf]
    %v5042 = vld [vmem:[%s3151 + $0x54] sm:$0xff]
    %v5043 = vld [vmem:[%s3151 + $0x5c] sm:$0xf]
    %v5044 = vld [vmem:[%s3151 + $0x60] sm:$0xff]
    %v5045 = vld [vmem:[%s3151 + $0x68] sm:$0xf]
    %v5046 = vld [vmem:[%s3151 + $0x6c] sm:$0xff]
    %v5047 = vld [vmem:[%s3151 + $0x74] sm:$0xf]
    %v5048 = vld [vmem:[%s3151 + $0x78] sm:$0xff]
    %v5049 = vld [vmem:[%s3151 + $0x80] sm:$0xf]
    %v5050 = vld [vmem:[%s3151 + $0x84] sm:$0xff]
    %v5051 = vld [vmem:[%s3151 + $0x8c] sm:$0xf]
    %v5052 = vld [vmem:[%s3151 + $0x90] sm:$0xff]
    %v5053 = vld [vmem:[%s3151 + $0x98] sm:$0xf]
    %v5054 = vld [vmem:[%s3151 + $0x9c] sm:$0xff]
    %v5055 = vld [vmem:[%s3151 + $0xa4] sm:$0xf]
    %v5056 = vld [vmem:[%s3151 + $0xa8] sm:$0xff]
    %v5057 = vld [vmem:[%s3151 + $0xb0] sm:$0xf]
    %v5058 = vld [vmem:[%s3151 + $0xb4] sm:$0xff]
    %v5059 = vld [vmem:[%s3151 + $0xbc] sm:$0xf]
    %v5092 = vunpack.c.l.b16 %v5028
    %v5093 = vunpack.c.h.b16 %v5028
    %v5094 = vunpack.c.l.b16 %v5029
    %v5095 = vunpack.c.l.b16 %v5030
    %v5096 = vunpack.c.h.b16 %v5030
    %v5097 = vunpack.c.l.b16 %v5031
    %v5098 = vunpack.c.l.b16 %v5032
    %v5099 = vunpack.c.h.b16 %v5032
    %v5100 = vunpack.c.l.b16 %v5033
    %v5101 = vunpack.c.l.b16 %v5034
    %v5102 = vunpack.c.h.b16 %v5034
    %v5103 = vunpack.c.l.b16 %v5035
    %v5104 = vunpack.c.l.b16 %v5036
    %v5105 = vunpack.c.h.b16 %v5036
    %v5106 = vunpack.c.l.b16 %v5037
    %v5107 = vunpack.c.l.b16 %v5038
    %v5108 = vunpack.c.h.b16 %v5038
    %v5109 = vunpack.c.l.b16 %v5039
    %v5110 = vunpack.c.l.b16 %v5040
    %v5111 = vunpack.c.h.b16 %v5040
    %v5112 = vunpack.c.l.b16 %v5041
    %v5113 = vunpack.c.l.b16 %v5042
    %v5114 = vunpack.c.h.b16 %v5042
    %v5115 = vunpack.c.l.b16 %v5043
    %v5116 = vunpack.c.l.b16 %v5044
    %v5117 = vunpack.c.h.b16 %v5044
    %v5118 = vunpack.c.l.b16 %v5045
    %v5119 = vunpack.c.l.b16 %v5046
    %v5120 = vunpack.c.h.b16 %v5046
    %v5121 = vunpack.c.l.b16 %v5047
    %v5122 = vunpack.c.l.b16 %v5048
    %v5123 = vunpack.c.h.b16 %v5048
    %v5124 = vunpack.c.l.b16 %v5049
    %v5125 = vunpack.c.l.b16 %v5050
    %v5126 = vunpack.c.h.b16 %v5050
    %v5127 = vunpack.c.l.b16 %v5051
    %v5128 = vunpack.c.l.b16 %v5052
    %v5129 = vunpack.c.h.b16 %v5052
    %v5130 = vunpack.c.l.b16 %v5053
    %v5131 = vunpack.c.l.b16 %v5054
    %v5132 = vunpack.c.h.b16 %v5054
    %v5133 = vunpack.c.l.b16 %v5055
    %v5134 = vunpack.c.l.b16 %v5056
    %v5135 = vunpack.c.h.b16 %v5056
    %v5136 = vunpack.c.l.b16 %v5057
    %v5137 = vunpack.c.l.b16 %v5058
    %v5138 = vunpack.c.h.b16 %v5058
    %v5139 = vunpack.c.l.b16 %v5059
    %v5140 = vpack.c.b16 %v5095, %v5092
    %v5141 = vpack.c.b16 %v5096, %v5093
    %v5142 = vpack.c.b16 %v5097, %v5094
    %v5143 = vpack.c.b16 %v5101, %v5098
    %v5144 = vpack.c.b16 %v5102, %v5099
    %v5145 = vpack.c.b16 %v5103, %v5100
    %v5146 = vpack.c.b16 %v5107, %v5104
    %v5147 = vpack.c.b16 %v5108, %v5105
    %v5148 = vpack.c.b16 %v5109, %v5106
    %v5149 = vpack.c.b16 %v5113, %v5110
    %v5150 = vpack.c.b16 %v5114, %v5111
    %v5151 = vpack.c.b16 %v5115, %v5112
    %v5152 = vpack.c.b16 %v5119, %v5116
    %v5153 = vpack.c.b16 %v5120, %v5117
    %v5154 = vpack.c.b16 %v5121, %v5118
    %v5155 = vpack.c.b16 %v5125, %v5122
    %v5156 = vpack.c.b16 %v5126, %v5123
    %v5157 = vpack.c.b16 %v5127, %v5124
    %v5158 = vpack.c.b16 %v5131, %v5128
    %v5159 = vpack.c.b16 %v5132, %v5129
    %v5160 = vpack.c.b16 %v5133, %v5130
    %v5161 = vpack.c.b16 %v5137, %v5134
    %v5162 = vpack.c.b16 %v5138, %v5135
    %v5163 = vpack.c.b16 %v5139, %v5136
    %5188 = vmatprep.subr.bf16.mxu0 %v5141
    %5189 = vmatpush1.bf16.msra.mxu0 %v5140
    %5190 = vmatprep.subr.bf16.mxu0 %v5144
    %5191 = vmatpush1.bf16.msra.mxu0 %v5143
    %5192 = vmatprep.subr.bf16.mxu0 %v5147
    %5193 = vmatpush1.bf16.msra.mxu0 %v5146
    %5194 = vmatprep.subr.bf16.mxu0 %v5150
    %5195 = vmatpush1.bf16.msra.mxu0 %v5149
    %5196 = vmatprep.subr.bf16.mxu0 %v5153
    %5197 = vmatpush1.bf16.msra.mxu0 %v5152
    %5198 = vmatprep.subr.bf16.mxu0 %v5156
    %5199 = vmatpush1.bf16.msra.mxu0 %v5155
    %5200 = vmatprep.subr.bf16.mxu0 %v5159
    %5201 = vmatpush1.bf16.msra.mxu0 %v5158
    %5202 = vmatprep.subr.bf16.mxu0 %v5162
    %5203 = vmatpush1.bf16.msra.mxu0 %v5161
    %5204 = vmatprep.subr.bf16.mxu0 0
    %5205 = vmatpush1.bf16.msra.mxu0 0
    %5206 = vmatprep.subr.bf16.mxu0 0
    %5207 = vmatpush1.bf16.msra.mxu0 0
    %5208 = vmatprep.subr.bf16.mxu0 0
    %5209 = vmatpush1.bf16.msra.mxu0 0
    %5210 = vmatprep.subr.bf16.mxu0 0
    %5211 = vmatpush1.bf16.msra.mxu0 0
    %5212 = vmatprep.subr.bf16.mxu0 0
    %5213 = vmatpush1.bf16.msra.mxu0 0
    %5214 = vmatprep.subr.bf16.mxu0 0
    %5215 = vmatpush1.bf16.msra.mxu0 0
    %5216 = vmatprep.subr.bf16.mxu0 0
    %5217 = vmatpush1.bf16.msra.mxu0 0
    %5218 = vmatprep.subr.bf16.mxu0 0
    %5219 = vmatpush1.bf16.msra.mxu0 0
    %5220 = vmatprep.mubr.bf16.mxu0 0
    %5221 = vmatmul.mubr.bf16.gmra.mrb[0].mxu0 %v5027
    %v5222 = vpop.f32.mrb[0].mxu0
    %v5223 = vadd.f32 0.0, %v5222
    %v5224 = vpop.f32.mrb[0].mxu0
    %v5225 = vadd.f32 0.0, %v5224
    %v5226 = vpop.f32.mrb[0].mxu0
    %v5227 = vpop.f32.mrb[0].mxu0
    %5228 = vdwg.mxu0
    %5229 = vmatprep.subr.bf16.mxu0 0
    %5230 = vmatpush1.bf16.msra.mxu0 %v5142
    %5231 = vmatprep.subr.bf16.mxu0 0
    %5232 = vmatpush1.bf16.msra.mxu0 %v5145
    %5233 = vmatprep.subr.bf16.mxu0 0
    %5234 = vmatpush1.bf16.msra.mxu0 %v5148
    %5235 = vmatprep.subr.bf16.mxu0 0
    %5236 = vmatpush1.bf16.msra.mxu0 %v5151
    %5237 = vmatprep.subr.bf16.mxu0 0
    %5238 = vmatpush1.bf16.msra.mxu0 %v5154
    %5239 = vmatprep.subr.bf16.mxu0 0
    %5240 = vmatpush1.bf16.msra.mxu0 %v5157
    %5241 = vmatprep.subr.bf16.mxu0 0
    %5242 = vmatpush1.bf16.msra.mxu0 %v5160
    %5243 = vmatprep.subr.bf16.mxu0 0
    %5244 = vmatpush1.bf16.msra.mxu0 %v5163
    %5245 = vmatprep.subr.bf16.mxu0 0
    %5246 = vmatpush1.bf16.msra.mxu0 0
    %5247 = vmatprep.subr.bf16.mxu0 0
    %5248 = vmatpush1.bf16.msra.mxu0 0
    %5249 = vmatprep.subr.bf16.mxu0 0
    %5250 = vmatpush1.bf16.msra.mxu0 0
    %5251 = vmatprep.subr.bf16.mxu0 0
    %5252 = vmatpush1.bf16.msra.mxu0 0
    %5253 = vmatprep.subr.bf16.mxu0 0
    %5254 = vmatpush1.bf16.msra.mxu0 0
    %5255 = vmatprep.subr.bf16.mxu0 0
    %5256 = vmatpush1.bf16.msra.mxu0 0
    %5257 = vmatprep.subr.bf16.mxu0 0
    %5258 = vmatpush1.bf16.msra.mxu0 0
    %5259 = vmatprep.subr.bf16.mxu0 0
    %5260 = vmatpush1.bf16.msra.mxu0 0
    %5261 = vmatprep.mubr.bf16.mxu0 0
    %5262 = vmatmul.mubr.bf16.gmra.mrb[0].mxu0 %v5027
    %v5263 = vpop.f32.mrb[0].mxu0
    %v5264 = vadd.f32 0.0, %v5263
    %v5265 = vpop.f32.mrb[0].mxu0
    %v5266 = vpop.f32.mrb[0].mxu0
    %v5267 = vpop.f32.mrb[0].mxu0
    %5268 = vdwg.mxu0
    %v5269 = vadd.f32 %v5024, %v5223
    %v5270 = vxor.u32 %v5269, 2147483648
    %v5271 = vmul.f32 %v5270, 1.442695
    %v5272 = vpow.pop %v5271
    %v5273 = vadd.f32 %v5272, 1.0
    %v5274 = vrcp.pop %v5273
    %v5275 = vmul.f32 1.0, %v5274
    %v5276 = vadd.f32 %v5025, %v5225
    %v5277 = vxor.u32 %v5276, 2147483648
    %v5278 = vmul.f32 %v5277, 1.442695
    %v5279 = vpow.pop %v5278
    %v5280 = vadd.f32 %v5279, 1.0
    %v5281 = vrcp.pop %v5280
    %v5282 = vmul.f32 1.0, %v5281
    %v5283 = vadd.f32 %v5264, %v3146
    %v5284 = vmul.f32 %v5275, %v5283
    %v5285 = vadd.f32 %v5026, %v5284
    %v5286 = vtanh.pop %v5285
    %v5287 = vsub.f32 1.0, %v5282
    %v5288 = vmul.f32 %v5287, %v5286
    %v5289 = vmul.f32 %v5282, %v5022
    %v5290 = vadd.f32 %v5288, %v5289
    %5291 = vst [vmem:[%s2689] sm:$0xff] %v5290
    %v5292 = vld [vmem:[#allocation4] sm:$0xff]
    %v5293 = vld [vmem:[#allocation4 + $0x38] sm:$0xff]
    %v5294 = vsel %vm66, %v5292, %v5293
    %5295 = vst [vmem:[#allocation2] sm:$0xff] %v5294
    %v5296 = vsel %vm66, %v5293, %v5292
    %5297 = vst [vmem:[#allocation2 + $0x38] sm:$0xff] %v5296
    %v5298 = vld [vmem:[#allocation4 + $0x8] sm:$0xff]
    %v5299 = vld [vmem:[#allocation4 + $0x30] sm:$0xff]
    %v5300 = vsel %vm66, %v5298, %v5299
    %5301 = vst [vmem:[#allocation2 + $0x8] sm:$0xff] %v5300
    %v5302 = vsel %vm66, %v5299, %v5298
    %5303 = vst [vmem:[#allocation2 + $0x30] sm:$0xff] %v5302
    %v5304 = vld [vmem:[#allocation4 + $0x10] sm:$0xff]
    %v5305 = vld [vmem:[#allocation4 + $0x28] sm:$0xff]
    %v5306 = vsel %vm66, %v5304, %v5305
    %5307 = vst [vmem:[#allocation2 + $0x10] sm:$0xff] %v5306
    %v5308 = vsel %vm66, %v5305, %v5304
    %5309 = vst [vmem:[#allocation2 + $0x28] sm:$0xff] %v5308
    %v5310 = vld [vmem:[#allocation4 + $0x18] sm:$0xff]
    %v5311 = vld [vmem:[#allocation4 + $0x20] sm:$0xff]
    %v5312 = vsel %vm66, %v5310, %v5311
    %5313 = vst [vmem:[#allocation2 + $0x18] sm:$0xff] %v5312
    %v5314 = vsel %vm66, %v5311, %v5310
    %5315 = vst [vmem:[#allocation2 + $0x20] sm:$0xff] %v5314
    %v5316 = vld [vmem:[#allocation2] sm:$0xff]
    %v5317 = vld [vmem:[#allocation2 + $0x8] sm:$0xff]
    %v5318 = vld [vmem:[#allocation2 + $0x10] sm:$0xff]
    %v5319 = vld [vmem:[#allocation2 + $0x18] sm:$0xff]
    %v5320 = vld [vmem:[#allocation2 + $0x20] sm:$0xff]
    %v5321 = vld [vmem:[#allocation2 + $0x28] sm:$0xff]
    %v5322 = vld [vmem:[#allocation2 + $0x30] sm:$0xff]
    %v5323 = vld [vmem:[#allocation2 + $0x38] sm:$0xff]
    %v5324 = vpack.c.bf16 %v5317, %v5316
    %v5325 = vpack.c.bf16 %v5319, %v5318
    %v5326 = vpack.c.bf16 %v5321, %v5320
    %v5327 = vpack.c.bf16 %v5323, %v5322
    %s5328 = scalar_lea.vmem [#allocation5], 384
    %v5329 = vld [vmem:[%s5328] sm:$0xff]
    %v5330 = vld [vmem:[%s5328 + $0x8] sm:$0xf]
    %v5331 = vld [vmem:[%s5328 + $0xc] sm:$0xff]
    %v5332 = vld [vmem:[%s5328 + $0x14] sm:$0xf]
    %v5333 = vld [vmem:[%s5328 + $0x18] sm:$0xff]
    %v5334 = vld [vmem:[%s5328 + $0x20] sm:$0xf]
    %v5335 = vld [vmem:[%s5328 + $0x24] sm:$0xff]
    %v5336 = vld [vmem:[%s5328 + $0x2c] sm:$0xf]
    %v5337 = vld [vmem:[%s5328 + $0x30] sm:$0xff]
    %v5338 = vld [vmem:[%s5328 + $0x38] sm:$0xf]
    %v5339 = vld [vmem:[%s5328 + $0x3c] sm:$0xff]
    %v5340 = vld [vmem:[%s5328 + $0x44] sm:$0xf]
    %v5341 = vld [vmem:[%s5328 + $0x48] sm:$0xff]
    %v5342 = vld [vmem:[%s5328 + $0x50] sm:$0xf]
    %v5343 = vld [vmem:[%s5328 + $0x54] sm:$0xff]
    %v5344 = vld [vmem:[%s5328 + $0x5c] sm:$0xf]
    %v5345 = vld [vmem:[%s5328 + $0x60] sm:$0xff]
    %v5346 = vld [vmem:[%s5328 + $0x68] sm:$0xf]
    %v5347 = vld [vmem:[%s5328 + $0x6c] sm:$0xff]
    %v5348 = vld [vmem:[%s5328 + $0x74] sm:$0xf]
    %v5349 = vld [vmem:[%s5328 + $0x78] sm:$0xff]
    %v5350 = vld [vmem:[%s5328 + $0x80] sm:$0xf]
    %v5351 = vld [vmem:[%s5328 + $0x84] sm:$0xff]
    %v5352 = vld [vmem:[%s5328 + $0x8c] sm:$0xf]
    %v5353 = vld [vmem:[%s5328 + $0x90] sm:$0xff]
    %v5354 = vld [vmem:[%s5328 + $0x98] sm:$0xf]
    %v5355 = vld [vmem:[%s5328 + $0x9c] sm:$0xff]
    %v5356 = vld [vmem:[%s5328 + $0xa4] sm:$0xf]
    %v5357 = vld [vmem:[%s5328 + $0xa8] sm:$0xff]
    %v5358 = vld [vmem:[%s5328 + $0xb0] sm:$0xf]
    %v5359 = vld [vmem:[%s5328 + $0xb4] sm:$0xff]
    %v5360 = vld [vmem:[%s5328 + $0xbc] sm:$0xf]
    %s5361 = scalar_lea.vmem %s3, 6
    %v5362 = vld [vmem:[%s5361] sm:$0x7]
    %v5364 = vlaneseq
    %v5365 = vshrl.u32 %v5364, 7
    %v5366 = vsub.s32 0, %v5365
    %v5367 = vrot.slane %v5362, %v5366
    %v5368 = vlaneseq
    %v5369 = vshrl.u32 %v5368, 7
    %v5370 = vsub.s32 1, %v5369
    %v5371 = vrot.slane %v5362, %v5370
    %v5372 = vlaneseq
    %v5373 = vshrl.u32 %v5372, 7
    %v5374 = vsub.s32 2, %v5373
    %v5375 = vrot.slane %v5362, %v5374
    %v5411 = vunpack.c.l.b16 %v5329
    %v5412 = vunpack.c.h.b16 %v5329
    %v5413 = vunpack.c.l.b16 %v5330
    %v5414 = vunpack.c.l.b16 %v5331
    %v5415 = vunpack.c.h.b16 %v5331
    %v5416 = vunpack.c.l.b16 %v5332
    %v5417 = vunpack.c.l.b16 %v5333
    %v5418 = vunpack.c.h.b16 %v5333
    %v5419 = vunpack.c.l.b16 %v5334
    %v5420 = vunpack.c.l.b16 %v5335
    %v5421 = vunpack.c.h.b16 %v5335
    %v5422 = vunpack.c.l.b16 %v5336
    %v5423 = vunpack.c.l.b16 %v5337
    %v5424 = vunpack.c.h.b16 %v5337
    %v5425 = vunpack.c.l.b16 %v5338
    %v5426 = vunpack.c.l.b16 %v5339
    %v5427 = vunpack.c.h.b16 %v5339
    %v5428 = vunpack.c.l.b16 %v5340
    %v5429 = vunpack.c.l.b16 %v5341
    %v5430 = vunpack.c.h.b16 %v5341
    %v5431 = vunpack.c.l.b16 %v5342
    %v5432 = vunpack.c.l.b16 %v5343
    %v5433 = vunpack.c.h.b16 %v5343
    %v5434 = vunpack.c.l.b16 %v5344
    %v5435 = vunpack.c.l.b16 %v5345
    %v5436 = vunpack.c.h.b16 %v5345
    %v5437 = vunpack.c.l.b16 %v5346
    %v5438 = vunpack.c.l.b16 %v5347
    %v5439 = vunpack.c.h.b16 %v5347
    %v5440 = vunpack.c.l.b16 %v5348
    %v5441 = vunpack.c.l.b16 %v5349
    %v5442 = vunpack.c.h.b16 %v5349
    %v5443 = vunpack.c.l.b16 %v5350
    %v5444 = vunpack.c.l.b16 %v5351
    %v5445 = vunpack.c.h.b16 %v5351
    %v5446 = vunpack.c.l.b16 %v5352
    %v5447 = vunpack.c.l.b16 %v5353
    %v5448 = vunpack.c.h.b16 %v5353
    %v5449 = vunpack.c.l.b16 %v5354
    %v5450 = vunpack.c.l.b16 %v5355
    %v5451 = vunpack.c.h.b16 %v5355
    %v5452 = vunpack.c.l.b16 %v5356
    %v5453 = vunpack.c.l.b16 %v5357
    %v5454 = vunpack.c.h.b16 %v5357
    %v5455 = vunpack.c.l.b16 %v5358
    %v5456 = vunpack.c.l.b16 %v5359
    %v5457 = vunpack.c.h.b16 %v5359
    %v5458 = vunpack.c.l.b16 %v5360
    %v5459 = vpack.c.b16 %v5414, %v5411
    %v5460 = vpack.c.b16 %v5415, %v5412
    %v5461 = vpack.c.b16 %v5416, %v5413
    %v5462 = vpack.c.b16 %v5420, %v5417
    %v5463 = vpack.c.b16 %v5421, %v5418
    %v5464 = vpack.c.b16 %v5422, %v5419
    %v5465 = vpack.c.b16 %v5426, %v5423
    %v5466 = vpack.c.b16 %v5427, %v5424
    %v5467 = vpack.c.b16 %v5428, %v5425
    %v5468 = vpack.c.b16 %v5432, %v5429
    %v5469 = vpack.c.b16 %v5433, %v5430
    %v5470 = vpack.c.b16 %v5434, %v5431
    %v5471 = vpack.c.b16 %v5438, %v5435
    %v5472 = vpack.c.b16 %v5439, %v5436
    %v5473 = vpack.c.b16 %v5440, %v5437
    %v5474 = vpack.c.b16 %v5444, %v5441
    %v5475 = vpack.c.b16 %v5445, %v5442
    %v5476 = vpack.c.b16 %v5446, %v5443
    %v5477 = vpack.c.b16 %v5450, %v5447
    %v5478 = vpack.c.b16 %v5451, %v5448
    %v5479 = vpack.c.b16 %v5452, %v5449
    %v5480 = vpack.c.b16 %v5456, %v5453
    %v5481 = vpack.c.b16 %v5457, %v5454
    %v5482 = vpack.c.b16 %v5458, %v5455
    %5507 = vmatprep.subr.bf16.mxu0 %v5460
    %5508 = vmatpush1.bf16.msra.mxu0 %v5459
    %5509 = vmatprep.subr.bf16.mxu0 %v5463
    %5510 = vmatpush1.bf16.msra.mxu0 %v5462
    %5511 = vmatprep.subr.bf16.mxu0 %v5466
    %5512 = vmatpush1.bf16.msra.mxu0 %v5465
    %5513 = vmatprep.subr.bf16.mxu0 %v5469
    %5514 = vmatpush1.bf16.msra.mxu0 %v5468
    %5515 = vmatprep.subr.bf16.mxu0 %v5472
    %5516 = vmatpush1.bf16.msra.mxu0 %v5471
    %5517 = vmatprep.subr.bf16.mxu0 %v5475
    %5518 = vmatpush1.bf16.msra.mxu0 %v5474
    %5519 = vmatprep.subr.bf16.mxu0 %v5478
    %5520 = vmatpush1.bf16.msra.mxu0 %v5477
    %5521 = vmatprep.subr.bf16.mxu0 %v5481
    %5522 = vmatpush1.bf16.msra.mxu0 %v5480
    %5523 = vmatprep.subr.bf16.mxu0 0
    %5524 = vmatpush1.bf16.msra.mxu0 0
    %5525 = vmatprep.subr.bf16.mxu0 0
    %5526 = vmatpush1.bf16.msra.mxu0 0
    %5527 = vmatprep.subr.bf16.mxu0 0
    %5528 = vmatpush1.bf16.msra.mxu0 0
    %5529 = vmatprep.subr.bf16.mxu0 0
    %5530 = vmatpush1.bf16.msra.mxu0 0
    %5531 = vmatprep.subr.bf16.mxu0 0
    %5532 = vmatpush1.bf16.msra.mxu0 0
    %5533 = vmatprep.subr.bf16.mxu0 0
    %5534 = vmatpush1.bf16.msra.mxu0 0
    %5535 = vmatprep.subr.bf16.mxu0 0
    %5536 = vmatpush1.bf16.msra.mxu0 0
    %5537 = vmatprep.subr.bf16.mxu0 0
    %5538 = vmatpush1.bf16.msra.mxu0 0
    %5539 = vmatprep.mubr.bf16.mxu0 0
    %5540 = vmatmul.mubr.bf16.gmra.mrb[0].mxu0 %v5324
    %v5541 = vpop.f32.mrb[0].mxu0
    %v5542 = vadd.f32 %v5367, %v5541
    %v5543 = vpop.f32.mrb[0].mxu0
    %v5544 = vadd.f32 %v5371, %v5543
    %v5545 = vpop.f32.mrb[0].mxu0
    %v5546 = vadd.f32 %v5367, %v5545
    %v5547 = vpop.f32.mrb[0].mxu0
    %v5548 = vadd.f32 %v5371, %v5547
    %5549 = vmatprep.mubr.bf16.mxu0 0
    %5550 = vmatmul.mubr.bf16.gmra.mrb[0].mxu0 %v5325
    %v5551 = vpop.f32.mrb[0].mxu0
    %v5552 = vadd.f32 %v5367, %v5551
    %v5553 = vpop.f32.mrb[0].mxu0
    %v5554 = vadd.f32 %v5371, %v5553
    %v5555 = vpop.f32.mrb[0].mxu0
    %v5556 = vadd.f32 %v5367, %v5555
    %v5557 = vpop.f32.mrb[0].mxu0
    %v5558 = vadd.f32 %v5371, %v5557
    %5559 = vmatprep.mubr.bf16.mxu0 0
    %5560 = vmatmul.mubr.bf16.gmra.mrb[0].mxu0 %v5326
    %v5561 = vpop.f32.mrb[0].mxu0
    %v5562 = vadd.f32 %v5367, %v5561
    %v5563 = vpop.f32.mrb[0].mxu0
    %v5564 = vadd.f32 %v5371, %v5563
    %v5565 = vpop.f32.mrb[0].mxu0
    %v5566 = vadd.f32 %v5367, %v5565
    %v5567 = vpop.f32.mrb[0].mxu0
    %v5568 = vadd.f32 %v5371, %v5567
    %5569 = vmatprep.mubr.bf16.mxu0 0
    %5570 = vmatmul.mubr.bf16.gmra.mrb[0].mxu0 %v5327
    %v5571 = vpop.f32.mrb[0].mxu0
    %v5572 = vadd.f32 %v5367, %v5571
    %v5573 = vpop.f32.mrb[0].mxu0
    %v5574 = vadd.f32 %v5371, %v5573
    %v5575 = vpop.f32.mrb[0].mxu0
    %v5576 = vadd.f32 %v5367, %v5575
    %v5577 = vpop.f32.mrb[0].mxu0
    %v5578 = vadd.f32 %v5371, %v5577
    %5579 = vdwg.mxu0
    %5580 = vmatprep.subr.bf16.mxu0 0
    %5581 = vmatpush1.bf16.msra.mxu0 %v5461
    %5582 = vmatprep.subr.bf16.mxu0 0
    %5583 = vmatpush1.bf16.msra.mxu0 %v5464
    %5584 = vmatprep.subr.bf16.mxu0 0
    %5585 = vmatpush1.bf16.msra.mxu0 %v5467
    %5586 = vmatprep.subr.bf16.mxu0 0
    %5587 = vmatpush1.bf16.msra.mxu0 %v5470
    %5588 = vmatprep.subr.bf16.mxu0 0
    %5589 = vmatpush1.bf16.msra.mxu0 %v5473
    %5590 = vmatprep.subr.bf16.mxu0 0
    %5591 = vmatpush1.bf16.msra.mxu0 %v5476
    %5592 = vmatprep.subr.bf16.mxu0 0
    %5593 = vmatpush1.bf16.msra.mxu0 %v5479
    %5594 = vmatprep.subr.bf16.mxu0 0
    %5595 = vmatpush1.bf16.msra.mxu0 %v5482
    %5596 = vmatprep.subr.bf16.mxu0 0
    %5597 = vmatpush1.bf16.msra.mxu0 0
    %5598 = vmatprep.subr.bf16.mxu0 0
    %5599 = vmatpush1.bf16.msra.mxu0 0
    %5600 = vmatprep.subr.bf16.mxu0 0
    %5601 = vmatpush1.bf16.msra.mxu0 0
    %5602 = vmatprep.subr.bf16.mxu0 0
    %5603 = vmatpush1.bf16.msra.mxu0 0
    %5604 = vmatprep.subr.bf16.mxu0 0
    %5605 = vmatpush1.bf16.msra.mxu0 0
    %5606 = vmatprep.subr.bf16.mxu0 0
    %5607 = vmatpush1.bf16.msra.mxu0 0
    %5608 = vmatprep.subr.bf16.mxu0 0
    %5609 = vmatpush1.bf16.msra.mxu0 0
    %5610 = vmatprep.subr.bf16.mxu0 0
    %5611 = vmatpush1.bf16.msra.mxu0 0
    %5612 = vmatprep.mubr.bf16.mxu0 0
    %5613 = vmatmul.mubr.bf16.gmra.mrb[0].mxu0 %v5324
    %v5614 = vpop.f32.mrb[0].mxu0
    %v5615 = vadd.f32 %v5375, %v5614
    %v5616 = vpop.f32.mrb[0].mxu0
    %v5617 = vpop.f32.mrb[0].mxu0
    %v5618 = vadd.f32 %v5375, %v5617
    %v5619 = vpop.f32.mrb[0].mxu0
    %5620 = vmatprep.mubr.bf16.mxu0 0
    %5621 = vmatmul.mubr.bf16.gmra.mrb[0].mxu0 %v5325
    %v5622 = vpop.f32.mrb[0].mxu0
    %v5623 = vadd.f32 %v5375, %v5622
    %v5624 = vpop.f32.mrb[0].mxu0
    %v5625 = vpop.f32.mrb[0].mxu0
    %v5626 = vadd.f32 %v5375, %v5625
    %v5627 = vpop.f32.mrb[0].mxu0
    %5628 = vmatprep.mubr.bf16.mxu0 0
    %5629 = vmatmul.mubr.bf16.gmra.mrb[0].mxu0 %v5326
    %v5630 = vpop.f32.mrb[0].mxu0
    %v5631 = vadd.f32 %v5375, %v5630
    %v5632 = vpop.f32.mrb[0].mxu0
    %v5633 = vpop.f32.mrb[0].mxu0
    %v5634 = vadd.f32 %v5375, %v5633
    %v5635 = vpop.f32.mrb[0].mxu0
    %5636 = vmatprep.mubr.bf16.mxu0 0
    %5637 = vmatmul.mubr.bf16.gmra.mrb[0].mxu0 %v5327
    %v5638 = vpop.f32.mrb[0].mxu0
    %v5639 = vadd.f32 %v5375, %v5638
    %v5640 = vpop.f32.mrb[0].mxu0
    %v5641 = vpop.f32.mrb[0].mxu0
    %v5642 = vadd.f32 %v5375, %v5641
    %v5643 = vpop.f32.mrb[0].mxu0
    %5644 = vdwg.mxu0
    %5645 = vst [vmem:[#allocation3] sm:$0xff] %v5542
    %5646 = vst [vmem:[#allocation3 + $0x8] sm:$0xff] %v5544
    %5647 = vst [vmem:[#allocation3 + $0x10] sm:$0xff] %v5615
    %5648 = vst [vmem:[#allocation3 + $0x18] sm:$0xff] %v5546
    %5649 = vst [vmem:[#allocation3 + $0x20] sm:$0xff] %v5548
    %5650 = vst [vmem:[#allocation3 + $0x28] sm:$0xff] %v5618
    %5651 = vst [vmem:[#allocation3 + $0x30] sm:$0xff] %v5552
    %5652 = vst [vmem:[#allocation3 + $0x38] sm:$0xff] %v5554
    %5653 = vst [vmem:[#allocation3 + $0x40] sm:$0xff] %v5623
    %5654 = vst [vmem:[#allocation3 + $0x48] sm:$0xff] %v5556
    %5655 = vst [vmem:[#allocation3 + $0x50] sm:$0xff] %v5558
    %5656 = vst [vmem:[#allocation3 + $0x58] sm:$0xff] %v5626
    %5657 = vst [vmem:[#allocation3 + $0x60] sm:$0xff] %v5562
    %5658 = vst [vmem:[#allocation3 + $0x68] sm:$0xff] %v5564
    %5659 = vst [vmem:[#allocation3 + $0x70] sm:$0xff] %v5631
    %5660 = vst [vmem:[#allocation3 + $0x78] sm:$0xff] %v5566
    %5661 = vst [vmem:[#allocation3 + $0x80] sm:$0xff] %v5568
    %5662 = vst [vmem:[#allocation3 + $0x88] sm:$0xff] %v5634
    %5663 = vst [vmem:[#allocation3 + $0x90] sm:$0xff] %v5572
    %5664 = vst [vmem:[#allocation3 + $0x98] sm:$0xff] %v5574
    %5665 = vst [vmem:[#allocation3 + $0xa0] sm:$0xff] %v5639
    %5666 = vst [vmem:[#allocation3 + $0xa8] sm:$0xff] %v5576
    %5667 = vst [vmem:[#allocation3 + $0xb0] sm:$0xff] %v5578
    %5668 = vst [vmem:[#allocation3 + $0xb8] sm:$0xff] %v5642
    %v5669 = vld [vmem:[#allocation3] sm:$0xff]
    %v5670 = vld [vmem:[#allocation3 + $0x8] sm:$0xff]
    %v5671 = vld [vmem:[#allocation3 + $0x10] sm:$0xff]
    %v5672 = vld [vmem:[#allocation3 + $0xa8] sm:$0xff]
    %v5673 = vld [vmem:[#allocation3 + $0xb0] sm:$0xff]
    %v5674 = vld [vmem:[#allocation3 + $0xb8] sm:$0xff]
    %v5675 = vsel %vm63, %v5669, %v5672
    %v5676 = vsel %vm64, %v5670, %v5673
    %v5677 = vsel %vm65, %v5671, %v5674
    %5678 = vst [vmem:[#allocation3] sm:$0xff] %v5675
    %5679 = vst [vmem:[#allocation3 + $0x8] sm:$0xff] %v5676
    %5680 = vst [vmem:[#allocation3 + $0x10] sm:$0xff] %v5677
    %v5681 = vsel %vm63, %v5672, %v5669
    %v5682 = vsel %vm64, %v5673, %v5670
    %v5683 = vsel %vm65, %v5674, %v5671
    %5684 = vst [vmem:[#allocation3 + $0xa8] sm:$0xff] %v5681
    %5685 = vst [vmem:[#allocation3 + $0xb0] sm:$0xff] %v5682
    %5686 = vst [vmem:[#allocation3 + $0xb8] sm:$0xff] %v5683
    %v5687 = vld [vmem:[#allocation3 + $0x18] sm:$0xff]
    %v5688 = vld [vmem:[#allocation3 + $0x20] sm:$0xff]
    %v5689 = vld [vmem:[#allocation3 + $0x28] sm:$0xff]
    %v5690 = vld [vmem:[#allocation3 + $0x90] sm:$0xff]
    %v5691 = vld [vmem:[#allocation3 + $0x98] sm:$0xff]
    %v5692 = vld [vmem:[#allocation3 + $0xa0] sm:$0xff]
    %v5693 = vsel %vm63, %v5687, %v5690
    %v5694 = vsel %vm64, %v5688, %v5691
    %v5695 = vsel %vm65, %v5689, %v5692
    %5696 = vst [vmem:[#allocation3 + $0x18] sm:$0xff] %v5693
    %5697 = vst [vmem:[#allocation3 + $0x20] sm:$0xff] %v5694
    %5698 = vst [vmem:[#allocation3 + $0x28] sm:$0xff] %v5695
    %v5699 = vsel %vm63, %v5690, %v5687
    %v5700 = vsel %vm64, %v5691, %v5688
    %v5701 = vsel %vm65, %v5692, %v5689
    %5702 = vst [vmem:[#allocation3 + $0x90] sm:$0xff] %v5699
    %5703 = vst [vmem:[#allocation3 + $0x98] sm:$0xff] %v5700
    %5704 = vst [vmem:[#allocation3 + $0xa0] sm:$0xff] %v5701
    %v5705 = vld [vmem:[#allocation3 + $0x30] sm:$0xff]
    %v5706 = vld [vmem:[#allocation3 + $0x38] sm:$0xff]
    %v5707 = vld [vmem:[#allocation3 + $0x40] sm:$0xff]
    %v5708 = vld [vmem:[#allocation3 + $0x78] sm:$0xff]
    %v5709 = vld [vmem:[#allocation3 + $0x80] sm:$0xff]
    %v5710 = vld [vmem:[#allocation3 + $0x88] sm:$0xff]
    %v5711 = vsel %vm63, %v5705, %v5708
    %v5712 = vsel %vm64, %v5706, %v5709
    %v5713 = vsel %vm65, %v5707, %v5710
    %5714 = vst [vmem:[#allocation3 + $0x30] sm:$0xff] %v5711
    %5715 = vst [vmem:[#allocation3 + $0x38] sm:$0xff] %v5712
    %5716 = vst [vmem:[#allocation3 + $0x40] sm:$0xff] %v5713
    %v5717 = vsel %vm63, %v5708, %v5705
    %v5718 = vsel %vm64, %v5709, %v5706
    %v5719 = vsel %vm65, %v5710, %v5707
    %5720 = vst [vmem:[#allocation3 + $0x78] sm:$0xff] %v5717
    %5721 = vst [vmem:[#allocation3 + $0x80] sm:$0xff] %v5718
    %5722 = vst [vmem:[#allocation3 + $0x88] sm:$0xff] %v5719
    %v5723 = vld [vmem:[#allocation3 + $0x48] sm:$0xff]
    %v5724 = vld [vmem:[#allocation3 + $0x50] sm:$0xff]
    %v5725 = vld [vmem:[#allocation3 + $0x58] sm:$0xff]
    %v5726 = vld [vmem:[#allocation3 + $0x60] sm:$0xff]
    %v5727 = vld [vmem:[#allocation3 + $0x68] sm:$0xff]
    %v5728 = vld [vmem:[#allocation3 + $0x70] sm:$0xff]
    %v5729 = vsel %vm63, %v5723, %v5726
    %v5730 = vsel %vm64, %v5724, %v5727
    %v5731 = vsel %vm65, %v5725, %v5728
    %5732 = vst [vmem:[#allocation3 + $0x48] sm:$0xff] %v5729
    %5733 = vst [vmem:[#allocation3 + $0x50] sm:$0xff] %v5730
    %5734 = vst [vmem:[#allocation3 + $0x58] sm:$0xff] %v5731
    %v5735 = vsel %vm63, %v5726, %v5723
    %v5736 = vsel %vm64, %v5727, %v5724
    %v5737 = vsel %vm65, %v5728, %v5725
    %5738 = vst [vmem:[#allocation3 + $0x60] sm:$0xff] %v5735
    %5739 = vst [vmem:[#allocation3 + $0x68] sm:$0xff] %v5736
    %5740 = vst [vmem:[#allocation3 + $0x70] sm:$0xff] %v5737
    %s5741 = scalar_lea.vmem %s4, 2
    %v5742 = vld [vmem:[%s5741] sm:$0x1]
    %v5744 = vlaneseq
    %v5745 = vshrl.u32 %v5744, 7
    %v5746 = vsub.s32 0, %v5745
    %v5747 = vrot.slane %v5742, %v5746
    %v5749 = vld [vmem:[%s519] sm:$0xff]
    %v5750 = vld [vmem:[%s519 + $0x8] sm:$0xff]
    %v5751 = vld [vmem:[%s519 + $0x10] sm:$0xff]
    %s5752 = scalar_lea.vmem [#allocation8], 384
    %v5753 = vld [vmem:[%s5752] sm:$0xff]
    %v5754 = vld [vmem:[%s5752 + $0x8] sm:$0xf]
    %v5755 = vld [vmem:[%s5752 + $0xc] sm:$0xff]
    %v5756 = vld [vmem:[%s5752 + $0x14] sm:$0xf]
    %v5757 = vld [vmem:[%s5752 + $0x18] sm:$0xff]
    %v5758 = vld [vmem:[%s5752 + $0x20] sm:$0xf]
    %v5759 = vld [vmem:[%s5752 + $0x24] sm:$0xff]
    %v5760 = vld [vmem:[%s5752 + $0x2c] sm:$0xf]
    %v5761 = vld [vmem:[%s5752 + $0x30] sm:$0xff]
    %v5762 = vld [vmem:[%s5752 + $0x38] sm:$0xf]
    %v5763 = vld [vmem:[%s5752 + $0x3c] sm:$0xff]
    %v5764 = vld [vmem:[%s5752 + $0x44] sm:$0xf]
    %v5765 = vld [vmem:[%s5752 + $0x48] sm:$0xff]
    %v5766 = vld [vmem:[%s5752 + $0x50] sm:$0xf]
    %v5767 = vld [vmem:[%s5752 + $0x54] sm:$0xff]
    %v5768 = vld [vmem:[%s5752 + $0x5c] sm:$0xf]
    %v5769 = vld [vmem:[%s5752 + $0x60] sm:$0xff]
    %v5770 = vld [vmem:[%s5752 + $0x68] sm:$0xf]
    %v5771 = vld [vmem:[%s5752 + $0x6c] sm:$0xff]
    %v5772 = vld [vmem:[%s5752 + $0x74] sm:$0xf]
    %v5773 = vld [vmem:[%s5752 + $0x78] sm:$0xff]
    %v5774 = vld [vmem:[%s5752 + $0x80] sm:$0xf]
    %v5775 = vld [vmem:[%s5752 + $0x84] sm:$0xff]
    %v5776 = vld [vmem:[%s5752 + $0x8c] sm:$0xf]
    %v5777 = vld [vmem:[%s5752 + $0x90] sm:$0xff]
    %v5778 = vld [vmem:[%s5752 + $0x98] sm:$0xf]
    %v5779 = vld [vmem:[%s5752 + $0x9c] sm:$0xff]
    %v5780 = vld [vmem:[%s5752 + $0xa4] sm:$0xf]
    %v5781 = vld [vmem:[%s5752 + $0xa8] sm:$0xff]
    %v5782 = vld [vmem:[%s5752 + $0xb0] sm:$0xf]
    %v5783 = vld [vmem:[%s5752 + $0xb4] sm:$0xff]
    %v5784 = vld [vmem:[%s5752 + $0xbc] sm:$0xf]
    %v5817 = vunpack.c.l.b16 %v5753
    %v5818 = vunpack.c.h.b16 %v5753
    %v5819 = vunpack.c.l.b16 %v5754
    %v5820 = vunpack.c.l.b16 %v5755
    %v5821 = vunpack.c.h.b16 %v5755
    %v5822 = vunpack.c.l.b16 %v5756
    %v5823 = vunpack.c.l.b16 %v5757
    %v5824 = vunpack.c.h.b16 %v5757
    %v5825 = vunpack.c.l.b16 %v5758
    %v5826 = vunpack.c.l.b16 %v5759
    %v5827 = vunpack.c.h.b16 %v5759
    %v5828 = vunpack.c.l.b16 %v5760
    %v5829 = vunpack.c.l.b16 %v5761
    %v5830 = vunpack.c.h.b16 %v5761
    %v5831 = vunpack.c.l.b16 %v5762
    %v5832 = vunpack.c.l.b16 %v5763
    %v5833 = vunpack.c.h.b16 %v5763
    %v5834 = vunpack.c.l.b16 %v5764
    %v5835 = vunpack.c.l.b16 %v5765
    %v5836 = vunpack.c.h.b16 %v5765
    %v5837 = vunpack.c.l.b16 %v5766
    %v5838 = vunpack.c.l.b16 %v5767
    %v5839 = vunpack.c.h.b16 %v5767
    %v5840 = vunpack.c.l.b16 %v5768
    %v5841 = vunpack.c.l.b16 %v5769
    %v5842 = vunpack.c.h.b16 %v5769
    %v5843 = vunpack.c.l.b16 %v5770
    %v5844 = vunpack.c.l.b16 %v5771
    %v5845 = vunpack.c.h.b16 %v5771
    %v5846 = vunpack.c.l.b16 %v5772
    %v5847 = vunpack.c.l.b16 %v5773
    %v5848 = vunpack.c.h.b16 %v5773
    %v5849 = vunpack.c.l.b16 %v5774
    %v5850 = vunpack.c.l.b16 %v5775
    %v5851 = vunpack.c.h.b16 %v5775
    %v5852 = vunpack.c.l.b16 %v5776
    %v5853 = vunpack.c.l.b16 %v5777
    %v5854 = vunpack.c.h.b16 %v5777
    %v5855 = vunpack.c.l.b16 %v5778
    %v5856 = vunpack.c.l.b16 %v5779
    %v5857 = vunpack.c.h.b16 %v5779
    %v5858 = vunpack.c.l.b16 %v5780
    %v5859 = vunpack.c.l.b16 %v5781
    %v5860 = vunpack.c.h.b16 %v5781
    %v5861 = vunpack.c.l.b16 %v5782
    %v5862 = vunpack.c.l.b16 %v5783
    %v5863 = vunpack.c.h.b16 %v5783
    %v5864 = vunpack.c.l.b16 %v5784
    %v5865 = vpack.c.b16 %v5820, %v5817
    %v5866 = vpack.c.b16 %v5821, %v5818
    %v5867 = vpack.c.b16 %v5822, %v5819
    %v5868 = vpack.c.b16 %v5826, %v5823
    %v5869 = vpack.c.b16 %v5827, %v5824
    %v5870 = vpack.c.b16 %v5828, %v5825
    %v5871 = vpack.c.b16 %v5832, %v5829
    %v5872 = vpack.c.b16 %v5833, %v5830
    %v5873 = vpack.c.b16 %v5834, %v5831
    %v5874 = vpack.c.b16 %v5838, %v5835
    %v5875 = vpack.c.b16 %v5839, %v5836
    %v5876 = vpack.c.b16 %v5840, %v5837
    %v5877 = vpack.c.b16 %v5844, %v5841
    %v5878 = vpack.c.b16 %v5845, %v5842
    %v5879 = vpack.c.b16 %v5846, %v5843
    %v5880 = vpack.c.b16 %v5850, %v5847
    %v5881 = vpack.c.b16 %v5851, %v5848
    %v5882 = vpack.c.b16 %v5852, %v5849
    %v5883 = vpack.c.b16 %v5856, %v5853
    %v5884 = vpack.c.b16 %v5857, %v5854
    %v5885 = vpack.c.b16 %v5858, %v5855
    %v5886 = vpack.c.b16 %v5862, %v5859
    %v5887 = vpack.c.b16 %v5863, %v5860
    %v5888 = vpack.c.b16 %v5864, %v5861
    %5913 = vmatprep.subr.bf16.mxu0 %v5866
    %5914 = vmatpush1.bf16.msra.mxu0 %v5865
    %5915 = vmatprep.subr.bf16.mxu0 %v5869
    %5916 = vmatpush1.bf16.msra.mxu0 %v5868
    %5917 = vmatprep.subr.bf16.mxu0 %v5872
    %5918 = vmatpush1.bf16.msra.mxu0 %v5871
    %5919 = vmatprep.subr.bf16.mxu0 %v5875
    %5920 = vmatpush1.bf16.msra.mxu0 %v5874
    %5921 = vmatprep.subr.bf16.mxu0 %v5878
    %5922 = vmatpush1.bf16.msra.mxu0 %v5877
    %5923 = vmatprep.subr.bf16.mxu0 %v5881
    %5924 = vmatpush1.bf16.msra.mxu0 %v5880
    %5925 = vmatprep.subr.bf16.mxu0 %v5884
    %5926 = vmatpush1.bf16.msra.mxu0 %v5883
    %5927 = vmatprep.subr.bf16.mxu0 %v5887
    %5928 = vmatpush1.bf16.msra.mxu0 %v5886
    %5929 = vmatprep.subr.bf16.mxu0 0
    %5930 = vmatpush1.bf16.msra.mxu0 0
    %5931 = vmatprep.subr.bf16.mxu0 0
    %5932 = vmatpush1.bf16.msra.mxu0 0
    %5933 = vmatprep.subr.bf16.mxu0 0
    %5934 = vmatpush1.bf16.msra.mxu0 0
    %5935 = vmatprep.subr.bf16.mxu0 0
    %5936 = vmatpush1.bf16.msra.mxu0 0
    %5937 = vmatprep.subr.bf16.mxu0 0
    %5938 = vmatpush1.bf16.msra.mxu0 0
    %5939 = vmatprep.subr.bf16.mxu0 0
    %5940 = vmatpush1.bf16.msra.mxu0 0
    %5941 = vmatprep.subr.bf16.mxu0 0
    %5942 = vmatpush1.bf16.msra.mxu0 0
    %5943 = vmatprep.subr.bf16.mxu0 0
    %5944 = vmatpush1.bf16.msra.mxu0 0
    %5945 = vmatprep.mubr.bf16.mxu0 0
    %5946 = vmatmul.mubr.bf16.gmra.mrb[0].mxu0 0
    %v5947 = vpop.f32.mrb[0].mxu0
    %v5948 = vadd.f32 0.0, %v5947
    %v5949 = vpop.f32.mrb[0].mxu0
    %v5950 = vadd.f32 0.0, %v5949
    %v5951 = vpop.f32.mrb[0].mxu0
    %v5952 = vpop.f32.mrb[0].mxu0
    %5953 = vdwg.mxu0
    %5954 = vmatprep.subr.bf16.mxu0 0
    %5955 = vmatpush1.bf16.msra.mxu0 %v5867
    %5956 = vmatprep.subr.bf16.mxu0 0
    %5957 = vmatpush1.bf16.msra.mxu0 %v5870
    %5958 = vmatprep.subr.bf16.mxu0 0
    %5959 = vmatpush1.bf16.msra.mxu0 %v5873
    %5960 = vmatprep.subr.bf16.mxu0 0
    %5961 = vmatpush1.bf16.msra.mxu0 %v5876
    %5962 = vmatprep.subr.bf16.mxu0 0
    %5963 = vmatpush1.bf16.msra.mxu0 %v5879
    %5964 = vmatprep.subr.bf16.mxu0 0
    %5965 = vmatpush1.bf16.msra.mxu0 %v5882
    %5966 = vmatprep.subr.bf16.mxu0 0
    %5967 = vmatpush1.bf16.msra.mxu0 %v5885
    %5968 = vmatprep.subr.bf16.mxu0 0
    %5969 = vmatpush1.bf16.msra.mxu0 %v5888
    %5970 = vmatprep.subr.bf16.mxu0 0
    %5971 = vmatpush1.bf16.msra.mxu0 0
    %5972 = vmatprep.subr.bf16.mxu0 0
    %5973 = vmatpush1.bf16.msra.mxu0 0
    %5974 = vmatprep.subr.bf16.mxu0 0
    %5975 = vmatpush1.bf16.msra.mxu0 0
    %5976 = vmatprep.subr.bf16.mxu0 0
    %5977 = vmatpush1.bf16.msra.mxu0 0
    %5978 = vmatprep.subr.bf16.mxu0 0
    %5979 = vmatpush1.bf16.msra.mxu0 0
    %5980 = vmatprep.subr.bf16.mxu0 0
    %5981 = vmatpush1.bf16.msra.mxu0 0
    %5982 = vmatprep.subr.bf16.mxu0 0
    %5983 = vmatpush1.bf16.msra.mxu0 0
    %5984 = vmatprep.subr.bf16.mxu0 0
    %5985 = vmatpush1.bf16.msra.mxu0 0
    %5986 = vmatprep.mubr.bf16.mxu0 0
    %5987 = vmatmul.mubr.bf16.gmra.mrb[0].mxu0 0
    %v5988 = vpop.f32.mrb[0].mxu0
    %v5989 = vadd.f32 0.0, %v5988
    %v5990 = vpop.f32.mrb[0].mxu0
    %v5991 = vpop.f32.mrb[0].mxu0
    %v5992 = vpop.f32.mrb[0].mxu0
    %5993 = vdwg.mxu0
    %v5994 = vadd.f32 %v5749, %v5948
    %v5995 = vxor.u32 %v5994, 2147483648
    %v5996 = vmul.f32 %v5995, 1.442695
    %v5997 = vpow.pop %v5996
    %v5998 = vadd.f32 %v5997, 1.0
    %v5999 = vrcp.pop %v5998
    %v6000 = vmul.f32 1.0, %v5999
    %v6001 = vadd.f32 %v5750, %v5950
    %v6002 = vxor.u32 %v6001, 2147483648
    %v6003 = vmul.f32 %v6002, 1.442695
    %v6004 = vpow.pop %v6003
    %v6005 = vadd.f32 %v6004, 1.0
    %v6006 = vrcp.pop %v6005
    %v6007 = vmul.f32 1.0, %v6006
    %v6008 = vadd.f32 %v5989, %v5747
    %v6009 = vmul.f32 %v6000, %v6008
    %v6010 = vadd.f32 %v5751, %v6009
    %v6011 = vtanh.pop %v6010
    %v6012 = vsub.f32 1.0, %v6007
    %v6013 = vmul.f32 %v6012, %v6011
    %v6014 = vmul.f32 %v6007, 0.0
    %v6015 = vadd.f32 %v6013, %v6014
    %6016 = vst [vmem:[#allocation4] sm:$0xff] %v6015
    %v6017 = vld [vmem:[%s789] sm:$0xff]
    %v6018 = vld [vmem:[%s789 + $0x8] sm:$0xff]
    %v6019 = vld [vmem:[%s789 + $0x10] sm:$0xff]
    %v6020 = vpack.c.bf16 %v6015, %v6015
    %v6021 = vld [vmem:[%s5752] sm:$0xff]
    %v6022 = vld [vmem:[%s5752 + $0x8] sm:$0xf]
    %v6023 = vld [vmem:[%s5752 + $0xc] sm:$0xff]
    %v6024 = vld [vmem:[%s5752 + $0x14] sm:$0xf]
    %v6025 = vld [vmem:[%s5752 + $0x18] sm:$0xff]
    %v6026 = vld [vmem:[%s5752 + $0x20] sm:$0xf]
    %v6027 = vld [vmem:[%s5752 + $0x24] sm:$0xff]
    %v6028 = vld [vmem:[%s5752 + $0x2c] sm:$0xf]
    %v6029 = vld [vmem:[%s5752 + $0x30] sm:$0xff]
    %v6030 = vld [vmem:[%s5752 + $0x38] sm:$0xf]
    %v6031 = vld [vmem:[%s5752 + $0x3c] sm:$0xff]
    %v6032 = vld [vmem:[%s5752 + $0x44] sm:$0xf]
    %v6033 = vld [vmem:[%s5752 + $0x48] sm:$0xff]
    %v6034 = vld [vmem:[%s5752 + $0x50] sm:$0xf]
    %v6035 = vld [vmem:[%s5752 + $0x54] sm:$0xff]
    %v6036 = vld [vmem:[%s5752 + $0x5c] sm:$0xf]
    %v6037 = vld [vmem:[%s5752 + $0x60] sm:$0xff]
    %v6038 = vld [vmem:[%s5752 + $0x68] sm:$0xf]
    %v6039 = vld [vmem:[%s5752 + $0x6c] sm:$0xff]
    %v6040 = vld [vmem:[%s5752 + $0x74] sm:$0xf]
    %v6041 = vld [vmem:[%s5752 + $0x78] sm:$0xff]
    %v6042 = vld [vmem:[%s5752 + $0x80] sm:$0xf]
    %v6043 = vld [vmem:[%s5752 + $0x84] sm:$0xff]
    %v6044 = vld [vmem:[%s5752 + $0x8c] sm:$0xf]
    %v6045 = vld [vmem:[%s5752 + $0x90] sm:$0xff]
    %v6046 = vld [vmem:[%s5752 + $0x98] sm:$0xf]
    %v6047 = vld [vmem:[%s5752 + $0x9c] sm:$0xff]
    %v6048 = vld [vmem:[%s5752 + $0xa4] sm:$0xf]
    %v6049 = vld [vmem:[%s5752 + $0xa8] sm:$0xff]
    %v6050 = vld [vmem:[%s5752 + $0xb0] sm:$0xf]
    %v6051 = vld [vmem:[%s5752 + $0xb4] sm:$0xff]
    %v6052 = vld [vmem:[%s5752 + $0xbc] sm:$0xf]
    %v6085 = vunpack.c.l.b16 %v6021
    %v6086 = vunpack.c.h.b16 %v6021
    %v6087 = vunpack.c.l.b16 %v6022
    %v6088 = vunpack.c.l.b16 %v6023
    %v6089 = vunpack.c.h.b16 %v6023
    %v6090 = vunpack.c.l.b16 %v6024
    %v6091 = vunpack.c.l.b16 %v6025
    %v6092 = vunpack.c.h.b16 %v6025
    %v6093 = vunpack.c.l.b16 %v6026
    %v6094 = vunpack.c.l.b16 %v6027
    %v6095 = vunpack.c.h.b16 %v6027
    %v6096 = vunpack.c.l.b16 %v6028
    %v6097 = vunpack.c.l.b16 %v6029
    %v6098 = vunpack.c.h.b16 %v6029
    %v6099 = vunpack.c.l.b16 %v6030
    %v6100 = vunpack.c.l.b16 %v6031
    %v6101 = vunpack.c.h.b16 %v6031
    %v6102 = vunpack.c.l.b16 %v6032
    %v6103 = vunpack.c.l.b16 %v6033
    %v6104 = vunpack.c.h.b16 %v6033
    %v6105 = vunpack.c.l.b16 %v6034
    %v6106 = vunpack.c.l.b16 %v6035
    %v6107 = vunpack.c.h.b16 %v6035
    %v6108 = vunpack.c.l.b16 %v6036
    %v6109 = vunpack.c.l.b16 %v6037
    %v6110 = vunpack.c.h.b16 %v6037
    %v6111 = vunpack.c.l.b16 %v6038
    %v6112 = vunpack.c.l.b16 %v6039
    %v6113 = vunpack.c.h.b16 %v6039
    %v6114 = vunpack.c.l.b16 %v6040
    %v6115 = vunpack.c.l.b16 %v6041
    %v6116 = vunpack.c.h.b16 %v6041
    %v6117 = vunpack.c.l.b16 %v6042
    %v6118 = vunpack.c.l.b16 %v6043
    %v6119 = vunpack.c.h.b16 %v6043
    %v6120 = vunpack.c.l.b16 %v6044
    %v6121 = vunpack.c.l.b16 %v6045
    %v6122 = vunpack.c.h.b16 %v6045
    %v6123 = vunpack.c.l.b16 %v6046
    %v6124 = vunpack.c.l.b16 %v6047
    %v6125 = vunpack.c.h.b16 %v6047
    %v6126 = vunpack.c.l.b16 %v6048
    %v6127 = vunpack.c.l.b16 %v6049
    %v6128 = vunpack.c.h.b16 %v6049
    %v6129 = vunpack.c.l.b16 %v6050
    %v6130 = vunpack.c.l.b16 %v6051
    %v6131 = vunpack.c.h.b16 %v6051
    %v6132 = vunpack.c.l.b16 %v6052
    %v6133 = vpack.c.b16 %v6088, %v6085
    %v6134 = vpack.c.b16 %v6089, %v6086
    %v6135 = vpack.c.b16 %v6090, %v6087
    %v6136 = vpack.c.b16 %v6094, %v6091
    %v6137 = vpack.c.b16 %v6095, %v6092
    %v6138 = vpack.c.b16 %v6096, %v6093
    %v6139 = vpack.c.b16 %v6100, %v6097
    %v6140 = vpack.c.b16 %v6101, %v6098
    %v6141 = vpack.c.b16 %v6102, %v6099
    %v6142 = vpack.c.b16 %v6106, %v6103
    %v6143 = vpack.c.b16 %v6107, %v6104
    %v6144 = vpack.c.b16 %v6108, %v6105
    %v6145 = vpack.c.b16 %v6112, %v6109
    %v6146 = vpack.c.b16 %v6113, %v6110
    %v6147 = vpack.c.b16 %v6114, %v6111
    %v6148 = vpack.c.b16 %v6118, %v6115
    %v6149 = vpack.c.b16 %v6119, %v6116
    %v6150 = vpack.c.b16 %v6120, %v6117
    %v6151 = vpack.c.b16 %v6124, %v6121
    %v6152 = vpack.c.b16 %v6125, %v6122
    %v6153 = vpack.c.b16 %v6126, %v6123
    %v6154 = vpack.c.b16 %v6130, %v6127
    %v6155 = vpack.c.b16 %v6131, %v6128
    %v6156 = vpack.c.b16 %v6132, %v6129
    %6181 = vmatprep.subr.bf16.mxu0 %v6134
    %6182 = vmatpush1.bf16.msra.mxu0 %v6133
    %6183 = vmatprep.subr.bf16.mxu0 %v6137
    %6184 = vmatpush1.bf16.msra.mxu0 %v6136
    %6185 = vmatprep.subr.bf16.mxu0 %v6140
    %6186 = vmatpush1.bf16.msra.mxu0 %v6139
    %6187 = vmatprep.subr.bf16.mxu0 %v6143
    %6188 = vmatpush1.bf16.msra.mxu0 %v6142
    %6189 = vmatprep.subr.bf16.mxu0 %v6146
    %6190 = vmatpush1.bf16.msra.mxu0 %v6145
    %6191 = vmatprep.subr.bf16.mxu0 %v6149
    %6192 = vmatpush1.bf16.msra.mxu0 %v6148
    %6193 = vmatprep.subr.bf16.mxu0 %v6152
    %6194 = vmatpush1.bf16.msra.mxu0 %v6151
    %6195 = vmatprep.subr.bf16.mxu0 %v6155
    %6196 = vmatpush1.bf16.msra.mxu0 %v6154
    %6197 = vmatprep.subr.bf16.mxu0 0
    %6198 = vmatpush1.bf16.msra.mxu0 0
    %6199 = vmatprep.subr.bf16.mxu0 0
    %6200 = vmatpush1.bf16.msra.mxu0 0
    %6201 = vmatprep.subr.bf16.mxu0 0
    %6202 = vmatpush1.bf16.msra.mxu0 0
    %6203 = vmatprep.subr.bf16.mxu0 0
    %6204 = vmatpush1.bf16.msra.mxu0 0
    %6205 = vmatprep.subr.bf16.mxu0 0
    %6206 = vmatpush1.bf16.msra.mxu0 0
    %6207 = vmatprep.subr.bf16.mxu0 0
    %6208 = vmatpush1.bf16.msra.mxu0 0
    %6209 = vmatprep.subr.bf16.mxu0 0
    %6210 = vmatpush1.bf16.msra.mxu0 0
    %6211 = vmatprep.subr.bf16.mxu0 0
    %6212 = vmatpush1.bf16.msra.mxu0 0
    %6213 = vmatprep.mubr.bf16.mxu0 0
    %6214 = vmatmul.mubr.bf16.gmra.mrb[0].mxu0 %v6020
    %v6215 = vpop.f32.mrb[0].mxu0
    %v6216 = vadd.f32 0.0, %v6215
    %v6217 = vpop.f32.mrb[0].mxu0
    %v6218 = vadd.f32 0.0, %v6217
    %v6219 = vpop.f32.mrb[0].mxu0
    %v6220 = vpop.f32.mrb[0].mxu0
    %6221 = vdwg.mxu0
    %6222 = vmatprep.subr.bf16.mxu0 0
    %6223 = vmatpush1.bf16.msra.mxu0 %v6135
    %6224 = vmatprep.subr.bf16.mxu0 0
    %6225 = vmatpush1.bf16.msra.mxu0 %v6138
    %6226 = vmatprep.subr.bf16.mxu0 0
    %6227 = vmatpush1.bf16.msra.mxu0 %v6141
    %6228 = vmatprep.subr.bf16.mxu0 0
    %6229 = vmatpush1.bf16.msra.mxu0 %v6144
    %6230 = vmatprep.subr.bf16.mxu0 0
    %6231 = vmatpush1.bf16.msra.mxu0 %v6147
    %6232 = vmatprep.subr.bf16.mxu0 0
    %6233 = vmatpush1.bf16.msra.mxu0 %v6150
    %6234 = vmatprep.subr.bf16.mxu0 0
    %6235 = vmatpush1.bf16.msra.mxu0 %v6153
    %6236 = vmatprep.subr.bf16.mxu0 0
    %6237 = vmatpush1.bf16.msra.mxu0 %v6156
    %6238 = vmatprep.subr.bf16.mxu0 0
    %6239 = vmatpush1.bf16.msra.mxu0 0
    %6240 = vmatprep.subr.bf16.mxu0 0
    %6241 = vmatpush1.bf16.msra.mxu0 0
    %6242 = vmatprep.subr.bf16.mxu0 0
    %6243 = vmatpush1.bf16.msra.mxu0 0
    %6244 = vmatprep.subr.bf16.mxu0 0
    %6245 = vmatpush1.bf16.msra.mxu0 0
    %6246 = vmatprep.subr.bf16.mxu0 0
    %6247 = vmatpush1.bf16.msra.mxu0 0
    %6248 = vmatprep.subr.bf16.mxu0 0
    %6249 = vmatpush1.bf16.msra.mxu0 0
    %6250 = vmatprep.subr.bf16.mxu0 0
    %6251 = vmatpush1.bf16.msra.mxu0 0
    %6252 = vmatprep.subr.bf16.mxu0 0
    %6253 = vmatpush1.bf16.msra.mxu0 0
    %6254 = vmatprep.mubr.bf16.mxu0 0
    %6255 = vmatmul.mubr.bf16.gmra.mrb[0].mxu0 %v6020
    %v6256 = vpop.f32.mrb[0].mxu0
    %v6257 = vadd.f32 0.0, %v6256
    %v6258 = vpop.f32.mrb[0].mxu0
    %v6259 = vpop.f32.mrb[0].mxu0
    %v6260 = vpop.f32.mrb[0].mxu0
    %6261 = vdwg.mxu0
    %v6262 = vadd.f32 %v6017, %v6216
    %v6263 = vxor.u32 %v6262, 2147483648
    %v6264 = vmul.f32 %v6263, 1.442695
    %v6265 = vpow.pop %v6264
    %v6266 = vadd.f32 %v6265, 1.0
    %v6267 = vrcp.pop %v6266
    %v6268 = vmul.f32 1.0, %v6267
    %v6269 = vadd.f32 %v6018, %v6218
    %v6270 = vxor.u32 %v6269, 2147483648
    %v6271 = vmul.f32 %v6270, 1.442695
    %v6272 = vpow.pop %v6271
    %v6273 = vadd.f32 %v6272, 1.0
    %v6274 = vrcp.pop %v6273
    %v6275 = vmul.f32 1.0, %v6274
    %v6276 = vadd.f32 %v6257, %v5747
    %v6277 = vmul.f32 %v6268, %v6276
    %v6278 = vadd.f32 %v6019, %v6277
    %v6279 = vtanh.pop %v6278
    %v6280 = vsub.f32 1.0, %v6275
    %v6281 = vmul.f32 %v6280, %v6279
    %v6282 = vmul.f32 %v6275, %v6015
    %v6283 = vadd.f32 %v6281, %v6282
    %6284 = vst [vmem:[%s1057] sm:$0xff] %v6283
    %v6285 = vld [vmem:[%s1061] sm:$0xff]
    %v6286 = vld [vmem:[%s1061 + $0x8] sm:$0xff]
    %v6287 = vld [vmem:[%s1061 + $0x10] sm:$0xff]
    %v6288 = vpack.c.bf16 %v6283, %v6283
    %v6289 = vld [vmem:[%s5752] sm:$0xff]
    %v6290 = vld [vmem:[%s5752 + $0x8] sm:$0xf]
    %v6291 = vld [vmem:[%s5752 + $0xc] sm:$0xff]
    %v6292 = vld [vmem:[%s5752 + $0x14] sm:$0xf]
    %v6293 = vld [vmem:[%s5752 + $0x18] sm:$0xff]
    %v6294 = vld [vmem:[%s5752 + $0x20] sm:$0xf]
    %v6295 = vld [vmem:[%s5752 + $0x24] sm:$0xff]
    %v6296 = vld [vmem:[%s5752 + $0x2c] sm:$0xf]
    %v6297 = vld [vmem:[%s5752 + $0x30] sm:$0xff]
    %v6298 = vld [vmem:[%s5752 + $0x38] sm:$0xf]
    %v6299 = vld [vmem:[%s5752 + $0x3c] sm:$0xff]
    %v6300 = vld [vmem:[%s5752 + $0x44] sm:$0xf]
    %v6301 = vld [vmem:[%s5752 + $0x48] sm:$0xff]
    %v6302 = vld [vmem:[%s5752 + $0x50] sm:$0xf]
    %v6303 = vld [vmem:[%s5752 + $0x54] sm:$0xff]
    %v6304 = vld [vmem:[%s5752 + $0x5c] sm:$0xf]
    %v6305 = vld [vmem:[%s5752 + $0x60] sm:$0xff]
    %v6306 = vld [vmem:[%s5752 + $0x68] sm:$0xf]
    %v6307 = vld [vmem:[%s5752 + $0x6c] sm:$0xff]
    %v6308 = vld [vmem:[%s5752 + $0x74] sm:$0xf]
    %v6309 = vld [vmem:[%s5752 + $0x78] sm:$0xff]
    %v6310 = vld [vmem:[%s5752 + $0x80] sm:$0xf]
    %v6311 = vld [vmem:[%s5752 + $0x84] sm:$0xff]
    %v6312 = vld [vmem:[%s5752 + $0x8c] sm:$0xf]
    %v6313 = vld [vmem:[%s5752 + $0x90] sm:$0xff]
    %v6314 = vld [vmem:[%s5752 + $0x98] sm:$0xf]
    %v6315 = vld [vmem:[%s5752 + $0x9c] sm:$0xff]
    %v6316 = vld [vmem:[%s5752 + $0xa4] sm:$0xf]
    %v6317 = vld [vmem:[%s5752 + $0xa8] sm:$0xff]
    %v6318 = vld [vmem:[%s5752 + $0xb0] sm:$0xf]
    %v6319 = vld [vmem:[%s5752 + $0xb4] sm:$0xff]
    %v6320 = vld [vmem:[%s5752 + $0xbc] sm:$0xf]
    %v6353 = vunpack.c.l.b16 %v6289
    %v6354 = vunpack.c.h.b16 %v6289
    %v6355 = vunpack.c.l.b16 %v6290
    %v6356 = vunpack.c.l.b16 %v6291
    %v6357 = vunpack.c.h.b16 %v6291
    %v6358 = vunpack.c.l.b16 %v6292
    %v6359 = vunpack.c.l.b16 %v6293
    %v6360 = vunpack.c.h.b16 %v6293
    %v6361 = vunpack.c.l.b16 %v6294
    %v6362 = vunpack.c.l.b16 %v6295
    %v6363 = vunpack.c.h.b16 %v6295
    %v6364 = vunpack.c.l.b16 %v6296
    %v6365 = vunpack.c.l.b16 %v6297
    %v6366 = vunpack.c.h.b16 %v6297
    %v6367 = vunpack.c.l.b16 %v6298
    %v6368 = vunpack.c.l.b16 %v6299
    %v6369 = vunpack.c.h.b16 %v6299
    %v6370 = vunpack.c.l.b16 %v6300
    %v6371 = vunpack.c.l.b16 %v6301
    %v6372 = vunpack.c.h.b16 %v6301
    %v6373 = vunpack.c.l.b16 %v6302
    %v6374 = vunpack.c.l.b16 %v6303
    %v6375 = vunpack.c.h.b16 %v6303
    %v6376 = vunpack.c.l.b16 %v6304
    %v6377 = vunpack.c.l.b16 %v6305
    %v6378 = vunpack.c.h.b16 %v6305
    %v6379 = vunpack.c.l.b16 %v6306
    %v6380 = vunpack.c.l.b16 %v6307
    %v6381 = vunpack.c.h.b16 %v6307
    %v6382 = vunpack.c.l.b16 %v6308
    %v6383 = vunpack.c.l.b16 %v6309
    %v6384 = vunpack.c.h.b16 %v6309
    %v6385 = vunpack.c.l.b16 %v6310
    %v6386 = vunpack.c.l.b16 %v6311
    %v6387 = vunpack.c.h.b16 %v6311
    %v6388 = vunpack.c.l.b16 %v6312
    %v6389 = vunpack.c.l.b16 %v6313
    %v6390 = vunpack.c.h.b16 %v6313
    %v6391 = vunpack.c.l.b16 %v6314
    %v6392 = vunpack.c.l.b16 %v6315
    %v6393 = vunpack.c.h.b16 %v6315
    %v6394 = vunpack.c.l.b16 %v6316
    %v6395 = vunpack.c.l.b16 %v6317
    %v6396 = vunpack.c.h.b16 %v6317
    %v6397 = vunpack.c.l.b16 %v6318
    %v6398 = vunpack.c.l.b16 %v6319
    %v6399 = vunpack.c.h.b16 %v6319
    %v6400 = vunpack.c.l.b16 %v6320
    %v6401 = vpack.c.b16 %v6356, %v6353
    %v6402 = vpack.c.b16 %v6357, %v6354
    %v6403 = vpack.c.b16 %v6358, %v6355
    %v6404 = vpack.c.b16 %v6362, %v6359
    %v6405 = vpack.c.b16 %v6363, %v6360
    %v6406 = vpack.c.b16 %v6364, %v6361
    %v6407 = vpack.c.b16 %v6368, %v6365
    %v6408 = vpack.c.b16 %v6369, %v6366
    %v6409 = vpack.c.b16 %v6370, %v6367
    %v6410 = vpack.c.b16 %v6374, %v6371
    %v6411 = vpack.c.b16 %v6375, %v6372
    %v6412 = vpack.c.b16 %v6376, %v6373
    %v6413 = vpack.c.b16 %v6380, %v6377
    %v6414 = vpack.c.b16 %v6381, %v6378
    %v6415 = vpack.c.b16 %v6382, %v6379
    %v6416 = vpack.c.b16 %v6386, %v6383
    %v6417 = vpack.c.b16 %v6387, %v6384
    %v6418 = vpack.c.b16 %v6388, %v6385
    %v6419 = vpack.c.b16 %v6392, %v6389
    %v6420 = vpack.c.b16 %v6393, %v6390
    %v6421 = vpack.c.b16 %v6394, %v6391
    %v6422 = vpack.c.b16 %v6398, %v6395
    %v6423 = vpack.c.b16 %v6399, %v6396
    %v6424 = vpack.c.b16 %v6400, %v6397
    %6449 = vmatprep.subr.bf16.mxu0 %v6402
    %6450 = vmatpush1.bf16.msra.mxu0 %v6401
    %6451 = vmatprep.subr.bf16.mxu0 %v6405
    %6452 = vmatpush1.bf16.msra.mxu0 %v6404
    %6453 = vmatprep.subr.bf16.mxu0 %v6408
    %6454 = vmatpush1.bf16.msra.mxu0 %v6407
    %6455 = vmatprep.subr.bf16.mxu0 %v6411
    %6456 = vmatpush1.bf16.msra.mxu0 %v6410
    %6457 = vmatprep.subr.bf16.mxu0 %v6414
    %6458 = vmatpush1.bf16.msra.mxu0 %v6413
    %6459 = vmatprep.subr.bf16.mxu0 %v6417
    %6460 = vmatpush1.bf16.msra.mxu0 %v6416
    %6461 = vmatprep.subr.bf16.mxu0 %v6420
    %6462 = vmatpush1.bf16.msra.mxu0 %v6419
    %6463 = vmatprep.subr.bf16.mxu0 %v6423
    %6464 = vmatpush1.bf16.msra.mxu0 %v6422
    %6465 = vmatprep.subr.bf16.mxu0 0
    %6466 = vmatpush1.bf16.msra.mxu0 0
    %6467 = vmatprep.subr.bf16.mxu0 0
    %6468 = vmatpush1.bf16.msra.mxu0 0
    %6469 = vmatprep.subr.bf16.mxu0 0
    %6470 = vmatpush1.bf16.msra.mxu0 0
    %6471 = vmatprep.subr.bf16.mxu0 0
    %6472 = vmatpush1.bf16.msra.mxu0 0
    %6473 = vmatprep.subr.bf16.mxu0 0
    %6474 = vmatpush1.bf16.msra.mxu0 0
    %6475 = vmatprep.subr.bf16.mxu0 0
    %6476 = vmatpush1.bf16.msra.mxu0 0
    %6477 = vmatprep.subr.bf16.mxu0 0
    %6478 = vmatpush1.bf16.msra.mxu0 0
    %6479 = vmatprep.subr.bf16.mxu0 0
    %6480 = vmatpush1.bf16.msra.mxu0 0
    %6481 = vmatprep.mubr.bf16.mxu0 0
    %6482 = vmatmul.mubr.bf16.gmra.mrb[0].mxu0 %v6288
    %v6483 = vpop.f32.mrb[0].mxu0
    %v6484 = vadd.f32 0.0, %v6483
    %v6485 = vpop.f32.mrb[0].mxu0
    %v6486 = vadd.f32 0.0, %v6485
    %v6487 = vpop.f32.mrb[0].mxu0
    %v6488 = vpop.f32.mrb[0].mxu0
    %6489 = vdwg.mxu0
    %6490 = vmatprep.subr.bf16.mxu0 0
    %6491 = vmatpush1.bf16.msra.mxu0 %v6403
    %6492 = vmatprep.subr.bf16.mxu0 0
    %6493 = vmatpush1.bf16.msra.mxu0 %v6406
    %6494 = vmatprep.subr.bf16.mxu0 0
    %6495 = vmatpush1.bf16.msra.mxu0 %v6409
    %6496 = vmatprep.subr.bf16.mxu0 0
    %6497 = vmatpush1.bf16.msra.mxu0 %v6412
    %6498 = vmatprep.subr.bf16.mxu0 0
    %6499 = vmatpush1.bf16.msra.mxu0 %v6415
    %6500 = vmatprep.subr.bf16.mxu0 0
    %6501 = vmatpush1.bf16.msra.mxu0 %v6418
    %6502 = vmatprep.subr.bf16.mxu0 0
    %6503 = vmatpush1.bf16.msra.mxu0 %v6421
    %6504 = vmatprep.subr.bf16.mxu0 0
    %6505 = vmatpush1.bf16.msra.mxu0 %v6424
    %6506 = vmatprep.subr.bf16.mxu0 0
    %6507 = vmatpush1.bf16.msra.mxu0 0
    %6508 = vmatprep.subr.bf16.mxu0 0
    %6509 = vmatpush1.bf16.msra.mxu0 0
    %6510 = vmatprep.subr.bf16.mxu0 0
    %6511 = vmatpush1.bf16.msra.mxu0 0
    %6512 = vmatprep.subr.bf16.mxu0 0
    %6513 = vmatpush1.bf16.msra.mxu0 0
    %6514 = vmatprep.subr.bf16.mxu0 0
    %6515 = vmatpush1.bf16.msra.mxu0 0
    %6516 = vmatprep.subr.bf16.mxu0 0
    %6517 = vmatpush1.bf16.msra.mxu0 0
    %6518 = vmatprep.subr.bf16.mxu0 0
    %6519 = vmatpush1.bf16.msra.mxu0 0
    %6520 = vmatprep.subr.bf16.mxu0 0
    %6521 = vmatpush1.bf16.msra.mxu0 0
    %6522 = vmatprep.mubr.bf16.mxu0 0
    %6523 = vmatmul.mubr.bf16.gmra.mrb[0].mxu0 %v6288
    %v6524 = vpop.f32.mrb[0].mxu0
    %v6525 = vadd.f32 0.0, %v6524
    %v6526 = vpop.f32.mrb[0].mxu0
    %v6527 = vpop.f32.mrb[0].mxu0
    %v6528 = vpop.f32.mrb[0].mxu0
    %6529 = vdwg.mxu0
    %v6530 = vadd.f32 %v6285, %v6484
    %v6531 = vxor.u32 %v6530, 2147483648
    %v6532 = vmul.f32 %v6531, 1.442695
    %v6533 = vpow.pop %v6532
    %v6534 = vadd.f32 %v6533, 1.0
    %v6535 = vrcp.pop %v6534
    %v6536 = vmul.f32 1.0, %v6535
    %v6537 = vadd.f32 %v6286, %v6486
    %v6538 = vxor.u32 %v6537, 2147483648
    %v6539 = vmul.f32 %v6538, 1.442695
    %v6540 = vpow.pop %v6539
    %v6541 = vadd.f32 %v6540, 1.0
    %v6542 = vrcp.pop %v6541
    %v6543 = vmul.f32 1.0, %v6542
    %v6544 = vadd.f32 %v6525, %v5747
    %v6545 = vmul.f32 %v6536, %v6544
    %v6546 = vadd.f32 %v6287, %v6545
    %v6547 = vtanh.pop %v6546
    %v6548 = vsub.f32 1.0, %v6543
    %v6549 = vmul.f32 %v6548, %v6547
    %v6550 = vmul.f32 %v6543, %v6283
    %v6551 = vadd.f32 %v6549, %v6550
    %6552 = vst [vmem:[%s1329] sm:$0xff] %v6551
    %v6553 = vld [vmem:[%s1333] sm:$0xff]
    %v6554 = vld [vmem:[%s1333 + $0x8] sm:$0xff]
    %v6555 = vld [vmem:[%s1333 + $0x10] sm:$0xff]
    %v6556 = vpack.c.bf16 %v6551, %v6551
    %v6557 = vld [vmem:[%s5752] sm:$0xff]
    %v6558 = vld [vmem:[%s5752 + $0x8] sm:$0xf]
    %v6559 = vld [vmem:[%s5752 + $0xc] sm:$0xff]
    %v6560 = vld [vmem:[%s5752 + $0x14] sm:$0xf]
    %v6561 = vld [vmem:[%s5752 + $0x18] sm:$0xff]
    %v6562 = vld [vmem:[%s5752 + $0x20] sm:$0xf]
    %v6563 = vld [vmem:[%s5752 + $0x24] sm:$0xff]
    %v6564 = vld [vmem:[%s5752 + $0x2c] sm:$0xf]
    %v6565 = vld [vmem:[%s5752 + $0x30] sm:$0xff]
    %v6566 = vld [vmem:[%s5752 + $0x38] sm:$0xf]
    %v6567 = vld [vmem:[%s5752 + $0x3c] sm:$0xff]
    %v6568 = vld [vmem:[%s5752 + $0x44] sm:$0xf]
    %v6569 = vld [vmem:[%s5752 + $0x48] sm:$0xff]
    %v6570 = vld [vmem:[%s5752 + $0x50] sm:$0xf]
    %v6571 = vld [vmem:[%s5752 + $0x54] sm:$0xff]
    %v6572 = vld [vmem:[%s5752 + $0x5c] sm:$0xf]
    %v6573 = vld [vmem:[%s5752 + $0x60] sm:$0xff]
    %v6574 = vld [vmem:[%s5752 + $0x68] sm:$0xf]
    %v6575 = vld [vmem:[%s5752 + $0x6c] sm:$0xff]
    %v6576 = vld [vmem:[%s5752 + $0x74] sm:$0xf]
    %v6577 = vld [vmem:[%s5752 + $0x78] sm:$0xff]
    %v6578 = vld [vmem:[%s5752 + $0x80] sm:$0xf]
    %v6579 = vld [vmem:[%s5752 + $0x84] sm:$0xff]
    %v6580 = vld [vmem:[%s5752 + $0x8c] sm:$0xf]
    %v6581 = vld [vmem:[%s5752 + $0x90] sm:$0xff]
    %v6582 = vld [vmem:[%s5752 + $0x98] sm:$0xf]
    %v6583 = vld [vmem:[%s5752 + $0x9c] sm:$0xff]
    %v6584 = vld [vmem:[%s5752 + $0xa4] sm:$0xf]
    %v6585 = vld [vmem:[%s5752 + $0xa8] sm:$0xff]
    %v6586 = vld [vmem:[%s5752 + $0xb0] sm:$0xf]
    %v6587 = vld [vmem:[%s5752 + $0xb4] sm:$0xff]
    %v6588 = vld [vmem:[%s5752 + $0xbc] sm:$0xf]
    %v6621 = vunpack.c.l.b16 %v6557
    %v6622 = vunpack.c.h.b16 %v6557
    %v6623 = vunpack.c.l.b16 %v6558
    %v6624 = vunpack.c.l.b16 %v6559
    %v6625 = vunpack.c.h.b16 %v6559
    %v6626 = vunpack.c.l.b16 %v6560
    %v6627 = vunpack.c.l.b16 %v6561
    %v6628 = vunpack.c.h.b16 %v6561
    %v6629 = vunpack.c.l.b16 %v6562
    %v6630 = vunpack.c.l.b16 %v6563
    %v6631 = vunpack.c.h.b16 %v6563
    %v6632 = vunpack.c.l.b16 %v6564
    %v6633 = vunpack.c.l.b16 %v6565
    %v6634 = vunpack.c.h.b16 %v6565
    %v6635 = vunpack.c.l.b16 %v6566
    %v6636 = vunpack.c.l.b16 %v6567
    %v6637 = vunpack.c.h.b16 %v6567
    %v6638 = vunpack.c.l.b16 %v6568
    %v6639 = vunpack.c.l.b16 %v6569
    %v6640 = vunpack.c.h.b16 %v6569
    %v6641 = vunpack.c.l.b16 %v6570
    %v6642 = vunpack.c.l.b16 %v6571
    %v6643 = vunpack.c.h.b16 %v6571
    %v6644 = vunpack.c.l.b16 %v6572
    %v6645 = vunpack.c.l.b16 %v6573
    %v6646 = vunpack.c.h.b16 %v6573
    %v6647 = vunpack.c.l.b16 %v6574
    %v6648 = vunpack.c.l.b16 %v6575
    %v6649 = vunpack.c.h.b16 %v6575
    %v6650 = vunpack.c.l.b16 %v6576
    %v6651 = vunpack.c.l.b16 %v6577
    %v6652 = vunpack.c.h.b16 %v6577
    %v6653 = vunpack.c.l.b16 %v6578
    %v6654 = vunpack.c.l.b16 %v6579
    %v6655 = vunpack.c.h.b16 %v6579
    %v6656 = vunpack.c.l.b16 %v6580
    %v6657 = vunpack.c.l.b16 %v6581
    %v6658 = vunpack.c.h.b16 %v6581
    %v6659 = vunpack.c.l.b16 %v6582
    %v6660 = vunpack.c.l.b16 %v6583
    %v6661 = vunpack.c.h.b16 %v6583
    %v6662 = vunpack.c.l.b16 %v6584
    %v6663 = vunpack.c.l.b16 %v6585
    %v6664 = vunpack.c.h.b16 %v6585
    %v6665 = vunpack.c.l.b16 %v6586
    %v6666 = vunpack.c.l.b16 %v6587
    %v6667 = vunpack.c.h.b16 %v6587
    %v6668 = vunpack.c.l.b16 %v6588
    %v6669 = vpack.c.b16 %v6624, %v6621
    %v6670 = vpack.c.b16 %v6625, %v6622
    %v6671 = vpack.c.b16 %v6626, %v6623
    %v6672 = vpack.c.b16 %v6630, %v6627
    %v6673 = vpack.c.b16 %v6631, %v6628
    %v6674 = vpack.c.b16 %v6632, %v6629
    %v6675 = vpack.c.b16 %v6636, %v6633
    %v6676 = vpack.c.b16 %v6637, %v6634
    %v6677 = vpack.c.b16 %v6638, %v6635
    %v6678 = vpack.c.b16 %v6642, %v6639
    %v6679 = vpack.c.b16 %v6643, %v6640
    %v6680 = vpack.c.b16 %v6644, %v6641
    %v6681 = vpack.c.b16 %v6648, %v6645
    %v6682 = vpack.c.b16 %v6649, %v6646
    %v6683 = vpack.c.b16 %v6650, %v6647
    %v6684 = vpack.c.b16 %v6654, %v6651
    %v6685 = vpack.c.b16 %v6655, %v6652
    %v6686 = vpack.c.b16 %v6656, %v6653
    %v6687 = vpack.c.b16 %v6660, %v6657
    %v6688 = vpack.c.b16 %v6661, %v6658
    %v6689 = vpack.c.b16 %v6662, %v6659
    %v6690 = vpack.c.b16 %v6666, %v6663
    %v6691 = vpack.c.b16 %v6667, %v6664
    %v6692 = vpack.c.b16 %v6668, %v6665
    %6717 = vmatprep.subr.bf16.mxu0 %v6670
    %6718 = vmatpush1.bf16.msra.mxu0 %v6669
    %6719 = vmatprep.subr.bf16.mxu0 %v6673
    %6720 = vmatpush1.bf16.msra.mxu0 %v6672
    %6721 = vmatprep.subr.bf16.mxu0 %v6676
    %6722 = vmatpush1.bf16.msra.mxu0 %v6675
    %6723 = vmatprep.subr.bf16.mxu0 %v6679
    %6724 = vmatpush1.bf16.msra.mxu0 %v6678
    %6725 = vmatprep.subr.bf16.mxu0 %v6682
    %6726 = vmatpush1.bf16.msra.mxu0 %v6681
    %6727 = vmatprep.subr.bf16.mxu0 %v6685
    %6728 = vmatpush1.bf16.msra.mxu0 %v6684
    %6729 = vmatprep.subr.bf16.mxu0 %v6688
    %6730 = vmatpush1.bf16.msra.mxu0 %v6687
    %6731 = vmatprep.subr.bf16.mxu0 %v6691
    %6732 = vmatpush1.bf16.msra.mxu0 %v6690
    %6733 = vmatprep.subr.bf16.mxu0 0
    %6734 = vmatpush1.bf16.msra.mxu0 0
    %6735 = vmatprep.subr.bf16.mxu0 0
    %6736 = vmatpush1.bf16.msra.mxu0 0
    %6737 = vmatprep.subr.bf16.mxu0 0
    %6738 = vmatpush1.bf16.msra.mxu0 0
    %6739 = vmatprep.subr.bf16.mxu0 0
    %6740 = vmatpush1.bf16.msra.mxu0 0
    %6741 = vmatprep.subr.bf16.mxu0 0
    %6742 = vmatpush1.bf16.msra.mxu0 0
    %6743 = vmatprep.subr.bf16.mxu0 0
    %6744 = vmatpush1.bf16.msra.mxu0 0
    %6745 = vmatprep.subr.bf16.mxu0 0
    %6746 = vmatpush1.bf16.msra.mxu0 0
    %6747 = vmatprep.subr.bf16.mxu0 0
    %6748 = vmatpush1.bf16.msra.mxu0 0
    %6749 = vmatprep.mubr.bf16.mxu0 0
    %6750 = vmatmul.mubr.bf16.gmra.mrb[0].mxu0 %v6556
    %v6751 = vpop.f32.mrb[0].mxu0
    %v6752 = vadd.f32 0.0, %v6751
    %v6753 = vpop.f32.mrb[0].mxu0
    %v6754 = vadd.f32 0.0, %v6753
    %v6755 = vpop.f32.mrb[0].mxu0
    %v6756 = vpop.f32.mrb[0].mxu0
    %6757 = vdwg.mxu0
    %6758 = vmatprep.subr.bf16.mxu0 0
    %6759 = vmatpush1.bf16.msra.mxu0 %v6671
    %6760 = vmatprep.subr.bf16.mxu0 0
    %6761 = vmatpush1.bf16.msra.mxu0 %v6674
    %6762 = vmatprep.subr.bf16.mxu0 0
    %6763 = vmatpush1.bf16.msra.mxu0 %v6677
    %6764 = vmatprep.subr.bf16.mxu0 0
    %6765 = vmatpush1.bf16.msra.mxu0 %v6680
    %6766 = vmatprep.subr.bf16.mxu0 0
    %6767 = vmatpush1.bf16.msra.mxu0 %v6683
    %6768 = vmatprep.subr.bf16.mxu0 0
    %6769 = vmatpush1.bf16.msra.mxu0 %v6686
    %6770 = vmatprep.subr.bf16.mxu0 0
    %6771 = vmatpush1.bf16.msra.mxu0 %v6689
    %6772 = vmatprep.subr.bf16.mxu0 0
    %6773 = vmatpush1.bf16.msra.mxu0 %v6692
    %6774 = vmatprep.subr.bf16.mxu0 0
    %6775 = vmatpush1.bf16.msra.mxu0 0
    %6776 = vmatprep.subr.bf16.mxu0 0
    %6777 = vmatpush1.bf16.msra.mxu0 0
    %6778 = vmatprep.subr.bf16.mxu0 0
    %6779 = vmatpush1.bf16.msra.mxu0 0
    %6780 = vmatprep.subr.bf16.mxu0 0
    %6781 = vmatpush1.bf16.msra.mxu0 0
    %6782 = vmatprep.subr.bf16.mxu0 0
    %6783 = vmatpush1.bf16.msra.mxu0 0
    %6784 = vmatprep.subr.bf16.mxu0 0
    %6785 = vmatpush1.bf16.msra.mxu0 0
    %6786 = vmatprep.subr.bf16.mxu0 0
    %6787 = vmatpush1.bf16.msra.mxu0 0
    %6788 = vmatprep.subr.bf16.mxu0 0
    %6789 = vmatpush1.bf16.msra.mxu0 0
    %6790 = vmatprep.mubr.bf16.mxu0 0
    %6791 = vmatmul.mubr.bf16.gmra.mrb[0].mxu0 %v6556
    %v6792 = vpop.f32.mrb[0].mxu0
    %v6793 = vadd.f32 0.0, %v6792
    %v6794 = vpop.f32.mrb[0].mxu0
    %v6795 = vpop.f32.mrb[0].mxu0
    %v6796 = vpop.f32.mrb[0].mxu0
    %6797 = vdwg.mxu0
    %v6798 = vadd.f32 %v6553, %v6752
    %v6799 = vxor.u32 %v6798, 2147483648
    %v6800 = vmul.f32 %v6799, 1.442695
    %v6801 = vpow.pop %v6800
    %v6802 = vadd.f32 %v6801, 1.0
    %v6803 = vrcp.pop %v6802
    %v6804 = vmul.f32 1.0, %v6803
    %v6805 = vadd.f32 %v6554, %v6754
    %v6806 = vxor.u32 %v6805, 2147483648
    %v6807 = vmul.f32 %v6806, 1.442695
    %v6808 = vpow.pop %v6807
    %v6809 = vadd.f32 %v6808, 1.0
    %v6810 = vrcp.pop %v6809
    %v6811 = vmul.f32 1.0, %v6810
    %v6812 = vadd.f32 %v6793, %v5747
    %v6813 = vmul.f32 %v6804, %v6812
    %v6814 = vadd.f32 %v6555, %v6813
    %v6815 = vtanh.pop %v6814
    %v6816 = vsub.f32 1.0, %v6811
    %v6817 = vmul.f32 %v6816, %v6815
    %v6818 = vmul.f32 %v6811, %v6551
    %v6819 = vadd.f32 %v6817, %v6818
    %6820 = vst [vmem:[%s1601] sm:$0xff] %v6819
    %v6821 = vld [vmem:[%s1605] sm:$0xff]
    %v6822 = vld [vmem:[%s1605 + $0x8] sm:$0xff]
    %v6823 = vld [vmem:[%s1605 + $0x10] sm:$0xff]
    %v6824 = vpack.c.bf16 %v6819, %v6819
    %v6825 = vld [vmem:[%s5752] sm:$0xff]
    %v6826 = vld [vmem:[%s5752 + $0x8] sm:$0xf]
    %v6827 = vld [vmem:[%s5752 + $0xc] sm:$0xff]
    %v6828 = vld [vmem:[%s5752 + $0x14] sm:$0xf]
    %v6829 = vld [vmem:[%s5752 + $0x18] sm:$0xff]
    %v6830 = vld [vmem:[%s5752 + $0x20] sm:$0xf]
    %v6831 = vld [vmem:[%s5752 + $0x24] sm:$0xff]
    %v6832 = vld [vmem:[%s5752 + $0x2c] sm:$0xf]
    %v6833 = vld [vmem:[%s5752 + $0x30] sm:$0xff]
    %v6834 = vld [vmem:[%s5752 + $0x38] sm:$0xf]
    %v6835 = vld [vmem:[%s5752 + $0x3c] sm:$0xff]
    %v6836 = vld [vmem:[%s5752 + $0x44] sm:$0xf]
    %v6837 = vld [vmem:[%s5752 + $0x48] sm:$0xff]
    %v6838 = vld [vmem:[%s5752 + $0x50] sm:$0xf]
    %v6839 = vld [vmem:[%s5752 + $0x54] sm:$0xff]
    %v6840 = vld [vmem:[%s5752 + $0x5c] sm:$0xf]
    %v6841 = vld [vmem:[%s5752 + $0x60] sm:$0xff]
    %v6842 = vld [vmem:[%s5752 + $0x68] sm:$0xf]
    %v6843 = vld [vmem:[%s5752 + $0x6c] sm:$0xff]
    %v6844 = vld [vmem:[%s5752 + $0x74] sm:$0xf]
    %v6845 = vld [vmem:[%s5752 + $0x78] sm:$0xff]
    %v6846 = vld [vmem:[%s5752 + $0x80] sm:$0xf]
    %v6847 = vld [vmem:[%s5752 + $0x84] sm:$0xff]
    %v6848 = vld [vmem:[%s5752 + $0x8c] sm:$0xf]
    %v6849 = vld [vmem:[%s5752 + $0x90] sm:$0xff]
    %v6850 = vld [vmem:[%s5752 + $0x98] sm:$0xf]
    %v6851 = vld [vmem:[%s5752 + $0x9c] sm:$0xff]
    %v6852 = vld [vmem:[%s5752 + $0xa4] sm:$0xf]
    %v6853 = vld [vmem:[%s5752 + $0xa8] sm:$0xff]
    %v6854 = vld [vmem:[%s5752 + $0xb0] sm:$0xf]
    %v6855 = vld [vmem:[%s5752 + $0xb4] sm:$0xff]
    %v6856 = vld [vmem:[%s5752 + $0xbc] sm:$0xf]
    %v6889 = vunpack.c.l.b16 %v6825
    %v6890 = vunpack.c.h.b16 %v6825
    %v6891 = vunpack.c.l.b16 %v6826
    %v6892 = vunpack.c.l.b16 %v6827
    %v6893 = vunpack.c.h.b16 %v6827
    %v6894 = vunpack.c.l.b16 %v6828
    %v6895 = vunpack.c.l.b16 %v6829
    %v6896 = vunpack.c.h.b16 %v6829
    %v6897 = vunpack.c.l.b16 %v6830
    %v6898 = vunpack.c.l.b16 %v6831
    %v6899 = vunpack.c.h.b16 %v6831
    %v6900 = vunpack.c.l.b16 %v6832
    %v6901 = vunpack.c.l.b16 %v6833
    %v6902 = vunpack.c.h.b16 %v6833
    %v6903 = vunpack.c.l.b16 %v6834
    %v6904 = vunpack.c.l.b16 %v6835
    %v6905 = vunpack.c.h.b16 %v6835
    %v6906 = vunpack.c.l.b16 %v6836
    %v6907 = vunpack.c.l.b16 %v6837
    %v6908 = vunpack.c.h.b16 %v6837
    %v6909 = vunpack.c.l.b16 %v6838
    %v6910 = vunpack.c.l.b16 %v6839
    %v6911 = vunpack.c.h.b16 %v6839
    %v6912 = vunpack.c.l.b16 %v6840
    %v6913 = vunpack.c.l.b16 %v6841
    %v6914 = vunpack.c.h.b16 %v6841
    %v6915 = vunpack.c.l.b16 %v6842
    %v6916 = vunpack.c.l.b16 %v6843
    %v6917 = vunpack.c.h.b16 %v6843
    %v6918 = vunpack.c.l.b16 %v6844
    %v6919 = vunpack.c.l.b16 %v6845
    %v6920 = vunpack.c.h.b16 %v6845
    %v6921 = vunpack.c.l.b16 %v6846
    %v6922 = vunpack.c.l.b16 %v6847
    %v6923 = vunpack.c.h.b16 %v6847
    %v6924 = vunpack.c.l.b16 %v6848
    %v6925 = vunpack.c.l.b16 %v6849
    %v6926 = vunpack.c.h.b16 %v6849
    %v6927 = vunpack.c.l.b16 %v6850
    %v6928 = vunpack.c.l.b16 %v6851
    %v6929 = vunpack.c.h.b16 %v6851
    %v6930 = vunpack.c.l.b16 %v6852
    %v6931 = vunpack.c.l.b16 %v6853
    %v6932 = vunpack.c.h.b16 %v6853
    %v6933 = vunpack.c.l.b16 %v6854
    %v6934 = vunpack.c.l.b16 %v6855
    %v6935 = vunpack.c.h.b16 %v6855
    %v6936 = vunpack.c.l.b16 %v6856
    %v6937 = vpack.c.b16 %v6892, %v6889
    %v6938 = vpack.c.b16 %v6893, %v6890
    %v6939 = vpack.c.b16 %v6894, %v6891
    %v6940 = vpack.c.b16 %v6898, %v6895
    %v6941 = vpack.c.b16 %v6899, %v6896
    %v6942 = vpack.c.b16 %v6900, %v6897
    %v6943 = vpack.c.b16 %v6904, %v6901
    %v6944 = vpack.c.b16 %v6905, %v6902
    %v6945 = vpack.c.b16 %v6906, %v6903
    %v6946 = vpack.c.b16 %v6910, %v6907
    %v6947 = vpack.c.b16 %v6911, %v6908
    %v6948 = vpack.c.b16 %v6912, %v6909
    %v6949 = vpack.c.b16 %v6916, %v6913
    %v6950 = vpack.c.b16 %v6917, %v6914
    %v6951 = vpack.c.b16 %v6918, %v6915
    %v6952 = vpack.c.b16 %v6922, %v6919
    %v6953 = vpack.c.b16 %v6923, %v6920
    %v6954 = vpack.c.b16 %v6924, %v6921
    %v6955 = vpack.c.b16 %v6928, %v6925
    %v6956 = vpack.c.b16 %v6929, %v6926
    %v6957 = vpack.c.b16 %v6930, %v6927
    %v6958 = vpack.c.b16 %v6934, %v6931
    %v6959 = vpack.c.b16 %v6935, %v6932
    %v6960 = vpack.c.b16 %v6936, %v6933
    %6985 = vmatprep.subr.bf16.mxu0 %v6938
    %6986 = vmatpush1.bf16.msra.mxu0 %v6937
    %6987 = vmatprep.subr.bf16.mxu0 %v6941
    %6988 = vmatpush1.bf16.msra.mxu0 %v6940
    %6989 = vmatprep.subr.bf16.mxu0 %v6944
    %6990 = vmatpush1.bf16.msra.mxu0 %v6943
    %6991 = vmatprep.subr.bf16.mxu0 %v6947
    %6992 = vmatpush1.bf16.msra.mxu0 %v6946
    %6993 = vmatprep.subr.bf16.mxu0 %v6950
    %6994 = vmatpush1.bf16.msra.mxu0 %v6949
    %6995 = vmatprep.subr.bf16.mxu0 %v6953
    %6996 = vmatpush1.bf16.msra.mxu0 %v6952
    %6997 = vmatprep.subr.bf16.mxu0 %v6956
    %6998 = vmatpush1.bf16.msra.mxu0 %v6955
    %6999 = vmatprep.subr.bf16.mxu0 %v6959
    %7000 = vmatpush1.bf16.msra.mxu0 %v6958
    %7001 = vmatprep.subr.bf16.mxu0 0
    %7002 = vmatpush1.bf16.msra.mxu0 0
    %7003 = vmatprep.subr.bf16.mxu0 0
    %7004 = vmatpush1.bf16.msra.mxu0 0
    %7005 = vmatprep.subr.bf16.mxu0 0
    %7006 = vmatpush1.bf16.msra.mxu0 0
    %7007 = vmatprep.subr.bf16.mxu0 0
    %7008 = vmatpush1.bf16.msra.mxu0 0
    %7009 = vmatprep.subr.bf16.mxu0 0
    %7010 = vmatpush1.bf16.msra.mxu0 0
    %7011 = vmatprep.subr.bf16.mxu0 0
    %7012 = vmatpush1.bf16.msra.mxu0 0
    %7013 = vmatprep.subr.bf16.mxu0 0
    %7014 = vmatpush1.bf16.msra.mxu0 0
    %7015 = vmatprep.subr.bf16.mxu0 0
    %7016 = vmatpush1.bf16.msra.mxu0 0
    %7017 = vmatprep.mubr.bf16.mxu0 0
    %7018 = vmatmul.mubr.bf16.gmra.mrb[0].mxu0 %v6824
    %v7019 = vpop.f32.mrb[0].mxu0
    %v7020 = vadd.f32 0.0, %v7019
    %v7021 = vpop.f32.mrb[0].mxu0
    %v7022 = vadd.f32 0.0, %v7021
    %v7023 = vpop.f32.mrb[0].mxu0
    %v7024 = vpop.f32.mrb[0].mxu0
    %7025 = vdwg.mxu0
    %7026 = vmatprep.subr.bf16.mxu0 0
    %7027 = vmatpush1.bf16.msra.mxu0 %v6939
    %7028 = vmatprep.subr.bf16.mxu0 0
    %7029 = vmatpush1.bf16.msra.mxu0 %v6942
    %7030 = vmatprep.subr.bf16.mxu0 0
    %7031 = vmatpush1.bf16.msra.mxu0 %v6945
    %7032 = vmatprep.subr.bf16.mxu0 0
    %7033 = vmatpush1.bf16.msra.mxu0 %v6948
    %7034 = vmatprep.subr.bf16.mxu0 0
    %7035 = vmatpush1.bf16.msra.mxu0 %v6951
    %7036 = vmatprep.subr.bf16.mxu0 0
    %7037 = vmatpush1.bf16.msra.mxu0 %v6954
    %7038 = vmatprep.subr.bf16.mxu0 0
    %7039 = vmatpush1.bf16.msra.mxu0 %v6957
    %7040 = vmatprep.subr.bf16.mxu0 0
    %7041 = vmatpush1.bf16.msra.mxu0 %v6960
    %7042 = vmatprep.subr.bf16.mxu0 0
    %7043 = vmatpush1.bf16.msra.mxu0 0
    %7044 = vmatprep.subr.bf16.mxu0 0
    %7045 = vmatpush1.bf16.msra.mxu0 0
    %7046 = vmatprep.subr.bf16.mxu0 0
    %7047 = vmatpush1.bf16.msra.mxu0 0
    %7048 = vmatprep.subr.bf16.mxu0 0
    %7049 = vmatpush1.bf16.msra.mxu0 0
    %7050 = vmatprep.subr.bf16.mxu0 0
    %7051 = vmatpush1.bf16.msra.mxu0 0
    %7052 = vmatprep.subr.bf16.mxu0 0
    %7053 = vmatpush1.bf16.msra.mxu0 0
    %7054 = vmatprep.subr.bf16.mxu0 0
    %7055 = vmatpush1.bf16.msra.mxu0 0
    %7056 = vmatprep.subr.bf16.mxu0 0
    %7057 = vmatpush1.bf16.msra.mxu0 0
    %7058 = vmatprep.mubr.bf16.mxu0 0
    %7059 = vmatmul.mubr.bf16.gmra.mrb[0].mxu0 %v6824
    %v7060 = vpop.f32.mrb[0].mxu0
    %v7061 = vadd.f32 0.0, %v7060
    %v7062 = vpop.f32.mrb[0].mxu0
    %v7063 = vpop.f32.mrb[0].mxu0
    %v7064 = vpop.f32.mrb[0].mxu0
    %7065 = vdwg.mxu0
    %v7066 = vadd.f32 %v6821, %v7020
    %v7067 = vxor.u32 %v7066, 2147483648
    %v7068 = vmul.f32 %v7067, 1.442695
    %v7069 = vpow.pop %v7068
    %v7070 = vadd.f32 %v7069, 1.0
    %v7071 = vrcp.pop %v7070
    %v7072 = vmul.f32 1.0, %v7071
    %v7073 = vadd.f32 %v6822, %v7022
    %v7074 = vxor.u32 %v7073, 2147483648
    %v7075 = vmul.f32 %v7074, 1.442695
    %v7076 = vpow.pop %v7075
    %v7077 = vadd.f32 %v7076, 1.0
    %v7078 = vrcp.pop %v7077
    %v7079 = vmul.f32 1.0, %v7078
    %v7080 = vadd.f32 %v7061, %v5747
    %v7081 = vmul.f32 %v7072, %v7080
    %v7082 = vadd.f32 %v6823, %v7081
    %v7083 = vtanh.pop %v7082
    %v7084 = vsub.f32 1.0, %v7079
    %v7085 = vmul.f32 %v7084, %v7083
    %v7086 = vmul.f32 %v7079, %v6819
    %v7087 = vadd.f32 %v7085, %v7086
    %7088 = vst [vmem:[%s1873] sm:$0xff] %v7087
    %v7089 = vld [vmem:[%s1877] sm:$0xff]
    %v7090 = vld [vmem:[%s1877 + $0x8] sm:$0xff]
    %v7091 = vld [vmem:[%s1877 + $0x10] sm:$0xff]
    %v7092 = vpack.c.bf16 %v7087, %v7087
    %v7093 = vld [vmem:[%s5752] sm:$0xff]
    %v7094 = vld [vmem:[%s5752 + $0x8] sm:$0xf]
    %v7095 = vld [vmem:[%s5752 + $0xc] sm:$0xff]
    %v7096 = vld [vmem:[%s5752 + $0x14] sm:$0xf]
    %v7097 = vld [vmem:[%s5752 + $0x18] sm:$0xff]
    %v7098 = vld [vmem:[%s5752 + $0x20] sm:$0xf]
    %v7099 = vld [vmem:[%s5752 + $0x24] sm:$0xff]
    %v7100 = vld [vmem:[%s5752 + $0x2c] sm:$0xf]
    %v7101 = vld [vmem:[%s5752 + $0x30] sm:$0xff]
    %v7102 = vld [vmem:[%s5752 + $0x38] sm:$0xf]
    %v7103 = vld [vmem:[%s5752 + $0x3c] sm:$0xff]
    %v7104 = vld [vmem:[%s5752 + $0x44] sm:$0xf]
    %v7105 = vld [vmem:[%s5752 + $0x48] sm:$0xff]
    %v7106 = vld [vmem:[%s5752 + $0x50] sm:$0xf]
    %v7107 = vld [vmem:[%s5752 + $0x54] sm:$0xff]
    %v7108 = vld [vmem:[%s5752 + $0x5c] sm:$0xf]
    %v7109 = vld [vmem:[%s5752 + $0x60] sm:$0xff]
    %v7110 = vld [vmem:[%s5752 + $0x68] sm:$0xf]
    %v7111 = vld [vmem:[%s5752 + $0x6c] sm:$0xff]
    %v7112 = vld [vmem:[%s5752 + $0x74] sm:$0xf]
    %v7113 = vld [vmem:[%s5752 + $0x78] sm:$0xff]
    %v7114 = vld [vmem:[%s5752 + $0x80] sm:$0xf]
    %v7115 = vld [vmem:[%s5752 + $0x84] sm:$0xff]
    %v7116 = vld [vmem:[%s5752 + $0x8c] sm:$0xf]
    %v7117 = vld [vmem:[%s5752 + $0x90] sm:$0xff]
    %v7118 = vld [vmem:[%s5752 + $0x98] sm:$0xf]
    %v7119 = vld [vmem:[%s5752 + $0x9c] sm:$0xff]
    %v7120 = vld [vmem:[%s5752 + $0xa4] sm:$0xf]
    %v7121 = vld [vmem:[%s5752 + $0xa8] sm:$0xff]
    %v7122 = vld [vmem:[%s5752 + $0xb0] sm:$0xf]
    %v7123 = vld [vmem:[%s5752 + $0xb4] sm:$0xff]
    %v7124 = vld [vmem:[%s5752 + $0xbc] sm:$0xf]
    %v7157 = vunpack.c.l.b16 %v7093
    %v7158 = vunpack.c.h.b16 %v7093
    %v7159 = vunpack.c.l.b16 %v7094
    %v7160 = vunpack.c.l.b16 %v7095
    %v7161 = vunpack.c.h.b16 %v7095
    %v7162 = vunpack.c.l.b16 %v7096
    %v7163 = vunpack.c.l.b16 %v7097
    %v7164 = vunpack.c.h.b16 %v7097
    %v7165 = vunpack.c.l.b16 %v7098
    %v7166 = vunpack.c.l.b16 %v7099
    %v7167 = vunpack.c.h.b16 %v7099
    %v7168 = vunpack.c.l.b16 %v7100
    %v7169 = vunpack.c.l.b16 %v7101
    %v7170 = vunpack.c.h.b16 %v7101
    %v7171 = vunpack.c.l.b16 %v7102
    %v7172 = vunpack.c.l.b16 %v7103
    %v7173 = vunpack.c.h.b16 %v7103
    %v7174 = vunpack.c.l.b16 %v7104
    %v7175 = vunpack.c.l.b16 %v7105
    %v7176 = vunpack.c.h.b16 %v7105
    %v7177 = vunpack.c.l.b16 %v7106
    %v7178 = vunpack.c.l.b16 %v7107
    %v7179 = vunpack.c.h.b16 %v7107
    %v7180 = vunpack.c.l.b16 %v7108
    %v7181 = vunpack.c.l.b16 %v7109
    %v7182 = vunpack.c.h.b16 %v7109
    %v7183 = vunpack.c.l.b16 %v7110
    %v7184 = vunpack.c.l.b16 %v7111
    %v7185 = vunpack.c.h.b16 %v7111
    %v7186 = vunpack.c.l.b16 %v7112
    %v7187 = vunpack.c.l.b16 %v7113
    %v7188 = vunpack.c.h.b16 %v7113
    %v7189 = vunpack.c.l.b16 %v7114
    %v7190 = vunpack.c.l.b16 %v7115
    %v7191 = vunpack.c.h.b16 %v7115
    %v7192 = vunpack.c.l.b16 %v7116
    %v7193 = vunpack.c.l.b16 %v7117
    %v7194 = vunpack.c.h.b16 %v7117
    %v7195 = vunpack.c.l.b16 %v7118
    %v7196 = vunpack.c.l.b16 %v7119
    %v7197 = vunpack.c.h.b16 %v7119
    %v7198 = vunpack.c.l.b16 %v7120
    %v7199 = vunpack.c.l.b16 %v7121
    %v7200 = vunpack.c.h.b16 %v7121
    %v7201 = vunpack.c.l.b16 %v7122
    %v7202 = vunpack.c.l.b16 %v7123
    %v7203 = vunpack.c.h.b16 %v7123
    %v7204 = vunpack.c.l.b16 %v7124
    %v7205 = vpack.c.b16 %v7160, %v7157
    %v7206 = vpack.c.b16 %v7161, %v7158
    %v7207 = vpack.c.b16 %v7162, %v7159
    %v7208 = vpack.c.b16 %v7166, %v7163
    %v7209 = vpack.c.b16 %v7167, %v7164
    %v7210 = vpack.c.b16 %v7168, %v7165
    %v7211 = vpack.c.b16 %v7172, %v7169
    %v7212 = vpack.c.b16 %v7173, %v7170
    %v7213 = vpack.c.b16 %v7174, %v7171
    %v7214 = vpack.c.b16 %v7178, %v7175
    %v7215 = vpack.c.b16 %v7179, %v7176
    %v7216 = vpack.c.b16 %v7180, %v7177
    %v7217 = vpack.c.b16 %v7184, %v7181
    %v7218 = vpack.c.b16 %v7185, %v7182
    %v7219 = vpack.c.b16 %v7186, %v7183
    %v7220 = vpack.c.b16 %v7190, %v7187
    %v7221 = vpack.c.b16 %v7191, %v7188
    %v7222 = vpack.c.b16 %v7192, %v7189
    %v7223 = vpack.c.b16 %v7196, %v7193
    %v7224 = vpack.c.b16 %v7197, %v7194
    %v7225 = vpack.c.b16 %v7198, %v7195
    %v7226 = vpack.c.b16 %v7202, %v7199
    %v7227 = vpack.c.b16 %v7203, %v7200
    %v7228 = vpack.c.b16 %v7204, %v7201
    %7253 = vmatprep.subr.bf16.mxu0 %v7206
    %7254 = vmatpush1.bf16.msra.mxu0 %v7205
    %7255 = vmatprep.subr.bf16.mxu0 %v7209
    %7256 = vmatpush1.bf16.msra.mxu0 %v7208
    %7257 = vmatprep.subr.bf16.mxu0 %v7212
    %7258 = vmatpush1.bf16.msra.mxu0 %v7211
    %7259 = vmatprep.subr.bf16.mxu0 %v7215
    %7260 = vmatpush1.bf16.msra.mxu0 %v7214
    %7261 = vmatprep.subr.bf16.mxu0 %v7218
    %7262 = vmatpush1.bf16.msra.mxu0 %v7217
    %7263 = vmatprep.subr.bf16.mxu0 %v7221
    %7264 = vmatpush1.bf16.msra.mxu0 %v7220
    %7265 = vmatprep.subr.bf16.mxu0 %v7224
    %7266 = vmatpush1.bf16.msra.mxu0 %v7223
    %7267 = vmatprep.subr.bf16.mxu0 %v7227
    %7268 = vmatpush1.bf16.msra.mxu0 %v7226
    %7269 = vmatprep.subr.bf16.mxu0 0
    %7270 = vmatpush1.bf16.msra.mxu0 0
    %7271 = vmatprep.subr.bf16.mxu0 0
    %7272 = vmatpush1.bf16.msra.mxu0 0
    %7273 = vmatprep.subr.bf16.mxu0 0
    %7274 = vmatpush1.bf16.msra.mxu0 0
    %7275 = vmatprep.subr.bf16.mxu0 0
    %7276 = vmatpush1.bf16.msra.mxu0 0
    %7277 = vmatprep.subr.bf16.mxu0 0
    %7278 = vmatpush1.bf16.msra.mxu0 0
    %7279 = vmatprep.subr.bf16.mxu0 0
    %7280 = vmatpush1.bf16.msra.mxu0 0
    %7281 = vmatprep.subr.bf16.mxu0 0
    %7282 = vmatpush1.bf16.msra.mxu0 0
    %7283 = vmatprep.subr.bf16.mxu0 0
    %7284 = vmatpush1.bf16.msra.mxu0 0
    %7285 = vmatprep.mubr.bf16.mxu0 0
    %7286 = vmatmul.mubr.bf16.gmra.mrb[0].mxu0 %v7092
    %v7287 = vpop.f32.mrb[0].mxu0
    %v7288 = vadd.f32 0.0, %v7287
    %v7289 = vpop.f32.mrb[0].mxu0
    %v7290 = vadd.f32 0.0, %v7289
    %v7291 = vpop.f32.mrb[0].mxu0
    %v7292 = vpop.f32.mrb[0].mxu0
    %7293 = vdwg.mxu0
    %7294 = vmatprep.subr.bf16.mxu0 0
    %7295 = vmatpush1.bf16.msra.mxu0 %v7207
    %7296 = vmatprep.subr.bf16.mxu0 0
    %7297 = vmatpush1.bf16.msra.mxu0 %v7210
    %7298 = vmatprep.subr.bf16.mxu0 0
    %7299 = vmatpush1.bf16.msra.mxu0 %v7213
    %7300 = vmatprep.subr.bf16.mxu0 0
    %7301 = vmatpush1.bf16.msra.mxu0 %v7216
    %7302 = vmatprep.subr.bf16.mxu0 0
    %7303 = vmatpush1.bf16.msra.mxu0 %v7219
    %7304 = vmatprep.subr.bf16.mxu0 0
    %7305 = vmatpush1.bf16.msra.mxu0 %v7222
    %7306 = vmatprep.subr.bf16.mxu0 0
    %7307 = vmatpush1.bf16.msra.mxu0 %v7225
    %7308 = vmatprep.subr.bf16.mxu0 0
    %7309 = vmatpush1.bf16.msra.mxu0 %v7228
    %7310 = vmatprep.subr.bf16.mxu0 0
    %7311 = vmatpush1.bf16.msra.mxu0 0
    %7312 = vmatprep.subr.bf16.mxu0 0
    %7313 = vmatpush1.bf16.msra.mxu0 0
    %7314 = vmatprep.subr.bf16.mxu0 0
    %7315 = vmatpush1.bf16.msra.mxu0 0
    %7316 = vmatprep.subr.bf16.mxu0 0
    %7317 = vmatpush1.bf16.msra.mxu0 0
    %7318 = vmatprep.subr.bf16.mxu0 0
    %7319 = vmatpush1.bf16.msra.mxu0 0
    %7320 = vmatprep.subr.bf16.mxu0 0
    %7321 = vmatpush1.bf16.msra.mxu0 0
    %7322 = vmatprep.subr.bf16.mxu0 0
    %7323 = vmatpush1.bf16.msra.mxu0 0
    %7324 = vmatprep.subr.bf16.mxu0 0
    %7325 = vmatpush1.bf16.msra.mxu0 0
    %7326 = vmatprep.mubr.bf16.mxu0 0
    %7327 = vmatmul.mubr.bf16.gmra.mrb[0].mxu0 %v7092
    %v7328 = vpop.f32.mrb[0].mxu0
    %v7329 = vadd.f32 0.0, %v7328
    %v7330 = vpop.f32.mrb[0].mxu0
    %v7331 = vpop.f32.mrb[0].mxu0
    %v7332 = vpop.f32.mrb[0].mxu0
    %7333 = vdwg.mxu0
    %v7334 = vadd.f32 %v7089, %v7288
    %v7335 = vxor.u32 %v7334, 2147483648
    %v7336 = vmul.f32 %v7335, 1.442695
    %v7337 = vpow.pop %v7336
    %v7338 = vadd.f32 %v7337, 1.0
    %v7339 = vrcp.pop %v7338
    %v7340 = vmul.f32 1.0, %v7339
    %v7341 = vadd.f32 %v7090, %v7290
    %v7342 = vxor.u32 %v7341, 2147483648
    %v7343 = vmul.f32 %v7342, 1.442695
    %v7344 = vpow.pop %v7343
    %v7345 = vadd.f32 %v7344, 1.0
    %v7346 = vrcp.pop %v7345
    %v7347 = vmul.f32 1.0, %v7346
    %v7348 = vadd.f32 %v7329, %v5747
    %v7349 = vmul.f32 %v7340, %v7348
    %v7350 = vadd.f32 %v7091, %v7349
    %v7351 = vtanh.pop %v7350
    %v7352 = vsub.f32 1.0, %v7347
    %v7353 = vmul.f32 %v7352, %v7351
    %v7354 = vmul.f32 %v7347, %v7087
    %v7355 = vadd.f32 %v7353, %v7354
    %7356 = vst [vmem:[%s2145] sm:$0xff] %v7355
    %v7357 = vld [vmem:[%s2149] sm:$0xff]
    %v7358 = vld [vmem:[%s2149 + $0x8] sm:$0xff]
    %v7359 = vld [vmem:[%s2149 + $0x10] sm:$0xff]
    %v7360 = vpack.c.bf16 %v7355, %v7355
    %v7361 = vld [vmem:[%s5752] sm:$0xff]
    %v7362 = vld [vmem:[%s5752 + $0x8] sm:$0xf]
    %v7363 = vld [vmem:[%s5752 + $0xc] sm:$0xff]
    %v7364 = vld [vmem:[%s5752 + $0x14] sm:$0xf]
    %v7365 = vld [vmem:[%s5752 + $0x18] sm:$0xff]
    %v7366 = vld [vmem:[%s5752 + $0x20] sm:$0xf]
    %v7367 = vld [vmem:[%s5752 + $0x24] sm:$0xff]
    %v7368 = vld [vmem:[%s5752 + $0x2c] sm:$0xf]
    %v7369 = vld [vmem:[%s5752 + $0x30] sm:$0xff]
    %v7370 = vld [vmem:[%s5752 + $0x38] sm:$0xf]
    %v7371 = vld [vmem:[%s5752 + $0x3c] sm:$0xff]
    %v7372 = vld [vmem:[%s5752 + $0x44] sm:$0xf]
    %v7373 = vld [vmem:[%s5752 + $0x48] sm:$0xff]
    %v7374 = vld [vmem:[%s5752 + $0x50] sm:$0xf]
    %v7375 = vld [vmem:[%s5752 + $0x54] sm:$0xff]
    %v7376 = vld [vmem:[%s5752 + $0x5c] sm:$0xf]
    %v7377 = vld [vmem:[%s5752 + $0x60] sm:$0xff]
    %v7378 = vld [vmem:[%s5752 + $0x68] sm:$0xf]
    %v7379 = vld [vmem:[%s5752 + $0x6c] sm:$0xff]
    %v7380 = vld [vmem:[%s5752 + $0x74] sm:$0xf]
    %v7381 = vld [vmem:[%s5752 + $0x78] sm:$0xff]
    %v7382 = vld [vmem:[%s5752 + $0x80] sm:$0xf]
    %v7383 = vld [vmem:[%s5752 + $0x84] sm:$0xff]
    %v7384 = vld [vmem:[%s5752 + $0x8c] sm:$0xf]
    %v7385 = vld [vmem:[%s5752 + $0x90] sm:$0xff]
    %v7386 = vld [vmem:[%s5752 + $0x98] sm:$0xf]
    %v7387 = vld [vmem:[%s5752 + $0x9c] sm:$0xff]
    %v7388 = vld [vmem:[%s5752 + $0xa4] sm:$0xf]
    %v7389 = vld [vmem:[%s5752 + $0xa8] sm:$0xff]
    %v7390 = vld [vmem:[%s5752 + $0xb0] sm:$0xf]
    %v7391 = vld [vmem:[%s5752 + $0xb4] sm:$0xff]
    %v7392 = vld [vmem:[%s5752 + $0xbc] sm:$0xf]
    %v7425 = vunpack.c.l.b16 %v7361
    %v7426 = vunpack.c.h.b16 %v7361
    %v7427 = vunpack.c.l.b16 %v7362
    %v7428 = vunpack.c.l.b16 %v7363
    %v7429 = vunpack.c.h.b16 %v7363
    %v7430 = vunpack.c.l.b16 %v7364
    %v7431 = vunpack.c.l.b16 %v7365
    %v7432 = vunpack.c.h.b16 %v7365
    %v7433 = vunpack.c.l.b16 %v7366
    %v7434 = vunpack.c.l.b16 %v7367
    %v7435 = vunpack.c.h.b16 %v7367
    %v7436 = vunpack.c.l.b16 %v7368
    %v7437 = vunpack.c.l.b16 %v7369
    %v7438 = vunpack.c.h.b16 %v7369
    %v7439 = vunpack.c.l.b16 %v7370
    %v7440 = vunpack.c.l.b16 %v7371
    %v7441 = vunpack.c.h.b16 %v7371
    %v7442 = vunpack.c.l.b16 %v7372
    %v7443 = vunpack.c.l.b16 %v7373
    %v7444 = vunpack.c.h.b16 %v7373
    %v7445 = vunpack.c.l.b16 %v7374
    %v7446 = vunpack.c.l.b16 %v7375
    %v7447 = vunpack.c.h.b16 %v7375
    %v7448 = vunpack.c.l.b16 %v7376
    %v7449 = vunpack.c.l.b16 %v7377
    %v7450 = vunpack.c.h.b16 %v7377
    %v7451 = vunpack.c.l.b16 %v7378
    %v7452 = vunpack.c.l.b16 %v7379
    %v7453 = vunpack.c.h.b16 %v7379
    %v7454 = vunpack.c.l.b16 %v7380
    %v7455 = vunpack.c.l.b16 %v7381
    %v7456 = vunpack.c.h.b16 %v7381
    %v7457 = vunpack.c.l.b16 %v7382
    %v7458 = vunpack.c.l.b16 %v7383
    %v7459 = vunpack.c.h.b16 %v7383
    %v7460 = vunpack.c.l.b16 %v7384
    %v7461 = vunpack.c.l.b16 %v7385
    %v7462 = vunpack.c.h.b16 %v7385
    %v7463 = vunpack.c.l.b16 %v7386
    %v7464 = vunpack.c.l.b16 %v7387
    %v7465 = vunpack.c.h.b16 %v7387
    %v7466 = vunpack.c.l.b16 %v7388
    %v7467 = vunpack.c.l.b16 %v7389
    %v7468 = vunpack.c.h.b16 %v7389
    %v7469 = vunpack.c.l.b16 %v7390
    %v7470 = vunpack.c.l.b16 %v7391
    %v7471 = vunpack.c.h.b16 %v7391
    %v7472 = vunpack.c.l.b16 %v7392
    %v7473 = vpack.c.b16 %v7428, %v7425
    %v7474 = vpack.c.b16 %v7429, %v7426
    %v7475 = vpack.c.b16 %v7430, %v7427
    %v7476 = vpack.c.b16 %v7434, %v7431
    %v7477 = vpack.c.b16 %v7435, %v7432
    %v7478 = vpack.c.b16 %v7436, %v7433
    %v7479 = vpack.c.b16 %v7440, %v7437
    %v7480 = vpack.c.b16 %v7441, %v7438
    %v7481 = vpack.c.b16 %v7442, %v7439
    %v7482 = vpack.c.b16 %v7446, %v7443
    %v7483 = vpack.c.b16 %v7447, %v7444
    %v7484 = vpack.c.b16 %v7448, %v7445
    %v7485 = vpack.c.b16 %v7452, %v7449
    %v7486 = vpack.c.b16 %v7453, %v7450
    %v7487 = vpack.c.b16 %v7454, %v7451
    %v7488 = vpack.c.b16 %v7458, %v7455
    %v7489 = vpack.c.b16 %v7459, %v7456
    %v7490 = vpack.c.b16 %v7460, %v7457
    %v7491 = vpack.c.b16 %v7464, %v7461
    %v7492 = vpack.c.b16 %v7465, %v7462
    %v7493 = vpack.c.b16 %v7466, %v7463
    %v7494 = vpack.c.b16 %v7470, %v7467
    %v7495 = vpack.c.b16 %v7471, %v7468
    %v7496 = vpack.c.b16 %v7472, %v7469
    %7521 = vmatprep.subr.bf16.mxu0 %v7474
    %7522 = vmatpush1.bf16.msra.mxu0 %v7473
    %7523 = vmatprep.subr.bf16.mxu0 %v7477
    %7524 = vmatpush1.bf16.msra.mxu0 %v7476
    %7525 = vmatprep.subr.bf16.mxu0 %v7480
    %7526 = vmatpush1.bf16.msra.mxu0 %v7479
    %7527 = vmatprep.subr.bf16.mxu0 %v7483
    %7528 = vmatpush1.bf16.msra.mxu0 %v7482
    %7529 = vmatprep.subr.bf16.mxu0 %v7486
    %7530 = vmatpush1.bf16.msra.mxu0 %v7485
    %7531 = vmatprep.subr.bf16.mxu0 %v7489
    %7532 = vmatpush1.bf16.msra.mxu0 %v7488
    %7533 = vmatprep.subr.bf16.mxu0 %v7492
    %7534 = vmatpush1.bf16.msra.mxu0 %v7491
    %7535 = vmatprep.subr.bf16.mxu0 %v7495
    %7536 = vmatpush1.bf16.msra.mxu0 %v7494
    %7537 = vmatprep.subr.bf16.mxu0 0
    %7538 = vmatpush1.bf16.msra.mxu0 0
    %7539 = vmatprep.subr.bf16.mxu0 0
    %7540 = vmatpush1.bf16.msra.mxu0 0
    %7541 = vmatprep.subr.bf16.mxu0 0
    %7542 = vmatpush1.bf16.msra.mxu0 0
    %7543 = vmatprep.subr.bf16.mxu0 0
    %7544 = vmatpush1.bf16.msra.mxu0 0
    %7545 = vmatprep.subr.bf16.mxu0 0
    %7546 = vmatpush1.bf16.msra.mxu0 0
    %7547 = vmatprep.subr.bf16.mxu0 0
    %7548 = vmatpush1.bf16.msra.mxu0 0
    %7549 = vmatprep.subr.bf16.mxu0 0
    %7550 = vmatpush1.bf16.msra.mxu0 0
    %7551 = vmatprep.subr.bf16.mxu0 0
    %7552 = vmatpush1.bf16.msra.mxu0 0
    %7553 = vmatprep.mubr.bf16.mxu0 0
    %7554 = vmatmul.mubr.bf16.gmra.mrb[0].mxu0 %v7360
    %v7555 = vpop.f32.mrb[0].mxu0
    %v7556 = vadd.f32 0.0, %v7555
    %v7557 = vpop.f32.mrb[0].mxu0
    %v7558 = vadd.f32 0.0, %v7557
    %v7559 = vpop.f32.mrb[0].mxu0
    %v7560 = vpop.f32.mrb[0].mxu0
    %7561 = vdwg.mxu0
    %7562 = vmatprep.subr.bf16.mxu0 0
    %7563 = vmatpush1.bf16.msra.mxu0 %v7475
    %7564 = vmatprep.subr.bf16.mxu0 0
    %7565 = vmatpush1.bf16.msra.mxu0 %v7478
    %7566 = vmatprep.subr.bf16.mxu0 0
    %7567 = vmatpush1.bf16.msra.mxu0 %v7481
    %7568 = vmatprep.subr.bf16.mxu0 0
    %7569 = vmatpush1.bf16.msra.mxu0 %v7484
    %7570 = vmatprep.subr.bf16.mxu0 0
    %7571 = vmatpush1.bf16.msra.mxu0 %v7487
    %7572 = vmatprep.subr.bf16.mxu0 0
    %7573 = vmatpush1.bf16.msra.mxu0 %v7490
    %7574 = vmatprep.subr.bf16.mxu0 0
    %7575 = vmatpush1.bf16.msra.mxu0 %v7493
    %7576 = vmatprep.subr.bf16.mxu0 0
    %7577 = vmatpush1.bf16.msra.mxu0 %v7496
    %7578 = vmatprep.subr.bf16.mxu0 0
    %7579 = vmatpush1.bf16.msra.mxu0 0
    %7580 = vmatprep.subr.bf16.mxu0 0
    %7581 = vmatpush1.bf16.msra.mxu0 0
    %7582 = vmatprep.subr.bf16.mxu0 0
    %7583 = vmatpush1.bf16.msra.mxu0 0
    %7584 = vmatprep.subr.bf16.mxu0 0
    %7585 = vmatpush1.bf16.msra.mxu0 0
    %7586 = vmatprep.subr.bf16.mxu0 0
    %7587 = vmatpush1.bf16.msra.mxu0 0
    %7588 = vmatprep.subr.bf16.mxu0 0
    %7589 = vmatpush1.bf16.msra.mxu0 0
    %7590 = vmatprep.subr.bf16.mxu0 0
    %7591 = vmatpush1.bf16.msra.mxu0 0
    %7592 = vmatprep.subr.bf16.mxu0 0
    %7593 = vmatpush1.bf16.msra.mxu0 0
    %7594 = vmatprep.mubr.bf16.mxu0 0
    %7595 = vmatmul.mubr.bf16.gmra.mrb[0].mxu0 %v7360
    %v7596 = vpop.f32.mrb[0].mxu0
    %v7597 = vadd.f32 0.0, %v7596
    %v7598 = vpop.f32.mrb[0].mxu0
    %v7599 = vpop.f32.mrb[0].mxu0
    %v7600 = vpop.f32.mrb[0].mxu0
    %7601 = vdwg.mxu0
    %v7602 = vadd.f32 %v7357, %v7556
    %v7603 = vxor.u32 %v7602, 2147483648
    %v7604 = vmul.f32 %v7603, 1.442695
    %v7605 = vpow.pop %v7604
    %v7606 = vadd.f32 %v7605, 1.0
    %v7607 = vrcp.pop %v7606
    %v7608 = vmul.f32 1.0, %v7607
    %v7609 = vadd.f32 %v7358, %v7558
    %v7610 = vxor.u32 %v7609, 2147483648
    %v7611 = vmul.f32 %v7610, 1.442695
    %v7612 = vpow.pop %v7611
    %v7613 = vadd.f32 %v7612, 1.0
    %v7614 = vrcp.pop %v7613
    %v7615 = vmul.f32 1.0, %v7614
    %v7616 = vadd.f32 %v7597, %v5747
    %v7617 = vmul.f32 %v7608, %v7616
    %v7618 = vadd.f32 %v7359, %v7617
    %v7619 = vtanh.pop %v7618
    %v7620 = vsub.f32 1.0, %v7615
    %v7621 = vmul.f32 %v7620, %v7619
    %v7622 = vmul.f32 %v7615, %v7355
    %v7623 = vadd.f32 %v7621, %v7622
    %7624 = vst [vmem:[%s2417] sm:$0xff] %v7623
    %v7625 = vld [vmem:[%s2421] sm:$0xff]
    %v7626 = vld [vmem:[%s2421 + $0x8] sm:$0xff]
    %v7627 = vld [vmem:[%s2421 + $0x10] sm:$0xff]
    %v7628 = vpack.c.bf16 %v7623, %v7623
    %v7629 = vld [vmem:[%s5752] sm:$0xff]
    %v7630 = vld [vmem:[%s5752 + $0x8] sm:$0xf]
    %v7631 = vld [vmem:[%s5752 + $0xc] sm:$0xff]
    %v7632 = vld [vmem:[%s5752 + $0x14] sm:$0xf]
    %v7633 = vld [vmem:[%s5752 + $0x18] sm:$0xff]
    %v7634 = vld [vmem:[%s5752 + $0x20] sm:$0xf]
    %v7635 = vld [vmem:[%s5752 + $0x24] sm:$0xff]
    %v7636 = vld [vmem:[%s5752 + $0x2c] sm:$0xf]
    %v7637 = vld [vmem:[%s5752 + $0x30] sm:$0xff]
    %v7638 = vld [vmem:[%s5752 + $0x38] sm:$0xf]
    %v7639 = vld [vmem:[%s5752 + $0x3c] sm:$0xff]
    %v7640 = vld [vmem:[%s5752 + $0x44] sm:$0xf]
    %v7641 = vld [vmem:[%s5752 + $0x48] sm:$0xff]
    %v7642 = vld [vmem:[%s5752 + $0x50] sm:$0xf]
    %v7643 = vld [vmem:[%s5752 + $0x54] sm:$0xff]
    %v7644 = vld [vmem:[%s5752 + $0x5c] sm:$0xf]
    %v7645 = vld [vmem:[%s5752 + $0x60] sm:$0xff]
    %v7646 = vld [vmem:[%s5752 + $0x68] sm:$0xf]
    %v7647 = vld [vmem:[%s5752 + $0x6c] sm:$0xff]
    %v7648 = vld [vmem:[%s5752 + $0x74] sm:$0xf]
    %v7649 = vld [vmem:[%s5752 + $0x78] sm:$0xff]
    %v7650 = vld [vmem:[%s5752 + $0x80] sm:$0xf]
    %v7651 = vld [vmem:[%s5752 + $0x84] sm:$0xff]
    %v7652 = vld [vmem:[%s5752 + $0x8c] sm:$0xf]
    %v7653 = vld [vmem:[%s5752 + $0x90] sm:$0xff]
    %v7654 = vld [vmem:[%s5752 + $0x98] sm:$0xf]
    %v7655 = vld [vmem:[%s5752 + $0x9c] sm:$0xff]
    %v7656 = vld [vmem:[%s5752 + $0xa4] sm:$0xf]
    %v7657 = vld [vmem:[%s5752 + $0xa8] sm:$0xff]
    %v7658 = vld [vmem:[%s5752 + $0xb0] sm:$0xf]
    %v7659 = vld [vmem:[%s5752 + $0xb4] sm:$0xff]
    %v7660 = vld [vmem:[%s5752 + $0xbc] sm:$0xf]
    %v7693 = vunpack.c.l.b16 %v7629
    %v7694 = vunpack.c.h.b16 %v7629
    %v7695 = vunpack.c.l.b16 %v7630
    %v7696 = vunpack.c.l.b16 %v7631
    %v7697 = vunpack.c.h.b16 %v7631
    %v7698 = vunpack.c.l.b16 %v7632
    %v7699 = vunpack.c.l.b16 %v7633
    %v7700 = vunpack.c.h.b16 %v7633
    %v7701 = vunpack.c.l.b16 %v7634
    %v7702 = vunpack.c.l.b16 %v7635
    %v7703 = vunpack.c.h.b16 %v7635
    %v7704 = vunpack.c.l.b16 %v7636
    %v7705 = vunpack.c.l.b16 %v7637
    %v7706 = vunpack.c.h.b16 %v7637
    %v7707 = vunpack.c.l.b16 %v7638
    %v7708 = vunpack.c.l.b16 %v7639
    %v7709 = vunpack.c.h.b16 %v7639
    %v7710 = vunpack.c.l.b16 %v7640
    %v7711 = vunpack.c.l.b16 %v7641
    %v7712 = vunpack.c.h.b16 %v7641
    %v7713 = vunpack.c.l.b16 %v7642
    %v7714 = vunpack.c.l.b16 %v7643
    %v7715 = vunpack.c.h.b16 %v7643
    %v7716 = vunpack.c.l.b16 %v7644
    %v7717 = vunpack.c.l.b16 %v7645
    %v7718 = vunpack.c.h.b16 %v7645
    %v7719 = vunpack.c.l.b16 %v7646
    %v7720 = vunpack.c.l.b16 %v7647
    %v7721 = vunpack.c.h.b16 %v7647
    %v7722 = vunpack.c.l.b16 %v7648
    %v7723 = vunpack.c.l.b16 %v7649
    %v7724 = vunpack.c.h.b16 %v7649
    %v7725 = vunpack.c.l.b16 %v7650
    %v7726 = vunpack.c.l.b16 %v7651
    %v7727 = vunpack.c.h.b16 %v7651
    %v7728 = vunpack.c.l.b16 %v7652
    %v7729 = vunpack.c.l.b16 %v7653
    %v7730 = vunpack.c.h.b16 %v7653
    %v7731 = vunpack.c.l.b16 %v7654
    %v7732 = vunpack.c.l.b16 %v7655
    %v7733 = vunpack.c.h.b16 %v7655
    %v7734 = vunpack.c.l.b16 %v7656
    %v7735 = vunpack.c.l.b16 %v7657
    %v7736 = vunpack.c.h.b16 %v7657
    %v7737 = vunpack.c.l.b16 %v7658
    %v7738 = vunpack.c.l.b16 %v7659
    %v7739 = vunpack.c.h.b16 %v7659
    %v7740 = vunpack.c.l.b16 %v7660
    %v7741 = vpack.c.b16 %v7696, %v7693
    %v7742 = vpack.c.b16 %v7697, %v7694
    %v7743 = vpack.c.b16 %v7698, %v7695
    %v7744 = vpack.c.b16 %v7702, %v7699
    %v7745 = vpack.c.b16 %v7703, %v7700
    %v7746 = vpack.c.b16 %v7704, %v7701
    %v7747 = vpack.c.b16 %v7708, %v7705
    %v7748 = vpack.c.b16 %v7709, %v7706
    %v7749 = vpack.c.b16 %v7710, %v7707
    %v7750 = vpack.c.b16 %v7714, %v7711
    %v7751 = vpack.c.b16 %v7715, %v7712
    %v7752 = vpack.c.b16 %v7716, %v7713
    %v7753 = vpack.c.b16 %v7720, %v7717
    %v7754 = vpack.c.b16 %v7721, %v7718
    %v7755 = vpack.c.b16 %v7722, %v7719
    %v7756 = vpack.c.b16 %v7726, %v7723
    %v7757 = vpack.c.b16 %v7727, %v7724
    %v7758 = vpack.c.b16 %v7728, %v7725
    %v7759 = vpack.c.b16 %v7732, %v7729
    %v7760 = vpack.c.b16 %v7733, %v7730
    %v7761 = vpack.c.b16 %v7734, %v7731
    %v7762 = vpack.c.b16 %v7738, %v7735
    %v7763 = vpack.c.b16 %v7739, %v7736
    %v7764 = vpack.c.b16 %v7740, %v7737
    %7789 = vmatprep.subr.bf16.mxu0 %v7742
    %7790 = vmatpush1.bf16.msra.mxu0 %v7741
    %7791 = vmatprep.subr.bf16.mxu0 %v7745
    %7792 = vmatpush1.bf16.msra.mxu0 %v7744
    %7793 = vmatprep.subr.bf16.mxu0 %v7748
    %7794 = vmatpush1.bf16.msra.mxu0 %v7747
    %7795 = vmatprep.subr.bf16.mxu0 %v7751
    %7796 = vmatpush1.bf16.msra.mxu0 %v7750
    %7797 = vmatprep.subr.bf16.mxu0 %v7754
    %7798 = vmatpush1.bf16.msra.mxu0 %v7753
    %7799 = vmatprep.subr.bf16.mxu0 %v7757
    %7800 = vmatpush1.bf16.msra.mxu0 %v7756
    %7801 = vmatprep.subr.bf16.mxu0 %v7760
    %7802 = vmatpush1.bf16.msra.mxu0 %v7759
    %7803 = vmatprep.subr.bf16.mxu0 %v7763
    %7804 = vmatpush1.bf16.msra.mxu0 %v7762
    %7805 = vmatprep.subr.bf16.mxu0 0
    %7806 = vmatpush1.bf16.msra.mxu0 0
    %7807 = vmatprep.subr.bf16.mxu0 0
    %7808 = vmatpush1.bf16.msra.mxu0 0
    %7809 = vmatprep.subr.bf16.mxu0 0
    %7810 = vmatpush1.bf16.msra.mxu0 0
    %7811 = vmatprep.subr.bf16.mxu0 0
    %7812 = vmatpush1.bf16.msra.mxu0 0
    %7813 = vmatprep.subr.bf16.mxu0 0
    %7814 = vmatpush1.bf16.msra.mxu0 0
    %7815 = vmatprep.subr.bf16.mxu0 0
    %7816 = vmatpush1.bf16.msra.mxu0 0
    %7817 = vmatprep.subr.bf16.mxu0 0
    %7818 = vmatpush1.bf16.msra.mxu0 0
    %7819 = vmatprep.subr.bf16.mxu0 0
    %7820 = vmatpush1.bf16.msra.mxu0 0
    %7821 = vmatprep.mubr.bf16.mxu0 0
    %7822 = vmatmul.mubr.bf16.gmra.mrb[0].mxu0 %v7628
    %v7823 = vpop.f32.mrb[0].mxu0
    %v7824 = vadd.f32 0.0, %v7823
    %v7825 = vpop.f32.mrb[0].mxu0
    %v7826 = vadd.f32 0.0, %v7825
    %v7827 = vpop.f32.mrb[0].mxu0
    %v7828 = vpop.f32.mrb[0].mxu0
    %7829 = vdwg.mxu0
    %7830 = vmatprep.subr.bf16.mxu0 0
    %7831 = vmatpush1.bf16.msra.mxu0 %v7743
    %7832 = vmatprep.subr.bf16.mxu0 0
    %7833 = vmatpush1.bf16.msra.mxu0 %v7746
    %7834 = vmatprep.subr.bf16.mxu0 0
    %7835 = vmatpush1.bf16.msra.mxu0 %v7749
    %7836 = vmatprep.subr.bf16.mxu0 0
    %7837 = vmatpush1.bf16.msra.mxu0 %v7752
    %7838 = vmatprep.subr.bf16.mxu0 0
    %7839 = vmatpush1.bf16.msra.mxu0 %v7755
    %7840 = vmatprep.subr.bf16.mxu0 0
    %7841 = vmatpush1.bf16.msra.mxu0 %v7758
    %7842 = vmatprep.subr.bf16.mxu0 0
    %7843 = vmatpush1.bf16.msra.mxu0 %v7761
    %7844 = vmatprep.subr.bf16.mxu0 0
    %7845 = vmatpush1.bf16.msra.mxu0 %v7764
    %7846 = vmatprep.subr.bf16.mxu0 0
    %7847 = vmatpush1.bf16.msra.mxu0 0
    %7848 = vmatprep.subr.bf16.mxu0 0
    %7849 = vmatpush1.bf16.msra.mxu0 0
    %7850 = vmatprep.subr.bf16.mxu0 0
    %7851 = vmatpush1.bf16.msra.mxu0 0
    %7852 = vmatprep.subr.bf16.mxu0 0
    %7853 = vmatpush1.bf16.msra.mxu0 0
    %7854 = vmatprep.subr.bf16.mxu0 0
    %7855 = vmatpush1.bf16.msra.mxu0 0
    %7856 = vmatprep.subr.bf16.mxu0 0
    %7857 = vmatpush1.bf16.msra.mxu0 0
    %7858 = vmatprep.subr.bf16.mxu0 0
    %7859 = vmatpush1.bf16.msra.mxu0 0
    %7860 = vmatprep.subr.bf16.mxu0 0
    %7861 = vmatpush1.bf16.msra.mxu0 0
    %7862 = vmatprep.mubr.bf16.mxu0 0
    %7863 = vmatmul.mubr.bf16.gmra.mrb[0].mxu0 %v7628
    %v7864 = vpop.f32.mrb[0].mxu0
    %v7865 = vadd.f32 0.0, %v7864
    %v7866 = vpop.f32.mrb[0].mxu0
    %v7867 = vpop.f32.mrb[0].mxu0
    %v7868 = vpop.f32.mrb[0].mxu0
    %7869 = vdwg.mxu0
    %v7870 = vadd.f32 %v7625, %v7824
    %v7871 = vxor.u32 %v7870, 2147483648
    %v7872 = vmul.f32 %v7871, 1.442695
    %v7873 = vpow.pop %v7872
    %v7874 = vadd.f32 %v7873, 1.0
    %v7875 = vrcp.pop %v7874
    %v7876 = vmul.f32 1.0, %v7875
    %v7877 = vadd.f32 %v7626, %v7826
    %v7878 = vxor.u32 %v7877, 2147483648
    %v7879 = vmul.f32 %v7878, 1.442695
    %v7880 = vpow.pop %v7879
    %v7881 = vadd.f32 %v7880, 1.0
    %v7882 = vrcp.pop %v7881
    %v7883 = vmul.f32 1.0, %v7882
    %v7884 = vadd.f32 %v7865, %v5747
    %v7885 = vmul.f32 %v7876, %v7884
    %v7886 = vadd.f32 %v7627, %v7885
    %v7887 = vtanh.pop %v7886
    %v7888 = vsub.f32 1.0, %v7883
    %v7889 = vmul.f32 %v7888, %v7887
    %v7890 = vmul.f32 %v7883, %v7623
    %v7891 = vadd.f32 %v7889, %v7890
    %7892 = vst [vmem:[%s2689] sm:$0xff] %v7891
    %v7893 = vld [vmem:[#allocation4 + $0x38] sm:$0xff]
    %v7894 = vld [vmem:[#allocation4] sm:$0xff]
    %v7895 = vsel %vm66, %v7893, %v7894
    %v7896 = vpack.c.bf16 %v7895, %v7895
    %v7897 = vld [vmem:[%s5] sm:$0xf]
    %v7898 = vld [vmem:[%s5 + $0x4] sm:$0xf]
    %v7899 = vld [vmem:[%s5 + $0x8] sm:$0xf]
    %v7900 = vld [vmem:[%s5 + $0xc] sm:$0xf]
    %v7901 = vld [vmem:[%s5 + $0x10] sm:$0xf]
    %v7902 = vld [vmem:[%s5 + $0x14] sm:$0xf]
    %v7903 = vld [vmem:[%s5 + $0x18] sm:$0xf]
    %v7904 = vld [vmem:[%s5 + $0x1c] sm:$0xf]
    %v7905 = vld [vmem:[%s5 + $0x20] sm:$0xf]
    %v7906 = vld [vmem:[%s5 + $0x24] sm:$0xf]
    %v7907 = vld [vmem:[%s5 + $0x28] sm:$0xf]
    %v7908 = vld [vmem:[%s5 + $0x2c] sm:$0xf]
    %v7909 = vld [vmem:[%s5 + $0x30] sm:$0xf]
    %v7910 = vld [vmem:[%s5 + $0x34] sm:$0xf]
    %v7911 = vld [vmem:[%s5 + $0x38] sm:$0xf]
    %v7912 = vld [vmem:[%s5 + $0x3c] sm:$0xf]
    %v7913 = vld [vmem:[%s6] sm:$0x1]
    %v7915 = vlaneseq
    %v7916 = vshrl.u32 %v7915, 7
    %v7917 = vsub.s32 0, %v7916
    %v7918 = vrot.slane %v7913, %v7917
    %v7936 = vunpack.c.l.b16 %v7897
    %v7937 = vunpack.c.l.b16 %v7898
    %v7938 = vunpack.c.l.b16 %v7899
    %v7939 = vunpack.c.l.b16 %v7900
    %v7940 = vunpack.c.l.b16 %v7901
    %v7941 = vunpack.c.l.b16 %v7902
    %v7942 = vunpack.c.l.b16 %v7903
    %v7943 = vunpack.c.l.b16 %v7904
    %v7944 = vunpack.c.l.b16 %v7905
    %v7945 = vunpack.c.l.b16 %v7906
    %v7946 = vunpack.c.l.b16 %v7907
    %v7947 = vunpack.c.l.b16 %v7908
    %v7948 = vunpack.c.l.b16 %v7909
    %v7949 = vunpack.c.l.b16 %v7910
    %v7950 = vunpack.c.l.b16 %v7911
    %v7951 = vunpack.c.l.b16 %v7912
    %v7952 = vpack.c.b16 %v7937, %v7936
    %v7953 = vpack.c.b16 %v7939, %v7938
    %v7954 = vpack.c.b16 %v7941, %v7940
    %v7955 = vpack.c.b16 %v7943, %v7942
    %v7956 = vpack.c.b16 %v7945, %v7944
    %v7957 = vpack.c.b16 %v7947, %v7946
    %v7958 = vpack.c.b16 %v7949, %v7948
    %v7959 = vpack.c.b16 %v7951, %v7950
    %7968 = vmatprep.subr.bf16.mxu0 0
    %7969 = vmatpush1.bf16.msra.mxu0 %v7952
    %7970 = vmatprep.subr.bf16.mxu0 0
    %7971 = vmatpush1.bf16.msra.mxu0 %v7953
    %7972 = vmatprep.subr.bf16.mxu0 0
    %7973 = vmatpush1.bf16.msra.mxu0 %v7954
    %7974 = vmatprep.subr.bf16.mxu0 0
    %7975 = vmatpush1.bf16.msra.mxu0 %v7955
    %7976 = vmatprep.subr.bf16.mxu0 0
    %7977 = vmatpush1.bf16.msra.mxu0 %v7956
    %7978 = vmatprep.subr.bf16.mxu0 0
    %7979 = vmatpush1.bf16.msra.mxu0 %v7957
    %7980 = vmatprep.subr.bf16.mxu0 0
    %7981 = vmatpush1.bf16.msra.mxu0 %v7958
    %7982 = vmatprep.subr.bf16.mxu0 0
    %7983 = vmatpush1.bf16.msra.mxu0 %v7959
    %7984 = vmatprep.subr.bf16.mxu0 0
    %7985 = vmatpush1.bf16.msra.mxu0 0
    %7986 = vmatprep.subr.bf16.mxu0 0
    %7987 = vmatpush1.bf16.msra.mxu0 0
    %7988 = vmatprep.subr.bf16.mxu0 0
    %7989 = vmatpush1.bf16.msra.mxu0 0
    %7990 = vmatprep.subr.bf16.mxu0 0
    %7991 = vmatpush1.bf16.msra.mxu0 0
    %7992 = vmatprep.subr.bf16.mxu0 0
    %7993 = vmatpush1.bf16.msra.mxu0 0
    %7994 = vmatprep.subr.bf16.mxu0 0
    %7995 = vmatpush1.bf16.msra.mxu0 0
    %7996 = vmatprep.subr.bf16.mxu0 0
    %7997 = vmatpush1.bf16.msra.mxu0 0
    %7998 = vmatprep.subr.bf16.mxu0 0
    %7999 = vmatpush1.bf16.msra.mxu0 0
    %8000 = vmatprep.mubr.bf16.mxu0 0
    %8001 = vmatmul.mubr.bf16.gmra.mrb[0].mxu0 %v7896
    %v8002 = vpop.f32.mrb[0].mxu0
    %v8003 = vadd.f32 %v7918, %v8002
    %v8004 = vpop.f32.mrb[0].mxu0
    %v8005 = vpop.f32.mrb[0].mxu0
    %v8006 = vpop.f32.mrb[0].mxu0
    %8007 = vdwg.mxu0
    %v8008 = vxor.u32 %v8003, 2147483648
    %v8009 = vmul.f32 %v8008, 1.442695
    %v8010 = vpow.pop %v8009
    %v8011 = vadd.f32 %v8010, 1.0
    %v8012 = vrcp.pop %v8011
    %v8013 = vmul.f32 1.0, %v8012
    %8014 = vst [vmem:[#allocation10] sm:$0xff] %v8013
    // Predicated region
    $region38: #{fused_forward.1} parent=1 // pred_check
      _
    $region39: #{fused_forward.1} parent=1 // pred_check_branch
      %8016 = sbr.rel (0) target = $region41
    $region40: #{fused_forward.1} parent=1 // pred_region
      %s8018 = ssub.s32 128, 128
      %8019 = vsyncadd [#allocation7], %s8018
      %s8021 = sshll.u32 [#allocation10], 4
      %s8022 = int_to_ptr.vmem [resolvable:$true] %s8021
      %8024 = dma.vmem_to_hbm [thread:$0]  %s8022, 128, %s7, [#allocation7]
    $region41: #{fused_forward.1} parent=1 // pred_fallthru
      _
    // Predicated region
    $region42: #{fused_forward.1} parent=1 // pred_check
      _
    $region43: #{fused_forward.1} parent=1 // pred_check_branch
      %8026 = sbr.rel (0) target = $region45
    $region44: #{fused_forward.1} parent=1 // pred_region
      %8027 = dma.done [#allocation7], 128
    $region45: #{fused_forward.1} parent=1 // pred_fallthru
      _
    %8028 = vsyncpa [#allocation6], 1
    %8029 = vsyncpa [#allocation9], 1
    %8030 = vsyncpa [#allocation7], 1

</llo_original>
